<compile_context>
chip_gen: v5e
topology: v5e:2x2
jax: 0.10.0
libtpu: 0.0.40
codegen_flags: <defaults>
</compile_context>

<pallas_src>
import functools

import jax
import jax.numpy as jnp
from jax import lax
from jax.experimental import pallas as pl
from jax.experimental.pallas import tpu as pltpu


# ----------------------------------------------------------------------------
# helpers
# ----------------------------------------------------------------------------
def _round_up(x, m):
    return (x + m - 1) // m * m


def _softplus(x):
    return jnp.maximum(x, 0.0) + jnp.log1p(jnp.exp(-jnp.abs(x)))


def _inclusive_cumsum_rows(x, n_rows):
    """Inclusive prefix-sum along axis 0 (Hillis-Steele, log2 steps of XLU rolls).

    Replaces the (L,L) mask-matmul cumsum of the previous version with cheap
    sublane rolls + selects on a tiny (Lc, H) tile.
    """
    row = lax.broadcasted_iota(jnp.int32, (n_rows, 1), 0)
    acc = x
    d = 1
    while d < n_rows:
        acc = acc + jnp.where(row >= d, pltpu.roll(acc, d, axis=0), 0.0)
        d *= 2
    return acc


# ----------------------------------------------------------------------------
# Tiled, pipelined matmul (fc_in).  Accumulator scratch + pl.when epilogue.
# Non-divisible dims are zero-padded (never ballooned to the full dimension).
# ----------------------------------------------------------------------------
def _mm_kernel(a_ref, b_ref, o_ref, acc_ref):
    @pl.when(pl.program_id(2) == 0)
    def _():
        acc_ref[...] = jnp.zeros_like(acc_ref)

    acc_ref[...] += jnp.dot(a_ref[...], b_ref[...],
                            preferred_element_type=jnp.float32)

    @pl.when(pl.program_id(2) == pl.num_programs(2) - 1)
    def _():
        o_ref[...] = acc_ref[...].astype(o_ref.dtype)


def tiled_matmul(a, b, tm=256, tk=512, tn=256):
    M, K = a.shape
    K2, N = b.shape
    assert K == K2
    tm = M if M <= tm else tm
    tk = K if K <= tk else tk
    tn = N if N <= tn else tn
    Mp, Kp, Np = _round_up(M, tm), _round_up(K, tk), _round_up(N, tn)
    if (Mp, Kp) != (M, K):
        a = jnp.pad(a, ((0, Mp - M), (0, Kp - K)))
    if (Kp, Np) != (K, N):
        b = jnp.pad(b, ((0, Kp - K), (0, Np - N)))
    out = pl.pallas_call(
        _mm_kernel,
        out_shape=jax.ShapeDtypeStruct((Mp, Np), jnp.float32),
        grid=(Mp // tm, Np // tn, Kp // tk),
        in_specs=[pl.BlockSpec((tm, tk), lambda i, j, k: (i, k)),
                  pl.BlockSpec((tk, tn), lambda i, j, k: (k, j))],
        out_specs=pl.BlockSpec((tm, tn), lambda i, j, k: (i, j)),
        scratch_shapes=[pltpu.VMEM((tm, tn), jnp.float32)],
        compiler_params=pltpu.CompilerParams(
            dimension_semantics=("parallel", "parallel", "arbitrary")),
    )(a, b)
    if (Mp, Np) != (M, N):
        out = out[:M, :N]
    return out


# ----------------------------------------------------------------------------
# One direction of a Mamba2 layer, chunked along the sequence.
#   forward call :  out = base + Mamba2_fwd(x)        (chunks left -> right)
#   reverse call :  out = base + flip(Mamba2(flip(x)))(chunks right -> left, no flips)
# ----------------------------------------------------------------------------
def _mamba_dir_chunk_kernel(x_ref, base_ref,
                            in_proj_ref, conv_w_ref, out_proj_ref,
                            hpar_ref, conv_b_ref, norm_w_ref,
                            o_ref,
                            state_ref, carry_ref,
                            *, reverse, Lc, d_inner, d_state, n_heads,
                            headdim, K, xbc_off, dt_off):
    conv_dim = d_inner + 2 * d_state

    @pl.when(pl.program_id(1) == 0)
    def _():
        state_ref[...] = jnp.zeros_like(state_ref)
        carry_ref[...] = jnp.zeros_like(carry_ref)

    xv = x_ref[...].astype(jnp.float32)                          # (Lc, Dm)

    # ---- in_proj (bf16 MXU, f32 accumulate); z / xBC / dt column blocks start on
    #      128-lane boundaries (weight padded at init) -> lane-aligned slices.
    zxbcdt = jnp.dot(xv.astype(jnp.bfloat16), in_proj_ref[...],
                     preferred_element_type=jnp.float32)
    z = zxbcdt[:, :d_inner]
    xBC = zxbcdt[:, xbc_off:xbc_off + conv_dim]
    dt = zxbcdt[:, dt_off:dt_off + n_heads]                      # (Lc, H)

    # ---- depthwise causal (fwd) / anti-causal (bwd) conv + SiLU via XLU rolls.
    #      `carry_ref` holds the K-1 context rows of the neighbouring chunk in the
    #      sublane positions where the roll wraps (zeros at the sequence boundary).
    row1 = lax.broadcasted_iota(jnp.int32, (Lc, 1), 0)
    P = carry_ref[...]                                           # (Lc, conv_dim)
    cw = conv_w_ref[...]                                         # (K, conv_dim)
    acc = conv_b_ref[...]
    for k in range(K):
        delta = K - 1 - k                                        # tap time-offset
        w_k = cw[k:k + 1, :]
        if delta == 0:
            tap = xBC
        elif not reverse:
            tap = pltpu.roll(jnp.where(row1 >= Lc - delta, P, xBC), delta, axis=0)
        else:
            tap = pltpu.roll(jnp.where(row1 < delta, P, xBC), Lc - delta, axis=0)
        acc = acc + tap * w_k
    acc = acc * jax.nn.sigmoid(acc)                              # SiLU

    # stash context rows for the next chunk in processing order
    if not reverse:
        carry_ref[...] = jnp.where(row1 >= Lc - (K - 1), xBC, 0.0)
    else:
        carry_ref[...] = jnp.where(row1 < (K - 1), xBC, 0.0)

    xs = acc[:, :d_inner]
    Bm = acc[:, d_inner:d_inner + d_state]                       # (Lc, N)
    Cm = acc[:, d_inner + d_state:d_inner + 2 * d_state]         # (Lc, N)

    # ---- dt preprocessing + per-chunk cumsums (prefix for fwd, suffix for bwd)
    hp = hpar_ref[...]                                           # (3, H): A, D, dt_bias
    dtsp = _softplus(dt + hp[2:3, :])                            # (Lc, H)
    csum = _inclusive_cumsum_rows(dtsp, Lc)
    total = jnp.sum(dtsp, axis=0, keepdims=True)                 # (1, H)
    lcum = csum if not reverse else (total - csum + dtsp)

    # ---- masked C.B^T shared across heads (n_groups = 1): ONE tile per chunk
    row = lax.broadcasted_iota(jnp.int32, (Lc, Lc), 0)
    col = lax.broadcasted_iota(jnp.int32, (Lc, Lc), 1)
    keep = (row >= col) if not reverse else (row <= col)
    CBm = jnp.where(keep, lax.dot_general(
        Cm.astype(jnp.bfloat16), Bm.astype(jnp.bfloat16),
        (((1,), (1,)), ((), ())), preferred_element_type=jnp.float32), 0.0)
    CBm_b = CBm.astype(jnp.bfloat16)
    Cm_b = Cm.astype(jnp.bfloat16)
    Bm_b = Bm.astype(jnp.bfloat16)

    u_heads = []
    for h in range(n_heads):                                     # static, small H
        A_h = hp[0:1, h:h + 1]                                   # (1,1)
        D_h = hp[1:2, h:h + 1]
        l_h = lcum[:, h:h + 1]                                   # (Lc,1)
        dt_h = dtsp[:, h:h + 1]
        T_h = total[:, h:h + 1]                                  # (1,1)

        # factored decay: O(Lc) exps per head instead of an (Lc,Lc) exp tile
        da = jnp.exp(A_h * l_h)                                  # (Lc,1) in (0,1]
        db = jnp.exp(-A_h * l_h)                                 # (Lc,1), bounded by exp(|A|T)
        dT = jnp.exp(A_h * T_h)                                  # (1,1) chunk-total decay

        x_h = xs[:, h * headdim:(h + 1) * headdim]               # (Lc, P)
        xdt = (db * dt_h) * x_h                                  # dt + row decay folded into x

        s0 = h * d_state
        S_h = state_ref[s0:s0 + d_state, :]                      # (N, P) carried state
        y = da * (jnp.dot(CBm_b, xdt.astype(jnp.bfloat16),
                          preferred_element_type=jnp.float32)    # intra-chunk
                  + jnp.dot(Cm_b, S_h.astype(jnp.bfloat16),
                            preferred_element_type=jnp.float32)) # inter-chunk
        y = y + D_h * x_h                                        # skip connection

        # carried-state update:  S' = exp(A*T) * (S + B^T @ xdt)
        dS = lax.dot_general(Bm_b, xdt.astype(jnp.bfloat16),
                             (((0,), (0,)), ((), ())),
                             preferred_element_type=jnp.float32)
        state_ref[s0:s0 + d_state, :] = dT * (S_h + dS)

        z_h = z[:, h * headdim:(h + 1) * headdim]
        u_heads.append(y * (z_h * jax.nn.sigmoid(z_h)))          # gate

    # ---- merged-head gated RMSNorm + single K=d_inner out_proj matmul
    u = u_heads[0] if n_heads == 1 else jnp.concatenate(u_heads, axis=1)
    inv = lax.rsqrt(jnp.sum(u * u, axis=-1, keepdims=True) * (1.0 / d_inner) + 1e-5)
    un = (u * inv * norm_w_ref[...]).astype(jnp.bfloat16)
    y_out = jnp.dot(un, out_proj_ref[...], preferred_element_type=jnp.float32)

    o_ref[...] = (base_ref[...].astype(jnp.float32) + y_out).astype(o_ref.dtype)


def _mamba_dir_call(x, base, p, cfg, Lc, nC, reverse):
    Bt, L, Dm = x.shape
    d_inner, d_state = cfg['d_inner'], cfg['d_state']
    H, P, K = cfg['n_heads'], cfg['headdim'], cfg['d_conv']
    conv_dim = d_inner + 2 * d_state
    xbc_off = d_inner
    dt_off = _round_up(d_inner + conv_dim, 128)

    if reverse:
        amap = lambda b, c: (b, nC - 1 - c, 0)
    else:
        amap = lambda b, c: (b, c, 0)
    wmap = lambda b, c: (0, 0)

    kernel = functools.partial(
        _mamba_dir_chunk_kernel, reverse=reverse, Lc=Lc, d_inner=d_inner,
        d_state=d_state, n_heads=H, headdim=P, K=K, xbc_off=xbc_off, dt_off=dt_off)

    weights = [p['in_proj'], p['conv_w'], p['out_proj'],
               p['hpar'], p['conv_b'], p['norm_w']]

    return pl.pallas_call(
        kernel,
        out_shape=jax.ShapeDtypeStruct((Bt, L, Dm), jnp.float32),
        grid=(Bt, nC),
        in_specs=[pl.BlockSpec((None, Lc, Dm), amap),
                  pl.BlockSpec((None, Lc, Dm), amap)] +
                 [pl.BlockSpec(w.shape, wmap) for w in weights],
        out_specs=pl.BlockSpec((None, Lc, Dm), amap),
        scratch_shapes=[pltpu.VMEM((H * d_state, P), jnp.float32),     # SSD state
                        pltpu.VMEM((Lc, conv_dim), jnp.float32)],      # conv carry
        compiler_params=pltpu.CompilerParams(
            dimension_semantics=("parallel", "arbitrary"),
            vmem_limit_bytes=cfg.get('vmem_limit_bytes', 48 * 1024 * 1024)),
    )(x, base, *weights)


def mamba_bidir_layer(x, pf, pb, cfg):
    Bt, L, Dm = x.shape
    Lc = min(cfg.get('chunk_len', 128), L)
    assert L % Lc == 0, 'sequence length must be a multiple of chunk_len'
    nC = L // Lc
    # forward direction: partial = x + mamba_fwd(x)     (chunks ascending)
    partial = _mamba_dir_call(x, x, pf, cfg, Lc, nC, reverse=False)
    # reversed-time direction, chunks descending; fuses the residual: + mamba_bwd
    return _mamba_dir_call(x, partial, pb, cfg, Lc, nC, reverse=True)


# ----------------------------------------------------------------------------
# Fused tail: mean over sequence + fc_out + (Linear+LayerNorm+ReLU)x3 + Linear,
# tiled over batch; the tiny MLP weights stay resident across the grid.
# ----------------------------------------------------------------------------
def _tail_kernel(x_ref, wout_ref,
                 w1, b1, g1, be1, w2, b2, g2, be2, w3, b3, g3, be3, w4, b4,
                 o_ref):
    xm = jnp.mean(x_ref[...].astype(jnp.float32), axis=1)        # (TB, Dm)
    h = jnp.dot(xm.astype(jnp.bfloat16), wout_ref[...],
                preferred_element_type=jnp.float32)              # bias-free fc_out after mean

    def lin_ln_relu(v, w, b, g, be):
        v = jnp.dot(v.astype(jnp.bfloat16), w[...],
                    preferred_element_type=jnp.float32) + b[...]
        mu = jnp.mean(v, axis=-1, keepdims=True)
        var = jnp.mean((v - mu) ** 2, axis=-1, keepdims=True)
        return jnp.maximum((v - mu) * lax.rsqrt(var + 1e-5) * g[...] + be[...], 0.0)

    h = lin_ln_relu(h, w1, b1, g1, be1)
    h = lin_ln_relu(h, w2, b2, g2, be2)
    h = lin_ln_relu(h, w3, b3, g3, be3)
    o_ref[...] = (jnp.dot(h.astype(jnp.bfloat16), w4[...],
                          preferred_element_type=jnp.float32) + b4[...]).astype(o_ref.dtype)


def tail_head(x, w_out, hp, tb=8):
    Bt, L, Dm = x.shape
    nc = hp['w4'].shape[1]
    TB = min(tb, Bt)
    Bp = _round_up(Bt, TB)
    if Bp != Bt:
        x = jnp.pad(x, ((0, Bp - Bt), (0, 0), (0, 0)))
    weights = [w_out, hp['w1'], hp['b1'], hp['g1'], hp['be1'],
               hp['w2'], hp['b2'], hp['g2'], hp['be2'],
               hp['w3'], hp['b3'], hp['g3'], hp['be3'],
               hp['w4'], hp['b4']]
    out = pl.pallas_call(
        _tail_kernel,
        out_shape=jax.ShapeDtypeStruct((Bp, nc), jnp.float32),
        grid=(Bp // TB,),
        in_specs=[pl.BlockSpec((TB, L, Dm), lambda i: (i, 0, 0))] +
                 [pl.BlockSpec(w.shape, lambda i: (0, 0)) for w in weights],
        out_specs=pl.BlockSpec((TB, nc), lambda i: (i, 0)),
        compiler_params=pltpu.CompilerParams(
            dimension_semantics=("parallel",)),
    )(x, *weights)
    return out[:Bt]


# ----------------------------------------------------------------------------
# BaseNdMamba2 forward
# ----------------------------------------------------------------------------
def base_nd_mamba2_forward(tokens, params, cfg):
    Bt, L = tokens.shape
    emb = params['embedding']                                    # (vocab, cin)
    cin = emb.shape[1]

    # nn.Embedding as a gather (XLA); cheaper than a one-hot matmul.
    x = jnp.take(emb, tokens.reshape(-1), axis=0).reshape(Bt, L, cin)

    pad = (64 - cin % 64) % 64                                   # F.pad on channels
    if pad:
        x = jnp.pad(x, ((0, 0), (0, 0), (0, pad)))
    cin_p = cin + pad                                            # fc_in is (cin_p, Dm)

    x = tiled_matmul(x.reshape(Bt * L, cin_p).astype(jnp.bfloat16),
                     params['fc_in']).reshape(Bt, L, cfg['mamba_dim'])

    for i in range(cfg['n_layer']):
        x = mamba_bidir_layer(x, params['fwd'][i], params['bwd'][i], cfg)

    return tail_head(x, params['fc_out'], params['head'])


# ----------------------------------------------------------------------------
# Deterministic synthetic parameters (bf16 matmul weights, f32 small params)
# ----------------------------------------------------------------------------
def init_mamba_params(key, cfg):
    d_model, d_inner = cfg['mamba_dim'], cfg['d_inner']
    d_state, n_heads, d_conv = cfg['d_state'], cfg['n_heads'], cfg['d_conv']
    conv_dim = d_inner + 2 * d_state
    dt_off = _round_up(d_inner + conv_dim, 128)
    w_pad = _round_up(dt_off + n_heads, 128)
    kz, kx, kdt, kc, ko = jax.random.split(key, 5)

    # lane-aligned in_proj column layout: [z | xBC | pad | dt | pad]
    w = jnp.zeros((d_model, w_pad), jnp.float32)
    w = w.at[:, :d_inner].set(0.02 * jax.random.normal(kz, (d_model, d_inner)))
    w = w.at[:, d_inner:d_inner + conv_dim].set(
        0.02 * jax.random.normal(kx, (d_model, conv_dim)))
    w = w.at[:, dt_off:dt_off + n_heads].set(
        0.02 * jax.random.normal(kdt, (d_model, n_heads)))

    A = -jnp.arange(1, n_heads + 1, dtype=jnp.float32)
    D = jnp.ones((n_heads,), jnp.float32)
    dt_bias = jnp.linspace(-2.0, -1.0, n_heads).astype(jnp.float32)

    return dict(
        in_proj=w.astype(jnp.bfloat16),
        # conv_w[K-1] multiplies the current timestep (PyTorch Conv1d w/ left pad).
        conv_w=0.10 * jax.random.normal(kc, (d_conv, conv_dim), jnp.float32),
        conv_b=jnp.zeros((1, conv_dim), jnp.float32),
        hpar=jnp.stack([A, D, dt_bias], axis=0),                 # packed (3, H)
        norm_w=jnp.ones((1, d_inner), jnp.float32),
        out_proj=(0.02 * jax.random.normal(ko, (d_inner, d_model))).astype(jnp.bfloat16),
    )


def init_params(seed, cfg):
    key = jax.random.PRNGKey(seed)
    keys = jax.random.split(key, 10 + 2 * cfg['n_layer'])
    hidden, nc = cfg['hidden_size'], cfg['num_classes']
    cin_p = cfg['cin'] + (64 - cfg['cin'] % 64) % 64
    head = dict(
        w1=(0.02 * jax.random.normal(keys[0], (cfg['cout'], hidden))).astype(jnp.bfloat16),
        b1=jnp.zeros((1, hidden), jnp.float32),
        g1=jnp.ones((1, hidden), jnp.float32),
        be1=jnp.zeros((1, hidden), jnp.float32),
        w2=(0.02 * jax.random.normal(keys[1], (hidden, hidden))).astype(jnp.bfloat16),
        b2=jnp.zeros((1, hidden), jnp.float32),
        g2=jnp.ones((1, hidden), jnp.float32),
        be2=jnp.zeros((1, hidden), jnp.float32),
        w3=(0.02 * jax.random.normal(keys[2], (hidden, hidden))).astype(jnp.bfloat16),
        b3=jnp.zeros((1, hidden), jnp.float32),
        g3=jnp.ones((1, hidden), jnp.float32),
        be3=jnp.zeros((1, hidden), jnp.float32),
        w4=(0.02 * jax.random.normal(keys[3], (hidden, nc))).astype(jnp.bfloat16),
        b4=jnp.zeros((1, nc), jnp.float32),
    )
    return dict(
        embedding=0.02 * jax.random.normal(keys[4], (cfg['vocab_size'], cfg['cin']),
                                           jnp.float32),
        fc_in=(0.02 * jax.random.normal(keys[5], (cin_p, cfg['mamba_dim']))
               ).astype(jnp.bfloat16),
        fc_out=(0.02 * jax.random.normal(keys[6], (cfg['mamba_dim'], cfg['cout']))
                ).astype(jnp.bfloat16),
        head=head,
        fwd=[init_mamba_params(keys[10 + 2 * i], cfg) for i in range(cfg['n_layer'])],
        bwd=[init_mamba_params(keys[11 + 2 * i], cfg) for i in range(cfg['n_layer'])],
    )


# ----------------------------------------------------------------------------
if __name__ == "__main__":
    cfg = dict(
        cin=64, cout=16, mamba_dim=64, vocab_size=32, hidden_size=32,
        num_classes=5, n_layer=1,
        d_state=16, d_conv=4, expand=2, headdim=64,
        # SSD chunk length: <=256 on v5e, up to ~512 on v6e with a raised VMEM limit,
        # keep live tiles under ~48 MiB on v7x (64 MiB physical VMEM).
        chunk_len=64,
        vmem_limit_bytes=48 * 1024 * 1024,
    )
    assert cfg['mamba_dim'] % 64 == 0, 'mamba_dim must be a multiple of 64'
    cfg['d_inner'] = cfg['expand'] * cfg['mamba_dim']
    assert cfg['d_inner'] % cfg['headdim'] == 0
    cfg['n_heads'] = cfg['d_inner'] // cfg['headdim']

    params = init_params(0, cfg)

    B, L = 2, 128                       # 2 chunks of 64 -> exercises the carried state
    tokens = jax.random.randint(jax.random.PRNGKey(0), (B, L), 0,
                                cfg['vocab_size'], dtype=jnp.int32)

    fwd = jax.jit(lambda t, p: base_nd_mamba2_forward(t, p, cfg))
    out = jax.block_until_ready(fwd(tokens, params))
    assert out.shape == (B, cfg['num_classes'])
    assert bool(jnp.all(jnp.isfinite(out)))
    print("KERNEL_OK")
</pallas_src>

<mosaic_0001>
module attributes {stable_mosaic.version = 11 : i64} {
  func.func @_mm_kernel(%arg0: i32, %arg1: i32, %arg2: i32, %arg3: memref<256x64xbf16, #tpu.memory_space<vmem>>, %arg4: memref<64x64xbf16, #tpu.memory_space<vmem>>, %arg5: memref<256x64xf32, #tpu.memory_space<vmem>>, %arg6: memref<256x64xf32, #tpu.memory_space<vmem>>) attributes {dimension_semantics = [#tpu.dimension_semantics<parallel>, #tpu.dimension_semantics<parallel>, #tpu.dimension_semantics<arbitrary>], iteration_bounds = array<i64: 1, 1, 1>, scalar_prefetch = 0 : i64, scratch_operands = 1 : i64, tpu.core_type = #tpu.core_type<tc>, window_params = [{transform_indices = @transform_0, window_bounds = array<i64: 256, 64>}, {transform_indices = @transform_1, window_bounds = array<i64: 64, 64>}, {transform_indices = @transform_2, window_bounds = array<i64: 256, 64>}]} {
    %c0_i32 = arith.constant 0 : i32
    %0 = arith.cmpi eq, %arg2, %c0_i32 : i32
    %1 = arith.extui %0 : i1 to i32
    %c0_i32_0 = arith.constant 0 : i32
    %2 = arith.cmpi ne, %1, %c0_i32_0 : i32
    scf.if %2 {
      %cst_10 = arith.constant 0.000000e+00 : f32
      %12 = vector.broadcast %cst_10 : f32 to vector<256x64xf32>
      %c0_11 = arith.constant 0 : index
      %c0_12 = arith.constant 0 : index
      %13 = vector.load %arg6[%c0_11, %c0_12] : memref<256x64xf32, #tpu.memory_space<vmem>>, vector<256x64xf32>
      tpu.vector_store %arg6[%c0_11, %c0_12], %12 {strides = array<i32>} : memref<256x64xf32, #tpu.memory_space<vmem>>, vector<256x64xf32>,
    } else {
    }
    %c0 = arith.constant 0 : index
    %c0_1 = arith.constant 0 : index
    %3 = vector.load %arg6[%c0, %c0_1] : memref<256x64xf32, #tpu.memory_space<vmem>>, vector<256x64xf32>
    %c0_2 = arith.constant 0 : index
    %c0_3 = arith.constant 0 : index
    %4 = vector.load %arg3[%c0_2, %c0_3] : memref<256x64xbf16, #tpu.memory_space<vmem>>, vector<256x64xbf16>
    %c0_4 = arith.constant 0 : index
    %c0_5 = arith.constant 0 : index
    %5 = vector.load %arg4[%c0_4, %c0_5] : memref<64x64xbf16, #tpu.memory_space<vmem>>, vector<64x64xbf16>
    %cst = arith.constant dense<0.000000e+00> : vector<256x64xf32>
    %6 = tpu.matmul %4, %5, %cst {dimension_numbers = #tpu.dot_dimension_numbers<[1], [0], [0], [1], [0, 0, 1, 1], [], []>} : vector<256x64xbf16>, vector<64x64xbf16>, vector<256x64xf32> -> vector<256x64xf32>
    %7 = arith.addf %3, %6 : vector<256x64xf32>
    %c0_6 = arith.constant 0 : index
    %c0_7 = arith.constant 0 : index
    %8 = vector.load %arg6[%c0_6, %c0_7] : memref<256x64xf32, #tpu.memory_space<vmem>>, vector<256x64xf32>
    tpu.vector_store %arg6[%c0_6, %c0_7], %7 {strides = array<i32>} : memref<256x64xf32, #tpu.memory_space<vmem>>, vector<256x64xf32>,
    %c0_i32_8 = arith.constant 0 : i32
    %9 = arith.cmpi eq, %arg2, %c0_i32_8 : i32
    %10 = arith.extui %9 : i1 to i32
    %c0_i32_9 = arith.constant 0 : i32
    %11 = arith.cmpi ne, %10, %c0_i32_9 : i32
    scf.if %11 {
      %c0_10 = arith.constant 0 : index
      %c0_11 = arith.constant 0 : index
      %12 = vector.load %arg6[%c0_10, %c0_11] : memref<256x64xf32, #tpu.memory_space<vmem>>, vector<256x64xf32>
      %c0_12 = arith.constant 0 : index
      %c0_13 = arith.constant 0 : index
      %13 = vector.load %arg5[%c0_12, %c0_13] : memref<256x64xf32, #tpu.memory_space<vmem>>, vector<256x64xf32>
      tpu.vector_store %arg5[%c0_12, %c0_13], %12 {strides = array<i32>} : memref<256x64xf32, #tpu.memory_space<vmem>>, vector<256x64xf32>,
    } else {
    }
    return
  }
  func.func @transform_0(%arg0: i32, %arg1: i32, %arg2: i32) -> (i32, i32) {
    %c0_i32 = arith.constant 0 : i32
    return %arg0, %arg2 : i32, i32
  }
  func.func @transform_1(%arg0: i32, %arg1: i32, %arg2: i32) -> (i32, i32) {
    %c0_i32 = arith.constant 0 : i32
    return %arg2, %arg1 : i32, i32
  }
  func.func @transform_2(%arg0: i32, %arg1: i32, %arg2: i32) -> (i32, i32) {
    %c0_i32 = arith.constant 0 : i32
    return %arg0, %arg1 : i32, i32
  }
}

module attributes {stable_mosaic.version = 11 : i64} {
  func.func @_mamba_dir_chunk_kernel(%arg0: i32, %arg1: i32, %arg2: memref<1x64x64xf32, #tpu.memory_space<vmem>>, %arg3: memref<1x64x64xf32, #tpu.memory_space<vmem>>, %arg4: memref<64x512xbf16, #tpu.memory_space<vmem>>, %arg5: memref<4x160xf32, #tpu.memory_space<vmem>>, %arg6: memref<128x64xbf16, #tpu.memory_space<vmem>>, %arg7: memref<3x2xf32, #tpu.memory_space<vmem>>, %arg8: memref<1x160xf32, #tpu.memory_space<vmem>>, %arg9: memref<1x128xf32, #tpu.memory_space<vmem>>, %arg10: memref<1x64x64xf32, #tpu.memory_space<vmem>>, %arg11: memref<32x64xf32, #tpu.memory_space<vmem>>, %arg12: memref<64x160xf32, #tpu.memory_space<vmem>>) attributes {dimension_semantics = [#tpu.dimension_semantics<parallel>, #tpu.dimension_semantics<arbitrary>], iteration_bounds = array<i64: 2, 2>, scalar_prefetch = 0 : i64, scratch_operands = 2 : i64, tpu.core_type = #tpu.core_type<tc>, window_params = [{transform_indices = @transform_0, window_bounds = array<i64: 1, 64, 64>}, {transform_indices = @transform_1, window_bounds = array<i64: 1, 64, 64>}, {pipeline_mode = #tpu.pipeline_mode<synchronous>, transform_indices = @transform_2, window_bounds = array<i64: 64, 512>}, {pipeline_mode = #tpu.pipeline_mode<synchronous>, transform_indices = @transform_3, window_bounds = array<i64: 4, 160>}, {pipeline_mode = #tpu.pipeline_mode<synchronous>, transform_indices = @transform_4, window_bounds = array<i64: 128, 64>}, {pipeline_mode = #tpu.pipeline_mode<synchronous>, transform_indices = @transform_5, window_bounds = array<i64: 3, 2>}, {pipeline_mode = #tpu.pipeline_mode<synchronous>, transform_indices = @transform_6, window_bounds = array<i64: 1, 160>}, {pipeline_mode = #tpu.pipeline_mode<synchronous>, transform_indices = @transform_7, window_bounds = array<i64: 1, 128>}, {transform_indices = @transform_8, window_bounds = array<i64: 1, 64, 64>}]} {
    %c0_i32 = arith.constant 0 : i32
    %0 = arith.cmpi eq, %arg1, %c0_i32 : i32
    %1 = arith.extui %0 : i1 to i32
    %c0_i32_0 = arith.constant 0 : i32
    %2 = arith.cmpi ne, %1, %c0_i32_0 : i32
    scf.if %2 {
      %cst_68 = arith.constant 0.000000e+00 : f32
      %254 = vector.broadcast %cst_68 : f32 to vector<32x64xf32>
      %c0_69 = arith.constant 0 : index
      %c0_70 = arith.constant 0 : index
      %255 = vector.load %arg11[%c0_69, %c0_70] : memref<32x64xf32, #tpu.memory_space<vmem>>, vector<32x64xf32>
      tpu.vector_store %arg11[%c0_69, %c0_70], %254 {strides = array<i32>} : memref<32x64xf32, #tpu.memory_space<vmem>>, vector<32x64xf32>,
      %cst_71 = arith.constant 0.000000e+00 : f32
      %256 = vector.broadcast %cst_71 : f32 to vector<64x160xf32>
      %c0_72 = arith.constant 0 : index
      %c0_73 = arith.constant 0 : index
      %257 = vector.load %arg12[%c0_72, %c0_73] : memref<64x160xf32, #tpu.memory_space<vmem>>, vector<64x160xf32>
      tpu.vector_store %arg12[%c0_72, %c0_73], %256 {strides = array<i32>} : memref<64x160xf32, #tpu.memory_space<vmem>>, vector<64x160xf32>,
    } else {
    }
    %c0 = arith.constant 0 : index
    %c0_1 = arith.constant 0 : index
    %c0_2 = arith.constant 0 : index
    %3 = vector.load %arg2[%c0, %c0_1, %c0_2] : memref<1x64x64xf32, #tpu.memory_space<vmem>>, vector<1x64x64xf32>
    %4 = vector.shape_cast %3 : vector<1x64x64xf32> to vector<64x64xf32>
    %5 = arith.truncf %4 : vector<64x64xf32> to vector<64x64xbf16>
    %c0_3 = arith.constant 0 : index
    %c0_4 = arith.constant 0 : index
    %6 = vector.load %arg4[%c0_3, %c0_4] : memref<64x512xbf16, #tpu.memory_space<vmem>>, vector<64x512xbf16>
    %cst = arith.constant dense<0.000000e+00> : vector<64x512xf32>
    %7 = tpu.matmul %5, %6, %cst {dimension_numbers = #tpu.dot_dimension_numbers<[1], [0], [0], [1], [0, 0, 1, 1], [], []>} : vector<64x64xbf16>, vector<64x512xbf16>, vector<64x512xf32> -> vector<64x512xf32>
    %8 = vector.extract_strided_slice %7 {offsets = [0, 0], sizes = [64, 128], strides = [1, 1]} : vector<64x512xf32> to vector<64x128xf32>
    %9 = vector.extract_strided_slice %7 {offsets = [0, 128], sizes = [64, 160], strides = [1, 1]} : vector<64x512xf32> to vector<64x160xf32>
    %10 = vector.extract_strided_slice %7 {offsets = [0, 384], sizes = [64, 2], strides = [1, 1]} : vector<64x512xf32> to vector<64x2xf32>
    %11 = tpu.iota {dimensions = array<i32: 0>} : vector<64x1xi32>
    %c0_5 = arith.constant 0 : index
    %c0_6 = arith.constant 0 : index
    %12 = vector.load %arg12[%c0_5, %c0_6] : memref<64x160xf32, #tpu.memory_space<vmem>>, vector<64x160xf32>
    %c0_7 = arith.constant 0 : index
    %c0_8 = arith.constant 0 : index
    %13 = vector.load %arg5[%c0_7, %c0_8] : memref<4x160xf32, #tpu.memory_space<vmem>>, vector<4x160xf32>
    %c0_9 = arith.constant 0 : index
    %c0_10 = arith.constant 0 : index
    %14 = vector.load %arg8[%c0_9, %c0_10] : memref<1x160xf32, #tpu.memory_space<vmem>>, vector<1x160xf32>
    %15 = vector.extract_strided_slice %13 {offsets = [0, 0], sizes = [1, 160], strides = [1, 1]} : vector<4x160xf32> to vector<1x160xf32>
    %c3_i32 = arith.constant 3 : i32
    %16 = vector.broadcast %c3_i32 : i32 to vector<64x1xi32>
    %17 = arith.cmpi slt, %11, %16 : vector<64x1xi32>
    %18 = vector.shape_cast %17 : vector<64x1xi1> to vector<64x1xi1>
    %19 = vector.broadcast %18 : vector<64x1xi1> to vector<64x160xi1>
    %20 = arith.select %19, %12, %9 : vector<64x160xi1>, vector<64x160xf32>
    %c61_i32 = arith.constant 61 : i32
    %21 = tpu.dynamic_rotate %20 by %c61_i32 dim 0 : vector<64x160xf32>, i32 -> vector<64x160xf32>
    %22 = vector.broadcast %15 : vector<1x160xf32> to vector<64x160xf32>
    %23 = arith.mulf %21, %22 : vector<64x160xf32>
    %24 = vector.broadcast %14 : vector<1x160xf32> to vector<64x160xf32>
    %25 = arith.addf %24, %23 : vector<64x160xf32>
    %26 = vector.extract_strided_slice %13 {offsets = [1, 0], sizes = [1, 160], strides = [1, 1]} : vector<4x160xf32> to vector<1x160xf32>
    %c2_i32 = arith.constant 2 : i32
    %27 = vector.broadcast %c2_i32 : i32 to vector<64x1xi32>
    %28 = arith.cmpi slt, %11, %27 : vector<64x1xi32>
    %29 = vector.shape_cast %28 : vector<64x1xi1> to vector<64x1xi1>
    %30 = vector.broadcast %29 : vector<64x1xi1> to vector<64x160xi1>
    %31 = arith.select %30, %12, %9 : vector<64x160xi1>, vector<64x160xf32>
    %c62_i32 = arith.constant 62 : i32
    %32 = tpu.dynamic_rotate %31 by %c62_i32 dim 0 : vector<64x160xf32>, i32 -> vector<64x160xf32>
    %33 = vector.broadcast %26 : vector<1x160xf32> to vector<64x160xf32>
    %34 = arith.mulf %32, %33 : vector<64x160xf32>
    %35 = arith.addf %25, %34 : vector<64x160xf32>
    %36 = vector.extract_strided_slice %13 {offsets = [2, 0], sizes = [1, 160], strides = [1, 1]} : vector<4x160xf32> to vector<1x160xf32>
    %c1_i32 = arith.constant 1 : i32
    %37 = vector.broadcast %c1_i32 : i32 to vector<64x1xi32>
    %38 = arith.cmpi slt, %11, %37 : vector<64x1xi32>
    %39 = vector.shape_cast %38 : vector<64x1xi1> to vector<64x1xi1>
    %40 = vector.broadcast %39 : vector<64x1xi1> to vector<64x160xi1>
    %41 = arith.select %40, %12, %9 : vector<64x160xi1>, vector<64x160xf32>
    %c63_i32 = arith.constant 63 : i32
    %42 = tpu.dynamic_rotate %41 by %c63_i32 dim 0 : vector<64x160xf32>, i32 -> vector<64x160xf32>
    %43 = vector.broadcast %36 : vector<1x160xf32> to vector<64x160xf32>
    %44 = arith.mulf %42, %43 : vector<64x160xf32>
    %45 = arith.addf %35, %44 : vector<64x160xf32>
    %46 = vector.extract_strided_slice %13 {offsets = [3, 0], sizes = [1, 160], strides = [1, 1]} : vector<4x160xf32> to vector<1x160xf32>
    %47 = vector.broadcast %46 : vector<1x160xf32> to vector<64x160xf32>
    %48 = arith.mulf %9, %47 : vector<64x160xf32>
    %49 = arith.addf %45, %48 : vector<64x160xf32>
    %50 = arith.negf %49 : vector<64x160xf32>
    %51 = math.exp %50 : vector<64x160xf32>
    %cst_11 = arith.constant 1.000000e+00 : f32
    %52 = vector.broadcast %cst_11 : f32 to vector<64x160xf32>
    %53 = arith.addf %52, %51 : vector<64x160xf32>
    %54 = arith.divf %52, %53 : vector<64x160xf32>
    %55 = arith.mulf %49, %54 : vector<64x160xf32>
    %c3_i32_12 = arith.constant 3 : i32
    %56 = vector.broadcast %c3_i32_12 : i32 to vector<64x1xi32>
    %57 = arith.cmpi slt, %11, %56 : vector<64x1xi32>
    %cst_13 = arith.constant 0.000000e+00 : f32
    %58 = vector.shape_cast %57 : vector<64x1xi1> to vector<64x1xi1>
    %59 = vector.broadcast %58 : vector<64x1xi1> to vector<64x160xi1>
    %60 = vector.broadcast %cst_13 : f32 to vector<64x160xf32>
    %61 = arith.select %59, %9, %60 : vector<64x160xi1>, vector<64x160xf32>
    %c0_14 = arith.constant 0 : index
    %c0_15 = arith.constant 0 : index
    %62 = vector.load %arg12[%c0_14, %c0_15] : memref<64x160xf32, #tpu.memory_space<vmem>>, vector<64x160xf32>
    tpu.vector_store %arg12[%c0_14, %c0_15], %61 {strides = array<i32>} : memref<64x160xf32, #tpu.memory_space<vmem>>, vector<64x160xf32>,
    %63 = vector.extract_strided_slice %55 {offsets = [0, 0], sizes = [64, 128], strides = [1, 1]} : vector<64x160xf32> to vector<64x128xf32>
    %64 = vector.extract_strided_slice %55 {offsets = [0, 128], sizes = [64, 16], strides = [1, 1]} : vector<64x160xf32> to vector<64x16xf32>
    %65 = vector.extract_strided_slice %55 {offsets = [0, 144], sizes = [64, 16], strides = [1, 1]} : vector<64x160xf32> to vector<64x16xf32>
    %c0_16 = arith.constant 0 : index
    %c0_17 = arith.constant 0 : index
    %66 = vector.load %arg7[%c0_16, %c0_17] : memref<3x2xf32, #tpu.memory_space<vmem>>, vector<3x2xf32>
    %67 = vector.extract_strided_slice %66 {offsets = [2, 0], sizes = [1, 2], strides = [1, 1]} : vector<3x2xf32> to vector<1x2xf32>
    %68 = vector.broadcast %67 : vector<1x2xf32> to vector<64x2xf32>
    %69 = arith.addf %10, %68 : vector<64x2xf32>
    %cst_18 = arith.constant 0.000000e+00 : f32
    %70 = vector.broadcast %cst_18 : f32 to vector<64x2xf32>
    %71 = arith.maximumf %69, %70 : vector<64x2xf32>
    %72 = math.absf %69 : vector<64x2xf32>
    %cst_19 = arith.constant 0.000000e+00 : f32
    %73 = vector.broadcast %cst_19 : f32 to vector<64x2xf32>
    %74 = arith.subf %73, %72 : vector<64x2xf32>
    %75 = math.exp %74 : vector<64x2xf32>
    %76 = math.log1p %75 : vector<64x2xf32>
    %77 = arith.addf %71, %76 : vector<64x2xf32>
    %78 = tpu.iota {dimensions = array<i32: 0>} : vector<64x1xi32>
    %c1_i32_20 = arith.constant 1 : i32
    %79 = vector.broadcast %c1_i32_20 : i32 to vector<64x1xi32>
    %80 = arith.cmpi sge, %78, %79 : vector<64x1xi32>
    %c1_i32_21 = arith.constant 1 : i32
    %81 = tpu.dynamic_rotate %77 by %c1_i32_21 dim 0 : vector<64x2xf32>, i32 -> vector<64x2xf32>
    %cst_22 = arith.constant 0.000000e+00 : f32
    %82 = vector.shape_cast %80 : vector<64x1xi1> to vector<64x1xi1>
    %83 = vector.broadcast %82 : vector<64x1xi1> to vector<64x2xi1>
    %84 = vector.broadcast %cst_22 : f32 to vector<64x2xf32>
    %85 = arith.select %83, %81, %84 : vector<64x2xi1>, vector<64x2xf32>
    %86 = arith.addf %77, %85 : vector<64x2xf32>
    %c2_i32_23 = arith.constant 2 : i32
    %87 = vector.broadcast %c2_i32_23 : i32 to vector<64x1xi32>
    %88 = arith.cmpi sge, %78, %87 : vector<64x1xi32>
    %c2_i32_24 = arith.constant 2 : i32
    %89 = tpu.dynamic_rotate %86 by %c2_i32_24 dim 0 : vector<64x2xf32>, i32 -> vector<64x2xf32>
    %cst_25 = arith.constant 0.000000e+00 : f32
    %90 = vector.shape_cast %88 : vector<64x1xi1> to vector<64x1xi1>
    %91 = vector.broadcast %90 : vector<64x1xi1> to vector<64x2xi1>
    %92 = vector.broadcast %cst_25 : f32 to vector<64x2xf32>
    %93 = arith.select %91, %89, %92 : vector<64x2xi1>, vector<64x2xf32>
    %94 = arith.addf %86, %93 : vector<64x2xf32>
    %c4_i32 = arith.constant 4 : i32
    %95 = vector.broadcast %c4_i32 : i32 to vector<64x1xi32>
    %96 = arith.cmpi sge, %78, %95 : vector<64x1xi32>
    %c4_i32_26 = arith.constant 4 : i32
    %97 = tpu.dynamic_rotate %94 by %c4_i32_26 dim 0 : vector<64x2xf32>, i32 -> vector<64x2xf32>
    %cst_27 = arith.constant 0.000000e+00 : f32
    %98 = vector.shape_cast %96 : vector<64x1xi1> to vector<64x1xi1>
    %99 = vector.broadcast %98 : vector<64x1xi1> to vector<64x2xi1>
    %100 = vector.broadcast %cst_27 : f32 to vector<64x2xf32>
    %101 = arith.select %99, %97, %100 : vector<64x2xi1>, vector<64x2xf32>
    %102 = arith.addf %94, %101 : vector<64x2xf32>
    %c8_i32 = arith.constant 8 : i32
    %103 = vector.broadcast %c8_i32 : i32 to vector<64x1xi32>
    %104 = arith.cmpi sge, %78, %103 : vector<64x1xi32>
    %c8_i32_28 = arith.constant 8 : i32
    %105 = tpu.dynamic_rotate %102 by %c8_i32_28 dim 0 : vector<64x2xf32>, i32 -> vector<64x2xf32>
    %cst_29 = arith.constant 0.000000e+00 : f32
    %106 = vector.shape_cast %104 : vector<64x1xi1> to vector<64x1xi1>
    %107 = vector.broadcast %106 : vector<64x1xi1> to vector<64x2xi1>
    %108 = vector.broadcast %cst_29 : f32 to vector<64x2xf32>
    %109 = arith.select %107, %105, %108 : vector<64x2xi1>, vector<64x2xf32>
    %110 = arith.addf %102, %109 : vector<64x2xf32>
    %c16_i32 = arith.constant 16 : i32
    %111 = vector.broadcast %c16_i32 : i32 to vector<64x1xi32>
    %112 = arith.cmpi sge, %78, %111 : vector<64x1xi32>
    %c16_i32_30 = arith.constant 16 : i32
    %113 = tpu.dynamic_rotate %110 by %c16_i32_30 dim 0 : vector<64x2xf32>, i32 -> vector<64x2xf32>
    %cst_31 = arith.constant 0.000000e+00 : f32
    %114 = vector.shape_cast %112 : vector<64x1xi1> to vector<64x1xi1>
    %115 = vector.broadcast %114 : vector<64x1xi1> to vector<64x2xi1>
    %116 = vector.broadcast %cst_31 : f32 to vector<64x2xf32>
    %117 = arith.select %115, %113, %116 : vector<64x2xi1>, vector<64x2xf32>
    %118 = arith.addf %110, %117 : vector<64x2xf32>
    %c32_i32 = arith.constant 32 : i32
    %119 = vector.broadcast %c32_i32 : i32 to vector<64x1xi32>
    %120 = arith.cmpi sge, %78, %119 : vector<64x1xi32>
    %c32_i32_32 = arith.constant 32 : i32
    %121 = tpu.dynamic_rotate %118 by %c32_i32_32 dim 0 : vector<64x2xf32>, i32 -> vector<64x2xf32>
    %cst_33 = arith.constant 0.000000e+00 : f32
    %122 = vector.shape_cast %120 : vector<64x1xi1> to vector<64x1xi1>
    %123 = vector.broadcast %122 : vector<64x1xi1> to vector<64x2xi1>
    %124 = vector.broadcast %cst_33 : f32 to vector<64x2xf32>
    %125 = arith.select %123, %121, %124 : vector<64x2xi1>, vector<64x2xf32>
    %126 = arith.addf %118, %125 : vector<64x2xf32>
    %cst_34 = arith.constant dense<0.000000e+00> : vector<2xf32>
    %127 = vector.multi_reduction <add>, %77, %cst_34 [0] : vector<64x2xf32> to vector<2xf32>
    %128 = vector.shape_cast %127 : vector<2xf32> to vector<1x2xf32>
    %129 = vector.broadcast %128 : vector<1x2xf32> to vector<64x2xf32>
    %130 = arith.subf %129, %126 : vector<64x2xf32>
    %131 = arith.addf %130, %77 : vector<64x2xf32>
    %132 = tpu.iota {dimensions = array<i32: 0>} : vector<64x64xi32>
    %133 = tpu.iota {dimensions = array<i32: 1>} : vector<64x64xi32>
    %134 = arith.cmpi sle, %132, %133 : vector<64x64xi32>
    %135 = arith.truncf %65 : vector<64x16xf32> to vector<64x16xbf16>
    %136 = arith.truncf %64 : vector<64x16xf32> to vector<64x16xbf16>
    %cst_35 = arith.constant dense<0.000000e+00> : vector<64x64xf32>
    %137 = tpu.matmul %135, %136, %cst_35 {dimension_numbers = #tpu.dot_dimension_numbers<[1], [1], [0], [0], [0, 0, 1, 0], [], []>} : vector<64x16xbf16>, vector<64x16xbf16>, vector<64x64xf32> -> vector<64x64xf32>
    %cst_36 = arith.constant 0.000000e+00 : f32
    %138 = vector.broadcast %cst_36 : f32 to vector<64x64xf32>
    %139 = arith.select %134, %137, %138 : vector<64x64xi1>, vector<64x64xf32>
    %140 = arith.truncf %139 : vector<64x64xf32> to vector<64x64xbf16>
    %141 = arith.truncf %65 : vector<64x16xf32> to vector<64x16xbf16>
    %142 = arith.truncf %64 : vector<64x16xf32> to vector<64x16xbf16>
    %143 = vector.extract_strided_slice %66 {offsets = [0, 0], sizes = [1, 1], strides = [1, 1]} : vector<3x2xf32> to vector<1x1xf32>
    %144 = vector.extract_strided_slice %66 {offsets = [1, 0], sizes = [1, 1], strides = [1, 1]} : vector<3x2xf32> to vector<1x1xf32>
    %145 = vector.extract_strided_slice %131 {offsets = [0, 0], sizes = [64, 1], strides = [1, 1]} : vector<64x2xf32> to vector<64x1xf32>
    %146 = vector.extract_strided_slice %77 {offsets = [0, 0], sizes = [64, 1], strides = [1, 1]} : vector<64x2xf32> to vector<64x1xf32>
    %147 = vector.extract_strided_slice %128 {offsets = [0, 0], sizes = [1, 1], strides = [1, 1]} : vector<1x2xf32> to vector<1x1xf32>
    %148 = vector.broadcast %143 : vector<1x1xf32> to vector<64x1xf32>
    %149 = arith.mulf %148, %145 : vector<64x1xf32>
    %150 = math.exp %149 : vector<64x1xf32>
    %cst_37 = arith.constant 0.000000e+00 : f32
    %151 = vector.broadcast %cst_37 : f32 to vector<1x1xf32>
    %152 = arith.subf %151, %143 : vector<1x1xf32>
    %153 = vector.broadcast %152 : vector<1x1xf32> to vector<64x1xf32>
    %154 = arith.mulf %153, %145 : vector<64x1xf32>
    %155 = math.exp %154 : vector<64x1xf32>
    %156 = arith.mulf %143, %147 : vector<1x1xf32>
    %157 = math.exp %156 : vector<1x1xf32>
    %158 = vector.extract_strided_slice %63 {offsets = [0, 0], sizes = [64, 64], strides = [1, 1]} : vector<64x128xf32> to vector<64x64xf32>
    %159 = arith.mulf %155, %146 : vector<64x1xf32>
    %160 = vector.broadcast %159 : vector<64x1xf32> to vector<64x64xf32>
    %161 = arith.mulf %160, %158 : vector<64x64xf32>
    %c0_38 = arith.constant 0 : index
    %c0_39 = arith.constant 0 : index
    %162 = vector.load %arg11[%c0_38, %c0_39] : memref<32x64xf32, #tpu.memory_space<vmem>>, vector<16x64xf32>
    %163 = arith.truncf %161 : vector<64x64xf32> to vector<64x64xbf16>
    %cst_40 = arith.constant dense<0.000000e+00> : vector<64x64xf32>
    %164 = tpu.matmul %140, %163, %cst_40 {dimension_numbers = #tpu.dot_dimension_numbers<[1], [0], [0], [1], [0, 0, 1, 1], [], []>} : vector<64x64xbf16>, vector<64x64xbf16>, vector<64x64xf32> -> vector<64x64xf32>
    %165 = arith.truncf %162 : vector<16x64xf32> to vector<16x64xbf16>
    %cst_41 = arith.constant dense<0.000000e+00> : vector<64x64xf32>
    %166 = tpu.matmul %141, %165, %cst_41 {dimension_numbers = #tpu.dot_dimension_numbers<[1], [0], [0], [1], [0, 0, 1, 1], [], []>} : vector<64x16xbf16>, vector<16x64xbf16>, vector<64x64xf32> -> vector<64x64xf32>
    %167 = arith.addf %164, %166 : vector<64x64xf32>
    %168 = vector.broadcast %150 : vector<64x1xf32> to vector<64x64xf32>
    %169 = arith.mulf %168, %167 : vector<64x64xf32>
    %170 = vector.broadcast %144 : vector<1x1xf32> to vector<64x64xf32>
    %171 = arith.mulf %170, %158 : vector<64x64xf32>
    %172 = arith.addf %169, %171 : vector<64x64xf32>
    %173 = arith.truncf %161 : vector<64x64xf32> to vector<64x64xbf16>
    %cst_42 = arith.constant dense<0.000000e+00> : vector<16x64xf32>
    %174 = tpu.matmul %142, %173, %cst_42 {dimension_numbers = #tpu.dot_dimension_numbers<[0], [0], [1], [1], [0, 1, 1, 1], [], []>} : vector<64x16xbf16>, vector<64x64xbf16>, vector<16x64xf32> -> vector<16x64xf32>
    %175 = arith.addf %162, %174 : vector<16x64xf32>
    %176 = vector.broadcast %157 : vector<1x1xf32> to vector<16x64xf32>
    %177 = arith.mulf %176, %175 : vector<16x64xf32>
    %c0_43 = arith.constant 0 : index
    %c0_44 = arith.constant 0 : index
    %178 = vector.load %arg11[%c0_43, %c0_44] : memref<32x64xf32, #tpu.memory_space<vmem>>, vector<16x64xf32>
    tpu.vector_store %arg11[%c0_43, %c0_44], %177 {strides = array<i32>} : memref<32x64xf32, #tpu.memory_space<vmem>>, vector<16x64xf32>,
    %179 = vector.extract_strided_slice %8 {offsets = [0, 0], sizes = [64, 64], strides = [1, 1]} : vector<64x128xf32> to vector<64x64xf32>
    %180 = arith.negf %179 : vector<64x64xf32>
    %181 = math.exp %180 : vector<64x64xf32>
    %cst_45 = arith.constant 1.000000e+00 : f32
    %182 = vector.broadcast %cst_45 : f32 to vector<64x64xf32>
    %183 = arith.addf %182, %181 : vector<64x64xf32>
    %184 = arith.divf %182, %183 : vector<64x64xf32>
    %185 = arith.mulf %179, %184 : vector<64x64xf32>
    %186 = arith.mulf %172, %185 : vector<64x64xf32>
    %187 = vector.extract_strided_slice %66 {offsets = [0, 1], sizes = [1, 1], strides = [1, 1]} : vector<3x2xf32> to vector<1x1xf32>
    %188 = vector.extract_strided_slice %66 {offsets = [1, 1], sizes = [1, 1], strides = [1, 1]} : vector<3x2xf32> to vector<1x1xf32>
    %189 = vector.extract_strided_slice %131 {offsets = [0, 1], sizes = [64, 1], strides = [1, 1]} : vector<64x2xf32> to vector<64x1xf32>
    %190 = vector.extract_strided_slice %77 {offsets = [0, 1], sizes = [64, 1], strides = [1, 1]} : vector<64x2xf32> to vector<64x1xf32>
    %191 = vector.extract_strided_slice %128 {offsets = [0, 1], sizes = [1, 1], strides = [1, 1]} : vector<1x2xf32> to vector<1x1xf32>
    %192 = vector.broadcast %187 : vector<1x1xf32> to vector<64x1xf32>
    %193 = arith.mulf %192, %189 : vector<64x1xf32>
    %194 = math.exp %193 : vector<64x1xf32>
    %cst_46 = arith.constant 0.000000e+00 : f32
    %195 = vector.broadcast %cst_46 : f32 to vector<1x1xf32>
    %196 = arith.subf %195, %187 : vector<1x1xf32>
    %197 = vector.broadcast %196 : vector<1x1xf32> to vector<64x1xf32>
    %198 = arith.mulf %197, %189 : vector<64x1xf32>
    %199 = math.exp %198 : vector<64x1xf32>
    %200 = arith.mulf %187, %191 : vector<1x1xf32>
    %201 = math.exp %200 : vector<1x1xf32>
    %202 = vector.extract_strided_slice %63 {offsets = [0, 64], sizes = [64, 64], strides = [1, 1]} : vector<64x128xf32> to vector<64x64xf32>
    %203 = arith.mulf %199, %190 : vector<64x1xf32>
    %204 = vector.broadcast %203 : vector<64x1xf32> to vector<64x64xf32>
    %205 = arith.mulf %204, %202 : vector<64x64xf32>
    %c16 = arith.constant 16 : index
    %c0_47 = arith.constant 0 : index
    %206 = vector.load %arg11[%c16, %c0_47] : memref<32x64xf32, #tpu.memory_space<vmem>>, vector<16x64xf32>
    %207 = arith.truncf %205 : vector<64x64xf32> to vector<64x64xbf16>
    %cst_48 = arith.constant dense<0.000000e+00> : vector<64x64xf32>
    %208 = tpu.matmul %140, %207, %cst_48 {dimension_numbers = #tpu.dot_dimension_numbers<[1], [0], [0], [1], [0, 0, 1, 1], [], []>} : vector<64x64xbf16>, vector<64x64xbf16>, vector<64x64xf32> -> vector<64x64xf32>
    %209 = arith.truncf %206 : vector<16x64xf32> to vector<16x64xbf16>
    %cst_49 = arith.constant dense<0.000000e+00> : vector<64x64xf32>
    %210 = tpu.matmul %141, %209, %cst_49 {dimension_numbers = #tpu.dot_dimension_numbers<[1], [0], [0], [1], [0, 0, 1, 1], [], []>} : vector<64x16xbf16>, vector<16x64xbf16>, vector<64x64xf32> -> vector<64x64xf32>
    %211 = arith.addf %208, %210 : vector<64x64xf32>
    %212 = vector.broadcast %194 : vector<64x1xf32> to vector<64x64xf32>
    %213 = arith.mulf %212, %211 : vector<64x64xf32>
    %214 = vector.broadcast %188 : vector<1x1xf32> to vector<64x64xf32>
    %215 = arith.mulf %214, %202 : vector<64x64xf32>
    %216 = arith.addf %213, %215 : vector<64x64xf32>
    %217 = arith.truncf %205 : vector<64x64xf32> to vector<64x64xbf16>
    %cst_50 = arith.constant dense<0.000000e+00> : vector<16x64xf32>
    %218 = tpu.matmul %142, %217, %cst_50 {dimension_numbers = #tpu.dot_dimension_numbers<[0], [0], [1], [1], [0, 1, 1, 1], [], []>} : vector<64x16xbf16>, vector<64x64xbf16>, vector<16x64xf32> -> vector<16x64xf32>
    %219 = arith.addf %206, %218 : vector<16x64xf32>
    %220 = vector.broadcast %201 : vector<1x1xf32> to vector<16x64xf32>
    %221 = arith.mulf %220, %219 : vector<16x64xf32>
    %c16_51 = arith.constant 16 : index
    %c0_52 = arith.constant 0 : index
    %222 = vector.load %arg11[%c16_51, %c0_52] : memref<32x64xf32, #tpu.memory_space<vmem>>, vector<16x64xf32>
    tpu.vector_store %arg11[%c16_51, %c0_52], %221 {strides = array<i32>} : memref<32x64xf32, #tpu.memory_space<vmem>>, vector<16x64xf32>,
    %223 = vector.extract_strided_slice %8 {offsets = [0, 64], sizes = [64, 64], strides = [1, 1]} : vector<64x128xf32> to vector<64x64xf32>
    %224 = arith.negf %223 : vector<64x64xf32>
    %225 = math.exp %224 : vector<64x64xf32>
    %cst_53 = arith.constant 1.000000e+00 : f32
    %226 = vector.broadcast %cst_53 : f32 to vector<64x64xf32>
    %227 = arith.addf %226, %225 : vector<64x64xf32>
    %228 = arith.divf %226, %227 : vector<64x64xf32>
    %229 = arith.mulf %223, %228 : vector<64x64xf32>
    %230 = arith.mulf %216, %229 : vector<64x64xf32>
    %231 = tpu.concatenate %186, %230 in 1 : vector<64x64xf32>, vector<64x64xf32> -> vector<64x128xf32>
    %232 = arith.mulf %231, %231 : vector<64x128xf32>
    %cst_54 = arith.constant dense<0.000000e+00> : vector<64xf32>
    %233 = vector.multi_reduction <add>, %232, %cst_54 [1] : vector<64x128xf32> to vector<64xf32>
    %234 = vector.shape_cast %233 : vector<64xf32> to vector<64x1xf32>
    %cst_55 = arith.constant 7.812500e-03 : f32
    %235 = vector.broadcast %cst_55 : f32 to vector<64x1xf32>
    %236 = arith.mulf %234, %235 : vector<64x1xf32>
    %cst_56 = arith.constant 9.99999974E-6 : f32
    %237 = vector.broadcast %cst_56 : f32 to vector<64x1xf32>
    %238 = arith.addf %236, %237 : vector<64x1xf32>
    %239 = math.rsqrt %238 : vector<64x1xf32>
    %240 = vector.broadcast %239 : vector<64x1xf32> to vector<64x128xf32>
    %241 = arith.mulf %231, %240 : vector<64x128xf32>
    %c0_57 = arith.constant 0 : index
    %c0_58 = arith.constant 0 : index
    %242 = vector.load %arg9[%c0_57, %c0_58] : memref<1x128xf32, #tpu.memory_space<vmem>>, vector<1x128xf32>
    %243 = vector.broadcast %242 : vector<1x128xf32> to vector<64x128xf32>
    %244 = arith.mulf %241, %243 : vector<64x128xf32>
    %245 = arith.truncf %244 : vector<64x128xf32> to vector<64x128xbf16>
    %c0_59 = arith.constant 0 : index
    %c0_60 = arith.constant 0 : index
    %246 = vector.load %arg6[%c0_59, %c0_60] : memref<128x64xbf16, #tpu.memory_space<vmem>>, vector<128x64xbf16>
    %cst_61 = arith.constant dense<0.000000e+00> : vector<64x64xf32>
    %247 = tpu.matmul %245, %246, %cst_61 {dimension_numbers = #tpu.dot_dimension_numbers<[1], [0], [0], [1], [0, 0, 1, 1], [], []>} : vector<64x128xbf16>, vector<128x64xbf16>, vector<64x64xf32> -> vector<64x64xf32>
    %c0_62 = arith.constant 0 : index
    %c0_63 = arith.constant 0 : index
    %c0_64 = arith.constant 0 : index
    %248 = vector.load %arg3[%c0_62, %c0_63, %c0_64] : memref<1x64x64xf32, #tpu.memory_space<vmem>>, vector<1x64x64xf32>
    %249 = vector.shape_cast %248 : vector<1x64x64xf32> to vector<64x64xf32>
    %250 = arith.addf %249, %247 : vector<64x64xf32>
    %c0_65 = arith.constant 0 : index
    %c0_66 = arith.constant 0 : index
    %c0_67 = arith.constant 0 : index
    %251 = vector.load %arg10[%c0_65, %c0_66, %c0_67] : memref<1x64x64xf32, #tpu.memory_space<vmem>>, vector<1x64x64xf32>
    %252 = vector.shape_cast %251 : vector<1x64x64xf32> to vector<64x64xf32>
    %253 = vector.shape_cast %250 : vector<64x64xf32> to vector<1x64x64xf32>
    tpu.vector_store %arg10[%c0_65, %c0_66, %c0_67], %253 {strides = array<i32>} : memref<1x64x64xf32, #tpu.memory_space<vmem>>, vector<1x64x64xf32>,
    return
  }
  func.func @transform_0(%arg0: i32, %arg1: i32) -> (i32, i32, i32) {
    %c1_i32 = arith.constant 1 : i32
    %0 = arith.subi %c1_i32, %arg1 : i32
    %c0_i32 = arith.constant 0 : i32
    %c0_i32_0 = arith.constant 0 : i32
    return %arg0, %0, %c0_i32 : i32, i32, i32
  }
  func.func @transform_1(%arg0: i32, %arg1: i32) -> (i32, i32, i32) {
    %c1_i32 = arith.constant 1 : i32
    %0 = arith.subi %c1_i32, %arg1 : i32
    %c0_i32 = arith.constant 0 : i32
    %c0_i32_0 = arith.constant 0 : i32
    return %arg0, %0, %c0_i32 : i32, i32, i32
  }
  func.func @transform_2(%arg0: i32, %arg1: i32) -> (i32, i32) {
    %c0_i32 = arith.constant 0 : i32
    %c0_i32_0 = arith.constant 0 : i32
    %c0_i32_1 = arith.constant 0 : i32
    return %c0_i32, %c0_i32_0 : i32, i32
  }
  func.func @transform_3(%arg0: i32, %arg1: i32) -> (i32, i32) {
    %c0_i32 = arith.constant 0 : i32
    %c0_i32_0 = arith.constant 0 : i32
    %c0_i32_1 = arith.constant 0 : i32
    return %c0_i32, %c0_i32_0 : i32, i32
  }
  func.func @transform_4(%arg0: i32, %arg1: i32) -> (i32, i32) {
    %c0_i32 = arith.constant 0 : i32
    %c0_i32_0 = arith.constant 0 : i32
    %c0_i32_1 = arith.constant 0 : i32
    return %c0_i32, %c0_i32_0 : i32, i32
  }
  func.func @transform_5(%arg0: i32, %arg1: i32) -> (i32, i32) {
    %c0_i32 = arith.constant 0 : i32
    %c0_i32_0 = arith.constant 0 : i32
    %c0_i32_1 = arith.constant 0 : i32
    return %c0_i32, %c0_i32_0 : i32, i32
  }
  func.func @transform_6(%arg0: i32, %arg1: i32) -> (i32, i32) {
    %c0_i32 = arith.constant 0 : i32
    %c0_i32_0 = arith.constant 0 : i32
    %c0_i32_1 = arith.constant 0 : i32
    return %c0_i32, %c0_i32_0 : i32, i32
  }
  func.func @transform_7(%arg0: i32, %arg1: i32) -> (i32, i32) {
    %c0_i32 = arith.constant 0 : i32
    %c0_i32_0 = arith.constant 0 : i32
    %c0_i32_1 = arith.constant 0 : i32
    return %c0_i32, %c0_i32_0 : i32, i32
  }
  func.func @transform_8(%arg0: i32, %arg1: i32) -> (i32, i32, i32) {
    %c1_i32 = arith.constant 1 : i32
    %0 = arith.subi %c1_i32, %arg1 : i32
    %c0_i32 = arith.constant 0 : i32
    %c0_i32_0 = arith.constant 0 : i32
    return %arg0, %0, %c0_i32 : i32, i32, i32
  }
}

module attributes {stable_mosaic.version = 11 : i64} {
  func.func @_mamba_dir_chunk_kernel(%arg0: i32, %arg1: i32, %arg2: memref<1x64x64xf32, #tpu.memory_space<vmem>>, %arg3: memref<1x64x64xf32, #tpu.memory_space<vmem>>, %arg4: memref<64x512xbf16, #tpu.memory_space<vmem>>, %arg5: memref<4x160xf32, #tpu.memory_space<vmem>>, %arg6: memref<128x64xbf16, #tpu.memory_space<vmem>>, %arg7: memref<3x2xf32, #tpu.memory_space<vmem>>, %arg8: memref<1x160xf32, #tpu.memory_space<vmem>>, %arg9: memref<1x128xf32, #tpu.memory_space<vmem>>, %arg10: memref<1x64x64xf32, #tpu.memory_space<vmem>>, %arg11: memref<32x64xf32, #tpu.memory_space<vmem>>, %arg12: memref<64x160xf32, #tpu.memory_space<vmem>>) attributes {dimension_semantics = [#tpu.dimension_semantics<parallel>, #tpu.dimension_semantics<arbitrary>], iteration_bounds = array<i64: 2, 2>, scalar_prefetch = 0 : i64, scratch_operands = 2 : i64, tpu.core_type = #tpu.core_type<tc>, window_params = [{transform_indices = @transform_0, window_bounds = array<i64: 1, 64, 64>}, {transform_indices = @transform_1, window_bounds = array<i64: 1, 64, 64>}, {pipeline_mode = #tpu.pipeline_mode<synchronous>, transform_indices = @transform_2, window_bounds = array<i64: 64, 512>}, {pipeline_mode = #tpu.pipeline_mode<synchronous>, transform_indices = @transform_3, window_bounds = array<i64: 4, 160>}, {pipeline_mode = #tpu.pipeline_mode<synchronous>, transform_indices = @transform_4, window_bounds = array<i64: 128, 64>}, {pipeline_mode = #tpu.pipeline_mode<synchronous>, transform_indices = @transform_5, window_bounds = array<i64: 3, 2>}, {pipeline_mode = #tpu.pipeline_mode<synchronous>, transform_indices = @transform_6, window_bounds = array<i64: 1, 160>}, {pipeline_mode = #tpu.pipeline_mode<synchronous>, transform_indices = @transform_7, window_bounds = array<i64: 1, 128>}, {transform_indices = @transform_8, window_bounds = array<i64: 1, 64, 64>}]} {
    %c0_i32 = arith.constant 0 : i32
    %0 = arith.cmpi eq, %arg1, %c0_i32 : i32
    %1 = arith.extui %0 : i1 to i32
    %c0_i32_0 = arith.constant 0 : i32
    %2 = arith.cmpi ne, %1, %c0_i32_0 : i32
    scf.if %2 {
      %cst_68 = arith.constant 0.000000e+00 : f32
      %251 = vector.broadcast %cst_68 : f32 to vector<32x64xf32>
      %c0_69 = arith.constant 0 : index
      %c0_70 = arith.constant 0 : index
      %252 = vector.load %arg11[%c0_69, %c0_70] : memref<32x64xf32, #tpu.memory_space<vmem>>, vector<32x64xf32>
      tpu.vector_store %arg11[%c0_69, %c0_70], %251 {strides = array<i32>} : memref<32x64xf32, #tpu.memory_space<vmem>>, vector<32x64xf32>,
      %cst_71 = arith.constant 0.000000e+00 : f32
      %253 = vector.broadcast %cst_71 : f32 to vector<64x160xf32>
      %c0_72 = arith.constant 0 : index
      %c0_73 = arith.constant 0 : index
      %254 = vector.load %arg12[%c0_72, %c0_73] : memref<64x160xf32, #tpu.memory_space<vmem>>, vector<64x160xf32>
      tpu.vector_store %arg12[%c0_72, %c0_73], %253 {strides = array<i32>} : memref<64x160xf32, #tpu.memory_space<vmem>>, vector<64x160xf32>,
    } else {
    }
    %c0 = arith.constant 0 : index
    %c0_1 = arith.constant 0 : index
    %c0_2 = arith.constant 0 : index
    %3 = vector.load %arg2[%c0, %c0_1, %c0_2] : memref<1x64x64xf32, #tpu.memory_space<vmem>>, vector<1x64x64xf32>
    %4 = vector.shape_cast %3 : vector<1x64x64xf32> to vector<64x64xf32>
    %5 = arith.truncf %4 : vector<64x64xf32> to vector<64x64xbf16>
    %c0_3 = arith.constant 0 : index
    %c0_4 = arith.constant 0 : index
    %6 = vector.load %arg4[%c0_3, %c0_4] : memref<64x512xbf16, #tpu.memory_space<vmem>>, vector<64x512xbf16>
    %cst = arith.constant dense<0.000000e+00> : vector<64x512xf32>
    %7 = tpu.matmul %5, %6, %cst {dimension_numbers = #tpu.dot_dimension_numbers<[1], [0], [0], [1], [0, 0, 1, 1], [], []>} : vector<64x64xbf16>, vector<64x512xbf16>, vector<64x512xf32> -> vector<64x512xf32>
    %8 = vector.extract_strided_slice %7 {offsets = [0, 0], sizes = [64, 128], strides = [1, 1]} : vector<64x512xf32> to vector<64x128xf32>
    %9 = vector.extract_strided_slice %7 {offsets = [0, 128], sizes = [64, 160], strides = [1, 1]} : vector<64x512xf32> to vector<64x160xf32>
    %10 = vector.extract_strided_slice %7 {offsets = [0, 384], sizes = [64, 2], strides = [1, 1]} : vector<64x512xf32> to vector<64x2xf32>
    %11 = tpu.iota {dimensions = array<i32: 0>} : vector<64x1xi32>
    %c0_5 = arith.constant 0 : index
    %c0_6 = arith.constant 0 : index
    %12 = vector.load %arg12[%c0_5, %c0_6] : memref<64x160xf32, #tpu.memory_space<vmem>>, vector<64x160xf32>
    %c0_7 = arith.constant 0 : index
    %c0_8 = arith.constant 0 : index
    %13 = vector.load %arg5[%c0_7, %c0_8] : memref<4x160xf32, #tpu.memory_space<vmem>>, vector<4x160xf32>
    %c0_9 = arith.constant 0 : index
    %c0_10 = arith.constant 0 : index
    %14 = vector.load %arg8[%c0_9, %c0_10] : memref<1x160xf32, #tpu.memory_space<vmem>>, vector<1x160xf32>
    %15 = vector.extract_strided_slice %13 {offsets = [0, 0], sizes = [1, 160], strides = [1, 1]} : vector<4x160xf32> to vector<1x160xf32>
    %c61_i32 = arith.constant 61 : i32
    %16 = vector.broadcast %c61_i32 : i32 to vector<64x1xi32>
    %17 = arith.cmpi sge, %11, %16 : vector<64x1xi32>
    %18 = vector.shape_cast %17 : vector<64x1xi1> to vector<64x1xi1>
    %19 = vector.broadcast %18 : vector<64x1xi1> to vector<64x160xi1>
    %20 = arith.select %19, %12, %9 : vector<64x160xi1>, vector<64x160xf32>
    %c3_i32 = arith.constant 3 : i32
    %21 = tpu.dynamic_rotate %20 by %c3_i32 dim 0 : vector<64x160xf32>, i32 -> vector<64x160xf32>
    %22 = vector.broadcast %15 : vector<1x160xf32> to vector<64x160xf32>
    %23 = arith.mulf %21, %22 : vector<64x160xf32>
    %24 = vector.broadcast %14 : vector<1x160xf32> to vector<64x160xf32>
    %25 = arith.addf %24, %23 : vector<64x160xf32>
    %26 = vector.extract_strided_slice %13 {offsets = [1, 0], sizes = [1, 160], strides = [1, 1]} : vector<4x160xf32> to vector<1x160xf32>
    %c62_i32 = arith.constant 62 : i32
    %27 = vector.broadcast %c62_i32 : i32 to vector<64x1xi32>
    %28 = arith.cmpi sge, %11, %27 : vector<64x1xi32>
    %29 = vector.shape_cast %28 : vector<64x1xi1> to vector<64x1xi1>
    %30 = vector.broadcast %29 : vector<64x1xi1> to vector<64x160xi1>
    %31 = arith.select %30, %12, %9 : vector<64x160xi1>, vector<64x160xf32>
    %c2_i32 = arith.constant 2 : i32
    %32 = tpu.dynamic_rotate %31 by %c2_i32 dim 0 : vector<64x160xf32>, i32 -> vector<64x160xf32>
    %33 = vector.broadcast %26 : vector<1x160xf32> to vector<64x160xf32>
    %34 = arith.mulf %32, %33 : vector<64x160xf32>
    %35 = arith.addf %25, %34 : vector<64x160xf32>
    %36 = vector.extract_strided_slice %13 {offsets = [2, 0], sizes = [1, 160], strides = [1, 1]} : vector<4x160xf32> to vector<1x160xf32>
    %c63_i32 = arith.constant 63 : i32
    %37 = vector.broadcast %c63_i32 : i32 to vector<64x1xi32>
    %38 = arith.cmpi sge, %11, %37 : vector<64x1xi32>
    %39 = vector.shape_cast %38 : vector<64x1xi1> to vector<64x1xi1>
    %40 = vector.broadcast %39 : vector<64x1xi1> to vector<64x160xi1>
    %41 = arith.select %40, %12, %9 : vector<64x160xi1>, vector<64x160xf32>
    %c1_i32 = arith.constant 1 : i32
    %42 = tpu.dynamic_rotate %41 by %c1_i32 dim 0 : vector<64x160xf32>, i32 -> vector<64x160xf32>
    %43 = vector.broadcast %36 : vector<1x160xf32> to vector<64x160xf32>
    %44 = arith.mulf %42, %43 : vector<64x160xf32>
    %45 = arith.addf %35, %44 : vector<64x160xf32>
    %46 = vector.extract_strided_slice %13 {offsets = [3, 0], sizes = [1, 160], strides = [1, 1]} : vector<4x160xf32> to vector<1x160xf32>
    %47 = vector.broadcast %46 : vector<1x160xf32> to vector<64x160xf32>
    %48 = arith.mulf %9, %47 : vector<64x160xf32>
    %49 = arith.addf %45, %48 : vector<64x160xf32>
    %50 = arith.negf %49 : vector<64x160xf32>
    %51 = math.exp %50 : vector<64x160xf32>
    %cst_11 = arith.constant 1.000000e+00 : f32
    %52 = vector.broadcast %cst_11 : f32 to vector<64x160xf32>
    %53 = arith.addf %52, %51 : vector<64x160xf32>
    %54 = arith.divf %52, %53 : vector<64x160xf32>
    %55 = arith.mulf %49, %54 : vector<64x160xf32>
    %c61_i32_12 = arith.constant 61 : i32
    %56 = vector.broadcast %c61_i32_12 : i32 to vector<64x1xi32>
    %57 = arith.cmpi sge, %11, %56 : vector<64x1xi32>
    %cst_13 = arith.constant 0.000000e+00 : f32
    %58 = vector.shape_cast %57 : vector<64x1xi1> to vector<64x1xi1>
    %59 = vector.broadcast %58 : vector<64x1xi1> to vector<64x160xi1>
    %60 = vector.broadcast %cst_13 : f32 to vector<64x160xf32>
    %61 = arith.select %59, %9, %60 : vector<64x160xi1>, vector<64x160xf32>
    %c0_14 = arith.constant 0 : index
    %c0_15 = arith.constant 0 : index
    %62 = vector.load %arg12[%c0_14, %c0_15] : memref<64x160xf32, #tpu.memory_space<vmem>>, vector<64x160xf32>
    tpu.vector_store %arg12[%c0_14, %c0_15], %61 {strides = array<i32>} : memref<64x160xf32, #tpu.memory_space<vmem>>, vector<64x160xf32>,
    %63 = vector.extract_strided_slice %55 {offsets = [0, 0], sizes = [64, 128], strides = [1, 1]} : vector<64x160xf32> to vector<64x128xf32>
    %64 = vector.extract_strided_slice %55 {offsets = [0, 128], sizes = [64, 16], strides = [1, 1]} : vector<64x160xf32> to vector<64x16xf32>
    %65 = vector.extract_strided_slice %55 {offsets = [0, 144], sizes = [64, 16], strides = [1, 1]} : vector<64x160xf32> to vector<64x16xf32>
    %c0_16 = arith.constant 0 : index
    %c0_17 = arith.constant 0 : index
    %66 = vector.load %arg7[%c0_16, %c0_17] : memref<3x2xf32, #tpu.memory_space<vmem>>, vector<3x2xf32>
    %67 = vector.extract_strided_slice %66 {offsets = [2, 0], sizes = [1, 2], strides = [1, 1]} : vector<3x2xf32> to vector<1x2xf32>
    %68 = vector.broadcast %67 : vector<1x2xf32> to vector<64x2xf32>
    %69 = arith.addf %10, %68 : vector<64x2xf32>
    %cst_18 = arith.constant 0.000000e+00 : f32
    %70 = vector.broadcast %cst_18 : f32 to vector<64x2xf32>
    %71 = arith.maximumf %69, %70 : vector<64x2xf32>
    %72 = math.absf %69 : vector<64x2xf32>
    %cst_19 = arith.constant 0.000000e+00 : f32
    %73 = vector.broadcast %cst_19 : f32 to vector<64x2xf32>
    %74 = arith.subf %73, %72 : vector<64x2xf32>
    %75 = math.exp %74 : vector<64x2xf32>
    %76 = math.log1p %75 : vector<64x2xf32>
    %77 = arith.addf %71, %76 : vector<64x2xf32>
    %78 = tpu.iota {dimensions = array<i32: 0>} : vector<64x1xi32>
    %c1_i32_20 = arith.constant 1 : i32
    %79 = vector.broadcast %c1_i32_20 : i32 to vector<64x1xi32>
    %80 = arith.cmpi sge, %78, %79 : vector<64x1xi32>
    %c1_i32_21 = arith.constant 1 : i32
    %81 = tpu.dynamic_rotate %77 by %c1_i32_21 dim 0 : vector<64x2xf32>, i32 -> vector<64x2xf32>
    %cst_22 = arith.constant 0.000000e+00 : f32
    %82 = vector.shape_cast %80 : vector<64x1xi1> to vector<64x1xi1>
    %83 = vector.broadcast %82 : vector<64x1xi1> to vector<64x2xi1>
    %84 = vector.broadcast %cst_22 : f32 to vector<64x2xf32>
    %85 = arith.select %83, %81, %84 : vector<64x2xi1>, vector<64x2xf32>
    %86 = arith.addf %77, %85 : vector<64x2xf32>
    %c2_i32_23 = arith.constant 2 : i32
    %87 = vector.broadcast %c2_i32_23 : i32 to vector<64x1xi32>
    %88 = arith.cmpi sge, %78, %87 : vector<64x1xi32>
    %c2_i32_24 = arith.constant 2 : i32
    %89 = tpu.dynamic_rotate %86 by %c2_i32_24 dim 0 : vector<64x2xf32>, i32 -> vector<64x2xf32>
    %cst_25 = arith.constant 0.000000e+00 : f32
    %90 = vector.shape_cast %88 : vector<64x1xi1> to vector<64x1xi1>
    %91 = vector.broadcast %90 : vector<64x1xi1> to vector<64x2xi1>
    %92 = vector.broadcast %cst_25 : f32 to vector<64x2xf32>
    %93 = arith.select %91, %89, %92 : vector<64x2xi1>, vector<64x2xf32>
    %94 = arith.addf %86, %93 : vector<64x2xf32>
    %c4_i32 = arith.constant 4 : i32
    %95 = vector.broadcast %c4_i32 : i32 to vector<64x1xi32>
    %96 = arith.cmpi sge, %78, %95 : vector<64x1xi32>
    %c4_i32_26 = arith.constant 4 : i32
    %97 = tpu.dynamic_rotate %94 by %c4_i32_26 dim 0 : vector<64x2xf32>, i32 -> vector<64x2xf32>
    %cst_27 = arith.constant 0.000000e+00 : f32
    %98 = vector.shape_cast %96 : vector<64x1xi1> to vector<64x1xi1>
    %99 = vector.broadcast %98 : vector<64x1xi1> to vector<64x2xi1>
    %100 = vector.broadcast %cst_27 : f32 to vector<64x2xf32>
    %101 = arith.select %99, %97, %100 : vector<64x2xi1>, vector<64x2xf32>
    %102 = arith.addf %94, %101 : vector<64x2xf32>
    %c8_i32 = arith.constant 8 : i32
    %103 = vector.broadcast %c8_i32 : i32 to vector<64x1xi32>
    %104 = arith.cmpi sge, %78, %103 : vector<64x1xi32>
    %c8_i32_28 = arith.constant 8 : i32
    %105 = tpu.dynamic_rotate %102 by %c8_i32_28 dim 0 : vector<64x2xf32>, i32 -> vector<64x2xf32>
    %cst_29 = arith.constant 0.000000e+00 : f32
    %106 = vector.shape_cast %104 : vector<64x1xi1> to vector<64x1xi1>
    %107 = vector.broadcast %106 : vector<64x1xi1> to vector<64x2xi1>
    %108 = vector.broadcast %cst_29 : f32 to vector<64x2xf32>
    %109 = arith.select %107, %105, %108 : vector<64x2xi1>, vector<64x2xf32>
    %110 = arith.addf %102, %109 : vector<64x2xf32>
    %c16_i32 = arith.constant 16 : i32
    %111 = vector.broadcast %c16_i32 : i32 to vector<64x1xi32>
    %112 = arith.cmpi sge, %78, %111 : vector<64x1xi32>
    %c16_i32_30 = arith.constant 16 : i32
    %113 = tpu.dynamic_rotate %110 by %c16_i32_30 dim 0 : vector<64x2xf32>, i32 -> vector<64x2xf32>
    %cst_31 = arith.constant 0.000000e+00 : f32
    %114 = vector.shape_cast %112 : vector<64x1xi1> to vector<64x1xi1>
    %115 = vector.broadcast %114 : vector<64x1xi1> to vector<64x2xi1>
    %116 = vector.broadcast %cst_31 : f32 to vector<64x2xf32>
    %117 = arith.select %115, %113, %116 : vector<64x2xi1>, vector<64x2xf32>
    %118 = arith.addf %110, %117 : vector<64x2xf32>
    %c32_i32 = arith.constant 32 : i32
    %119 = vector.broadcast %c32_i32 : i32 to vector<64x1xi32>
    %120 = arith.cmpi sge, %78, %119 : vector<64x1xi32>
    %c32_i32_32 = arith.constant 32 : i32
    %121 = tpu.dynamic_rotate %118 by %c32_i32_32 dim 0 : vector<64x2xf32>, i32 -> vector<64x2xf32>
    %cst_33 = arith.constant 0.000000e+00 : f32
    %122 = vector.shape_cast %120 : vector<64x1xi1> to vector<64x1xi1>
    %123 = vector.broadcast %122 : vector<64x1xi1> to vector<64x2xi1>
    %124 = vector.broadcast %cst_33 : f32 to vector<64x2xf32>
    %125 = arith.select %123, %121, %124 : vector<64x2xi1>, vector<64x2xf32>
    %126 = arith.addf %118, %125 : vector<64x2xf32>
    %cst_34 = arith.constant dense<0.000000e+00> : vector<2xf32>
    %127 = vector.multi_reduction <add>, %77, %cst_34 [0] : vector<64x2xf32> to vector<2xf32>
    %128 = vector.shape_cast %127 : vector<2xf32> to vector<1x2xf32>
    %129 = tpu.iota {dimensions = array<i32: 0>} : vector<64x64xi32>
    %130 = tpu.iota {dimensions = array<i32: 1>} : vector<64x64xi32>
    %131 = arith.cmpi sge, %129, %130 : vector<64x64xi32>
    %132 = arith.truncf %65 : vector<64x16xf32> to vector<64x16xbf16>
    %133 = arith.truncf %64 : vector<64x16xf32> to vector<64x16xbf16>
    %cst_35 = arith.constant dense<0.000000e+00> : vector<64x64xf32>
    %134 = tpu.matmul %132, %133, %cst_35 {dimension_numbers = #tpu.dot_dimension_numbers<[1], [1], [0], [0], [0, 0, 1, 0], [], []>} : vector<64x16xbf16>, vector<64x16xbf16>, vector<64x64xf32> -> vector<64x64xf32>
    %cst_36 = arith.constant 0.000000e+00 : f32
    %135 = vector.broadcast %cst_36 : f32 to vector<64x64xf32>
    %136 = arith.select %131, %134, %135 : vector<64x64xi1>, vector<64x64xf32>
    %137 = arith.truncf %136 : vector<64x64xf32> to vector<64x64xbf16>
    %138 = arith.truncf %65 : vector<64x16xf32> to vector<64x16xbf16>
    %139 = arith.truncf %64 : vector<64x16xf32> to vector<64x16xbf16>
    %140 = vector.extract_strided_slice %66 {offsets = [0, 0], sizes = [1, 1], strides = [1, 1]} : vector<3x2xf32> to vector<1x1xf32>
    %141 = vector.extract_strided_slice %66 {offsets = [1, 0], sizes = [1, 1], strides = [1, 1]} : vector<3x2xf32> to vector<1x1xf32>
    %142 = vector.extract_strided_slice %126 {offsets = [0, 0], sizes = [64, 1], strides = [1, 1]} : vector<64x2xf32> to vector<64x1xf32>
    %143 = vector.extract_strided_slice %77 {offsets = [0, 0], sizes = [64, 1], strides = [1, 1]} : vector<64x2xf32> to vector<64x1xf32>
    %144 = vector.extract_strided_slice %128 {offsets = [0, 0], sizes = [1, 1], strides = [1, 1]} : vector<1x2xf32> to vector<1x1xf32>
    %145 = vector.broadcast %140 : vector<1x1xf32> to vector<64x1xf32>
    %146 = arith.mulf %145, %142 : vector<64x1xf32>
    %147 = math.exp %146 : vector<64x1xf32>
    %cst_37 = arith.constant 0.000000e+00 : f32
    %148 = vector.broadcast %cst_37 : f32 to vector<1x1xf32>
    %149 = arith.subf %148, %140 : vector<1x1xf32>
    %150 = vector.broadcast %149 : vector<1x1xf32> to vector<64x1xf32>
    %151 = arith.mulf %150, %142 : vector<64x1xf32>
    %152 = math.exp %151 : vector<64x1xf32>
    %153 = arith.mulf %140, %144 : vector<1x1xf32>
    %154 = math.exp %153 : vector<1x1xf32>
    %155 = vector.extract_strided_slice %63 {offsets = [0, 0], sizes = [64, 64], strides = [1, 1]} : vector<64x128xf32> to vector<64x64xf32>
    %156 = arith.mulf %152, %143 : vector<64x1xf32>
    %157 = vector.broadcast %156 : vector<64x1xf32> to vector<64x64xf32>
    %158 = arith.mulf %157, %155 : vector<64x64xf32>
    %c0_38 = arith.constant 0 : index
    %c0_39 = arith.constant 0 : index
    %159 = vector.load %arg11[%c0_38, %c0_39] : memref<32x64xf32, #tpu.memory_space<vmem>>, vector<16x64xf32>
    %160 = arith.truncf %158 : vector<64x64xf32> to vector<64x64xbf16>
    %cst_40 = arith.constant dense<0.000000e+00> : vector<64x64xf32>
    %161 = tpu.matmul %137, %160, %cst_40 {dimension_numbers = #tpu.dot_dimension_numbers<[1], [0], [0], [1], [0, 0, 1, 1], [], []>} : vector<64x64xbf16>, vector<64x64xbf16>, vector<64x64xf32> -> vector<64x64xf32>
    %162 = arith.truncf %159 : vector<16x64xf32> to vector<16x64xbf16>
    %cst_41 = arith.constant dense<0.000000e+00> : vector<64x64xf32>
    %163 = tpu.matmul %138, %162, %cst_41 {dimension_numbers = #tpu.dot_dimension_numbers<[1], [0], [0], [1], [0, 0, 1, 1], [], []>} : vector<64x16xbf16>, vector<16x64xbf16>, vector<64x64xf32> -> vector<64x64xf32>
    %164 = arith.addf %161, %163 : vector<64x64xf32>
    %165 = vector.broadcast %147 : vector<64x1xf32> to vector<64x64xf32>
    %166 = arith.mulf %165, %164 : vector<64x64xf32>
    %167 = vector.broadcast %141 : vector<1x1xf32> to vector<64x64xf32>
    %168 = arith.mulf %167, %155 : vector<64x64xf32>
    %169 = arith.addf %166, %168 : vector<64x64xf32>
    %170 = arith.truncf %158 : vector<64x64xf32> to vector<64x64xbf16>
    %cst_42 = arith.constant dense<0.000000e+00> : vector<16x64xf32>
    %171 = tpu.matmul %139, %170, %cst_42 {dimension_numbers = #tpu.dot_dimension_numbers<[0], [0], [1], [1], [0, 1, 1, 1], [], []>} : vector<64x16xbf16>, vector<64x64xbf16>, vector<16x64xf32> -> vector<16x64xf32>
    %172 = arith.addf %159, %171 : vector<16x64xf32>
    %173 = vector.broadcast %154 : vector<1x1xf32> to vector<16x64xf32>
    %174 = arith.mulf %173, %172 : vector<16x64xf32>
    %c0_43 = arith.constant 0 : index
    %c0_44 = arith.constant 0 : index
    %175 = vector.load %arg11[%c0_43, %c0_44] : memref<32x64xf32, #tpu.memory_space<vmem>>, vector<16x64xf32>
    tpu.vector_store %arg11[%c0_43, %c0_44], %174 {strides = array<i32>} : memref<32x64xf32, #tpu.memory_space<vmem>>, vector<16x64xf32>,
    %176 = vector.extract_strided_slice %8 {offsets = [0, 0], sizes = [64, 64], strides = [1, 1]} : vector<64x128xf32> to vector<64x64xf32>
    %177 = arith.negf %176 : vector<64x64xf32>
    %178 = math.exp %177 : vector<64x64xf32>
    %cst_45 = arith.constant 1.000000e+00 : f32
    %179 = vector.broadcast %cst_45 : f32 to vector<64x64xf32>
    %180 = arith.addf %179, %178 : vector<64x64xf32>
    %181 = arith.divf %179, %180 : vector<64x64xf32>
    %182 = arith.mulf %176, %181 : vector<64x64xf32>
    %183 = arith.mulf %169, %182 : vector<64x64xf32>
    %184 = vector.extract_strided_slice %66 {offsets = [0, 1], sizes = [1, 1], strides = [1, 1]} : vector<3x2xf32> to vector<1x1xf32>
    %185 = vector.extract_strided_slice %66 {offsets = [1, 1], sizes = [1, 1], strides = [1, 1]} : vector<3x2xf32> to vector<1x1xf32>
    %186 = vector.extract_strided_slice %126 {offsets = [0, 1], sizes = [64, 1], strides = [1, 1]} : vector<64x2xf32> to vector<64x1xf32>
    %187 = vector.extract_strided_slice %77 {offsets = [0, 1], sizes = [64, 1], strides = [1, 1]} : vector<64x2xf32> to vector<64x1xf32>
    %188 = vector.extract_strided_slice %128 {offsets = [0, 1], sizes = [1, 1], strides = [1, 1]} : vector<1x2xf32> to vector<1x1xf32>
    %189 = vector.broadcast %184 : vector<1x1xf32> to vector<64x1xf32>
    %190 = arith.mulf %189, %186 : vector<64x1xf32>
    %191 = math.exp %190 : vector<64x1xf32>
    %cst_46 = arith.constant 0.000000e+00 : f32
    %192 = vector.broadcast %cst_46 : f32 to vector<1x1xf32>
    %193 = arith.subf %192, %184 : vector<1x1xf32>
    %194 = vector.broadcast %193 : vector<1x1xf32> to vector<64x1xf32>
    %195 = arith.mulf %194, %186 : vector<64x1xf32>
    %196 = math.exp %195 : vector<64x1xf32>
    %197 = arith.mulf %184, %188 : vector<1x1xf32>
    %198 = math.exp %197 : vector<1x1xf32>
    %199 = vector.extract_strided_slice %63 {offsets = [0, 64], sizes = [64, 64], strides = [1, 1]} : vector<64x128xf32> to vector<64x64xf32>
    %200 = arith.mulf %196, %187 : vector<64x1xf32>
    %201 = vector.broadcast %200 : vector<64x1xf32> to vector<64x64xf32>
    %202 = arith.mulf %201, %199 : vector<64x64xf32>
    %c16 = arith.constant 16 : index
    %c0_47 = arith.constant 0 : index
    %203 = vector.load %arg11[%c16, %c0_47] : memref<32x64xf32, #tpu.memory_space<vmem>>, vector<16x64xf32>
    %204 = arith.truncf %202 : vector<64x64xf32> to vector<64x64xbf16>
    %cst_48 = arith.constant dense<0.000000e+00> : vector<64x64xf32>
    %205 = tpu.matmul %137, %204, %cst_48 {dimension_numbers = #tpu.dot_dimension_numbers<[1], [0], [0], [1], [0, 0, 1, 1], [], []>} : vector<64x64xbf16>, vector<64x64xbf16>, vector<64x64xf32> -> vector<64x64xf32>
    %206 = arith.truncf %203 : vector<16x64xf32> to vector<16x64xbf16>
    %cst_49 = arith.constant dense<0.000000e+00> : vector<64x64xf32>
    %207 = tpu.matmul %138, %206, %cst_49 {dimension_numbers = #tpu.dot_dimension_numbers<[1], [0], [0], [1], [0, 0, 1, 1], [], []>} : vector<64x16xbf16>, vector<16x64xbf16>, vector<64x64xf32> -> vector<64x64xf32>
    %208 = arith.addf %205, %207 : vector<64x64xf32>
    %209 = vector.broadcast %191 : vector<64x1xf32> to vector<64x64xf32>
    %210 = arith.mulf %209, %208 : vector<64x64xf32>
    %211 = vector.broadcast %185 : vector<1x1xf32> to vector<64x64xf32>
    %212 = arith.mulf %211, %199 : vector<64x64xf32>
    %213 = arith.addf %210, %212 : vector<64x64xf32>
    %214 = arith.truncf %202 : vector<64x64xf32> to vector<64x64xbf16>
    %cst_50 = arith.constant dense<0.000000e+00> : vector<16x64xf32>
    %215 = tpu.matmul %139, %214, %cst_50 {dimension_numbers = #tpu.dot_dimension_numbers<[0], [0], [1], [1], [0, 1, 1, 1], [], []>} : vector<64x16xbf16>, vector<64x64xbf16>, vector<16x64xf32> -> vector<16x64xf32>
    %216 = arith.addf %203, %215 : vector<16x64xf32>
    %217 = vector.broadcast %198 : vector<1x1xf32> to vector<16x64xf32>
    %218 = arith.mulf %217, %216 : vector<16x64xf32>
    %c16_51 = arith.constant 16 : index
    %c0_52 = arith.constant 0 : index
    %219 = vector.load %arg11[%c16_51, %c0_52] : memref<32x64xf32, #tpu.memory_space<vmem>>, vector<16x64xf32>
    tpu.vector_store %arg11[%c16_51, %c0_52], %218 {strides = array<i32>} : memref<32x64xf32, #tpu.memory_space<vmem>>, vector<16x64xf32>,
    %220 = vector.extract_strided_slice %8 {offsets = [0, 64], sizes = [64, 64], strides = [1, 1]} : vector<64x128xf32> to vector<64x64xf32>
    %221 = arith.negf %220 : vector<64x64xf32>
    %222 = math.exp %221 : vector<64x64xf32>
    %cst_53 = arith.constant 1.000000e+00 : f32
    %223 = vector.broadcast %cst_53 : f32 to vector<64x64xf32>
    %224 = arith.addf %223, %222 : vector<64x64xf32>
    %225 = arith.divf %223, %224 : vector<64x64xf32>
    %226 = arith.mulf %220, %225 : vector<64x64xf32>
    %227 = arith.mulf %213, %226 : vector<64x64xf32>
    %228 = tpu.concatenate %183, %227 in 1 : vector<64x64xf32>, vector<64x64xf32> -> vector<64x128xf32>
    %229 = arith.mulf %228, %228 : vector<64x128xf32>
    %cst_54 = arith.constant dense<0.000000e+00> : vector<64xf32>
    %230 = vector.multi_reduction <add>, %229, %cst_54 [1] : vector<64x128xf32> to vector<64xf32>
    %231 = vector.shape_cast %230 : vector<64xf32> to vector<64x1xf32>
    %cst_55 = arith.constant 7.812500e-03 : f32
    %232 = vector.broadcast %cst_55 : f32 to vector<64x1xf32>
    %233 = arith.mulf %231, %232 : vector<64x1xf32>
    %cst_56 = arith.constant 9.99999974E-6 : f32
    %234 = vector.broadcast %cst_56 : f32 to vector<64x1xf32>
    %235 = arith.addf %233, %234 : vector<64x1xf32>
    %236 = math.rsqrt %235 : vector<64x1xf32>
    %237 = vector.broadcast %236 : vector<64x1xf32> to vector<64x128xf32>
    %238 = arith.mulf %228, %237 : vector<64x128xf32>
    %c0_57 = arith.constant 0 : index
    %c0_58 = arith.constant 0 : index
    %239 = vector.load %arg9[%c0_57, %c0_58] : memref<1x128xf32, #tpu.memory_space<vmem>>, vector<1x128xf32>
    %240 = vector.broadcast %239 : vector<1x128xf32> to vector<64x128xf32>
    %241 = arith.mulf %238, %240 : vector<64x128xf32>
    %242 = arith.truncf %241 : vector<64x128xf32> to vector<64x128xbf16>
    %c0_59 = arith.constant 0 : index
    %c0_60 = arith.constant 0 : index
    %243 = vector.load %arg6[%c0_59, %c0_60] : memref<128x64xbf16, #tpu.memory_space<vmem>>, vector<128x64xbf16>
    %cst_61 = arith.constant dense<0.000000e+00> : vector<64x64xf32>
    %244 = tpu.matmul %242, %243, %cst_61 {dimension_numbers = #tpu.dot_dimension_numbers<[1], [0], [0], [1], [0, 0, 1, 1], [], []>} : vector<64x128xbf16>, vector<128x64xbf16>, vector<64x64xf32> -> vector<64x64xf32>
    %c0_62 = arith.constant 0 : index
    %c0_63 = arith.constant 0 : index
    %c0_64 = arith.constant 0 : index
    %245 = vector.load %arg3[%c0_62, %c0_63, %c0_64] : memref<1x64x64xf32, #tpu.memory_space<vmem>>, vector<1x64x64xf32>
    %246 = vector.shape_cast %245 : vector<1x64x64xf32> to vector<64x64xf32>
    %247 = arith.addf %246, %244 : vector<64x64xf32>
    %c0_65 = arith.constant 0 : index
    %c0_66 = arith.constant 0 : index
    %c0_67 = arith.constant 0 : index
    %248 = vector.load %arg10[%c0_65, %c0_66, %c0_67] : memref<1x64x64xf32, #tpu.memory_space<vmem>>, vector<1x64x64xf32>
    %249 = vector.shape_cast %248 : vector<1x64x64xf32> to vector<64x64xf32>
    %250 = vector.shape_cast %247 : vector<64x64xf32> to vector<1x64x64xf32>
    tpu.vector_store %arg10[%c0_65, %c0_66, %c0_67], %250 {strides = array<i32>} : memref<1x64x64xf32, #tpu.memory_space<vmem>>, vector<1x64x64xf32>,
    return
  }
  func.func @transform_0(%arg0: i32, %arg1: i32) -> (i32, i32, i32) {
    %c0_i32 = arith.constant 0 : i32
    %c0_i32_0 = arith.constant 0 : i32
    return %arg0, %arg1, %c0_i32 : i32, i32, i32
  }
  func.func @transform_1(%arg0: i32, %arg1: i32) -> (i32, i32, i32) {
    %c0_i32 = arith.constant 0 : i32
    %c0_i32_0 = arith.constant 0 : i32
    return %arg0, %arg1, %c0_i32 : i32, i32, i32
  }
  func.func @transform_2(%arg0: i32, %arg1: i32) -> (i32, i32) {
    %c0_i32 = arith.constant 0 : i32
    %c0_i32_0 = arith.constant 0 : i32
    %c0_i32_1 = arith.constant 0 : i32
    return %c0_i32, %c0_i32_0 : i32, i32
  }
  func.func @transform_3(%arg0: i32, %arg1: i32) -> (i32, i32) {
    %c0_i32 = arith.constant 0 : i32
    %c0_i32_0 = arith.constant 0 : i32
    %c0_i32_1 = arith.constant 0 : i32
    return %c0_i32, %c0_i32_0 : i32, i32
  }
  func.func @transform_4(%arg0: i32, %arg1: i32) -> (i32, i32) {
    %c0_i32 = arith.constant 0 : i32
    %c0_i32_0 = arith.constant 0 : i32
    %c0_i32_1 = arith.constant 0 : i32
    return %c0_i32, %c0_i32_0 : i32, i32
  }
  func.func @transform_5(%arg0: i32, %arg1: i32) -> (i32, i32) {
    %c0_i32 = arith.constant 0 : i32
    %c0_i32_0 = arith.constant 0 : i32
    %c0_i32_1 = arith.constant 0 : i32
    return %c0_i32, %c0_i32_0 : i32, i32
  }
  func.func @transform_6(%arg0: i32, %arg1: i32) -> (i32, i32) {
    %c0_i32 = arith.constant 0 : i32
    %c0_i32_0 = arith.constant 0 : i32
    %c0_i32_1 = arith.constant 0 : i32
    return %c0_i32, %c0_i32_0 : i32, i32
  }
  func.func @transform_7(%arg0: i32, %arg1: i32) -> (i32, i32) {
    %c0_i32 = arith.constant 0 : i32
    %c0_i32_0 = arith.constant 0 : i32
    %c0_i32_1 = arith.constant 0 : i32
    return %c0_i32, %c0_i32_0 : i32, i32
  }
  func.func @transform_8(%arg0: i32, %arg1: i32) -> (i32, i32, i32) {
    %c0_i32 = arith.constant 0 : i32
    %c0_i32_0 = arith.constant 0 : i32
    return %arg0, %arg1, %c0_i32 : i32, i32, i32
  }
}

module attributes {stable_mosaic.version = 11 : i64} {
  func.func @_tail_kernel(%arg0: i32, %arg1: memref<2x128x64xf32, #tpu.memory_space<vmem>>, %arg2: memref<64x16xbf16, #tpu.memory_space<vmem>>, %arg3: memref<16x32xbf16, #tpu.memory_space<vmem>>, %arg4: memref<1x32xf32, #tpu.memory_space<vmem>>, %arg5: memref<1x32xf32, #tpu.memory_space<vmem>>, %arg6: memref<1x32xf32, #tpu.memory_space<vmem>>, %arg7: memref<32x32xbf16, #tpu.memory_space<vmem>>, %arg8: memref<1x32xf32, #tpu.memory_space<vmem>>, %arg9: memref<1x32xf32, #tpu.memory_space<vmem>>, %arg10: memref<1x32xf32, #tpu.memory_space<vmem>>, %arg11: memref<32x32xbf16, #tpu.memory_space<vmem>>, %arg12: memref<1x32xf32, #tpu.memory_space<vmem>>, %arg13: memref<1x32xf32, #tpu.memory_space<vmem>>, %arg14: memref<1x32xf32, #tpu.memory_space<vmem>>, %arg15: memref<32x5xbf16, #tpu.memory_space<vmem>>, %arg16: memref<1x5xf32, #tpu.memory_space<vmem>>, %arg17: memref<2x5xf32, #tpu.memory_space<vmem>>) attributes {dimension_semantics = [#tpu.dimension_semantics<parallel>], iteration_bounds = array<i64: 1>, scalar_prefetch = 0 : i64, scratch_operands = 0 : i64, tpu.core_type = #tpu.core_type<tc>, window_params = [{transform_indices = @transform_0, window_bounds = array<i64: 2, 128, 64>}, {pipeline_mode = #tpu.pipeline_mode<synchronous>, transform_indices = @transform_1, window_bounds = array<i64: 64, 16>}, {pipeline_mode = #tpu.pipeline_mode<synchronous>, transform_indices = @transform_2, window_bounds = array<i64: 16, 32>}, {pipeline_mode = #tpu.pipeline_mode<synchronous>, transform_indices = @transform_3, window_bounds = array<i64: 1, 32>}, {pipeline_mode = #tpu.pipeline_mode<synchronous>, transform_indices = @transform_4, window_bounds = array<i64: 1, 32>}, {pipeline_mode = #tpu.pipeline_mode<synchronous>, transform_indices = @transform_5, window_bounds = array<i64: 1, 32>}, {pipeline_mode = #tpu.pipeline_mode<synchronous>, transform_indices = @transform_6, window_bounds = array<i64: 32, 32>}, {pipeline_mode = #tpu.pipeline_mode<synchronous>, transform_indices = @transform_7, window_bounds = array<i64: 1, 32>}, {pipeline_mode = #tpu.pipeline_mode<synchronous>, transform_indices = @transform_8, window_bounds = array<i64: 1, 32>}, {pipeline_mode = #tpu.pipeline_mode<synchronous>, transform_indices = @transform_9, window_bounds = array<i64: 1, 32>}, {pipeline_mode = #tpu.pipeline_mode<synchronous>, transform_indices = @transform_10, window_bounds = array<i64: 32, 32>}, {pipeline_mode = #tpu.pipeline_mode<synchronous>, transform_indices = @transform_11, window_bounds = array<i64: 1, 32>}, {pipeline_mode = #tpu.pipeline_mode<synchronous>, transform_indices = @transform_12, window_bounds = array<i64: 1, 32>}, {pipeline_mode = #tpu.pipeline_mode<synchronous>, transform_indices = @transform_13, window_bounds = array<i64: 1, 32>}, {pipeline_mode = #tpu.pipeline_mode<synchronous>, transform_indices = @transform_14, window_bounds = array<i64: 32, 5>}, {pipeline_mode = #tpu.pipeline_mode<synchronous>, transform_indices = @transform_15, window_bounds = array<i64: 1, 5>}, {transform_indices = @transform_16, window_bounds = array<i64: 2, 5>}]} {
    %c0 = arith.constant 0 : index
    %c0_0 = arith.constant 0 : index
    %c0_1 = arith.constant 0 : index
    %0 = vector.load %arg1[%c0, %c0_0, %c0_1] : memref<2x128x64xf32, #tpu.memory_space<vmem>>, vector<2x128x64xf32>
    %cst = arith.constant dense<0.000000e+00> : vector<2x64xf32>
    %1 = vector.multi_reduction <add>, %0, %cst [1] : vector<2x128x64xf32> to vector<2x64xf32>
    %cst_2 = arith.constant 1.280000e+02 : f32
    %2 = vector.broadcast %cst_2 : f32 to vector<2x64xf32>
    %3 = arith.divf %1, %2 : vector<2x64xf32>
    %4 = arith.truncf %3 : vector<2x64xf32> to vector<2x64xbf16>
    %c0_3 = arith.constant 0 : index
    %c0_4 = arith.constant 0 : index
    %5 = vector.load %arg2[%c0_3, %c0_4] : memref<64x16xbf16, #tpu.memory_space<vmem>>, vector<64x16xbf16>
    %cst_5 = arith.constant dense<0.000000e+00> : vector<2x16xf32>
    %6 = tpu.matmul %4, %5, %cst_5 {dimension_numbers = #tpu.dot_dimension_numbers<[1], [0], [0], [1], [0, 0, 1, 1], [], []>} : vector<2x64xbf16>, vector<64x16xbf16>, vector<2x16xf32> -> vector<2x16xf32>
    %7 = arith.truncf %6 : vector<2x16xf32> to vector<2x16xbf16>
    %c0_6 = arith.constant 0 : index
    %c0_7 = arith.constant 0 : index
    %8 = vector.load %arg3[%c0_6, %c0_7] : memref<16x32xbf16, #tpu.memory_space<vmem>>, vector<16x32xbf16>
    %cst_8 = arith.constant dense<0.000000e+00> : vector<2x32xf32>
    %9 = tpu.matmul %7, %8, %cst_8 {dimension_numbers = #tpu.dot_dimension_numbers<[1], [0], [0], [1], [0, 0, 1, 1], [], []>} : vector<2x16xbf16>, vector<16x32xbf16>, vector<2x32xf32> -> vector<2x32xf32>
    %c0_9 = arith.constant 0 : index
    %c0_10 = arith.constant 0 : index
    %10 = vector.load %arg4[%c0_9, %c0_10] : memref<1x32xf32, #tpu.memory_space<vmem>>, vector<1x32xf32>
    %11 = vector.broadcast %10 : vector<1x32xf32> to vector<2x32xf32>
    %12 = arith.addf %9, %11 : vector<2x32xf32>
    %cst_11 = arith.constant dense<0.000000e+00> : vector<2xf32>
    %13 = vector.multi_reduction <add>, %12, %cst_11 [1] : vector<2x32xf32> to vector<2xf32>
    %14 = vector.shape_cast %13 : vector<2xf32> to vector<2x1xf32>
    %cst_12 = arith.constant 3.200000e+01 : f32
    %15 = vector.broadcast %cst_12 : f32 to vector<2x1xf32>
    %16 = arith.divf %14, %15 : vector<2x1xf32>
    %17 = vector.broadcast %16 : vector<2x1xf32> to vector<2x32xf32>
    %18 = arith.subf %12, %17 : vector<2x32xf32>
    %19 = arith.mulf %18, %18 : vector<2x32xf32>
    %cst_13 = arith.constant dense<0.000000e+00> : vector<2xf32>
    %20 = vector.multi_reduction <add>, %19, %cst_13 [1] : vector<2x32xf32> to vector<2xf32>
    %21 = vector.shape_cast %20 : vector<2xf32> to vector<2x1xf32>
    %cst_14 = arith.constant 3.200000e+01 : f32
    %22 = vector.broadcast %cst_14 : f32 to vector<2x1xf32>
    %23 = arith.divf %21, %22 : vector<2x1xf32>
    %24 = vector.broadcast %16 : vector<2x1xf32> to vector<2x32xf32>
    %25 = arith.subf %12, %24 : vector<2x32xf32>
    %cst_15 = arith.constant 9.99999974E-6 : f32
    %26 = vector.broadcast %cst_15 : f32 to vector<2x1xf32>
    %27 = arith.addf %23, %26 : vector<2x1xf32>
    %28 = math.rsqrt %27 : vector<2x1xf32>
    %29 = vector.broadcast %28 : vector<2x1xf32> to vector<2x32xf32>
    %30 = arith.mulf %25, %29 : vector<2x32xf32>
    %c0_16 = arith.constant 0 : index
    %c0_17 = arith.constant 0 : index
    %31 = vector.load %arg5[%c0_16, %c0_17] : memref<1x32xf32, #tpu.memory_space<vmem>>, vector<1x32xf32>
    %32 = vector.broadcast %31 : vector<1x32xf32> to vector<2x32xf32>
    %33 = arith.mulf %30, %32 : vector<2x32xf32>
    %c0_18 = arith.constant 0 : index
    %c0_19 = arith.constant 0 : index
    %34 = vector.load %arg6[%c0_18, %c0_19] : memref<1x32xf32, #tpu.memory_space<vmem>>, vector<1x32xf32>
    %35 = vector.broadcast %34 : vector<1x32xf32> to vector<2x32xf32>
    %36 = arith.addf %33, %35 : vector<2x32xf32>
    %cst_20 = arith.constant 0.000000e+00 : f32
    %37 = vector.broadcast %cst_20 : f32 to vector<2x32xf32>
    %38 = arith.maximumf %36, %37 : vector<2x32xf32>
    %39 = arith.truncf %38 : vector<2x32xf32> to vector<2x32xbf16>
    %c0_21 = arith.constant 0 : index
    %c0_22 = arith.constant 0 : index
    %40 = vector.load %arg7[%c0_21, %c0_22] : memref<32x32xbf16, #tpu.memory_space<vmem>>, vector<32x32xbf16>
    %cst_23 = arith.constant dense<0.000000e+00> : vector<2x32xf32>
    %41 = tpu.matmul %39, %40, %cst_23 {dimension_numbers = #tpu.dot_dimension_numbers<[1], [0], [0], [1], [0, 0, 1, 1], [], []>} : vector<2x32xbf16>, vector<32x32xbf16>, vector<2x32xf32> -> vector<2x32xf32>
    %c0_24 = arith.constant 0 : index
    %c0_25 = arith.constant 0 : index
    %42 = vector.load %arg8[%c0_24, %c0_25] : memref<1x32xf32, #tpu.memory_space<vmem>>, vector<1x32xf32>
    %43 = vector.broadcast %42 : vector<1x32xf32> to vector<2x32xf32>
    %44 = arith.addf %41, %43 : vector<2x32xf32>
    %cst_26 = arith.constant dense<0.000000e+00> : vector<2xf32>
    %45 = vector.multi_reduction <add>, %44, %cst_26 [1] : vector<2x32xf32> to vector<2xf32>
    %46 = vector.shape_cast %45 : vector<2xf32> to vector<2x1xf32>
    %cst_27 = arith.constant 3.200000e+01 : f32
    %47 = vector.broadcast %cst_27 : f32 to vector<2x1xf32>
    %48 = arith.divf %46, %47 : vector<2x1xf32>
    %49 = vector.broadcast %48 : vector<2x1xf32> to vector<2x32xf32>
    %50 = arith.subf %44, %49 : vector<2x32xf32>
    %51 = arith.mulf %50, %50 : vector<2x32xf32>
    %cst_28 = arith.constant dense<0.000000e+00> : vector<2xf32>
    %52 = vector.multi_reduction <add>, %51, %cst_28 [1] : vector<2x32xf32> to vector<2xf32>
    %53 = vector.shape_cast %52 : vector<2xf32> to vector<2x1xf32>
    %cst_29 = arith.constant 3.200000e+01 : f32
    %54 = vector.broadcast %cst_29 : f32 to vector<2x1xf32>
    %55 = arith.divf %53, %54 : vector<2x1xf32>
    %56 = vector.broadcast %48 : vector<2x1xf32> to vector<2x32xf32>
    %57 = arith.subf %44, %56 : vector<2x32xf32>
    %cst_30 = arith.constant 9.99999974E-6 : f32
    %58 = vector.broadcast %cst_30 : f32 to vector<2x1xf32>
    %59 = arith.addf %55, %58 : vector<2x1xf32>
    %60 = math.rsqrt %59 : vector<2x1xf32>
    %61 = vector.broadcast %60 : vector<2x1xf32> to vector<2x32xf32>
    %62 = arith.mulf %57, %61 : vector<2x32xf32>
    %c0_31 = arith.constant 0 : index
    %c0_32 = arith.constant 0 : index
    %63 = vector.load %arg9[%c0_31, %c0_32] : memref<1x32xf32, #tpu.memory_space<vmem>>, vector<1x32xf32>
    %64 = vector.broadcast %63 : vector<1x32xf32> to vector<2x32xf32>
    %65 = arith.mulf %62, %64 : vector<2x32xf32>
    %c0_33 = arith.constant 0 : index
    %c0_34 = arith.constant 0 : index
    %66 = vector.load %arg10[%c0_33, %c0_34] : memref<1x32xf32, #tpu.memory_space<vmem>>, vector<1x32xf32>
    %67 = vector.broadcast %66 : vector<1x32xf32> to vector<2x32xf32>
    %68 = arith.addf %65, %67 : vector<2x32xf32>
    %cst_35 = arith.constant 0.000000e+00 : f32
    %69 = vector.broadcast %cst_35 : f32 to vector<2x32xf32>
    %70 = arith.maximumf %68, %69 : vector<2x32xf32>
    %71 = arith.truncf %70 : vector<2x32xf32> to vector<2x32xbf16>
    %c0_36 = arith.constant 0 : index
    %c0_37 = arith.constant 0 : index
    %72 = vector.load %arg11[%c0_36, %c0_37] : memref<32x32xbf16, #tpu.memory_space<vmem>>, vector<32x32xbf16>
    %cst_38 = arith.constant dense<0.000000e+00> : vector<2x32xf32>
    %73 = tpu.matmul %71, %72, %cst_38 {dimension_numbers = #tpu.dot_dimension_numbers<[1], [0], [0], [1], [0, 0, 1, 1], [], []>} : vector<2x32xbf16>, vector<32x32xbf16>, vector<2x32xf32> -> vector<2x32xf32>
    %c0_39 = arith.constant 0 : index
    %c0_40 = arith.constant 0 : index
    %74 = vector.load %arg12[%c0_39, %c0_40] : memref<1x32xf32, #tpu.memory_space<vmem>>, vector<1x32xf32>
    %75 = vector.broadcast %74 : vector<1x32xf32> to vector<2x32xf32>
    %76 = arith.addf %73, %75 : vector<2x32xf32>
    %cst_41 = arith.constant dense<0.000000e+00> : vector<2xf32>
    %77 = vector.multi_reduction <add>, %76, %cst_41 [1] : vector<2x32xf32> to vector<2xf32>
    %78 = vector.shape_cast %77 : vector<2xf32> to vector<2x1xf32>
    %cst_42 = arith.constant 3.200000e+01 : f32
    %79 = vector.broadcast %cst_42 : f32 to vector<2x1xf32>
    %80 = arith.divf %78, %79 : vector<2x1xf32>
    %81 = vector.broadcast %80 : vector<2x1xf32> to vector<2x32xf32>
    %82 = arith.subf %76, %81 : vector<2x32xf32>
    %83 = arith.mulf %82, %82 : vector<2x32xf32>
    %cst_43 = arith.constant dense<0.000000e+00> : vector<2xf32>
    %84 = vector.multi_reduction <add>, %83, %cst_43 [1] : vector<2x32xf32> to vector<2xf32>
    %85 = vector.shape_cast %84 : vector<2xf32> to vector<2x1xf32>
    %cst_44 = arith.constant 3.200000e+01 : f32
    %86 = vector.broadcast %cst_44 : f32 to vector<2x1xf32>
    %87 = arith.divf %85, %86 : vector<2x1xf32>
    %88 = vector.broadcast %80 : vector<2x1xf32> to vector<2x32xf32>
    %89 = arith.subf %76, %88 : vector<2x32xf32>
    %cst_45 = arith.constant 9.99999974E-6 : f32
    %90 = vector.broadcast %cst_45 : f32 to vector<2x1xf32>
    %91 = arith.addf %87, %90 : vector<2x1xf32>
    %92 = math.rsqrt %91 : vector<2x1xf32>
    %93 = vector.broadcast %92 : vector<2x1xf32> to vector<2x32xf32>
    %94 = arith.mulf %89, %93 : vector<2x32xf32>
    %c0_46 = arith.constant 0 : index
    %c0_47 = arith.constant 0 : index
    %95 = vector.load %arg13[%c0_46, %c0_47] : memref<1x32xf32, #tpu.memory_space<vmem>>, vector<1x32xf32>
    %96 = vector.broadcast %95 : vector<1x32xf32> to vector<2x32xf32>
    %97 = arith.mulf %94, %96 : vector<2x32xf32>
    %c0_48 = arith.constant 0 : index
    %c0_49 = arith.constant 0 : index
    %98 = vector.load %arg14[%c0_48, %c0_49] : memref<1x32xf32, #tpu.memory_space<vmem>>, vector<1x32xf32>
    %99 = vector.broadcast %98 : vector<1x32xf32> to vector<2x32xf32>
    %100 = arith.addf %97, %99 : vector<2x32xf32>
    %cst_50 = arith.constant 0.000000e+00 : f32
    %101 = vector.broadcast %cst_50 : f32 to vector<2x32xf32>
    %102 = arith.maximumf %100, %101 : vector<2x32xf32>
    %103 = arith.truncf %102 : vector<2x32xf32> to vector<2x32xbf16>
    %c0_51 = arith.constant 0 : index
    %c0_52 = arith.constant 0 : index
    %104 = vector.load %arg15[%c0_51, %c0_52] : memref<32x5xbf16, #tpu.memory_space<vmem>>, vector<32x5xbf16>
    %cst_53 = arith.constant dense<0.000000e+00> : vector<2x5xf32>
    %105 = tpu.matmul %103, %104, %cst_53 {dimension_numbers = #tpu.dot_dimension_numbers<[1], [0], [0], [1], [0, 0, 1, 1], [], []>} : vector<2x32xbf16>, vector<32x5xbf16>, vector<2x5xf32> -> vector<2x5xf32>
    %c0_54 = arith.constant 0 : index
    %c0_55 = arith.constant 0 : index
    %106 = vector.load %arg16[%c0_54, %c0_55] : memref<1x5xf32, #tpu.memory_space<vmem>>, vector<1x5xf32>
    %107 = vector.broadcast %106 : vector<1x5xf32> to vector<2x5xf32>
    %108 = arith.addf %105, %107 : vector<2x5xf32>
    %c0_56 = arith.constant 0 : index
    %c0_57 = arith.constant 0 : index
    %109 = vector.load %arg17[%c0_56, %c0_57] : memref<2x5xf32, #tpu.memory_space<vmem>>, vector<2x5xf32>
    tpu.vector_store %arg17[%c0_56, %c0_57], %108 {strides = array<i32>} : memref<2x5xf32, #tpu.memory_space<vmem>>, vector<2x5xf32>,
    return
  }
  func.func @transform_0(%arg0: i32) -> (i32, i32, i32) {
    %c0_i32 = arith.constant 0 : i32
    %c0_i32_0 = arith.constant 0 : i32
    %c0_i32_1 = arith.constant 0 : i32
    return %arg0, %c0_i32, %c0_i32_0 : i32, i32, i32
  }
  func.func @transform_1(%arg0: i32) -> (i32, i32) {
    %c0_i32 = arith.constant 0 : i32
    %c0_i32_0 = arith.constant 0 : i32
    %c0_i32_1 = arith.constant 0 : i32
    return %c0_i32, %c0_i32_0 : i32, i32
  }
  func.func @transform_2(%arg0: i32) -> (i32, i32) {
    %c0_i32 = arith.constant 0 : i32
    %c0_i32_0 = arith.constant 0 : i32
    %c0_i32_1 = arith.constant 0 : i32
    return %c0_i32, %c0_i32_0 : i32, i32
  }
  func.func @transform_3(%arg0: i32) -> (i32, i32) {
    %c0_i32 = arith.constant 0 : i32
    %c0_i32_0 = arith.constant 0 : i32
    %c0_i32_1 = arith.constant 0 : i32
    return %c0_i32, %c0_i32_0 : i32, i32
  }
  func.func @transform_4(%arg0: i32) -> (i32, i32) {
    %c0_i32 = arith.constant 0 : i32
    %c0_i32_0 = arith.constant 0 : i32
    %c0_i32_1 = arith.constant 0 : i32
    return %c0_i32, %c0_i32_0 : i32, i32
  }
  func.func @transform_5(%arg0: i32) -> (i32, i32) {
    %c0_i32 = arith.constant 0 : i32
    %c0_i32_0 = arith.constant 0 : i32
    %c0_i32_1 = arith.constant 0 : i32
    return %c0_i32, %c0_i32_0 : i32, i32
  }
  func.func @transform_6(%arg0: i32) -> (i32, i32) {
    %c0_i32 = arith.constant 0 : i32
    %c0_i32_0 = arith.constant 0 : i32
    %c0_i32_1 = arith.constant 0 : i32
    return %c0_i32, %c0_i32_0 : i32, i32
  }
  func.func @transform_7(%arg0: i32) -> (i32, i32) {
    %c0_i32 = arith.constant 0 : i32
    %c0_i32_0 = arith.constant 0 : i32
    %c0_i32_1 = arith.constant 0 : i32
    return %c0_i32, %c0_i32_0 : i32, i32
  }
  func.func @transform_8(%arg0: i32) -> (i32, i32) {
    %c0_i32 = arith.constant 0 : i32
    %c0_i32_0 = arith.constant 0 : i32
    %c0_i32_1 = arith.constant 0 : i32
    return %c0_i32, %c0_i32_0 : i32, i32
  }
  func.func @transform_9(%arg0: i32) -> (i32, i32) {
    %c0_i32 = arith.constant 0 : i32
    %c0_i32_0 = arith.constant 0 : i32
    %c0_i32_1 = arith.constant 0 : i32
    return %c0_i32, %c0_i32_0 : i32, i32
  }
  func.func @transform_10(%arg0: i32) -> (i32, i32) {
    %c0_i32 = arith.constant 0 : i32
    %c0_i32_0 = arith.constant 0 : i32
    %c0_i32_1 = arith.constant 0 : i32
    return %c0_i32, %c0_i32_0 : i32, i32
  }
  func.func @transform_11(%arg0: i32) -> (i32, i32) {
    %c0_i32 = arith.constant 0 : i32
    %c0_i32_0 = arith.constant 0 : i32
    %c0_i32_1 = arith.constant 0 : i32
    return %c0_i32, %c0_i32_0 : i32, i32
  }
  func.func @transform_12(%arg0: i32) -> (i32, i32) {
    %c0_i32 = arith.constant 0 : i32
    %c0_i32_0 = arith.constant 0 : i32
    %c0_i32_1 = arith.constant 0 : i32
    return %c0_i32, %c0_i32_0 : i32, i32
  }
  func.func @transform_13(%arg0: i32) -> (i32, i32) {
    %c0_i32 = arith.constant 0 : i32
    %c0_i32_0 = arith.constant 0 : i32
    %c0_i32_1 = arith.constant 0 : i32
    return %c0_i32, %c0_i32_0 : i32, i32
  }
  func.func @transform_14(%arg0: i32) -> (i32, i32) {
    %c0_i32 = arith.constant 0 : i32
    %c0_i32_0 = arith.constant 0 : i32
    %c0_i32_1 = arith.constant 0 : i32
    return %c0_i32, %c0_i32_0 : i32, i32
  }
  func.func @transform_15(%arg0: i32) -> (i32, i32) {
    %c0_i32 = arith.constant 0 : i32
    %c0_i32_0 = arith.constant 0 : i32
    %c0_i32_1 = arith.constant 0 : i32
    return %c0_i32, %c0_i32_0 : i32, i32
  }
  func.func @transform_16(%arg0: i32) -> (i32, i32) {
    %c0_i32 = arith.constant 0 : i32
    %c0_i32_0 = arith.constant 0 : i32
    return %arg0, %c0_i32 : i32, i32
  }
}

</mosaic_0001>

<llo_original>
// kernel: _lambda_.4
$region0: #{_lambda_.4}
  #allocation0 [shape = 'u32[]', space=smem, size = 0x4, offset = 0x4, fixed_abs, tag = 'smem constant byte address 0x4 - core index']
  #allocation1 [shape = 'u32[72,128]{1,0:T(1,128)}', space=vmem, size = 0x9000, scoped, tag = 'internal scratch']
  #allocation2 [shape = 'f32[256,64]{1,0:T(8,128)}', space=vmem, size = 0x20000, scoped, tag = 'scratch operand']
  %s0 = inlined_call_operand.vmem [shape: bf16[256,64], index: 0, kind: input, shape index: {}]
  %s1 = inlined_call_operand.vmem [shape: bf16[64,64], index: 1, kind: input, shape index: {}]
  %s2 = inlined_call_operand.vmem [shape: f32[256,64], index: 2, kind: output, shape index: {}]
  %s3 = sld [smem:[#allocation0]]
  $region26: #{_lambda_.4} parent=0
    _
  %s5 = ssub.s32 1, %s3
  %s6 = scalar_select 0, %s5, %s3
  // Predicated region
  $region2: #{_lambda_.4} parent=0 // pred_check
    _
  $region3: #{_lambda_.4} parent=0 // pred_check_branch
    %8 = sbr.rel (0) target = $region5
  $region4: #{_lambda_.4} parent=0 // pred_region
    _
  $region5: #{_lambda_.4} parent=0 // pred_fallthru
    _
  // Predicated region
  $region6: #{_lambda_.4} parent=0 // pred_check
    _
  $region7: #{_lambda_.4} parent=0 // pred_check_branch
    %10 = sbr.rel (0) target = $region9
  $region8: #{_lambda_.4} parent=0 // pred_region
    _
  $region9: #{_lambda_.4} parent=0 // pred_fallthru
    _
  %p12 = scmp.eq.s32.totalorder 0, 0
  // Predicated region
  $region10: #{_lambda_.4} parent=0 // pred_check
    %p13 = pneg %p12
  $region11: #{_lambda_.4} parent=0 // pred_check_branch
    %15 = sbr.rel (%p13) target = $region13
  $region12: #{_lambda_.4} parent=0 // pred_region
    %vm16 = vcmask 523264
    %17 = vst.msk [vmem:[#allocation2] sm:$0xff] %vm16, 0.0
    %18 = vst.msk [vmem:[#allocation2 + $0x8] sm:$0xff] %vm16, 0.0
    %19 = vst.msk [vmem:[#allocation2 + $0x10] sm:$0xff] %vm16, 0.0
    %20 = vst.msk [vmem:[#allocation2 + $0x18] sm:$0xff] %vm16, 0.0
    %21 = vst.msk [vmem:[#allocation2 + $0x20] sm:$0xff] %vm16, 0.0
    %22 = vst.msk [vmem:[#allocation2 + $0x28] sm:$0xff] %vm16, 0.0
    %23 = vst.msk [vmem:[#allocation2 + $0x30] sm:$0xff] %vm16, 0.0
    %24 = vst.msk [vmem:[#allocation2 + $0x38] sm:$0xff] %vm16, 0.0
    %25 = vst.msk [vmem:[#allocation2 + $0x40] sm:$0xff] %vm16, 0.0
    %26 = vst.msk [vmem:[#allocation2 + $0x48] sm:$0xff] %vm16, 0.0
    %27 = vst.msk [vmem:[#allocation2 + $0x50] sm:$0xff] %vm16, 0.0
    %28 = vst.msk [vmem:[#allocation2 + $0x58] sm:$0xff] %vm16, 0.0
    %29 = vst.msk [vmem:[#allocation2 + $0x60] sm:$0xff] %vm16, 0.0
    %30 = vst.msk [vmem:[#allocation2 + $0x68] sm:$0xff] %vm16, 0.0
    %31 = vst.msk [vmem:[#allocation2 + $0x70] sm:$0xff] %vm16, 0.0
    %32 = vst.msk [vmem:[#allocation2 + $0x78] sm:$0xff] %vm16, 0.0
    %33 = vst.msk [vmem:[#allocation2 + $0x80] sm:$0xff] %vm16, 0.0
    %34 = vst.msk [vmem:[#allocation2 + $0x88] sm:$0xff] %vm16, 0.0
    %35 = vst.msk [vmem:[#allocation2 + $0x90] sm:$0xff] %vm16, 0.0
    %36 = vst.msk [vmem:[#allocation2 + $0x98] sm:$0xff] %vm16, 0.0
    %37 = vst.msk [vmem:[#allocation2 + $0xa0] sm:$0xff] %vm16, 0.0
    %38 = vst.msk [vmem:[#allocation2 + $0xa8] sm:$0xff] %vm16, 0.0
    %39 = vst.msk [vmem:[#allocation2 + $0xb0] sm:$0xff] %vm16, 0.0
    %40 = vst.msk [vmem:[#allocation2 + $0xb8] sm:$0xff] %vm16, 0.0
    %41 = vst.msk [vmem:[#allocation2 + $0xc0] sm:$0xff] %vm16, 0.0
    %42 = vst.msk [vmem:[#allocation2 + $0xc8] sm:$0xff] %vm16, 0.0
    %43 = vst.msk [vmem:[#allocation2 + $0xd0] sm:$0xff] %vm16, 0.0
    %44 = vst.msk [vmem:[#allocation2 + $0xd8] sm:$0xff] %vm16, 0.0
    %45 = vst.msk [vmem:[#allocation2 + $0xe0] sm:$0xff] %vm16, 0.0
    %46 = vst.msk [vmem:[#allocation2 + $0xe8] sm:$0xff] %vm16, 0.0
    %47 = vst.msk [vmem:[#allocation2 + $0xf0] sm:$0xff] %vm16, 0.0
    %48 = vst.msk [vmem:[#allocation2 + $0xf8] sm:$0xff] %vm16, 0.0
  $region13: #{_lambda_.4} parent=0 // pred_fallthru
    _
  %v49 = vld [vmem:[#allocation2] sm:$0xff]
  %v50 = vld [vmem:[#allocation2 + $0x8] sm:$0xff]
  %v51 = vld [vmem:[#allocation2 + $0x10] sm:$0xff]
  %v52 = vld [vmem:[#allocation2 + $0x18] sm:$0xff]
  %v53 = vld [vmem:[#allocation2 + $0x20] sm:$0xff]
  %v54 = vld [vmem:[#allocation2 + $0x28] sm:$0xff]
  %v55 = vld [vmem:[#allocation2 + $0x30] sm:$0xff]
  %v56 = vld [vmem:[#allocation2 + $0x38] sm:$0xff]
  %v57 = vld [vmem:[#allocation2 + $0x40] sm:$0xff]
  %v58 = vld [vmem:[#allocation2 + $0x48] sm:$0xff]
  %v59 = vld [vmem:[#allocation2 + $0x50] sm:$0xff]
  %v60 = vld [vmem:[#allocation2 + $0x58] sm:$0xff]
  %v61 = vld [vmem:[#allocation2 + $0x60] sm:$0xff]
  %v62 = vld [vmem:[#allocation2 + $0x68] sm:$0xff]
  %v63 = vld [vmem:[#allocation2 + $0x70] sm:$0xff]
  %v64 = vld [vmem:[#allocation2 + $0x78] sm:$0xff]
  %v65 = vld [vmem:[#allocation2 + $0x80] sm:$0xff]
  %v66 = vld [vmem:[#allocation2 + $0x88] sm:$0xff]
  %v67 = vld [vmem:[#allocation2 + $0x90] sm:$0xff]
  %v68 = vld [vmem:[#allocation2 + $0x98] sm:$0xff]
  %v69 = vld [vmem:[#allocation2 + $0xa0] sm:$0xff]
  %v70 = vld [vmem:[#allocation2 + $0xa8] sm:$0xff]
  %v71 = vld [vmem:[#allocation2 + $0xb0] sm:$0xff]
  %v72 = vld [vmem:[#allocation2 + $0xb8] sm:$0xff]
  %v73 = vld [vmem:[#allocation2 + $0xc0] sm:$0xff]
  %v74 = vld [vmem:[#allocation2 + $0xc8] sm:$0xff]
  %v75 = vld [vmem:[#allocation2 + $0xd0] sm:$0xff]
  %v76 = vld [vmem:[#allocation2 + $0xd8] sm:$0xff]
  %v77 = vld [vmem:[#allocation2 + $0xe0] sm:$0xff]
  %v78 = vld [vmem:[#allocation2 + $0xe8] sm:$0xff]
  %v79 = vld [vmem:[#allocation2 + $0xf0] sm:$0xff]
  %v80 = vld [vmem:[#allocation2 + $0xf8] sm:$0xff]
  %v81 = vld [vmem:[%s0] sm:$0xf]
  %v82 = vld [vmem:[%s0 + $0x4] sm:$0xf]
  %v83 = vld [vmem:[%s0 + $0x8] sm:$0xf]
  %v84 = vld [vmem:[%s0 + $0xc] sm:$0xf]
  %v85 = vld [vmem:[%s0 + $0x10] sm:$0xf]
  %v86 = vld [vmem:[%s0 + $0x14] sm:$0xf]
  %v87 = vld [vmem:[%s0 + $0x18] sm:$0xf]
  %v88 = vld [vmem:[%s0 + $0x1c] sm:$0xf]
  %v89 = vld [vmem:[%s0 + $0x20] sm:$0xf]
  %v90 = vld [vmem:[%s0 + $0x24] sm:$0xf]
  %v91 = vld [vmem:[%s0 + $0x28] sm:$0xf]
  %v92 = vld [vmem:[%s0 + $0x2c] sm:$0xf]
  %v93 = vld [vmem:[%s0 + $0x30] sm:$0xf]
  %v94 = vld [vmem:[%s0 + $0x34] sm:$0xf]
  %v95 = vld [vmem:[%s0 + $0x38] sm:$0xf]
  %v96 = vld [vmem:[%s0 + $0x3c] sm:$0xf]
  %v97 = vld [vmem:[%s0 + $0x40] sm:$0xf]
  %v98 = vld [vmem:[%s0 + $0x44] sm:$0xf]
  %v99 = vld [vmem:[%s0 + $0x48] sm:$0xf]
  %v100 = vld [vmem:[%s0 + $0x4c] sm:$0xf]
  %v101 = vld [vmem:[%s0 + $0x50] sm:$0xf]
  %v102 = vld [vmem:[%s0 + $0x54] sm:$0xf]
  %v103 = vld [vmem:[%s0 + $0x58] sm:$0xf]
  %v104 = vld [vmem:[%s0 + $0x5c] sm:$0xf]
  %v105 = vld [vmem:[%s0 + $0x60] sm:$0xf]
  %v106 = vld [vmem:[%s0 + $0x64] sm:$0xf]
  %v107 = vld [vmem:[%s0 + $0x68] sm:$0xf]
  %v108 = vld [vmem:[%s0 + $0x6c] sm:$0xf]
  %v109 = vld [vmem:[%s0 + $0x70] sm:$0xf]
  %v110 = vld [vmem:[%s0 + $0x74] sm:$0xf]
  %v111 = vld [vmem:[%s0 + $0x78] sm:$0xf]
  %v112 = vld [vmem:[%s0 + $0x7c] sm:$0xf]
  %v113 = vld [vmem:[%s1] sm:$0xf]
  %v114 = vld [vmem:[%s1 + $0x4] sm:$0xf]
  %v115 = vld [vmem:[%s1 + $0x8] sm:$0xf]
  %v116 = vld [vmem:[%s1 + $0xc] sm:$0xf]
  %v117 = vld [vmem:[%s1 + $0x10] sm:$0xf]
  %v118 = vld [vmem:[%s1 + $0x14] sm:$0xf]
  %v119 = vld [vmem:[%s1 + $0x18] sm:$0xf]
  %v120 = vld [vmem:[%s1 + $0x1c] sm:$0xf]
  %v153 = vunpack.c.l.b16 %v81
  %v154 = vunpack.c.l.b16 %v82
  %v155 = vunpack.c.l.b16 %v83
  %v156 = vunpack.c.l.b16 %v84
  %v157 = vunpack.c.l.b16 %v85
  %v158 = vunpack.c.l.b16 %v86
  %v159 = vunpack.c.l.b16 %v87
  %v160 = vunpack.c.l.b16 %v88
  %v161 = vunpack.c.l.b16 %v89
  %v162 = vunpack.c.l.b16 %v90
  %v163 = vunpack.c.l.b16 %v91
  %v164 = vunpack.c.l.b16 %v92
  %v165 = vunpack.c.l.b16 %v93
  %v166 = vunpack.c.l.b16 %v94
  %v167 = vunpack.c.l.b16 %v95
  %v168 = vunpack.c.l.b16 %v96
  %v169 = vunpack.c.l.b16 %v97
  %v170 = vunpack.c.l.b16 %v98
  %v171 = vunpack.c.l.b16 %v99
  %v172 = vunpack.c.l.b16 %v100
  %v173 = vunpack.c.l.b16 %v101
  %v174 = vunpack.c.l.b16 %v102
  %v175 = vunpack.c.l.b16 %v103
  %v176 = vunpack.c.l.b16 %v104
  %v177 = vunpack.c.l.b16 %v105
  %v178 = vunpack.c.l.b16 %v106
  %v179 = vunpack.c.l.b16 %v107
  %v180 = vunpack.c.l.b16 %v108
  %v181 = vunpack.c.l.b16 %v109
  %v182 = vunpack.c.l.b16 %v110
  %v183 = vunpack.c.l.b16 %v111
  %v184 = vunpack.c.l.b16 %v112
  %v185 = vpack.c.b16 %v154, %v153
  %v186 = vpack.c.b16 %v156, %v155
  %v187 = vpack.c.b16 %v158, %v157
  %v188 = vpack.c.b16 %v160, %v159
  %v189 = vpack.c.b16 %v162, %v161
  %v190 = vpack.c.b16 %v164, %v163
  %v191 = vpack.c.b16 %v166, %v165
  %v192 = vpack.c.b16 %v168, %v167
  %v193 = vpack.c.b16 %v170, %v169
  %v194 = vpack.c.b16 %v172, %v171
  %v195 = vpack.c.b16 %v174, %v173
  %v196 = vpack.c.b16 %v176, %v175
  %v197 = vpack.c.b16 %v178, %v177
  %v198 = vpack.c.b16 %v180, %v179
  %v199 = vpack.c.b16 %v182, %v181
  %v200 = vpack.c.b16 %v184, %v183
  %v209 = vunpack.c.l.b16 %v113
  %v210 = vunpack.c.l.b16 %v114
  %v211 = vunpack.c.l.b16 %v115
  %v212 = vunpack.c.l.b16 %v116
  %v213 = vunpack.c.l.b16 %v117
  %v214 = vunpack.c.l.b16 %v118
  %v215 = vunpack.c.l.b16 %v119
  %v216 = vunpack.c.l.b16 %v120
  %v217 = vpack.c.b16 %v210, %v209
  %v218 = vpack.c.b16 %v212, %v211
  %v219 = vpack.c.b16 %v214, %v213
  %v220 = vpack.c.b16 %v216, %v215
  %vm225 = vcmask 523264
  %v227 = vsel %vm225, %v185, 0
  %v230 = vsel %vm225, %v186, 0
  %v233 = vsel %vm225, %v187, 0
  %v236 = vsel %vm225, %v188, 0
  %v239 = vsel %vm225, %v189, 0
  %v242 = vsel %vm225, %v190, 0
  %v245 = vsel %vm225, %v191, 0
  %v248 = vsel %vm225, %v192, 0
  %v251 = vsel %vm225, %v193, 0
  %v254 = vsel %vm225, %v194, 0
  %v257 = vsel %vm225, %v195, 0
  %v260 = vsel %vm225, %v196, 0
  %v263 = vsel %vm225, %v197, 0
  %v266 = vsel %vm225, %v198, 0
  %v269 = vsel %vm225, %v199, 0
  %v272 = vsel %vm225, %v200, 0
  %274 = vmatpush.bf16.msra.mxu0 0
  %275 = vmatpush.bf16.msra.mxu0 0
  %276 = vmatpush.bf16.msra.mxu0 0
  %277 = vmatpush.bf16.msra.mxu0 0
  %278 = vmatpush.bf16.msra.mxu0 %v220
  %279 = vmatpush.bf16.msra.mxu0 %v219
  %280 = vmatpush.bf16.msra.mxu0 %v218
  %281 = vmatpush.bf16.msra.mxu0 %v217
  %282 = vmatmul.bf16.gmra.mxu0 %v227
  %v283 = vpop.f32.mrf.mxu0
  %v284 = vadd.f32 0.0, %v283
  %v285 = vpop.f32.mrf.mxu0
  %v286 = vadd.f32 0.0, %v285
  %287 = vmatmul.bf16.gmra.mxu0 %v230
  %v288 = vpop.f32.mrf.mxu0
  %v289 = vadd.f32 0.0, %v288
  %v290 = vpop.f32.mrf.mxu0
  %v291 = vadd.f32 0.0, %v290
  %292 = vmatmul.bf16.gmra.mxu0 %v233
  %v293 = vpop.f32.mrf.mxu0
  %v294 = vadd.f32 0.0, %v293
  %v295 = vpop.f32.mrf.mxu0
  %v296 = vadd.f32 0.0, %v295
  %297 = vmatmul.bf16.gmra.mxu0 %v236
  %v298 = vpop.f32.mrf.mxu0
  %v299 = vadd.f32 0.0, %v298
  %v300 = vpop.f32.mrf.mxu0
  %v301 = vadd.f32 0.0, %v300
  %302 = vmatmul.bf16.gmra.mxu0 %v239
  %v303 = vpop.f32.mrf.mxu0
  %v304 = vadd.f32 0.0, %v303
  %v305 = vpop.f32.mrf.mxu0
  %v306 = vadd.f32 0.0, %v305
  %307 = vmatmul.bf16.gmra.mxu0 %v242
  %v308 = vpop.f32.mrf.mxu0
  %v309 = vadd.f32 0.0, %v308
  %v310 = vpop.f32.mrf.mxu0
  %v311 = vadd.f32 0.0, %v310
  %312 = vmatmul.bf16.gmra.mxu0 %v245
  %v313 = vpop.f32.mrf.mxu0
  %v314 = vadd.f32 0.0, %v313
  %v315 = vpop.f32.mrf.mxu0
  %v316 = vadd.f32 0.0, %v315
  %317 = vmatmul.bf16.gmra.mxu0 %v248
  %v318 = vpop.f32.mrf.mxu0
  %v319 = vadd.f32 0.0, %v318
  %v320 = vpop.f32.mrf.mxu0
  %v321 = vadd.f32 0.0, %v320
  %322 = vmatmul.bf16.gmra.mxu0 %v251
  %v323 = vpop.f32.mrf.mxu0
  %v324 = vadd.f32 0.0, %v323
  %v325 = vpop.f32.mrf.mxu0
  %v326 = vadd.f32 0.0, %v325
  %327 = vmatmul.bf16.gmra.mxu0 %v254
  %v328 = vpop.f32.mrf.mxu0
  %v329 = vadd.f32 0.0, %v328
  %v330 = vpop.f32.mrf.mxu0
  %v331 = vadd.f32 0.0, %v330
  %332 = vmatmul.bf16.gmra.mxu0 %v257
  %v333 = vpop.f32.mrf.mxu0
  %v334 = vadd.f32 0.0, %v333
  %v335 = vpop.f32.mrf.mxu0
  %v336 = vadd.f32 0.0, %v335
  %337 = vmatmul.bf16.gmra.mxu0 %v260
  %v338 = vpop.f32.mrf.mxu0
  %v339 = vadd.f32 0.0, %v338
  %v340 = vpop.f32.mrf.mxu0
  %v341 = vadd.f32 0.0, %v340
  %342 = vmatmul.bf16.gmra.mxu0 %v263
  %v343 = vpop.f32.mrf.mxu0
  %v344 = vadd.f32 0.0, %v343
  %v345 = vpop.f32.mrf.mxu0
  %v346 = vadd.f32 0.0, %v345
  %347 = vmatmul.bf16.gmra.mxu0 %v266
  %v348 = vpop.f32.mrf.mxu0
  %v349 = vadd.f32 0.0, %v348
  %v350 = vpop.f32.mrf.mxu0
  %v351 = vadd.f32 0.0, %v350
  %352 = vmatmul.bf16.gmra.mxu0 %v269
  %v353 = vpop.f32.mrf.mxu0
  %v354 = vadd.f32 0.0, %v353
  %v355 = vpop.f32.mrf.mxu0
  %v356 = vadd.f32 0.0, %v355
  %357 = vmatmul.bf16.gmra.mxu0 %v272
  %v358 = vpop.f32.mrf.mxu0
  %v359 = vadd.f32 0.0, %v358
  %v360 = vpop.f32.mrf.mxu0
  %v361 = vadd.f32 0.0, %v360
  %362 = vdwg.mxu0
  %v363 = vadd.f32 %v49, %v284
  %v364 = vadd.f32 %v50, %v286
  %v365 = vadd.f32 %v51, %v289
  %v366 = vadd.f32 %v52, %v291
  %v367 = vadd.f32 %v53, %v294
  %v368 = vadd.f32 %v54, %v296
  %v369 = vadd.f32 %v55, %v299
  %v370 = vadd.f32 %v56, %v301
  %v371 = vadd.f32 %v57, %v304
  %v372 = vadd.f32 %v58, %v306
  %v373 = vadd.f32 %v59, %v309
  %v374 = vadd.f32 %v60, %v311
  %v375 = vadd.f32 %v61, %v314
  %v376 = vadd.f32 %v62, %v316
  %v377 = vadd.f32 %v63, %v319
  %v378 = vadd.f32 %v64, %v321
  %v379 = vadd.f32 %v65, %v324
  %v380 = vadd.f32 %v66, %v326
  %v381 = vadd.f32 %v67, %v329
  %v382 = vadd.f32 %v68, %v331
  %v383 = vadd.f32 %v69, %v334
  %v384 = vadd.f32 %v70, %v336
  %v385 = vadd.f32 %v71, %v339
  %v386 = vadd.f32 %v72, %v341
  %v387 = vadd.f32 %v73, %v344
  %v388 = vadd.f32 %v74, %v346
  %v389 = vadd.f32 %v75, %v349
  %v390 = vadd.f32 %v76, %v351
  %v391 = vadd.f32 %v77, %v354
  %v392 = vadd.f32 %v78, %v356
  %v393 = vadd.f32 %v79, %v359
  %v394 = vadd.f32 %v80, %v361
  %395 = vst.msk [vmem:[#allocation2] sm:$0xff] %vm225, %v363
  %396 = vst.msk [vmem:[#allocation2 + $0x8] sm:$0xff] %vm225, %v364
  %397 = vst.msk [vmem:[#allocation2 + $0x10] sm:$0xff] %vm225, %v365
  %398 = vst.msk [vmem:[#allocation2 + $0x18] sm:$0xff] %vm225, %v366
  %399 = vst.msk [vmem:[#allocation2 + $0x20] sm:$0xff] %vm225, %v367
  %400 = vst.msk [vmem:[#allocation2 + $0x28] sm:$0xff] %vm225, %v368
  %401 = vst.msk [vmem:[#allocation2 + $0x30] sm:$0xff] %vm225, %v369
  %402 = vst.msk [vmem:[#allocation2 + $0x38] sm:$0xff] %vm225, %v370
  %403 = vst.msk [vmem:[#allocation2 + $0x40] sm:$0xff] %vm225, %v371
  %404 = vst.msk [vmem:[#allocation2 + $0x48] sm:$0xff] %vm225, %v372
  %405 = vst.msk [vmem:[#allocation2 + $0x50] sm:$0xff] %vm225, %v373
  %406 = vst.msk [vmem:[#allocation2 + $0x58] sm:$0xff] %vm225, %v374
  %407 = vst.msk [vmem:[#allocation2 + $0x60] sm:$0xff] %vm225, %v375
  %408 = vst.msk [vmem:[#allocation2 + $0x68] sm:$0xff] %vm225, %v376
  %409 = vst.msk [vmem:[#allocation2 + $0x70] sm:$0xff] %vm225, %v377
  %410 = vst.msk [vmem:[#allocation2 + $0x78] sm:$0xff] %vm225, %v378
  %411 = vst.msk [vmem:[#allocation2 + $0x80] sm:$0xff] %vm225, %v379
  %412 = vst.msk [vmem:[#allocation2 + $0x88] sm:$0xff] %vm225, %v380
  %413 = vst.msk [vmem:[#allocation2 + $0x90] sm:$0xff] %vm225, %v381
  %414 = vst.msk [vmem:[#allocation2 + $0x98] sm:$0xff] %vm225, %v382
  %415 = vst.msk [vmem:[#allocation2 + $0xa0] sm:$0xff] %vm225, %v383
  %416 = vst.msk [vmem:[#allocation2 + $0xa8] sm:$0xff] %vm225, %v384
  %417 = vst.msk [vmem:[#allocation2 + $0xb0] sm:$0xff] %vm225, %v385
  %418 = vst.msk [vmem:[#allocation2 + $0xb8] sm:$0xff] %vm225, %v386
  %419 = vst.msk [vmem:[#allocation2 + $0xc0] sm:$0xff] %vm225, %v387
  %420 = vst.msk [vmem:[#allocation2 + $0xc8] sm:$0xff] %vm225, %v388
  %421 = vst.msk [vmem:[#allocation2 + $0xd0] sm:$0xff] %vm225, %v389
  %422 = vst.msk [vmem:[#allocation2 + $0xd8] sm:$0xff] %vm225, %v390
  %423 = vst.msk [vmem:[#allocation2 + $0xe0] sm:$0xff] %vm225, %v391
  %424 = vst.msk [vmem:[#allocation2 + $0xe8] sm:$0xff] %vm225, %v392
  %425 = vst.msk [vmem:[#allocation2 + $0xf0] sm:$0xff] %vm225, %v393
  %426 = vst.msk [vmem:[#allocation2 + $0xf8] sm:$0xff] %vm225, %v394
  // Predicated region
  $region14: #{_lambda_.4} parent=0 // pred_check
    %p427 = pneg %p12
  $region15: #{_lambda_.4} parent=0 // pred_check_branch
    %429 = sbr.rel (%p427) target = $region17
  $region16: #{_lambda_.4} parent=0 // pred_region
    %v430 = vld [vmem:[#allocation2] sm:$0xff]
    %v431 = vld [vmem:[#allocation2 + $0x8] sm:$0xff]
    %v432 = vld [vmem:[#allocation2 + $0x10] sm:$0xff]
    %v433 = vld [vmem:[#allocation2 + $0x18] sm:$0xff]
    %v434 = vld [vmem:[#allocation2 + $0x20] sm:$0xff]
    %v435 = vld [vmem:[#allocation2 + $0x28] sm:$0xff]
    %v436 = vld [vmem:[#allocation2 + $0x30] sm:$0xff]
    %v437 = vld [vmem:[#allocation2 + $0x38] sm:$0xff]
    %v438 = vld [vmem:[#allocation2 + $0x40] sm:$0xff]
    %v439 = vld [vmem:[#allocation2 + $0x48] sm:$0xff]
    %v440 = vld [vmem:[#allocation2 + $0x50] sm:$0xff]
    %v441 = vld [vmem:[#allocation2 + $0x58] sm:$0xff]
    %v442 = vld [vmem:[#allocation2 + $0x60] sm:$0xff]
    %v443 = vld [vmem:[#allocation2 + $0x68] sm:$0xff]
    %v444 = vld [vmem:[#allocation2 + $0x70] sm:$0xff]
    %v445 = vld [vmem:[#allocation2 + $0x78] sm:$0xff]
    %v446 = vld [vmem:[#allocation2 + $0x80] sm:$0xff]
    %v447 = vld [vmem:[#allocation2 + $0x88] sm:$0xff]
    %v448 = vld [vmem:[#allocation2 + $0x90] sm:$0xff]
    %v449 = vld [vmem:[#allocation2 + $0x98] sm:$0xff]
    %v450 = vld [vmem:[#allocation2 + $0xa0] sm:$0xff]
    %v451 = vld [vmem:[#allocation2 + $0xa8] sm:$0xff]
    %v452 = vld [vmem:[#allocation2 + $0xb0] sm:$0xff]
    %v453 = vld [vmem:[#allocation2 + $0xb8] sm:$0xff]
    %v454 = vld [vmem:[#allocation2 + $0xc0] sm:$0xff]
    %v455 = vld [vmem:[#allocation2 + $0xc8] sm:$0xff]
    %v456 = vld [vmem:[#allocation2 + $0xd0] sm:$0xff]
    %v457 = vld [vmem:[#allocation2 + $0xd8] sm:$0xff]
    %v458 = vld [vmem:[#allocation2 + $0xe0] sm:$0xff]
    %v459 = vld [vmem:[#allocation2 + $0xe8] sm:$0xff]
    %v460 = vld [vmem:[#allocation2 + $0xf0] sm:$0xff]
    %v461 = vld [vmem:[#allocation2 + $0xf8] sm:$0xff]
    %462 = vst.msk [vmem:[%s2] sm:$0xff] %vm225, %v430
    %463 = vst.msk [vmem:[%s2 + $0x8] sm:$0xff] %vm225, %v431
    %464 = vst.msk [vmem:[%s2 + $0x10] sm:$0xff] %vm225, %v432
    %465 = vst.msk [vmem:[%s2 + $0x18] sm:$0xff] %vm225, %v433
    %466 = vst.msk [vmem:[%s2 + $0x20] sm:$0xff] %vm225, %v434
    %467 = vst.msk [vmem:[%s2 + $0x28] sm:$0xff] %vm225, %v435
    %468 = vst.msk [vmem:[%s2 + $0x30] sm:$0xff] %vm225, %v436
    %469 = vst.msk [vmem:[%s2 + $0x38] sm:$0xff] %vm225, %v437
    %470 = vst.msk [vmem:[%s2 + $0x40] sm:$0xff] %vm225, %v438
    %471 = vst.msk [vmem:[%s2 + $0x48] sm:$0xff] %vm225, %v439
    %472 = vst.msk [vmem:[%s2 + $0x50] sm:$0xff] %vm225, %v440
    %473 = vst.msk [vmem:[%s2 + $0x58] sm:$0xff] %vm225, %v441
    %474 = vst.msk [vmem:[%s2 + $0x60] sm:$0xff] %vm225, %v442
    %475 = vst.msk [vmem:[%s2 + $0x68] sm:$0xff] %vm225, %v443
    %476 = vst.msk [vmem:[%s2 + $0x70] sm:$0xff] %vm225, %v444
    %477 = vst.msk [vmem:[%s2 + $0x78] sm:$0xff] %vm225, %v445
    %478 = vst.msk [vmem:[%s2 + $0x80] sm:$0xff] %vm225, %v446
    %479 = vst.msk [vmem:[%s2 + $0x88] sm:$0xff] %vm225, %v447
    %480 = vst.msk [vmem:[%s2 + $0x90] sm:$0xff] %vm225, %v448
    %481 = vst.msk [vmem:[%s2 + $0x98] sm:$0xff] %vm225, %v449
    %482 = vst.msk [vmem:[%s2 + $0xa0] sm:$0xff] %vm225, %v450
    %483 = vst.msk [vmem:[%s2 + $0xa8] sm:$0xff] %vm225, %v451
    %484 = vst.msk [vmem:[%s2 + $0xb0] sm:$0xff] %vm225, %v452
    %485 = vst.msk [vmem:[%s2 + $0xb8] sm:$0xff] %vm225, %v453
    %486 = vst.msk [vmem:[%s2 + $0xc0] sm:$0xff] %vm225, %v454
    %487 = vst.msk [vmem:[%s2 + $0xc8] sm:$0xff] %vm225, %v455
    %488 = vst.msk [vmem:[%s2 + $0xd0] sm:$0xff] %vm225, %v456
    %489 = vst.msk [vmem:[%s2 + $0xd8] sm:$0xff] %vm225, %v457
    %490 = vst.msk [vmem:[%s2 + $0xe0] sm:$0xff] %vm225, %v458
    %491 = vst.msk [vmem:[%s2 + $0xe8] sm:$0xff] %vm225, %v459
    %492 = vst.msk [vmem:[%s2 + $0xf0] sm:$0xff] %vm225, %v460
    %493 = vst.msk [vmem:[%s2 + $0xf8] sm:$0xff] %vm225, %v461
  $region17: #{_lambda_.4} parent=0 // pred_fallthru
    _
  // Predicated region
  $region18: #{_lambda_.4} parent=0 // pred_check
    _
  $region19: #{_lambda_.4} parent=0 // pred_check_branch
    %495 = sbr.rel (0) target = $region21
  $region20: #{_lambda_.4} parent=0 // pred_region
    _
  $region21: #{_lambda_.4} parent=0 // pred_fallthru
    _
  // Predicated region
  $region22: #{_lambda_.4} parent=0 // pred_check
    _
  $region23: #{_lambda_.4} parent=0 // pred_check_branch
    %497 = sbr.rel (0) target = $region25
  $region24: #{_lambda_.4} parent=0 // pred_region
    _
  $region25: #{_lambda_.4} parent=0 // pred_fallthru
    _

// kernel: _lambda_.7
$region0: #{_lambda_.7}
  #allocation0 [shape = 'u32[]', space=smem, size = 0x4, offset = 0x4, fixed_abs, tag = 'smem constant byte address 0x4 - core index']
  #allocation1 [shape = 'u32[72,128]{1,0:T(1,128)}', space=vmem, size = 0x9000, scoped, tag = 'internal scratch']
  %s0 = inlined_call_operand.vmem [shape: f32[2,128,64], index: 0, kind: input, shape index: {}]
  %s1 = inlined_call_operand.vmem [shape: bf16[64,16], index: 1, kind: input, shape index: {}]
  %s2 = inlined_call_operand.vmem [shape: bf16[16,32], index: 2, kind: input, shape index: {}]
  %s3 = inlined_call_operand.vmem [shape: f32[1,32], index: 3, kind: input, shape index: {}]
  %s4 = inlined_call_operand.vmem [shape: f32[1,32], index: 4, kind: input, shape index: {}]
  %s5 = inlined_call_operand.vmem [shape: f32[1,32], index: 5, kind: input, shape index: {}]
  %s6 = inlined_call_operand.vmem [shape: bf16[32,32], index: 6, kind: input, shape index: {}]
  %s7 = inlined_call_operand.vmem [shape: f32[1,32], index: 7, kind: input, shape index: {}]
  %s8 = inlined_call_operand.vmem [shape: f32[1,32], index: 8, kind: input, shape index: {}]
  %s9 = inlined_call_operand.vmem [shape: f32[1,32], index: 9, kind: input, shape index: {}]
  %s10 = inlined_call_operand.vmem [shape: bf16[32,32], index: 10, kind: input, shape index: {}]
  %s11 = inlined_call_operand.vmem [shape: f32[1,32], index: 11, kind: input, shape index: {}]
  %s12 = inlined_call_operand.vmem [shape: f32[1,32], index: 12, kind: input, shape index: {}]
  %s13 = inlined_call_operand.vmem [shape: f32[1,32], index: 13, kind: input, shape index: {}]
  %s14 = inlined_call_operand.vmem [shape: bf16[32,5], index: 14, kind: input, shape index: {}]
  %s15 = inlined_call_operand.vmem [shape: f32[1,5], index: 15, kind: input, shape index: {}]
  %s16 = inlined_call_operand.hbm [shape: f32[2,5], index: 16, kind: output, shape index: {}]
  %s17 = sld [smem:[#allocation0]]
  $region74: #{_lambda_.7} parent=0
    _
  %s19 = ssub.s32 1, %s17
  %s20 = scalar_select 0, %s19, %s17
  $region1: #{_lambda_.7} parent=0
    #allocation2 [shape = 'u8[1024]{0}', space=vmem, size = 0x400, scoped, tag = 'output window, operand 0, single buffered']
    #allocation3 [shape = 's32[1]{0}', space=sflag, size = 0x4, scoped, tag = 'scoped memory for _lambda_.7']
    %21 = vsyncpa [#allocation3], 0
    // Predicated region
    $region2: #{_lambda_.7} parent=1 // pred_check
      _
    $region3: #{_lambda_.7} parent=1 // pred_check_branch
      %23 = sbr.rel (0) target = $region5
    $region4: #{_lambda_.7} parent=1 // pred_region
      _
    $region5: #{_lambda_.7} parent=1 // pred_fallthru
      _
    // Predicated region
    $region6: #{_lambda_.7} parent=1 // pred_check
      _
    $region7: #{_lambda_.7} parent=1 // pred_check_branch
      %25 = sbr.rel (0) target = $region9
    $region8: #{_lambda_.7} parent=1 // pred_region
      _
    $region9: #{_lambda_.7} parent=1 // pred_fallthru
      _
    // Predicated region
    $region10: #{_lambda_.7} parent=1 // pred_check
      _
    $region11: #{_lambda_.7} parent=1 // pred_check_branch
      %27 = sbr.rel (0) target = $region13
    $region12: #{_lambda_.7} parent=1 // pred_region
      _
    $region13: #{_lambda_.7} parent=1 // pred_fallthru
      _
    // Predicated region
    $region14: #{_lambda_.7} parent=1 // pred_check
      _
    $region15: #{_lambda_.7} parent=1 // pred_check_branch
      %29 = sbr.rel (0) target = $region17
    $region16: #{_lambda_.7} parent=1 // pred_region
      _
    $region17: #{_lambda_.7} parent=1 // pred_fallthru
      _
    // Predicated region
    $region18: #{_lambda_.7} parent=1 // pred_check
      _
    $region19: #{_lambda_.7} parent=1 // pred_check_branch
      %31 = sbr.rel (0) target = $region21
    $region20: #{_lambda_.7} parent=1 // pred_region
      _
    $region21: #{_lambda_.7} parent=1 // pred_fallthru
      _
    // Predicated region
    $region22: #{_lambda_.7} parent=1 // pred_check
      _
    $region23: #{_lambda_.7} parent=1 // pred_check_branch
      %33 = sbr.rel (0) target = $region25
    $region24: #{_lambda_.7} parent=1 // pred_region
      _
    $region25: #{_lambda_.7} parent=1 // pred_fallthru
      _
    // Predicated region
    $region26: #{_lambda_.7} parent=1 // pred_check
      _
    $region27: #{_lambda_.7} parent=1 // pred_check_branch
      %35 = sbr.rel (0) target = $region29
    $region28: #{_lambda_.7} parent=1 // pred_region
      _
    $region29: #{_lambda_.7} parent=1 // pred_fallthru
      _
    // Predicated region
    $region30: #{_lambda_.7} parent=1 // pred_check
      _
    $region31: #{_lambda_.7} parent=1 // pred_check_branch
      %37 = sbr.rel (0) target = $region33
    $region32: #{_lambda_.7} parent=1 // pred_region
      _
    $region33: #{_lambda_.7} parent=1 // pred_fallthru
      _
    // Predicated region
    $region34: #{_lambda_.7} parent=1 // pred_check
      _
    $region35: #{_lambda_.7} parent=1 // pred_check_branch
      %39 = sbr.rel (0) target = $region37
    $region36: #{_lambda_.7} parent=1 // pred_region
      _
    $region37: #{_lambda_.7} parent=1 // pred_fallthru
      _
    // Predicated region
    $region38: #{_lambda_.7} parent=1 // pred_check
      _
    $region39: #{_lambda_.7} parent=1 // pred_check_branch
      %41 = sbr.rel (0) target = $region41
    $region40: #{_lambda_.7} parent=1 // pred_region
      _
    $region41: #{_lambda_.7} parent=1 // pred_fallthru
      _
    // Predicated region
    $region42: #{_lambda_.7} parent=1 // pred_check
      _
    $region43: #{_lambda_.7} parent=1 // pred_check_branch
      %43 = sbr.rel (0) target = $region45
    $region44: #{_lambda_.7} parent=1 // pred_region
      _
    $region45: #{_lambda_.7} parent=1 // pred_fallthru
      _
    // Predicated region
    $region46: #{_lambda_.7} parent=1 // pred_check
      _
    $region47: #{_lambda_.7} parent=1 // pred_check_branch
      %45 = sbr.rel (0) target = $region49
    $region48: #{_lambda_.7} parent=1 // pred_region
      _
    $region49: #{_lambda_.7} parent=1 // pred_fallthru
      _
    // Predicated region
    $region50: #{_lambda_.7} parent=1 // pred_check
      _
    $region51: #{_lambda_.7} parent=1 // pred_check_branch
      %47 = sbr.rel (0) target = $region53
    $region52: #{_lambda_.7} parent=1 // pred_region
      _
    $region53: #{_lambda_.7} parent=1 // pred_fallthru
      _
    // Predicated region
    $region54: #{_lambda_.7} parent=1 // pred_check
      _
    $region55: #{_lambda_.7} parent=1 // pred_check_branch
      %49 = sbr.rel (0) target = $region57
    $region56: #{_lambda_.7} parent=1 // pred_region
      _
    $region57: #{_lambda_.7} parent=1 // pred_fallthru
      _
    // Predicated region
    $region58: #{_lambda_.7} parent=1 // pred_check
      _
    $region59: #{_lambda_.7} parent=1 // pred_check_branch
      %51 = sbr.rel (0) target = $region61
    $region60: #{_lambda_.7} parent=1 // pred_region
      _
    $region61: #{_lambda_.7} parent=1 // pred_fallthru
      _
    // Predicated region
    $region62: #{_lambda_.7} parent=1 // pred_check
      _
    $region63: #{_lambda_.7} parent=1 // pred_check_branch
      %53 = sbr.rel (0) target = $region65
    $region64: #{_lambda_.7} parent=1 // pred_region
      _
    $region65: #{_lambda_.7} parent=1 // pred_fallthru
      _
    %v55 = vld [vmem:[%s0] sm:$0xff]
    %v56 = vld [vmem:[%s0 + $0x8] sm:$0xff]
    %v57 = vld [vmem:[%s0 + $0x10] sm:$0xff]
    %v58 = vld [vmem:[%s0 + $0x18] sm:$0xff]
    %v59 = vld [vmem:[%s0 + $0x20] sm:$0xff]
    %v60 = vld [vmem:[%s0 + $0x28] sm:$0xff]
    %v61 = vld [vmem:[%s0 + $0x30] sm:$0xff]
    %v62 = vld [vmem:[%s0 + $0x38] sm:$0xff]
    %v63 = vld [vmem:[%s0 + $0x40] sm:$0xff]
    %v64 = vld [vmem:[%s0 + $0x48] sm:$0xff]
    %v65 = vld [vmem:[%s0 + $0x50] sm:$0xff]
    %v66 = vld [vmem:[%s0 + $0x58] sm:$0xff]
    %v67 = vld [vmem:[%s0 + $0x60] sm:$0xff]
    %v68 = vld [vmem:[%s0 + $0x68] sm:$0xff]
    %v69 = vld [vmem:[%s0 + $0x70] sm:$0xff]
    %v70 = vld [vmem:[%s0 + $0x78] sm:$0xff]
    %v71 = vld [vmem:[%s0 + $0x80] sm:$0xff]
    %v72 = vld [vmem:[%s0 + $0x88] sm:$0xff]
    %v73 = vld [vmem:[%s0 + $0x90] sm:$0xff]
    %v74 = vld [vmem:[%s0 + $0x98] sm:$0xff]
    %v75 = vld [vmem:[%s0 + $0xa0] sm:$0xff]
    %v76 = vld [vmem:[%s0 + $0xa8] sm:$0xff]
    %v77 = vld [vmem:[%s0 + $0xb0] sm:$0xff]
    %v78 = vld [vmem:[%s0 + $0xb8] sm:$0xff]
    %v79 = vld [vmem:[%s0 + $0xc0] sm:$0xff]
    %v80 = vld [vmem:[%s0 + $0xc8] sm:$0xff]
    %v81 = vld [vmem:[%s0 + $0xd0] sm:$0xff]
    %v82 = vld [vmem:[%s0 + $0xd8] sm:$0xff]
    %v83 = vld [vmem:[%s0 + $0xe0] sm:$0xff]
    %v84 = vld [vmem:[%s0 + $0xe8] sm:$0xff]
    %v85 = vld [vmem:[%s0 + $0xf0] sm:$0xff]
    %v86 = vld [vmem:[%s0 + $0xf8] sm:$0xff]
    %vm87 = vcmask 523264
    %v88 = vsel %vm87, %v55, 0.0
    %v89 = vsel %vm87, %v56, 0.0
    %v90 = vadd.f32 %v88, %v89
    %v91 = vsel %vm87, %v57, 0.0
    %v92 = vadd.f32 %v90, %v91
    %v93 = vsel %vm87, %v58, 0.0
    %v94 = vadd.f32 %v92, %v93
    %v95 = vsel %vm87, %v59, 0.0
    %v96 = vadd.f32 %v94, %v95
    %v97 = vsel %vm87, %v60, 0.0
    %v98 = vadd.f32 %v96, %v97
    %v99 = vsel %vm87, %v61, 0.0
    %v100 = vadd.f32 %v98, %v99
    %v101 = vsel %vm87, %v62, 0.0
    %v102 = vadd.f32 %v100, %v101
    %v103 = vsel %vm87, %v63, 0.0
    %v104 = vadd.f32 %v102, %v103
    %v105 = vsel %vm87, %v64, 0.0
    %v106 = vadd.f32 %v104, %v105
    %v107 = vsel %vm87, %v65, 0.0
    %v108 = vadd.f32 %v106, %v107
    %v109 = vsel %vm87, %v66, 0.0
    %v110 = vadd.f32 %v108, %v109
    %v111 = vsel %vm87, %v67, 0.0
    %v112 = vadd.f32 %v110, %v111
    %v113 = vsel %vm87, %v68, 0.0
    %v114 = vadd.f32 %v112, %v113
    %v115 = vsel %vm87, %v69, 0.0
    %v116 = vadd.f32 %v114, %v115
    %v117 = vsel %vm87, %v70, 0.0
    %v118 = vadd.f32 %v116, %v117
    %v119 = vrot.slane %v118, 4
    %v120 = vadd.f32 %v118, %v119
    %v121 = vrot.slane %v120, 2
    %v122 = vadd.f32 %v120, %v121
    %v123 = vrot.slane %v122, 1
    %v124 = vadd.f32 %v122, %v123
    %v125 = vsel %vm87, %v71, 0.0
    %v126 = vsel %vm87, %v72, 0.0
    %v127 = vadd.f32 %v125, %v126
    %v128 = vsel %vm87, %v73, 0.0
    %v129 = vadd.f32 %v127, %v128
    %v130 = vsel %vm87, %v74, 0.0
    %v131 = vadd.f32 %v129, %v130
    %v132 = vsel %vm87, %v75, 0.0
    %v133 = vadd.f32 %v131, %v132
    %v134 = vsel %vm87, %v76, 0.0
    %v135 = vadd.f32 %v133, %v134
    %v136 = vsel %vm87, %v77, 0.0
    %v137 = vadd.f32 %v135, %v136
    %v138 = vsel %vm87, %v78, 0.0
    %v139 = vadd.f32 %v137, %v138
    %v140 = vsel %vm87, %v79, 0.0
    %v141 = vadd.f32 %v139, %v140
    %v142 = vsel %vm87, %v80, 0.0
    %v143 = vadd.f32 %v141, %v142
    %v144 = vsel %vm87, %v81, 0.0
    %v145 = vadd.f32 %v143, %v144
    %v146 = vsel %vm87, %v82, 0.0
    %v147 = vadd.f32 %v145, %v146
    %v148 = vsel %vm87, %v83, 0.0
    %v149 = vadd.f32 %v147, %v148
    %v150 = vsel %vm87, %v84, 0.0
    %v151 = vadd.f32 %v149, %v150
    %v152 = vsel %vm87, %v85, 0.0
    %v153 = vadd.f32 %v151, %v152
    %v154 = vsel %vm87, %v86, 0.0
    %v155 = vadd.f32 %v153, %v154
    %v156 = vrot.slane %v155, 4
    %v157 = vadd.f32 %v155, %v156
    %v158 = vrot.slane %v157, 2
    %v159 = vadd.f32 %v157, %v158
    %v160 = vrot.slane %v159, 1
    %v161 = vadd.f32 %v159, %v160
    %v162 = vrcp.pop 128.0
    %v163 = vmul.f32 128.0, %v162
    %v164 = vsub.f32 1.0, %v163
    %v165 = vmul.f32 %v162, %v164
    %v166 = vadd.f32 %v162, %v165
    %vm167 = vweird.f32 %v162
    %v168 = vsel %vm167, %v162, %v166
    %v169 = vmul.f32 %v124, %v168
    %v170 = vmul.f32 %v161, %v168
    %v171 = vpack.c.bf16 %v169, %v169
    %v172 = vpack.c.bf16 %v170, %v170
    %v173 = vld [vmem:[%s1] sm:$0xf]
    %v174 = vld [vmem:[%s1 + $0x4] sm:$0xf]
    %v175 = vld [vmem:[%s1 + $0x8] sm:$0xf]
    %v176 = vld [vmem:[%s1 + $0xc] sm:$0xf]
    %v177 = vld [vmem:[%s1 + $0x10] sm:$0xf]
    %v178 = vld [vmem:[%s1 + $0x14] sm:$0xf]
    %v179 = vld [vmem:[%s1 + $0x18] sm:$0xf]
    %v180 = vld [vmem:[%s1 + $0x1c] sm:$0xf]
    %v183 = vunpack.c.l.b16 %v171
    %v184 = vunpack.c.l.b16 %v172
    %vm185 = vcmask 1041409
    %v186 = vsel %vm185, %v184, %v183
    %v187 = vpack.c.b16 %v186, %v186
    %v196 = vunpack.c.l.b16 %v173
    %v197 = vunpack.c.l.b16 %v174
    %v198 = vunpack.c.l.b16 %v175
    %v199 = vunpack.c.l.b16 %v176
    %v200 = vunpack.c.l.b16 %v177
    %v201 = vunpack.c.l.b16 %v178
    %v202 = vunpack.c.l.b16 %v179
    %v203 = vunpack.c.l.b16 %v180
    %v204 = vpack.c.b16 %v197, %v196
    %v205 = vpack.c.b16 %v199, %v198
    %v206 = vpack.c.b16 %v201, %v200
    %v207 = vpack.c.b16 %v203, %v202
    %v213 = vsel %vm87, %v187, 0
    %215 = vmatpush.bf16.msra.mxu0 0
    %216 = vmatpush.bf16.msra.mxu0 0
    %217 = vmatpush.bf16.msra.mxu0 0
    %218 = vmatpush.bf16.msra.mxu0 0
    %219 = vmatpush.bf16.msra.mxu0 %v207
    %220 = vmatpush.bf16.msra.mxu0 %v206
    %221 = vmatpush.bf16.msra.mxu0 %v205
    %222 = vmatpush.bf16.msra.mxu0 %v204
    %223 = vmatmul.bf16.gmra.mxu0 %v213
    %v224 = vpop.f32.mrf.mxu0
    %v225 = vadd.f32 0.0, %v224
    %v226 = vpop.f32.mrf.mxu0
    %227 = vdwg.mxu0
    %v228 = vpack.c.bf16 %v225, %v225
    %v229 = vld [vmem:[%s2] sm:$0xf]
    %v230 = vld [vmem:[%s2 + $0x4] sm:$0xf]
    %v231 = vld [vmem:[%s3] sm:$0x1]
    %v233 = vperm.slane %v231, 0
    %v237 = vunpack.c.l.b16 %v229
    %v238 = vunpack.c.l.b16 %v230
    %v239 = vpack.c.b16 %v238, %v237
    %vm241 = vcmask 130048
    %v243 = vsel %vm241, %v228, 0
    %245 = vmatpush.bf16.msra.mxu0 0
    %246 = vmatpush.bf16.msra.mxu0 0
    %247 = vmatpush.bf16.msra.mxu0 0
    %248 = vmatpush.bf16.msra.mxu0 0
    %249 = vmatpush.bf16.msra.mxu0 0
    %250 = vmatpush.bf16.msra.mxu0 0
    %251 = vmatpush.bf16.msra.mxu0 0
    %252 = vmatpush.bf16.msra.mxu0 %v239
    %253 = vmatmul.bf16.gmra.mxu0 %v243
    %v254 = vpop.f32.mrf.mxu0
    %v255 = vadd.f32 %v233, %v254
    %v256 = vpop.f32.mrf.mxu0
    %257 = vdwg.mxu0
    %vm258 = vcmask 254976
    %v259 = vsel %vm258, %v255, 0.0
    %260 = vadd.xlane.f32.xlu0 %v259
    %v261 = vpop.xlane.xlu0 %260
    %v262 = vrcp.pop 32.0
    %v263 = vmul.f32 32.0, %v262
    %v264 = vsub.f32 1.0, %v263
    %v265 = vmul.f32 %v262, %v264
    %v266 = vadd.f32 %v262, %v265
    %vm267 = vweird.f32 %v262
    %v268 = vsel %vm267, %v262, %v266
    %v269 = vmul.f32 %v261, %v268
    %v270 = vsub.f32 %v255, %v269
    %v271 = vmul.f32 %v270, %v270
    %v272 = vsel %vm258, %v271, 0.0
    %273 = vadd.xlane.f32.xlu0 %v272
    %v274 = vpop.xlane.xlu0 %273
    %v275 = vmul.f32 %v274, %v268
    %v276 = vadd.f32 %v275, 1e-05
    %v277 = vrsqrt.pop %v276
    %v278 = vmul.f32 %v277, %v276
    %v279 = vmul.f32 %v278, %v277
    %v280 = vmul.f32 0.5, %v279
    %v281 = vsub.f32 1.5, %v280
    %v282 = vmul.f32 %v277, %v281
    %vm283 = vweird.f32 %v276
    %vm284 = vweird.f32 %v277
    %vm285 = vmor %vm283, %vm284
    %v286 = vsel %vm285, %v277, %v282
    %v287 = vmul.f32 %v270, %v286
    %v288 = vld [vmem:[%s4] sm:$0x1]
    %v290 = vperm.slane %v288, 0
    %v292 = vmul.f32 %v287, %v290
    %v293 = vld [vmem:[%s5] sm:$0x1]
    %v295 = vperm.slane %v293, 0
    %v297 = vadd.f32 %v292, %v295
    %v298 = vmax.f32 %v297, 0.0
    %v299 = vpack.c.bf16 %v298, %v298
    %v300 = vld [vmem:[%s6] sm:$0xf]
    %v301 = vld [vmem:[%s6 + $0x4] sm:$0xf]
    %v302 = vld [vmem:[%s6 + $0x8] sm:$0xf]
    %v303 = vld [vmem:[%s6 + $0xc] sm:$0xf]
    %v304 = vld [vmem:[%s7] sm:$0x1]
    %v306 = vperm.slane %v304, 0
    %v312 = vunpack.c.l.b16 %v300
    %v313 = vunpack.c.l.b16 %v301
    %v314 = vunpack.c.l.b16 %v302
    %v315 = vunpack.c.l.b16 %v303
    %v316 = vpack.c.b16 %v313, %v312
    %v317 = vpack.c.b16 %v315, %v314
    %vm320 = vcmask 261120
    %v322 = vsel %vm320, %v299, 0
    %324 = vmatpush.bf16.msra.mxu0 0
    %325 = vmatpush.bf16.msra.mxu0 0
    %326 = vmatpush.bf16.msra.mxu0 0
    %327 = vmatpush.bf16.msra.mxu0 0
    %328 = vmatpush.bf16.msra.mxu0 0
    %329 = vmatpush.bf16.msra.mxu0 0
    %330 = vmatpush.bf16.msra.mxu0 %v317
    %331 = vmatpush.bf16.msra.mxu0 %v316
    %332 = vmatmul.bf16.gmra.mxu0 %v322
    %v333 = vpop.f32.mrf.mxu0
    %v334 = vadd.f32 %v306, %v333
    %v335 = vpop.f32.mrf.mxu0
    %336 = vdwg.mxu0
    %v337 = vsel %vm258, %v334, 0.0
    %338 = vadd.xlane.f32.xlu0 %v337
    %v339 = vpop.xlane.xlu0 %338
    %v340 = vmul.f32 %v339, %v268
    %v341 = vsub.f32 %v334, %v340
    %v342 = vmul.f32 %v341, %v341
    %v343 = vsel %vm258, %v342, 0.0
    %344 = vadd.xlane.f32.xlu0 %v343
    %v345 = vpop.xlane.xlu0 %344
    %v346 = vmul.f32 %v345, %v268
    %v347 = vadd.f32 %v346, 1e-05
    %v348 = vrsqrt.pop %v347
    %v349 = vmul.f32 %v348, %v347
    %v350 = vmul.f32 %v349, %v348
    %v351 = vmul.f32 0.5, %v350
    %v352 = vsub.f32 1.5, %v351
    %v353 = vmul.f32 %v348, %v352
    %vm354 = vweird.f32 %v347
    %vm355 = vweird.f32 %v348
    %vm356 = vmor %vm354, %vm355
    %v357 = vsel %vm356, %v348, %v353
    %v358 = vmul.f32 %v341, %v357
    %v359 = vld [vmem:[%s8] sm:$0x1]
    %v361 = vperm.slane %v359, 0
    %v363 = vmul.f32 %v358, %v361
    %v364 = vld [vmem:[%s9] sm:$0x1]
    %v366 = vperm.slane %v364, 0
    %v368 = vadd.f32 %v363, %v366
    %v369 = vmax.f32 %v368, 0.0
    %v370 = vpack.c.bf16 %v369, %v369
    %v371 = vld [vmem:[%s10] sm:$0xf]
    %v372 = vld [vmem:[%s10 + $0x4] sm:$0xf]
    %v373 = vld [vmem:[%s10 + $0x8] sm:$0xf]
    %v374 = vld [vmem:[%s10 + $0xc] sm:$0xf]
    %v375 = vld [vmem:[%s11] sm:$0x1]
    %v377 = vperm.slane %v375, 0
    %v383 = vunpack.c.l.b16 %v371
    %v384 = vunpack.c.l.b16 %v372
    %v385 = vunpack.c.l.b16 %v373
    %v386 = vunpack.c.l.b16 %v374
    %v387 = vpack.c.b16 %v384, %v383
    %v388 = vpack.c.b16 %v386, %v385
    %v392 = vsel %vm320, %v370, 0
    %394 = vmatpush.bf16.msra.mxu0 0
    %395 = vmatpush.bf16.msra.mxu0 0
    %396 = vmatpush.bf16.msra.mxu0 0
    %397 = vmatpush.bf16.msra.mxu0 0
    %398 = vmatpush.bf16.msra.mxu0 0
    %399 = vmatpush.bf16.msra.mxu0 0
    %400 = vmatpush.bf16.msra.mxu0 %v388
    %401 = vmatpush.bf16.msra.mxu0 %v387
    %402 = vmatmul.bf16.gmra.mxu0 %v392
    %v403 = vpop.f32.mrf.mxu0
    %v404 = vadd.f32 %v377, %v403
    %v405 = vpop.f32.mrf.mxu0
    %406 = vdwg.mxu0
    %v407 = vsel %vm258, %v404, 0.0
    %408 = vadd.xlane.f32.xlu0 %v407
    %v409 = vpop.xlane.xlu0 %408
    %v410 = vmul.f32 %v409, %v268
    %v411 = vsub.f32 %v404, %v410
    %v412 = vmul.f32 %v411, %v411
    %v413 = vsel %vm258, %v412, 0.0
    %414 = vadd.xlane.f32.xlu0 %v413
    %v415 = vpop.xlane.xlu0 %414
    %v416 = vmul.f32 %v415, %v268
    %v417 = vadd.f32 %v416, 1e-05
    %v418 = vrsqrt.pop %v417
    %v419 = vmul.f32 %v418, %v417
    %v420 = vmul.f32 %v419, %v418
    %v421 = vmul.f32 0.5, %v420
    %v422 = vsub.f32 1.5, %v421
    %v423 = vmul.f32 %v418, %v422
    %vm424 = vweird.f32 %v417
    %vm425 = vweird.f32 %v418
    %vm426 = vmor %vm424, %vm425
    %v427 = vsel %vm426, %v418, %v423
    %v428 = vmul.f32 %v411, %v427
    %v429 = vld [vmem:[%s12] sm:$0x1]
    %v431 = vperm.slane %v429, 0
    %v433 = vmul.f32 %v428, %v431
    %v434 = vld [vmem:[%s13] sm:$0x1]
    %v436 = vperm.slane %v434, 0
    %v438 = vadd.f32 %v433, %v436
    %v439 = vmax.f32 %v438, 0.0
    %v440 = vpack.c.bf16 %v439, %v439
    %v441 = vld [vmem:[%s14] sm:$0xf]
    %v442 = vld [vmem:[%s14 + $0x4] sm:$0xf]
    %v443 = vld [vmem:[%s14 + $0x8] sm:$0xf]
    %v444 = vld [vmem:[%s14 + $0xc] sm:$0xf]
    %v445 = vld [vmem:[%s15] sm:$0x1]
    %v447 = vperm.slane %v445, 0
    %v453 = vunpack.c.l.b16 %v441
    %v454 = vunpack.c.l.b16 %v442
    %v455 = vunpack.c.l.b16 %v443
    %v456 = vunpack.c.l.b16 %v444
    %v457 = vpack.c.b16 %v454, %v453
    %v458 = vpack.c.b16 %v456, %v455
    %v462 = vsel %vm320, %v440, 0
    %464 = vmatpush.bf16.msra.mxu0 0
    %465 = vmatpush.bf16.msra.mxu0 0
    %466 = vmatpush.bf16.msra.mxu0 0
    %467 = vmatpush.bf16.msra.mxu0 0
    %468 = vmatpush.bf16.msra.mxu0 0
    %469 = vmatpush.bf16.msra.mxu0 0
    %470 = vmatpush.bf16.msra.mxu0 %v458
    %471 = vmatpush.bf16.msra.mxu0 %v457
    %472 = vmatmul.bf16.gmra.mxu0 %v462
    %v473 = vpop.f32.mrf.mxu0
    %v474 = vadd.f32 %v447, %v473
    %v475 = vpop.f32.mrf.mxu0
    %476 = vdwg.mxu0
    %vm477 = vcmask 33792
    %478 = vst.msk [vmem:[#allocation2] sm:$0x3] %vm477, %v474
    // Predicated region
    $region66: #{_lambda_.7} parent=1 // pred_check
      _
    $region67: #{_lambda_.7} parent=1 // pred_check_branch
      %480 = sbr.rel (0) target = $region69
    $region68: #{_lambda_.7} parent=1 // pred_region
      %482 = vsyncadd [#allocation3], 0
      %s484 = sshll.u32 [#allocation2], 4
      %s485 = int_to_ptr.vmem [resolvable:$true] %s484
      %s486 = sshll.u32 %s16, 4
      %s487 = int_to_ptr.hbm [resolvable:$true] %s486
      %489 = dma.vmem_to_hbm [thread:$0]  %s485, 32, %s487, [#allocation3]
    $region69: #{_lambda_.7} parent=1 // pred_fallthru
      _
    // Predicated region
    $region70: #{_lambda_.7} parent=1 // pred_check
      _
    $region71: #{_lambda_.7} parent=1 // pred_check_branch
      %491 = sbr.rel (0) target = $region73
    $region72: #{_lambda_.7} parent=1 // pred_region
      %493 = dma.done [#allocation3], 32
    $region73: #{_lambda_.7} parent=1 // pred_fallthru
      _
    %494 = vsyncpa [#allocation3], 1

// kernel: _lambda_.5
$region0: #{_lambda_.5}
  #allocation0 [shape = 'u32[]', space=smem, size = 0x4, offset = 0x4, fixed_abs, tag = 'smem constant byte address 0x4 - core index']
  #allocation1 [shape = 'u32[72,128]{1,0:T(1,128)}', space=vmem, size = 0x9000, scoped, tag = 'internal scratch']
  #allocation2 [shape = 'f32[32,64]{1,0:T(8,128)}', space=vmem, size = 0x4000, scoped, tag = 'scratch operand']
  #allocation3 [shape = 'f32[64,160]{1,0:T(8,128)}', space=vmem, size = 0x10000, scoped, tag = 'scratch operand']
  %s0 = inlined_call_operand.vmem [shape: f32[2,128,64], index: 0, kind: input, shape index: {}, may-alias: {0,1}]
  %s1 = inlined_call_operand.vmem [shape: f32[2,128,64], index: 1, kind: input, shape index: {}, may-alias: {0,1}]
  %s2 = inlined_call_operand.vmem [shape: bf16[64,512], index: 2, kind: input, shape index: {}]
  %s3 = inlined_call_operand.vmem [shape: f32[4,160], index: 3, kind: input, shape index: {}]
  %s4 = inlined_call_operand.vmem [shape: bf16[128,64], index: 4, kind: input, shape index: {}]
  %s5 = inlined_call_operand.vmem [shape: f32[3,2], index: 5, kind: input, shape index: {}]
  %s6 = inlined_call_operand.vmem [shape: f32[1,160], index: 6, kind: input, shape index: {}]
  %s7 = inlined_call_operand.vmem [shape: f32[1,128], index: 7, kind: input, shape index: {}]
  %s8 = inlined_call_operand.vmem [shape: f32[2,128,64], index: 8, kind: output, shape index: {}]
  %s9 = sld [smem:[#allocation0]]
  $region69: #{_lambda_.5} parent=0
    _
  %s11 = ssub.s32 1, %s9
  %s12 = scalar_select 0, %s11, %s9
  loop: start=0, step=1, limit=6
  $region2: #{_lambda_.5} parent=0 // loop_pre_header
    _
  $region3: #{_lambda_.5} parent=0 // loop_header
    %s14 = sphi 0, %s18
    %p15 = scmp.ge.s32.totalorder %s14, 6
    %s21 = sphi 0, %s33
    %s22 = sphi 0, %s29
    %s23 = sphi 0, %s21
    %s24 = sphi 0, %s22
    %s25 = sphi 0, %s23
    %s26 = sphi 0, %s24
    %s38 = sphi 0, %s40
    %s41 = sphi 0, %s38
    %s42 = sphi 0, %s41
    %s58 = sphi 0, %s42
    %s66 = sphi 0, %s68
    %s69 = sphi 0, %s66
    %s70 = sphi 0, %s69
    %s86 = sphi 0, %s70
    %s90 = sphi 0, %s90
    %s92 = sphi 0, %s90
    %s93 = sphi 0, %s92
    %s107 = sphi 0, %s93
    %s111 = sphi 0, %s111
    %s113 = sphi 0, %s111
    %s114 = sphi 0, %s113
    %s128 = sphi 0, %s114
    %s132 = sphi 0, %s132
    %s134 = sphi 0, %s132
    %s135 = sphi 0, %s134
    %s149 = sphi 0, %s135
    %s153 = sphi 0, %s153
    %s155 = sphi 0, %s153
    %s156 = sphi 0, %s155
    %s170 = sphi 0, %s156
    %s174 = sphi 0, %s174
    %s176 = sphi 0, %s174
    %s177 = sphi 0, %s176
    %s191 = sphi 0, %s177
    %s195 = sphi 0, %s195
    %s197 = sphi 0, %s195
    %s198 = sphi 0, %s197
    %s212 = sphi 0, %s198
    %s220 = sphi 0, %s222
    %s223 = sphi 0, %s220
    %s224 = sphi 0, %s223
    %s240 = sphi 0, %s224
  $region4: #{_lambda_.5} parent=0 // loop_header_branch
    %17 = sbr.rel (%p15) target = $region8
  $region5: #{_lambda_.5} parent=0 // loop_body
    %s19 = ssub.s32 %s14, 1
    %s20 = ssub.s32 %s14, 2
    %s27 = sadd.s32 1, %s22
    %p28 = scmp.ge.s32.totalorder %s27, 2
    %s29 = scalar_select %p28, 0, %s27
    %s30 = sadd.s32 1, %s21
    %s31 = scalar_select %p28, %s30, %s21
    %p32 = scmp.ge.s32.totalorder %s31, 2
    %s33 = scalar_select %p32, 0, %s31
    %s34 = ssub.s32 %s21, %s33
    %s35 = ssub.s32 %s22, %s29
    %s36 = sor.u32 %s34, %s35
    %p37 = scmp.eq.s32.totalorder %s36, 0
    %s39 = sadd.s32 %s38, 1
    %s40 = scalar_select %p37, %s38, %s39
    %p43 = pneg %p37
    %p44 = scmp.eq.s32.totalorder %s14, 3
    %p45 = por %p43, %p44
    %p46 = scmp.ne.s32.totalorder %s38, %s41
    %p47 = scmp.eq.s32.totalorder %s14, 0
    %p48 = por %p46, %p47
    %p49 = scmp.ne.s32.totalorder %s38, %s41
    %p50 = scmp.eq.s32.totalorder %s19, 3
    %p51 = por %p49, %p50
    %p52 = scmp.ne.s32.totalorder %s41, %s42
    %p53 = scmp.eq.s32.totalorder %s19, 0
    %p54 = por %p52, %p53
    %p55 = scmp.ne.s32.totalorder %s41, %s42
    %p56 = scmp.eq.s32.totalorder %s20, 3
    %p57 = por %p55, %p56
    %p59 = scmp.ne.s32.totalorder %s42, %s58
    %p60 = scmp.eq.s32.totalorder %s20, 0
    %p61 = por %p59, %p60
    %s62 = ssub.s32 %s21, %s33
    %s63 = ssub.s32 %s22, %s29
    %s64 = sor.u32 %s62, %s63
    %p65 = scmp.eq.s32.totalorder %s64, 0
    %s67 = sadd.s32 %s66, 1
    %s68 = scalar_select %p65, %s66, %s67
    %p71 = pneg %p65
    %p72 = scmp.eq.s32.totalorder %s14, 3
    %p73 = por %p71, %p72
    %p74 = scmp.ne.s32.totalorder %s66, %s69
    %p75 = scmp.eq.s32.totalorder %s14, 0
    %p76 = por %p74, %p75
    %p77 = scmp.ne.s32.totalorder %s66, %s69
    %p78 = scmp.eq.s32.totalorder %s19, 3
    %p79 = por %p77, %p78
    %p80 = scmp.ne.s32.totalorder %s69, %s70
    %p81 = scmp.eq.s32.totalorder %s19, 0
    %p82 = por %p80, %p81
    %p83 = scmp.ne.s32.totalorder %s69, %s70
    %p84 = scmp.eq.s32.totalorder %s20, 3
    %p85 = por %p83, %p84
    %p87 = scmp.ne.s32.totalorder %s70, %s86
    %p88 = scmp.eq.s32.totalorder %s20, 0
    %p89 = por %p87, %p88
    %s91 = sadd.s32 %s90, 1
    %p94 = scmp.eq.s32.totalorder %s14, 3
    %p95 = scmp.ne.s32.totalorder %s90, %s92
    %p96 = scmp.eq.s32.totalorder %s14, 0
    %p97 = por %p95, %p96
    %p98 = scmp.ne.s32.totalorder %s90, %s92
    %p99 = scmp.eq.s32.totalorder %s19, 3
    %p100 = por %p98, %p99
    %p101 = scmp.ne.s32.totalorder %s92, %s93
    %p102 = scmp.eq.s32.totalorder %s19, 0
    %p103 = por %p101, %p102
    %p104 = scmp.ne.s32.totalorder %s92, %s93
    %p105 = scmp.eq.s32.totalorder %s20, 3
    %p106 = por %p104, %p105
    %p108 = scmp.ne.s32.totalorder %s93, %s107
    %p109 = scmp.eq.s32.totalorder %s20, 0
    %p110 = por %p108, %p109
    %s112 = sadd.s32 %s111, 1
    %p115 = scmp.eq.s32.totalorder %s14, 3
    %p116 = scmp.ne.s32.totalorder %s111, %s113
    %p117 = scmp.eq.s32.totalorder %s14, 0
    %p118 = por %p116, %p117
    %p119 = scmp.ne.s32.totalorder %s111, %s113
    %p120 = scmp.eq.s32.totalorder %s19, 3
    %p121 = por %p119, %p120
    %p122 = scmp.ne.s32.totalorder %s113, %s114
    %p123 = scmp.eq.s32.totalorder %s19, 0
    %p124 = por %p122, %p123
    %p125 = scmp.ne.s32.totalorder %s113, %s114
    %p126 = scmp.eq.s32.totalorder %s20, 3
    %p127 = por %p125, %p126
    %p129 = scmp.ne.s32.totalorder %s114, %s128
    %p130 = scmp.eq.s32.totalorder %s20, 0
    %p131 = por %p129, %p130
    %s133 = sadd.s32 %s132, 1
    %p136 = scmp.eq.s32.totalorder %s14, 3
    %p137 = scmp.ne.s32.totalorder %s132, %s134
    %p138 = scmp.eq.s32.totalorder %s14, 0
    %p139 = por %p137, %p138
    %p140 = scmp.ne.s32.totalorder %s132, %s134
    %p141 = scmp.eq.s32.totalorder %s19, 3
    %p142 = por %p140, %p141
    %p143 = scmp.ne.s32.totalorder %s134, %s135
    %p144 = scmp.eq.s32.totalorder %s19, 0
    %p145 = por %p143, %p144
    %p146 = scmp.ne.s32.totalorder %s134, %s135
    %p147 = scmp.eq.s32.totalorder %s20, 3
    %p148 = por %p146, %p147
    %p150 = scmp.ne.s32.totalorder %s135, %s149
    %p151 = scmp.eq.s32.totalorder %s20, 0
    %p152 = por %p150, %p151
    %s154 = sadd.s32 %s153, 1
    %p157 = scmp.eq.s32.totalorder %s14, 3
    %p158 = scmp.ne.s32.totalorder %s153, %s155
    %p159 = scmp.eq.s32.totalorder %s14, 0
    %p160 = por %p158, %p159
    %p161 = scmp.ne.s32.totalorder %s153, %s155
    %p162 = scmp.eq.s32.totalorder %s19, 3
    %p163 = por %p161, %p162
    %p164 = scmp.ne.s32.totalorder %s155, %s156
    %p165 = scmp.eq.s32.totalorder %s19, 0
    %p166 = por %p164, %p165
    %p167 = scmp.ne.s32.totalorder %s155, %s156
    %p168 = scmp.eq.s32.totalorder %s20, 3
    %p169 = por %p167, %p168
    %p171 = scmp.ne.s32.totalorder %s156, %s170
    %p172 = scmp.eq.s32.totalorder %s20, 0
    %p173 = por %p171, %p172
    %s175 = sadd.s32 %s174, 1
    %p178 = scmp.eq.s32.totalorder %s14, 3
    %p179 = scmp.ne.s32.totalorder %s174, %s176
    %p180 = scmp.eq.s32.totalorder %s14, 0
    %p181 = por %p179, %p180
    %p182 = scmp.ne.s32.totalorder %s174, %s176
    %p183 = scmp.eq.s32.totalorder %s19, 3
    %p184 = por %p182, %p183
    %p185 = scmp.ne.s32.totalorder %s176, %s177
    %p186 = scmp.eq.s32.totalorder %s19, 0
    %p187 = por %p185, %p186
    %p188 = scmp.ne.s32.totalorder %s176, %s177
    %p189 = scmp.eq.s32.totalorder %s20, 3
    %p190 = por %p188, %p189
    %p192 = scmp.ne.s32.totalorder %s177, %s191
    %p193 = scmp.eq.s32.totalorder %s20, 0
    %p194 = por %p192, %p193
    %s196 = sadd.s32 %s195, 1
    %p199 = scmp.eq.s32.totalorder %s14, 3
    %p200 = scmp.ne.s32.totalorder %s195, %s197
    %p201 = scmp.eq.s32.totalorder %s14, 0
    %p202 = por %p200, %p201
    %p203 = scmp.ne.s32.totalorder %s195, %s197
    %p204 = scmp.eq.s32.totalorder %s19, 3
    %p205 = por %p203, %p204
    %p206 = scmp.ne.s32.totalorder %s197, %s198
    %p207 = scmp.eq.s32.totalorder %s19, 0
    %p208 = por %p206, %p207
    %p209 = scmp.ne.s32.totalorder %s197, %s198
    %p210 = scmp.eq.s32.totalorder %s20, 3
    %p211 = por %p209, %p210
    %p213 = scmp.ne.s32.totalorder %s198, %s212
    %p214 = scmp.eq.s32.totalorder %s20, 0
    %p215 = por %p213, %p214
    %s216 = ssub.s32 %s21, %s33
    %s217 = ssub.s32 %s22, %s29
    %s218 = sor.u32 %s216, %s217
    %p219 = scmp.eq.s32.totalorder %s218, 0
    %s221 = sadd.s32 %s220, 1
    %s222 = scalar_select %p219, %s220, %s221
    %p225 = pneg %p219
    %p226 = scmp.eq.s32.totalorder %s14, 3
    %p227 = por %p225, %p226
    %p228 = scmp.ne.s32.totalorder %s220, %s223
    %p229 = scmp.eq.s32.totalorder %s14, 0
    %p230 = por %p228, %p229
    %p231 = scmp.ne.s32.totalorder %s220, %s223
    %p232 = scmp.eq.s32.totalorder %s19, 3
    %p233 = por %p231, %p232
    %p234 = scmp.ne.s32.totalorder %s223, %s224
    %p235 = scmp.eq.s32.totalorder %s19, 0
    %p236 = por %p234, %p235
    %p237 = scmp.ne.s32.totalorder %s223, %s224
    %p238 = scmp.eq.s32.totalorder %s20, 3
    %p239 = por %p237, %p238
    %p241 = scmp.ne.s32.totalorder %s224, %s240
    %p242 = scmp.eq.s32.totalorder %s20, 0
    %p243 = por %p241, %p242
    %p244 = scmp.le.s32.totalorder 1, %s14
    %p245 = scmp.lt.s32.totalorder %s14, 5
    %p246 = pnand %p244, %p245
    %p247 = pneg %p246
    // Predicated region
    $region9: #{_lambda_.5} parent=5 // pred_check
      _
    $region10: #{_lambda_.5} parent=5 // pred_check_branch
      %249 = sbr.rel (%p246) target = $region12
    $region11: #{_lambda_.5} parent=5 // pred_region
      %s250 = ssub.s32 %s14, 1
      // Predicated region
      $region13: #{_lambda_.5} parent=11 // pred_check
        %p251 = pneg %p103
      $region14: #{_lambda_.5} parent=11 // pred_check_branch
        %253 = sbr.rel (%p251) target = $region16
      $region15: #{_lambda_.5} parent=11 // pred_region
        _
      $region16: #{_lambda_.5} parent=11 // pred_fallthru
        _
      // Predicated region
      $region17: #{_lambda_.5} parent=11 // pred_check
        %p254 = pneg %p124
      $region18: #{_lambda_.5} parent=11 // pred_check_branch
        %256 = sbr.rel (%p254) target = $region20
      $region19: #{_lambda_.5} parent=11 // pred_region
        _
      $region20: #{_lambda_.5} parent=11 // pred_fallthru
        _
      // Predicated region
      $region21: #{_lambda_.5} parent=11 // pred_check
        %p257 = pneg %p145
      $region22: #{_lambda_.5} parent=11 // pred_check_branch
        %259 = sbr.rel (%p257) target = $region24
      $region23: #{_lambda_.5} parent=11 // pred_region
        _
      $region24: #{_lambda_.5} parent=11 // pred_fallthru
        _
      // Predicated region
      $region25: #{_lambda_.5} parent=11 // pred_check
        %p260 = pneg %p166
      $region26: #{_lambda_.5} parent=11 // pred_check_branch
        %262 = sbr.rel (%p260) target = $region28
      $region27: #{_lambda_.5} parent=11 // pred_region
        _
      $region28: #{_lambda_.5} parent=11 // pred_fallthru
        _
      // Predicated region
      $region29: #{_lambda_.5} parent=11 // pred_check
        %p263 = pneg %p187
      $region30: #{_lambda_.5} parent=11 // pred_check_branch
        %265 = sbr.rel (%p263) target = $region32
      $region31: #{_lambda_.5} parent=11 // pred_region
        _
      $region32: #{_lambda_.5} parent=11 // pred_fallthru
        _
      // Predicated region
      $region33: #{_lambda_.5} parent=11 // pred_check
        %p266 = pneg %p208
      $region34: #{_lambda_.5} parent=11 // pred_check_branch
        %268 = sbr.rel (%p266) target = $region36
      $region35: #{_lambda_.5} parent=11 // pred_region
        _
      $region36: #{_lambda_.5} parent=11 // pred_fallthru
        _
    $region12: #{_lambda_.5} parent=5 // pred_fallthru
      _
    %p269 = scmp.lt.s32.totalorder %s14, 4
    // Predicated region
    $region37: #{_lambda_.5} parent=5 // pred_check
      %p270 = pneg %p269
    $region38: #{_lambda_.5} parent=5 // pred_check_branch
      %272 = sbr.rel (%p270) target = $region40
    $region39: #{_lambda_.5} parent=5 // pred_region
      // Predicated region
      $region41: #{_lambda_.5} parent=39 // pred_check
        %p273 = pneg %p48
      $region42: #{_lambda_.5} parent=39 // pred_check_branch
        %275 = sbr.rel (%p273) target = $region44
      $region43: #{_lambda_.5} parent=39 // pred_region
        %s276 = smul.u32 8, %s22
        %p277 = scmp.lt.s32.totalorder %s21, 1
        %s278 = scalar_select %p277, %s21, 1
        %p279 = scmp.lt.s32.totalorder %s276, 15
        %s280 = scalar_select %p279, %s276, 15
        %s281 = smul.addr %s278, 16
        %s282 = sadd.s32 %s280, %s281
        %s283 = smul.addr %s282, 8
        %s284 = scalar_lea.vmem %s0, %s283
        %s285 = smul.u32 8, %s22
      $region44: #{_lambda_.5} parent=39 // pred_fallthru
        _
      // Predicated region
      $region45: #{_lambda_.5} parent=39 // pred_check
        %p286 = pneg %p76
      $region46: #{_lambda_.5} parent=39 // pred_check_branch
        %288 = sbr.rel (%p286) target = $region48
      $region47: #{_lambda_.5} parent=39 // pred_region
        %s289 = smul.u32 8, %s22
        %p290 = scmp.lt.s32.totalorder %s21, 1
        %s291 = scalar_select %p290, %s21, 1
        %p292 = scmp.lt.s32.totalorder %s289, 15
        %s293 = scalar_select %p292, %s289, 15
        %s294 = smul.addr %s291, 16
        %s295 = sadd.s32 %s293, %s294
        %s296 = smul.addr %s295, 8
        %s297 = scalar_lea.vmem %s1, %s296
        %s298 = smul.u32 8, %s22
      $region48: #{_lambda_.5} parent=39 // pred_fallthru
        _
    $region40: #{_lambda_.5} parent=5 // pred_fallthru
      _
    %p299 = scmp.le.s32.totalorder 1, %s14
    %p300 = scmp.lt.s32.totalorder %s14, 5
    %p301 = pnand %p299, %p300
    %p302 = pneg %p301
    // Predicated region
    $region49: #{_lambda_.5} parent=5 // pred_check
      _
    $region50: #{_lambda_.5} parent=5 // pred_check_branch
      %304 = sbr.rel (%p301) target = $region52
    $region51: #{_lambda_.5} parent=5 // pred_region
      %s305 = ssub.s32 %s14, 1
      %s306 = smul.u32 8, %s24
      %p307 = scmp.lt.s32.totalorder %s23, 1
      %s308 = scalar_select %p307, %s23, 1
      %p309 = scmp.lt.s32.totalorder %s306, 15
      %s310 = scalar_select %p309, %s306, 15
      %s311 = smul.addr %s308, 16
      %s312 = sadd.s32 %s310, %s311
      %s313 = smul.addr %s312, 8
      %s314 = scalar_lea.vmem %s0, %s313
      %p315 = pneg %p54
      %p316 = pneg %p51
      %s317 = smul.u32 8, %s24
      %p318 = scmp.lt.s32.totalorder %s23, 1
      %s319 = scalar_select %p318, %s23, 1
      %p320 = scmp.lt.s32.totalorder %s317, 15
      %s321 = scalar_select %p320, %s317, 15
      %s322 = smul.addr %s319, 16
      %s323 = sadd.s32 %s321, %s322
      %s324 = smul.addr %s323, 8
      %s325 = scalar_lea.vmem %s1, %s324
      %p326 = pneg %p82
      %p327 = pneg %p79
      %p328 = pneg %p103
      %p329 = pneg %p100
      %p330 = pneg %p124
      %p331 = pneg %p121
      %p332 = pneg %p145
      %p333 = pneg %p142
      %p334 = pneg %p166
      %p335 = pneg %p163
      %p336 = pneg %p187
      %p337 = pneg %p184
      %p338 = pneg %p208
      %p339 = pneg %p205
      %p340 = pneg %p236
      %p341 = pneg %p233
      %s342 = smul.u32 8, %s24
      %p343 = scmp.lt.s32.totalorder %s23, 1
      %s344 = scalar_select %p343, %s23, 1
      %p345 = scmp.lt.s32.totalorder %s342, 15
      %s346 = scalar_select %p345, %s342, 15
      %s347 = smul.addr %s344, 16
      %s348 = sadd.s32 %s346, %s347
      %s349 = smul.addr %s348, 8
      %s350 = scalar_lea.vmem %s8, %s349
      %s351 = smul.u32 8, %s24
      %p352 = scmp.lt.s32.totalorder %s23, 1
      %s353 = scalar_select %p352, %s23, 1
      %p354 = scmp.lt.s32.totalorder %s351, 15
      %s355 = scalar_select %p354, %s351, 15
      %s356 = smul.addr %s353, 16
      %s357 = sadd.s32 %s355, %s356
      %s358 = smul.addr %s357, 8
      %s359 = scalar_lea.vmem %s0, %s358
      %s360 = smul.u32 8, %s24
      %s361 = smul.u32 8, %s24
      %p362 = scmp.lt.s32.totalorder %s23, 1
      %s363 = scalar_select %p362, %s23, 1
      %p364 = scmp.lt.s32.totalorder %s361, 15
      %s365 = scalar_select %p364, %s361, 15
      %s366 = smul.addr %s363, 16
      %s367 = sadd.s32 %s365, %s366
      %s368 = smul.addr %s367, 8
      %s369 = scalar_lea.vmem %s1, %s368
      %s370 = smul.u32 8, %s24
      %s371 = smul.u32 8, %s24
      %p372 = scmp.lt.s32.totalorder %s23, 1
      %s373 = scalar_select %p372, %s23, 1
      %p374 = scmp.lt.s32.totalorder %s371, 15
      %s375 = scalar_select %p374, %s371, 15
      %s376 = smul.addr %s373, 16
      %s377 = sadd.s32 %s375, %s376
      %s378 = smul.addr %s377, 8
      %s379 = scalar_lea.vmem %s8, %s378
      %s380 = smul.u32 8, %s24
      %p382 = scmp.eq.s32.totalorder %s24, 0
      // Predicated region
      $region53: #{_lambda_.5} parent=51 // pred_check
        %p383 = pneg %p382
      $region54: #{_lambda_.5} parent=51 // pred_check_branch
        %385 = sbr.rel (%p383) target = $region56
      $region55: #{_lambda_.5} parent=51 // pred_region
        %vm386 = vcmask 523264
        %387 = vst.msk [vmem:[#allocation2] sm:$0xff] %vm386, 0.0
        %388 = vst.msk [vmem:[#allocation2 + $0x8] sm:$0xff] %vm386, 0.0
        %389 = vst.msk [vmem:[#allocation2 + $0x10] sm:$0xff] %vm386, 0.0
        %390 = vst.msk [vmem:[#allocation2 + $0x18] sm:$0xff] %vm386, 0.0
        %391 = vst [vmem:[#allocation3] sm:$0xff] 0.0
        %vm392 = vcmask 261120
        %393 = vst.msk [vmem:[#allocation3 + $0x8] sm:$0xff] %vm392, 0.0
        %394 = vst [vmem:[#allocation3 + $0x10] sm:$0xff] 0.0
        %395 = vst.msk [vmem:[#allocation3 + $0x18] sm:$0xff] %vm392, 0.0
        %396 = vst [vmem:[#allocation3 + $0x20] sm:$0xff] 0.0
        %397 = vst.msk [vmem:[#allocation3 + $0x28] sm:$0xff] %vm392, 0.0
        %398 = vst [vmem:[#allocation3 + $0x30] sm:$0xff] 0.0
        %399 = vst.msk [vmem:[#allocation3 + $0x38] sm:$0xff] %vm392, 0.0
        %400 = vst [vmem:[#allocation3 + $0x40] sm:$0xff] 0.0
        %401 = vst.msk [vmem:[#allocation3 + $0x48] sm:$0xff] %vm392, 0.0
        %402 = vst [vmem:[#allocation3 + $0x50] sm:$0xff] 0.0
        %403 = vst.msk [vmem:[#allocation3 + $0x58] sm:$0xff] %vm392, 0.0
        %404 = vst [vmem:[#allocation3 + $0x60] sm:$0xff] 0.0
        %405 = vst.msk [vmem:[#allocation3 + $0x68] sm:$0xff] %vm392, 0.0
        %406 = vst [vmem:[#allocation3 + $0x70] sm:$0xff] 0.0
        %407 = vst.msk [vmem:[#allocation3 + $0x78] sm:$0xff] %vm392, 0.0
      $region56: #{_lambda_.5} parent=51 // pred_fallthru
        _
      %v408 = vld [vmem:[%s359] sm:$0xff]
      %v409 = vld [vmem:[%s359 + $0x8] sm:$0xff]
      %v410 = vld [vmem:[%s359 + $0x10] sm:$0xff]
      %v411 = vld [vmem:[%s359 + $0x18] sm:$0xff]
      %v412 = vld [vmem:[%s359 + $0x20] sm:$0xff]
      %v413 = vld [vmem:[%s359 + $0x28] sm:$0xff]
      %v414 = vld [vmem:[%s359 + $0x30] sm:$0xff]
      %v415 = vld [vmem:[%s359 + $0x38] sm:$0xff]
      %v416 = vpack.c.bf16 %v409, %v408
      %v417 = vpack.c.bf16 %v411, %v410
      %v418 = vpack.c.bf16 %v413, %v412
      %v419 = vpack.c.bf16 %v415, %v414
      %v420 = vld [vmem:[%s2] sm:$0xff]
      %v421 = vld [vmem:[%s2 + $0x8] sm:$0xff]
      %v422 = vld [vmem:[%s2 + $0x10] sm:$0xff]
      %v423 = vld [vmem:[%s2 + $0x18] sm:$0xff]
      %v424 = vld [vmem:[%s2 + $0x20] sm:$0xff]
      %v425 = vld [vmem:[%s2 + $0x28] sm:$0xff]
      %v426 = vld [vmem:[%s2 + $0x30] sm:$0xff]
      %v427 = vld [vmem:[%s2 + $0x38] sm:$0xff]
      %v428 = vld [vmem:[%s2 + $0x40] sm:$0xff]
      %v429 = vld [vmem:[%s2 + $0x48] sm:$0xff]
      %v430 = vld [vmem:[%s2 + $0x50] sm:$0xff]
      %v431 = vld [vmem:[%s2 + $0x58] sm:$0xff]
      %v432 = vld [vmem:[%s2 + $0x60] sm:$0xff]
      %v433 = vld [vmem:[%s2 + $0x68] sm:$0xff]
      %v434 = vld [vmem:[%s2 + $0x70] sm:$0xff]
      %v435 = vld [vmem:[%s2 + $0x78] sm:$0xff]
      %v452 = vunpack.c.l.b16 %v420
      %v453 = vunpack.c.h.b16 %v420
      %v454 = vunpack.c.l.b16 %v421
      %v455 = vunpack.c.h.b16 %v421
      %v456 = vunpack.c.l.b16 %v422
      %v457 = vunpack.c.h.b16 %v422
      %v458 = vunpack.c.l.b16 %v423
      %v459 = vunpack.c.h.b16 %v423
      %v460 = vunpack.c.l.b16 %v424
      %v461 = vunpack.c.h.b16 %v424
      %v462 = vunpack.c.l.b16 %v425
      %v463 = vunpack.c.h.b16 %v425
      %v464 = vunpack.c.l.b16 %v426
      %v465 = vunpack.c.h.b16 %v426
      %v466 = vunpack.c.l.b16 %v427
      %v467 = vunpack.c.h.b16 %v427
      %v468 = vunpack.c.l.b16 %v428
      %v469 = vunpack.c.h.b16 %v428
      %v470 = vunpack.c.l.b16 %v429
      %v471 = vunpack.c.h.b16 %v429
      %v472 = vunpack.c.l.b16 %v430
      %v473 = vunpack.c.h.b16 %v430
      %v474 = vunpack.c.l.b16 %v431
      %v475 = vunpack.c.h.b16 %v431
      %v476 = vunpack.c.l.b16 %v432
      %v477 = vunpack.c.h.b16 %v432
      %v478 = vunpack.c.l.b16 %v433
      %v479 = vunpack.c.h.b16 %v433
      %v480 = vunpack.c.l.b16 %v434
      %v481 = vunpack.c.h.b16 %v434
      %v482 = vunpack.c.l.b16 %v435
      %v483 = vunpack.c.h.b16 %v435
      %v484 = vpack.c.b16 %v456, %v452
      %v485 = vpack.c.b16 %v457, %v453
      %v486 = vpack.c.b16 %v458, %v454
      %v487 = vpack.c.b16 %v459, %v455
      %v488 = vpack.c.b16 %v464, %v460
      %v489 = vpack.c.b16 %v465, %v461
      %v490 = vpack.c.b16 %v466, %v462
      %v491 = vpack.c.b16 %v467, %v463
      %v492 = vpack.c.b16 %v472, %v468
      %v493 = vpack.c.b16 %v473, %v469
      %v494 = vpack.c.b16 %v474, %v470
      %v495 = vpack.c.b16 %v475, %v471
      %v496 = vpack.c.b16 %v480, %v476
      %v497 = vpack.c.b16 %v481, %v477
      %v498 = vpack.c.b16 %v482, %v478
      %v499 = vpack.c.b16 %v483, %v479
      %vm516 = vcmask 523264
      %v518 = vsel %vm516, %v416, 0
      %v521 = vsel %vm516, %v417, 0
      %v524 = vsel %vm516, %v418, 0
      %v527 = vsel %vm516, %v419, 0
      %529 = vmatpush.bf16.msra.mxu0 0
      %530 = vmatpush.bf16.msra.mxu0 0
      %531 = vmatpush.bf16.msra.mxu0 0
      %532 = vmatpush.bf16.msra.mxu0 0
      %533 = vmatpush.bf16.msra.mxu0 %v496
      %534 = vmatpush.bf16.msra.mxu0 %v492
      %535 = vmatpush.bf16.msra.mxu0 %v488
      %536 = vmatpush.bf16.msra.mxu0 %v484
      %537 = vmatmul.bf16.gmra.mxu0 %v518
      %v538 = vpop.f32.mrf.mxu0
      %v539 = vadd.f32 0.0, %v538
      %v540 = vpop.f32.mrf.mxu0
      %v541 = vadd.f32 0.0, %v540
      %542 = vmatmul.bf16.gmra.mxu0 %v521
      %v543 = vpop.f32.mrf.mxu0
      %v544 = vadd.f32 0.0, %v543
      %v545 = vpop.f32.mrf.mxu0
      %v546 = vadd.f32 0.0, %v545
      %547 = vmatmul.bf16.gmra.mxu0 %v524
      %v548 = vpop.f32.mrf.mxu0
      %v549 = vadd.f32 0.0, %v548
      %v550 = vpop.f32.mrf.mxu0
      %v551 = vadd.f32 0.0, %v550
      %552 = vmatmul.bf16.gmra.mxu0 %v527
      %v553 = vpop.f32.mrf.mxu0
      %v554 = vadd.f32 0.0, %v553
      %v555 = vpop.f32.mrf.mxu0
      %v556 = vadd.f32 0.0, %v555
      %557 = vdwg.mxu0
      %558 = vmatpush.bf16.msra.mxu0 0
      %559 = vmatpush.bf16.msra.mxu0 0
      %560 = vmatpush.bf16.msra.mxu0 0
      %561 = vmatpush.bf16.msra.mxu0 0
      %562 = vmatpush.bf16.msra.mxu0 %v497
      %563 = vmatpush.bf16.msra.mxu0 %v493
      %564 = vmatpush.bf16.msra.mxu0 %v489
      %565 = vmatpush.bf16.msra.mxu0 %v485
      %566 = vmatmul.bf16.gmra.mxu0 %v518
      %v567 = vpop.f32.mrf.mxu0
      %v568 = vadd.f32 0.0, %v567
      %v569 = vpop.f32.mrf.mxu0
      %v570 = vadd.f32 0.0, %v569
      %571 = vmatmul.bf16.gmra.mxu0 %v521
      %v572 = vpop.f32.mrf.mxu0
      %v573 = vadd.f32 0.0, %v572
      %v574 = vpop.f32.mrf.mxu0
      %v575 = vadd.f32 0.0, %v574
      %576 = vmatmul.bf16.gmra.mxu0 %v524
      %v577 = vpop.f32.mrf.mxu0
      %v578 = vadd.f32 0.0, %v577
      %v579 = vpop.f32.mrf.mxu0
      %v580 = vadd.f32 0.0, %v579
      %581 = vmatmul.bf16.gmra.mxu0 %v527
      %v582 = vpop.f32.mrf.mxu0
      %v583 = vadd.f32 0.0, %v582
      %v584 = vpop.f32.mrf.mxu0
      %v585 = vadd.f32 0.0, %v584
      %586 = vdwg.mxu0
      %587 = vmatpush.bf16.msra.mxu0 0
      %588 = vmatpush.bf16.msra.mxu0 0
      %589 = vmatpush.bf16.msra.mxu0 0
      %590 = vmatpush.bf16.msra.mxu0 0
      %591 = vmatpush.bf16.msra.mxu0 %v498
      %592 = vmatpush.bf16.msra.mxu0 %v494
      %593 = vmatpush.bf16.msra.mxu0 %v490
      %594 = vmatpush.bf16.msra.mxu0 %v486
      %595 = vmatmul.bf16.gmra.mxu0 %v518
      %v596 = vpop.f32.mrf.mxu0
      %v597 = vadd.f32 0.0, %v596
      %v598 = vpop.f32.mrf.mxu0
      %v599 = vadd.f32 0.0, %v598
      %600 = vmatmul.bf16.gmra.mxu0 %v521
      %v601 = vpop.f32.mrf.mxu0
      %v602 = vadd.f32 0.0, %v601
      %v603 = vpop.f32.mrf.mxu0
      %v604 = vadd.f32 0.0, %v603
      %605 = vmatmul.bf16.gmra.mxu0 %v524
      %v606 = vpop.f32.mrf.mxu0
      %v607 = vadd.f32 0.0, %v606
      %v608 = vpop.f32.mrf.mxu0
      %v609 = vadd.f32 0.0, %v608
      %610 = vmatmul.bf16.gmra.mxu0 %v527
      %v611 = vpop.f32.mrf.mxu0
      %v612 = vadd.f32 0.0, %v611
      %v613 = vpop.f32.mrf.mxu0
      %v614 = vadd.f32 0.0, %v613
      %615 = vdwg.mxu0
      %616 = vmatpush.bf16.msra.mxu0 0
      %617 = vmatpush.bf16.msra.mxu0 0
      %618 = vmatpush.bf16.msra.mxu0 0
      %619 = vmatpush.bf16.msra.mxu0 0
      %620 = vmatpush.bf16.msra.mxu0 %v499
      %621 = vmatpush.bf16.msra.mxu0 %v495
      %622 = vmatpush.bf16.msra.mxu0 %v491
      %623 = vmatpush.bf16.msra.mxu0 %v487
      %624 = vmatmul.bf16.gmra.mxu0 %v518
      %v625 = vpop.f32.mrf.mxu0
      %v626 = vadd.f32 0.0, %v625
      %v627 = vpop.f32.mrf.mxu0
      %v628 = vadd.f32 0.0, %v627
      %629 = vmatmul.bf16.gmra.mxu0 %v521
      %v630 = vpop.f32.mrf.mxu0
      %v631 = vadd.f32 0.0, %v630
      %v632 = vpop.f32.mrf.mxu0
      %v633 = vadd.f32 0.0, %v632
      %634 = vmatmul.bf16.gmra.mxu0 %v524
      %v635 = vpop.f32.mrf.mxu0
      %v636 = vadd.f32 0.0, %v635
      %v637 = vpop.f32.mrf.mxu0
      %v638 = vadd.f32 0.0, %v637
      %639 = vmatmul.bf16.gmra.mxu0 %v527
      %v640 = vpop.f32.mrf.mxu0
      %v641 = vadd.f32 0.0, %v640
      %v642 = vpop.f32.mrf.mxu0
      %v643 = vadd.f32 0.0, %v642
      %644 = vdwg.mxu0
      %v645 = vlaneseq
      %v646 = vshrl.u32 %v645, 7
      %v647 = vadd.s32 %v646, 8
      %v648 = vadd.s32 %v646, 16
      %v649 = vadd.s32 %v646, 24
      %v650 = vadd.s32 %v646, 32
      %v651 = vadd.s32 %v646, 40
      %v652 = vadd.s32 %v646, 48
      %v653 = vadd.s32 %v646, 56
      %v654 = vld [vmem:[#allocation3] sm:$0xff]
      %v655 = vld [vmem:[#allocation3 + $0x8] sm:$0xff]
      %v656 = vld [vmem:[#allocation3 + $0x10] sm:$0xff]
      %v657 = vld [vmem:[#allocation3 + $0x18] sm:$0xff]
      %v658 = vld [vmem:[#allocation3 + $0x20] sm:$0xff]
      %v659 = vld [vmem:[#allocation3 + $0x28] sm:$0xff]
      %v660 = vld [vmem:[#allocation3 + $0x30] sm:$0xff]
      %v661 = vld [vmem:[#allocation3 + $0x38] sm:$0xff]
      %v662 = vld [vmem:[#allocation3 + $0x40] sm:$0xff]
      %v663 = vld [vmem:[#allocation3 + $0x48] sm:$0xff]
      %v664 = vld [vmem:[#allocation3 + $0x50] sm:$0xff]
      %v665 = vld [vmem:[#allocation3 + $0x58] sm:$0xff]
      %v666 = vld [vmem:[#allocation3 + $0x60] sm:$0xff]
      %v667 = vld [vmem:[#allocation3 + $0x68] sm:$0xff]
      %v668 = vld [vmem:[#allocation3 + $0x70] sm:$0xff]
      %v669 = vld [vmem:[#allocation3 + $0x78] sm:$0xff]
      %v670 = vld [vmem:[%s3] sm:$0xff]
      %v671 = vld [vmem:[%s6] sm:$0x3]
      %vm672 = vcmp.ge.s32.totalorder %v646, 61
      %vm673 = vcmp.ge.s32.totalorder %v647, 61
      %vm674 = vcmp.ge.s32.totalorder %v648, 61
      %vm675 = vcmp.ge.s32.totalorder %v649, 61
      %vm676 = vcmp.ge.s32.totalorder %v650, 61
      %vm677 = vcmp.ge.s32.totalorder %v651, 61
      %vm678 = vcmp.ge.s32.totalorder %v652, 61
      %vm679 = vcmp.ge.s32.totalorder %v653, 61
      %v680 = vsel %vm672, 1, 0
      %v681 = vsel %vm673, 1, 0
      %v682 = vsel %vm674, 1, 0
      %v683 = vsel %vm675, 1, 0
      %v684 = vsel %vm676, 1, 0
      %v685 = vsel %vm677, 1, 0
      %v686 = vsel %vm678, 1, 0
      %v687 = vsel %vm679, 1, 0
      %vm688 = vcmp.eq.s32.totalorder %v680, 1
      %vm689 = vcmp.eq.s32.totalorder %v681, 1
      %vm690 = vcmp.eq.s32.totalorder %v682, 1
      %vm691 = vcmp.eq.s32.totalorder %v683, 1
      %vm692 = vcmp.eq.s32.totalorder %v684, 1
      %vm693 = vcmp.eq.s32.totalorder %v685, 1
      %vm694 = vcmp.eq.s32.totalorder %v686, 1
      %vm695 = vcmp.eq.s32.totalorder %v687, 1
      %v696 = vsel %vm688, %v654, %v568
      %v697 = vsel %vm688, %v655, %v597
      %v698 = vsel %vm689, %v656, %v570
      %v699 = vsel %vm689, %v657, %v599
      %v700 = vsel %vm690, %v658, %v573
      %v701 = vsel %vm690, %v659, %v602
      %v702 = vsel %vm691, %v660, %v575
      %v703 = vsel %vm691, %v661, %v604
      %v704 = vsel %vm692, %v662, %v578
      %v705 = vsel %vm692, %v663, %v607
      %v706 = vsel %vm693, %v664, %v580
      %v707 = vsel %vm693, %v665, %v609
      %v708 = vsel %vm694, %v666, %v583
      %v709 = vsel %vm694, %v667, %v612
      %v710 = vsel %vm695, %v668, %v585
      %v711 = vsel %vm695, %v669, %v614
      %v712 = vrot.slane %v696, 5
      %v713 = vrot.slane %v697, 5
      %v714 = vrot.slane %v698, 5
      %v715 = vrot.slane %v699, 5
      %v716 = vrot.slane %v700, 5
      %v717 = vrot.slane %v701, 5
      %v718 = vrot.slane %v702, 5
      %v719 = vrot.slane %v703, 5
      %v720 = vrot.slane %v704, 5
      %v721 = vrot.slane %v705, 5
      %v722 = vrot.slane %v706, 5
      %v723 = vrot.slane %v707, 5
      %v724 = vrot.slane %v708, 5
      %v725 = vrot.slane %v709, 5
      %v726 = vrot.slane %v710, 5
      %v727 = vrot.slane %v711, 5
      %vm728 = vcmp.lt.s32.totalorder %v646, 3
      %v729 = vsel %vm728, %v724, %v726
      %v730 = vsel %vm728, %v725, %v727
      %v731 = vsel %vm728, %v722, %v724
      %v732 = vsel %vm728, %v723, %v725
      %v733 = vsel %vm728, %v720, %v722
      %v734 = vsel %vm728, %v721, %v723
      %v735 = vsel %vm728, %v718, %v720
      %v736 = vsel %vm728, %v719, %v721
      %v737 = vsel %vm728, %v716, %v718
      %v738 = vsel %vm728, %v717, %v719
      %v739 = vsel %vm728, %v714, %v716
      %v740 = vsel %vm728, %v715, %v717
      %v741 = vsel %vm728, %v712, %v714
      %v742 = vsel %vm728, %v713, %v715
      %v743 = vsel %vm728, %v726, %v712
      %v744 = vsel %vm728, %v727, %v713
      %v746 = vperm.slane %v670, 0
      %v747 = vperm.slane %v670, 4
      %v750 = vperm.slane %v746, 0
      %v751 = vperm.slane %v747, 0
      %v752 = vmul.f32 %v743, %v750
      %v753 = vmul.f32 %v744, %v751
      %v754 = vmul.f32 %v741, %v750
      %v755 = vmul.f32 %v742, %v751
      %v756 = vmul.f32 %v739, %v750
      %v757 = vmul.f32 %v740, %v751
      %v758 = vmul.f32 %v737, %v750
      %v759 = vmul.f32 %v738, %v751
      %v760 = vmul.f32 %v735, %v750
      %v761 = vmul.f32 %v736, %v751
      %v762 = vmul.f32 %v733, %v750
      %v763 = vmul.f32 %v734, %v751
      %v764 = vmul.f32 %v731, %v750
      %v765 = vmul.f32 %v732, %v751
      %v766 = vmul.f32 %v729, %v750
      %v767 = vmul.f32 %v730, %v751
      %v769 = vperm.slane %v671, 0
      %v770 = vperm.slane %v671, 1
      %v773 = vadd.f32 %v769, %v752
      %v774 = vadd.f32 %v770, %v753
      %v775 = vadd.f32 %v769, %v754
      %v776 = vadd.f32 %v770, %v755
      %v777 = vadd.f32 %v769, %v756
      %v778 = vadd.f32 %v770, %v757
      %v779 = vadd.f32 %v769, %v758
      %v780 = vadd.f32 %v770, %v759
      %v781 = vadd.f32 %v769, %v760
      %v782 = vadd.f32 %v770, %v761
      %v783 = vadd.f32 %v769, %v762
      %v784 = vadd.f32 %v770, %v763
      %v785 = vadd.f32 %v769, %v764
      %v786 = vadd.f32 %v770, %v765
      %v787 = vadd.f32 %v769, %v766
      %v788 = vadd.f32 %v770, %v767
      %vm789 = vcmp.ge.s32.totalorder %v646, 62
      %vm790 = vcmp.ge.s32.totalorder %v647, 62
      %vm791 = vcmp.ge.s32.totalorder %v648, 62
      %vm792 = vcmp.ge.s32.totalorder %v649, 62
      %vm793 = vcmp.ge.s32.totalorder %v650, 62
      %vm794 = vcmp.ge.s32.totalorder %v651, 62
      %vm795 = vcmp.ge.s32.totalorder %v652, 62
      %vm796 = vcmp.ge.s32.totalorder %v653, 62
      %v797 = vsel %vm789, 1, 0
      %v798 = vsel %vm790, 1, 0
      %v799 = vsel %vm791, 1, 0
      %v800 = vsel %vm792, 1, 0
      %v801 = vsel %vm793, 1, 0
      %v802 = vsel %vm794, 1, 0
      %v803 = vsel %vm795, 1, 0
      %v804 = vsel %vm796, 1, 0
      %vm805 = vcmp.eq.s32.totalorder %v797, 1
      %vm806 = vcmp.eq.s32.totalorder %v798, 1
      %vm807 = vcmp.eq.s32.totalorder %v799, 1
      %vm808 = vcmp.eq.s32.totalorder %v800, 1
      %vm809 = vcmp.eq.s32.totalorder %v801, 1
      %vm810 = vcmp.eq.s32.totalorder %v802, 1
      %vm811 = vcmp.eq.s32.totalorder %v803, 1
      %vm812 = vcmp.eq.s32.totalorder %v804, 1
      %v813 = vsel %vm805, %v654, %v568
      %v814 = vsel %vm805, %v655, %v597
      %v815 = vsel %vm806, %v656, %v570
      %v816 = vsel %vm806, %v657, %v599
      %v817 = vsel %vm807, %v658, %v573
      %v818 = vsel %vm807, %v659, %v602
      %v819 = vsel %vm808, %v660, %v575
      %v820 = vsel %vm808, %v661, %v604
      %v821 = vsel %vm809, %v662, %v578
      %v822 = vsel %vm809, %v663, %v607
      %v823 = vsel %vm810, %v664, %v580
      %v824 = vsel %vm810, %v665, %v609
      %v825 = vsel %vm811, %v666, %v583
      %v826 = vsel %vm811, %v667, %v612
      %v827 = vsel %vm812, %v668, %v585
      %v828 = vsel %vm812, %v669, %v614
      %v829 = vrot.slane %v813, 6
      %v830 = vrot.slane %v814, 6
      %v831 = vrot.slane %v815, 6
      %v832 = vrot.slane %v816, 6
      %v833 = vrot.slane %v817, 6
      %v834 = vrot.slane %v818, 6
      %v835 = vrot.slane %v819, 6
      %v836 = vrot.slane %v820, 6
      %v837 = vrot.slane %v821, 6
      %v838 = vrot.slane %v822, 6
      %v839 = vrot.slane %v823, 6
      %v840 = vrot.slane %v824, 6
      %v841 = vrot.slane %v825, 6
      %v842 = vrot.slane %v826, 6
      %v843 = vrot.slane %v827, 6
      %v844 = vrot.slane %v828, 6
      %vm845 = vcmp.lt.s32.totalorder %v646, 2
      %v846 = vsel %vm845, %v841, %v843
      %v847 = vsel %vm845, %v842, %v844
      %v848 = vsel %vm845, %v839, %v841
      %v849 = vsel %vm845, %v840, %v842
      %v850 = vsel %vm845, %v837, %v839
      %v851 = vsel %vm845, %v838, %v840
      %v852 = vsel %vm845, %v835, %v837
      %v853 = vsel %vm845, %v836, %v838
      %v854 = vsel %vm845, %v833, %v835
      %v855 = vsel %vm845, %v834, %v836
      %v856 = vsel %vm845, %v831, %v833
      %v857 = vsel %vm845, %v832, %v834
      %v858 = vsel %vm845, %v829, %v831
      %v859 = vsel %vm845, %v830, %v832
      %v860 = vsel %vm845, %v843, %v829
      %v861 = vsel %vm845, %v844, %v830
      %v862 = vperm.slane %v670, 1
      %v863 = vperm.slane %v670, 5
      %v866 = vperm.slane %v862, 1
      %v867 = vperm.slane %v863, 1
      %v868 = vmul.f32 %v860, %v866
      %v869 = vmul.f32 %v861, %v867
      %v870 = vmul.f32 %v858, %v866
      %v871 = vmul.f32 %v859, %v867
      %v872 = vmul.f32 %v856, %v866
      %v873 = vmul.f32 %v857, %v867
      %v874 = vmul.f32 %v854, %v866
      %v875 = vmul.f32 %v855, %v867
      %v876 = vmul.f32 %v852, %v866
      %v877 = vmul.f32 %v853, %v867
      %v878 = vmul.f32 %v850, %v866
      %v879 = vmul.f32 %v851, %v867
      %v880 = vmul.f32 %v848, %v866
      %v881 = vmul.f32 %v849, %v867
      %v882 = vmul.f32 %v846, %v866
      %v883 = vmul.f32 %v847, %v867
      %v884 = vadd.f32 %v773, %v868
      %v885 = vadd.f32 %v774, %v869
      %v886 = vadd.f32 %v775, %v870
      %v887 = vadd.f32 %v776, %v871
      %v888 = vadd.f32 %v777, %v872
      %v889 = vadd.f32 %v778, %v873
      %v890 = vadd.f32 %v779, %v874
      %v891 = vadd.f32 %v780, %v875
      %v892 = vadd.f32 %v781, %v876
      %v893 = vadd.f32 %v782, %v877
      %v894 = vadd.f32 %v783, %v878
      %v895 = vadd.f32 %v784, %v879
      %v896 = vadd.f32 %v785, %v880
      %v897 = vadd.f32 %v786, %v881
      %v898 = vadd.f32 %v787, %v882
      %v899 = vadd.f32 %v788, %v883
      %vm900 = vcmp.ge.s32.totalorder %v646, 63
      %vm901 = vcmp.ge.s32.totalorder %v647, 63
      %vm902 = vcmp.ge.s32.totalorder %v648, 63
      %vm903 = vcmp.ge.s32.totalorder %v649, 63
      %vm904 = vcmp.ge.s32.totalorder %v650, 63
      %vm905 = vcmp.ge.s32.totalorder %v651, 63
      %vm906 = vcmp.ge.s32.totalorder %v652, 63
      %vm907 = vcmp.ge.s32.totalorder %v653, 63
      %v908 = vsel %vm900, 1, 0
      %v909 = vsel %vm901, 1, 0
      %v910 = vsel %vm902, 1, 0
      %v911 = vsel %vm903, 1, 0
      %v912 = vsel %vm904, 1, 0
      %v913 = vsel %vm905, 1, 0
      %v914 = vsel %vm906, 1, 0
      %v915 = vsel %vm907, 1, 0
      %vm916 = vcmp.eq.s32.totalorder %v908, 1
      %vm917 = vcmp.eq.s32.totalorder %v909, 1
      %vm918 = vcmp.eq.s32.totalorder %v910, 1
      %vm919 = vcmp.eq.s32.totalorder %v911, 1
      %vm920 = vcmp.eq.s32.totalorder %v912, 1
      %vm921 = vcmp.eq.s32.totalorder %v913, 1
      %vm922 = vcmp.eq.s32.totalorder %v914, 1
      %vm923 = vcmp.eq.s32.totalorder %v915, 1
      %v924 = vsel %vm916, %v654, %v568
      %v925 = vsel %vm916, %v655, %v597
      %v926 = vsel %vm917, %v656, %v570
      %v927 = vsel %vm917, %v657, %v599
      %v928 = vsel %vm918, %v658, %v573
      %v929 = vsel %vm918, %v659, %v602
      %v930 = vsel %vm919, %v660, %v575
      %v931 = vsel %vm919, %v661, %v604
      %v932 = vsel %vm920, %v662, %v578
      %v933 = vsel %vm920, %v663, %v607
      %v934 = vsel %vm921, %v664, %v580
      %v935 = vsel %vm921, %v665, %v609
      %v936 = vsel %vm922, %v666, %v583
      %v937 = vsel %vm922, %v667, %v612
      %v938 = vsel %vm923, %v668, %v585
      %v939 = vsel %vm923, %v669, %v614
      %v940 = vrot.slane %v924, 7
      %v941 = vrot.slane %v925, 7
      %v942 = vrot.slane %v926, 7
      %v943 = vrot.slane %v927, 7
      %v944 = vrot.slane %v928, 7
      %v945 = vrot.slane %v929, 7
      %v946 = vrot.slane %v930, 7
      %v947 = vrot.slane %v931, 7
      %v948 = vrot.slane %v932, 7
      %v949 = vrot.slane %v933, 7
      %v950 = vrot.slane %v934, 7
      %v951 = vrot.slane %v935, 7
      %v952 = vrot.slane %v936, 7
      %v953 = vrot.slane %v937, 7
      %v954 = vrot.slane %v938, 7
      %v955 = vrot.slane %v939, 7
      %vm956 = vcmp.lt.s32.totalorder %v646, 1
      %v957 = vsel %vm956, %v952, %v954
      %v958 = vsel %vm956, %v953, %v955
      %v959 = vsel %vm956, %v950, %v952
      %v960 = vsel %vm956, %v951, %v953
      %v961 = vsel %vm956, %v948, %v950
      %v962 = vsel %vm956, %v949, %v951
      %v963 = vsel %vm956, %v946, %v948
      %v964 = vsel %vm956, %v947, %v949
      %v965 = vsel %vm956, %v944, %v946
      %v966 = vsel %vm956, %v945, %v947
      %v967 = vsel %vm956, %v942, %v944
      %v968 = vsel %vm956, %v943, %v945
      %v969 = vsel %vm956, %v940, %v942
      %v970 = vsel %vm956, %v941, %v943
      %v971 = vsel %vm956, %v954, %v940
      %v972 = vsel %vm956, %v955, %v941
      %v973 = vperm.slane %v670, 2
      %v974 = vperm.slane %v670, 6
      %v977 = vperm.slane %v973, 2
      %v978 = vperm.slane %v974, 2
      %v979 = vmul.f32 %v971, %v977
      %v980 = vmul.f32 %v972, %v978
      %v981 = vmul.f32 %v969, %v977
      %v982 = vmul.f32 %v970, %v978
      %v983 = vmul.f32 %v967, %v977
      %v984 = vmul.f32 %v968, %v978
      %v985 = vmul.f32 %v965, %v977
      %v986 = vmul.f32 %v966, %v978
      %v987 = vmul.f32 %v963, %v977
      %v988 = vmul.f32 %v964, %v978
      %v989 = vmul.f32 %v961, %v977
      %v990 = vmul.f32 %v962, %v978
      %v991 = vmul.f32 %v959, %v977
      %v992 = vmul.f32 %v960, %v978
      %v993 = vmul.f32 %v957, %v977
      %v994 = vmul.f32 %v958, %v978
      %v995 = vadd.f32 %v884, %v979
      %v996 = vadd.f32 %v885, %v980
      %v997 = vadd.f32 %v886, %v981
      %v998 = vadd.f32 %v887, %v982
      %v999 = vadd.f32 %v888, %v983
      %v1000 = vadd.f32 %v889, %v984
      %v1001 = vadd.f32 %v890, %v985
      %v1002 = vadd.f32 %v891, %v986
      %v1003 = vadd.f32 %v892, %v987
      %v1004 = vadd.f32 %v893, %v988
      %v1005 = vadd.f32 %v894, %v989
      %v1006 = vadd.f32 %v895, %v990
      %v1007 = vadd.f32 %v896, %v991
      %v1008 = vadd.f32 %v897, %v992
      %v1009 = vadd.f32 %v898, %v993
      %v1010 = vadd.f32 %v899, %v994
      %v1011 = vperm.slane %v670, 3
      %v1012 = vperm.slane %v670, 7
      %v1015 = vperm.slane %v1011, 3
      %v1016 = vperm.slane %v1012, 3
      %v1017 = vmul.f32 %v568, %v1015
      %v1018 = vmul.f32 %v597, %v1016
      %v1019 = vmul.f32 %v570, %v1015
      %v1020 = vmul.f32 %v599, %v1016
      %v1021 = vmul.f32 %v573, %v1015
      %v1022 = vmul.f32 %v602, %v1016
      %v1023 = vmul.f32 %v575, %v1015
      %v1024 = vmul.f32 %v604, %v1016
      %v1025 = vmul.f32 %v578, %v1015
      %v1026 = vmul.f32 %v607, %v1016
      %v1027 = vmul.f32 %v580, %v1015
      %v1028 = vmul.f32 %v609, %v1016
      %v1029 = vmul.f32 %v583, %v1015
      %v1030 = vmul.f32 %v612, %v1016
      %v1031 = vmul.f32 %v585, %v1015
      %v1032 = vmul.f32 %v614, %v1016
      %v1033 = vadd.f32 %v995, %v1017
      %v1034 = vadd.f32 %v996, %v1018
      %v1035 = vadd.f32 %v997, %v1019
      %v1036 = vadd.f32 %v998, %v1020
      %v1037 = vadd.f32 %v999, %v1021
      %v1038 = vadd.f32 %v1000, %v1022
      %v1039 = vadd.f32 %v1001, %v1023
      %v1040 = vadd.f32 %v1002, %v1024
      %v1041 = vadd.f32 %v1003, %v1025
      %v1042 = vadd.f32 %v1004, %v1026
      %v1043 = vadd.f32 %v1005, %v1027
      %v1044 = vadd.f32 %v1006, %v1028
      %v1045 = vadd.f32 %v1007, %v1029
      %v1046 = vadd.f32 %v1008, %v1030
      %v1047 = vadd.f32 %v1009, %v1031
      %v1048 = vadd.f32 %v1010, %v1032
      %v1049 = vxor.u32 %v1033, 2147483648
      %v1050 = vxor.u32 %v1034, 2147483648
      %v1051 = vxor.u32 %v1035, 2147483648
      %v1052 = vxor.u32 %v1036, 2147483648
      %v1053 = vxor.u32 %v1037, 2147483648
      %v1054 = vxor.u32 %v1038, 2147483648
      %v1055 = vxor.u32 %v1039, 2147483648
      %v1056 = vxor.u32 %v1040, 2147483648
      %v1057 = vxor.u32 %v1041, 2147483648
      %v1058 = vxor.u32 %v1042, 2147483648
      %v1059 = vxor.u32 %v1043, 2147483648
      %v1060 = vxor.u32 %v1044, 2147483648
      %v1061 = vxor.u32 %v1045, 2147483648
      %v1062 = vxor.u32 %v1046, 2147483648
      %v1063 = vxor.u32 %v1047, 2147483648
      %v1064 = vxor.u32 %v1048, 2147483648
      %v1065 = vmul.f32 %v1049, 1.442695
      %v1066 = vpow.pop %v1065
      %v1067 = vmul.f32 %v1050, 1.442695
      %v1068 = vpow.pop %v1067
      %v1069 = vmul.f32 %v1051, 1.442695
      %v1070 = vpow.pop %v1069
      %v1071 = vmul.f32 %v1052, 1.442695
      %v1072 = vpow.pop %v1071
      %v1073 = vmul.f32 %v1053, 1.442695
      %v1074 = vpow.pop %v1073
      %v1075 = vmul.f32 %v1054, 1.442695
      %v1076 = vpow.pop %v1075
      %v1077 = vmul.f32 %v1055, 1.442695
      %v1078 = vpow.pop %v1077
      %v1079 = vmul.f32 %v1056, 1.442695
      %v1080 = vpow.pop %v1079
      %v1081 = vmul.f32 %v1057, 1.442695
      %v1082 = vpow.pop %v1081
      %v1083 = vmul.f32 %v1058, 1.442695
      %v1084 = vpow.pop %v1083
      %v1085 = vmul.f32 %v1059, 1.442695
      %v1086 = vpow.pop %v1085
      %v1087 = vmul.f32 %v1060, 1.442695
      %v1088 = vpow.pop %v1087
      %v1089 = vmul.f32 %v1061, 1.442695
      %v1090 = vpow.pop %v1089
      %v1091 = vmul.f32 %v1062, 1.442695
      %v1092 = vpow.pop %v1091
      %v1093 = vmul.f32 %v1063, 1.442695
      %v1094 = vpow.pop %v1093
      %v1095 = vmul.f32 %v1064, 1.442695
      %v1096 = vpow.pop %v1095
      %v1097 = vadd.f32 %v1066, 1.0
      %v1098 = vadd.f32 %v1068, 1.0
      %v1099 = vadd.f32 %v1070, 1.0
      %v1100 = vadd.f32 %v1072, 1.0
      %v1101 = vadd.f32 %v1074, 1.0
      %v1102 = vadd.f32 %v1076, 1.0
      %v1103 = vadd.f32 %v1078, 1.0
      %v1104 = vadd.f32 %v1080, 1.0
      %v1105 = vadd.f32 %v1082, 1.0
      %v1106 = vadd.f32 %v1084, 1.0
      %v1107 = vadd.f32 %v1086, 1.0
      %v1108 = vadd.f32 %v1088, 1.0
      %v1109 = vadd.f32 %v1090, 1.0
      %v1110 = vadd.f32 %v1092, 1.0
      %v1111 = vadd.f32 %v1094, 1.0
      %v1112 = vadd.f32 %v1096, 1.0
      %v1113 = vrcp.pop %v1097
      %v1114 = vmul.f32 %v1097, %v1113
      %v1115 = vsub.f32 1.0, %v1114
      %v1116 = vmul.f32 %v1113, %v1115
      %v1117 = vadd.f32 %v1113, %v1116
      %vm1118 = vweird.f32 %v1097
      %vm1119 = vweird.f32 %v1113
      %vm1120 = vmor %vm1118, %vm1119
      %v1121 = vsel %vm1120, %v1113, %v1117
      %v1122 = vand.u32 2147483647, %v1097
      %vm1123 = vcmp.eq.f32.partialorder %v1122, 8.507059e+37
      %v1124 = vand.u32 %v1097, 2147483648
      %v1125 = vor.u32 1.1754944e-38, %v1124
      %v1126 = vsel %vm1123, %v1125, %v1121
      %v1127 = vmul.f32 1.0, %v1126
      %v1128 = vrcp.pop %v1098
      %v1129 = vmul.f32 %v1098, %v1128
      %v1130 = vsub.f32 1.0, %v1129
      %v1131 = vmul.f32 %v1128, %v1130
      %v1132 = vadd.f32 %v1128, %v1131
      %vm1133 = vweird.f32 %v1098
      %vm1134 = vweird.f32 %v1128
      %vm1135 = vmor %vm1133, %vm1134
      %v1136 = vsel %vm1135, %v1128, %v1132
      %v1137 = vand.u32 2147483647, %v1098
      %vm1138 = vcmp.eq.f32.partialorder %v1137, 8.507059e+37
      %v1139 = vand.u32 %v1098, 2147483648
      %v1140 = vor.u32 1.1754944e-38, %v1139
      %v1141 = vsel %vm1138, %v1140, %v1136
      %v1142 = vmul.f32 1.0, %v1141
      %v1143 = vrcp.pop %v1099
      %v1144 = vmul.f32 %v1099, %v1143
      %v1145 = vsub.f32 1.0, %v1144
      %v1146 = vmul.f32 %v1143, %v1145
      %v1147 = vadd.f32 %v1143, %v1146
      %vm1148 = vweird.f32 %v1099
      %vm1149 = vweird.f32 %v1143
      %vm1150 = vmor %vm1148, %vm1149
      %v1151 = vsel %vm1150, %v1143, %v1147
      %v1152 = vand.u32 2147483647, %v1099
      %vm1153 = vcmp.eq.f32.partialorder %v1152, 8.507059e+37
      %v1154 = vand.u32 %v1099, 2147483648
      %v1155 = vor.u32 1.1754944e-38, %v1154
      %v1156 = vsel %vm1153, %v1155, %v1151
      %v1157 = vmul.f32 1.0, %v1156
      %v1158 = vrcp.pop %v1100
      %v1159 = vmul.f32 %v1100, %v1158
      %v1160 = vsub.f32 1.0, %v1159
      %v1161 = vmul.f32 %v1158, %v1160
      %v1162 = vadd.f32 %v1158, %v1161
      %vm1163 = vweird.f32 %v1100
      %vm1164 = vweird.f32 %v1158
      %vm1165 = vmor %vm1163, %vm1164
      %v1166 = vsel %vm1165, %v1158, %v1162
      %v1167 = vand.u32 2147483647, %v1100
      %vm1168 = vcmp.eq.f32.partialorder %v1167, 8.507059e+37
      %v1169 = vand.u32 %v1100, 2147483648
      %v1170 = vor.u32 1.1754944e-38, %v1169
      %v1171 = vsel %vm1168, %v1170, %v1166
      %v1172 = vmul.f32 1.0, %v1171
      %v1173 = vrcp.pop %v1101
      %v1174 = vmul.f32 %v1101, %v1173
      %v1175 = vsub.f32 1.0, %v1174
      %v1176 = vmul.f32 %v1173, %v1175
      %v1177 = vadd.f32 %v1173, %v1176
      %vm1178 = vweird.f32 %v1101
      %vm1179 = vweird.f32 %v1173
      %vm1180 = vmor %vm1178, %vm1179
      %v1181 = vsel %vm1180, %v1173, %v1177
      %v1182 = vand.u32 2147483647, %v1101
      %vm1183 = vcmp.eq.f32.partialorder %v1182, 8.507059e+37
      %v1184 = vand.u32 %v1101, 2147483648
      %v1185 = vor.u32 1.1754944e-38, %v1184
      %v1186 = vsel %vm1183, %v1185, %v1181
      %v1187 = vmul.f32 1.0, %v1186
      %v1188 = vrcp.pop %v1102
      %v1189 = vmul.f32 %v1102, %v1188
      %v1190 = vsub.f32 1.0, %v1189
      %v1191 = vmul.f32 %v1188, %v1190
      %v1192 = vadd.f32 %v1188, %v1191
      %vm1193 = vweird.f32 %v1102
      %vm1194 = vweird.f32 %v1188
      %vm1195 = vmor %vm1193, %vm1194
      %v1196 = vsel %vm1195, %v1188, %v1192
      %v1197 = vand.u32 2147483647, %v1102
      %vm1198 = vcmp.eq.f32.partialorder %v1197, 8.507059e+37
      %v1199 = vand.u32 %v1102, 2147483648
      %v1200 = vor.u32 1.1754944e-38, %v1199
      %v1201 = vsel %vm1198, %v1200, %v1196
      %v1202 = vmul.f32 1.0, %v1201
      %v1203 = vrcp.pop %v1103
      %v1204 = vmul.f32 %v1103, %v1203
      %v1205 = vsub.f32 1.0, %v1204
      %v1206 = vmul.f32 %v1203, %v1205
      %v1207 = vadd.f32 %v1203, %v1206
      %vm1208 = vweird.f32 %v1103
      %vm1209 = vweird.f32 %v1203
      %vm1210 = vmor %vm1208, %vm1209
      %v1211 = vsel %vm1210, %v1203, %v1207
      %v1212 = vand.u32 2147483647, %v1103
      %vm1213 = vcmp.eq.f32.partialorder %v1212, 8.507059e+37
      %v1214 = vand.u32 %v1103, 2147483648
      %v1215 = vor.u32 1.1754944e-38, %v1214
      %v1216 = vsel %vm1213, %v1215, %v1211
      %v1217 = vmul.f32 1.0, %v1216
      %v1218 = vrcp.pop %v1104
      %v1219 = vmul.f32 %v1104, %v1218
      %v1220 = vsub.f32 1.0, %v1219
      %v1221 = vmul.f32 %v1218, %v1220
      %v1222 = vadd.f32 %v1218, %v1221
      %vm1223 = vweird.f32 %v1104
      %vm1224 = vweird.f32 %v1218
      %vm1225 = vmor %vm1223, %vm1224
      %v1226 = vsel %vm1225, %v1218, %v1222
      %v1227 = vand.u32 2147483647, %v1104
      %vm1228 = vcmp.eq.f32.partialorder %v1227, 8.507059e+37
      %v1229 = vand.u32 %v1104, 2147483648
      %v1230 = vor.u32 1.1754944e-38, %v1229
      %v1231 = vsel %vm1228, %v1230, %v1226
      %v1232 = vmul.f32 1.0, %v1231
      %v1233 = vrcp.pop %v1105
      %v1234 = vmul.f32 %v1105, %v1233
      %v1235 = vsub.f32 1.0, %v1234
      %v1236 = vmul.f32 %v1233, %v1235
      %v1237 = vadd.f32 %v1233, %v1236
      %vm1238 = vweird.f32 %v1105
      %vm1239 = vweird.f32 %v1233
      %vm1240 = vmor %vm1238, %vm1239
      %v1241 = vsel %vm1240, %v1233, %v1237
      %v1242 = vand.u32 2147483647, %v1105
      %vm1243 = vcmp.eq.f32.partialorder %v1242, 8.507059e+37
      %v1244 = vand.u32 %v1105, 2147483648
      %v1245 = vor.u32 1.1754944e-38, %v1244
      %v1246 = vsel %vm1243, %v1245, %v1241
      %v1247 = vmul.f32 1.0, %v1246
      %v1248 = vrcp.pop %v1106
      %v1249 = vmul.f32 %v1106, %v1248
      %v1250 = vsub.f32 1.0, %v1249
      %v1251 = vmul.f32 %v1248, %v1250
      %v1252 = vadd.f32 %v1248, %v1251
      %vm1253 = vweird.f32 %v1106
      %vm1254 = vweird.f32 %v1248
      %vm1255 = vmor %vm1253, %vm1254
      %v1256 = vsel %vm1255, %v1248, %v1252
      %v1257 = vand.u32 2147483647, %v1106
      %vm1258 = vcmp.eq.f32.partialorder %v1257, 8.507059e+37
      %v1259 = vand.u32 %v1106, 2147483648
      %v1260 = vor.u32 1.1754944e-38, %v1259
      %v1261 = vsel %vm1258, %v1260, %v1256
      %v1262 = vmul.f32 1.0, %v1261
      %v1263 = vrcp.pop %v1107
      %v1264 = vmul.f32 %v1107, %v1263
      %v1265 = vsub.f32 1.0, %v1264
      %v1266 = vmul.f32 %v1263, %v1265
      %v1267 = vadd.f32 %v1263, %v1266
      %vm1268 = vweird.f32 %v1107
      %vm1269 = vweird.f32 %v1263
      %vm1270 = vmor %vm1268, %vm1269
      %v1271 = vsel %vm1270, %v1263, %v1267
      %v1272 = vand.u32 2147483647, %v1107
      %vm1273 = vcmp.eq.f32.partialorder %v1272, 8.507059e+37
      %v1274 = vand.u32 %v1107, 2147483648
      %v1275 = vor.u32 1.1754944e-38, %v1274
      %v1276 = vsel %vm1273, %v1275, %v1271
      %v1277 = vmul.f32 1.0, %v1276
      %v1278 = vrcp.pop %v1108
      %v1279 = vmul.f32 %v1108, %v1278
      %v1280 = vsub.f32 1.0, %v1279
      %v1281 = vmul.f32 %v1278, %v1280
      %v1282 = vadd.f32 %v1278, %v1281
      %vm1283 = vweird.f32 %v1108
      %vm1284 = vweird.f32 %v1278
      %vm1285 = vmor %vm1283, %vm1284
      %v1286 = vsel %vm1285, %v1278, %v1282
      %v1287 = vand.u32 2147483647, %v1108
      %vm1288 = vcmp.eq.f32.partialorder %v1287, 8.507059e+37
      %v1289 = vand.u32 %v1108, 2147483648
      %v1290 = vor.u32 1.1754944e-38, %v1289
      %v1291 = vsel %vm1288, %v1290, %v1286
      %v1292 = vmul.f32 1.0, %v1291
      %v1293 = vrcp.pop %v1109
      %v1294 = vmul.f32 %v1109, %v1293
      %v1295 = vsub.f32 1.0, %v1294
      %v1296 = vmul.f32 %v1293, %v1295
      %v1297 = vadd.f32 %v1293, %v1296
      %vm1298 = vweird.f32 %v1109
      %vm1299 = vweird.f32 %v1293
      %vm1300 = vmor %vm1298, %vm1299
      %v1301 = vsel %vm1300, %v1293, %v1297
      %v1302 = vand.u32 2147483647, %v1109
      %vm1303 = vcmp.eq.f32.partialorder %v1302, 8.507059e+37
      %v1304 = vand.u32 %v1109, 2147483648
      %v1305 = vor.u32 1.1754944e-38, %v1304
      %v1306 = vsel %vm1303, %v1305, %v1301
      %v1307 = vmul.f32 1.0, %v1306
      %v1308 = vrcp.pop %v1110
      %v1309 = vmul.f32 %v1110, %v1308
      %v1310 = vsub.f32 1.0, %v1309
      %v1311 = vmul.f32 %v1308, %v1310
      %v1312 = vadd.f32 %v1308, %v1311
      %vm1313 = vweird.f32 %v1110
      %vm1314 = vweird.f32 %v1308
      %vm1315 = vmor %vm1313, %vm1314
      %v1316 = vsel %vm1315, %v1308, %v1312
      %v1317 = vand.u32 2147483647, %v1110
      %vm1318 = vcmp.eq.f32.partialorder %v1317, 8.507059e+37
      %v1319 = vand.u32 %v1110, 2147483648
      %v1320 = vor.u32 1.1754944e-38, %v1319
      %v1321 = vsel %vm1318, %v1320, %v1316
      %v1322 = vmul.f32 1.0, %v1321
      %v1323 = vrcp.pop %v1111
      %v1324 = vmul.f32 %v1111, %v1323
      %v1325 = vsub.f32 1.0, %v1324
      %v1326 = vmul.f32 %v1323, %v1325
      %v1327 = vadd.f32 %v1323, %v1326
      %vm1328 = vweird.f32 %v1111
      %vm1329 = vweird.f32 %v1323
      %vm1330 = vmor %vm1328, %vm1329
      %v1331 = vsel %vm1330, %v1323, %v1327
      %v1332 = vand.u32 2147483647, %v1111
      %vm1333 = vcmp.eq.f32.partialorder %v1332, 8.507059e+37
      %v1334 = vand.u32 %v1111, 2147483648
      %v1335 = vor.u32 1.1754944e-38, %v1334
      %v1336 = vsel %vm1333, %v1335, %v1331
      %v1337 = vmul.f32 1.0, %v1336
      %v1338 = vrcp.pop %v1112
      %v1339 = vmul.f32 %v1112, %v1338
      %v1340 = vsub.f32 1.0, %v1339
      %v1341 = vmul.f32 %v1338, %v1340
      %v1342 = vadd.f32 %v1338, %v1341
      %vm1343 = vweird.f32 %v1112
      %vm1344 = vweird.f32 %v1338
      %vm1345 = vmor %vm1343, %vm1344
      %v1346 = vsel %vm1345, %v1338, %v1342
      %v1347 = vand.u32 2147483647, %v1112
      %vm1348 = vcmp.eq.f32.partialorder %v1347, 8.507059e+37
      %v1349 = vand.u32 %v1112, 2147483648
      %v1350 = vor.u32 1.1754944e-38, %v1349
      %v1351 = vsel %vm1348, %v1350, %v1346
      %v1352 = vmul.f32 1.0, %v1351
      %v1353 = vmul.f32 %v1033, %v1127
      %v1354 = vmul.f32 %v1034, %v1142
      %v1355 = vmul.f32 %v1035, %v1157
      %v1356 = vmul.f32 %v1036, %v1172
      %v1357 = vmul.f32 %v1037, %v1187
      %v1358 = vmul.f32 %v1038, %v1202
      %v1359 = vmul.f32 %v1039, %v1217
      %v1360 = vmul.f32 %v1040, %v1232
      %v1361 = vmul.f32 %v1041, %v1247
      %v1362 = vmul.f32 %v1042, %v1262
      %v1363 = vmul.f32 %v1043, %v1277
      %v1364 = vmul.f32 %v1044, %v1292
      %v1365 = vmul.f32 %v1045, %v1307
      %v1366 = vmul.f32 %v1046, %v1322
      %v1367 = vmul.f32 %v1047, %v1337
      %v1368 = vmul.f32 %v1048, %v1352
      %v1369 = vsel %vm688, %v568, 0.0
      %v1370 = vsel %vm688, %v597, 0.0
      %v1371 = vsel %vm689, %v570, 0.0
      %v1372 = vsel %vm689, %v599, 0.0
      %v1373 = vsel %vm690, %v573, 0.0
      %v1374 = vsel %vm690, %v602, 0.0
      %v1375 = vsel %vm691, %v575, 0.0
      %v1376 = vsel %vm691, %v604, 0.0
      %v1377 = vsel %vm692, %v578, 0.0
      %v1378 = vsel %vm692, %v607, 0.0
      %v1379 = vsel %vm693, %v580, 0.0
      %v1380 = vsel %vm693, %v609, 0.0
      %v1381 = vsel %vm694, %v583, 0.0
      %v1382 = vsel %vm694, %v612, 0.0
      %v1383 = vsel %vm695, %v585, 0.0
      %v1384 = vsel %vm695, %v614, 0.0
      %1385 = vst [vmem:[#allocation3] sm:$0xff] %v1369
      %vm1386 = vcmask 261120
      %1387 = vst.msk [vmem:[#allocation3 + $0x8] sm:$0xff] %vm1386, %v1370
      %1388 = vst [vmem:[#allocation3 + $0x10] sm:$0xff] %v1371
      %1389 = vst.msk [vmem:[#allocation3 + $0x18] sm:$0xff] %vm1386, %v1372
      %1390 = vst [vmem:[#allocation3 + $0x20] sm:$0xff] %v1373
      %1391 = vst.msk [vmem:[#allocation3 + $0x28] sm:$0xff] %vm1386, %v1374
      %1392 = vst [vmem:[#allocation3 + $0x30] sm:$0xff] %v1375
      %1393 = vst.msk [vmem:[#allocation3 + $0x38] sm:$0xff] %vm1386, %v1376
      %1394 = vst [vmem:[#allocation3 + $0x40] sm:$0xff] %v1377
      %1395 = vst.msk [vmem:[#allocation3 + $0x48] sm:$0xff] %vm1386, %v1378
      %1396 = vst [vmem:[#allocation3 + $0x50] sm:$0xff] %v1379
      %1397 = vst.msk [vmem:[#allocation3 + $0x58] sm:$0xff] %vm1386, %v1380
      %1398 = vst [vmem:[#allocation3 + $0x60] sm:$0xff] %v1381
      %1399 = vst.msk [vmem:[#allocation3 + $0x68] sm:$0xff] %vm1386, %v1382
      %1400 = vst [vmem:[#allocation3 + $0x70] sm:$0xff] %v1383
      %1401 = vst.msk [vmem:[#allocation3 + $0x78] sm:$0xff] %vm1386, %v1384
      %v1402 = vld [vmem:[%s5] sm:$0x7]
      %v1403 = vperm.slane %v1402, 2
      %v1404 = vadd.f32 %v626, %v1403
      %v1405 = vadd.f32 %v628, %v1403
      %v1406 = vadd.f32 %v631, %v1403
      %v1407 = vadd.f32 %v633, %v1403
      %v1408 = vadd.f32 %v636, %v1403
      %v1409 = vadd.f32 %v638, %v1403
      %v1410 = vadd.f32 %v641, %v1403
      %v1411 = vadd.f32 %v643, %v1403
      %v1412 = vmax.f32 %v1404, 0.0
      %v1413 = vmax.f32 %v1405, 0.0
      %v1414 = vmax.f32 %v1406, 0.0
      %v1415 = vmax.f32 %v1407, 0.0
      %v1416 = vmax.f32 %v1408, 0.0
      %v1417 = vmax.f32 %v1409, 0.0
      %v1418 = vmax.f32 %v1410, 0.0
      %v1419 = vmax.f32 %v1411, 0.0
      %v1420 = vand.u32 2147483647, %v1404
      %v1421 = vand.u32 2147483647, %v1405
      %v1422 = vand.u32 2147483647, %v1406
      %v1423 = vand.u32 2147483647, %v1407
      %v1424 = vand.u32 2147483647, %v1408
      %v1425 = vand.u32 2147483647, %v1409
      %v1426 = vand.u32 2147483647, %v1410
      %v1427 = vand.u32 2147483647, %v1411
      %v1428 = vsub.f32 0.0, %v1420
      %v1429 = vsub.f32 0.0, %v1421
      %v1430 = vsub.f32 0.0, %v1422
      %v1431 = vsub.f32 0.0, %v1423
      %v1432 = vsub.f32 0.0, %v1424
      %v1433 = vsub.f32 0.0, %v1425
      %v1434 = vsub.f32 0.0, %v1426
      %v1435 = vsub.f32 0.0, %v1427
      %v1436 = vmul.f32 %v1428, 1.442695
      %v1437 = vpow.pop %v1436
      %v1438 = vmul.f32 %v1429, 1.442695
      %v1439 = vpow.pop %v1438
      %v1440 = vmul.f32 %v1430, 1.442695
      %v1441 = vpow.pop %v1440
      %v1442 = vmul.f32 %v1431, 1.442695
      %v1443 = vpow.pop %v1442
      %v1444 = vmul.f32 %v1432, 1.442695
      %v1445 = vpow.pop %v1444
      %v1446 = vmul.f32 %v1433, 1.442695
      %v1447 = vpow.pop %v1446
      %v1448 = vmul.f32 %v1434, 1.442695
      %v1449 = vpow.pop %v1448
      %v1450 = vmul.f32 %v1435, 1.442695
      %v1451 = vpow.pop %v1450
      %v1452 = vadd.f32 %v1437, 1.0
      %v1453 = vlog2.pop %v1452
      %v1454 = vmul.f32 %v1453, 0.6931472
      %v1455 = vmul.f32 -0.5, %v1437
      %v1456 = vadd.f32 %v1455, 1.0
      %v1457 = vmul.f32 %v1456, %v1437
      %v1458 = vand.u32 2147483647, %v1437
      %vm1459 = vcmp.lt.f32.partialorder %v1458, 0.0004427343
      %v1460 = vsel %vm1459, %v1457, %v1454
      %v1461 = vadd.f32 %v1439, 1.0
      %v1462 = vlog2.pop %v1461
      %v1463 = vmul.f32 %v1462, 0.6931472
      %v1464 = vmul.f32 -0.5, %v1439
      %v1465 = vadd.f32 %v1464, 1.0
      %v1466 = vmul.f32 %v1465, %v1439
      %v1467 = vand.u32 2147483647, %v1439
      %vm1468 = vcmp.lt.f32.partialorder %v1467, 0.0004427343
      %v1469 = vsel %vm1468, %v1466, %v1463
      %v1470 = vadd.f32 %v1441, 1.0
      %v1471 = vlog2.pop %v1470
      %v1472 = vmul.f32 %v1471, 0.6931472
      %v1473 = vmul.f32 -0.5, %v1441
      %v1474 = vadd.f32 %v1473, 1.0
      %v1475 = vmul.f32 %v1474, %v1441
      %v1476 = vand.u32 2147483647, %v1441
      %vm1477 = vcmp.lt.f32.partialorder %v1476, 0.0004427343
      %v1478 = vsel %vm1477, %v1475, %v1472
      %v1479 = vadd.f32 %v1443, 1.0
      %v1480 = vlog2.pop %v1479
      %v1481 = vmul.f32 %v1480, 0.6931472
      %v1482 = vmul.f32 -0.5, %v1443
      %v1483 = vadd.f32 %v1482, 1.0
      %v1484 = vmul.f32 %v1483, %v1443
      %v1485 = vand.u32 2147483647, %v1443
      %vm1486 = vcmp.lt.f32.partialorder %v1485, 0.0004427343
      %v1487 = vsel %vm1486, %v1484, %v1481
      %v1488 = vadd.f32 %v1445, 1.0
      %v1489 = vlog2.pop %v1488
      %v1490 = vmul.f32 %v1489, 0.6931472
      %v1491 = vmul.f32 -0.5, %v1445
      %v1492 = vadd.f32 %v1491, 1.0
      %v1493 = vmul.f32 %v1492, %v1445
      %v1494 = vand.u32 2147483647, %v1445
      %vm1495 = vcmp.lt.f32.partialorder %v1494, 0.0004427343
      %v1496 = vsel %vm1495, %v1493, %v1490
      %v1497 = vadd.f32 %v1447, 1.0
      %v1498 = vlog2.pop %v1497
      %v1499 = vmul.f32 %v1498, 0.6931472
      %v1500 = vmul.f32 -0.5, %v1447
      %v1501 = vadd.f32 %v1500, 1.0
      %v1502 = vmul.f32 %v1501, %v1447
      %v1503 = vand.u32 2147483647, %v1447
      %vm1504 = vcmp.lt.f32.partialorder %v1503, 0.0004427343
      %v1505 = vsel %vm1504, %v1502, %v1499
      %v1506 = vadd.f32 %v1449, 1.0
      %v1507 = vlog2.pop %v1506
      %v1508 = vmul.f32 %v1507, 0.6931472
      %v1509 = vmul.f32 -0.5, %v1449
      %v1510 = vadd.f32 %v1509, 1.0
      %v1511 = vmul.f32 %v1510, %v1449
      %v1512 = vand.u32 2147483647, %v1449
      %vm1513 = vcmp.lt.f32.partialorder %v1512, 0.0004427343
      %v1514 = vsel %vm1513, %v1511, %v1508
      %v1515 = vadd.f32 %v1451, 1.0
      %v1516 = vlog2.pop %v1515
      %v1517 = vmul.f32 %v1516, 0.6931472
      %v1518 = vmul.f32 -0.5, %v1451
      %v1519 = vadd.f32 %v1518, 1.0
      %v1520 = vmul.f32 %v1519, %v1451
      %v1521 = vand.u32 2147483647, %v1451
      %vm1522 = vcmp.lt.f32.partialorder %v1521, 0.0004427343
      %v1523 = vsel %vm1522, %v1520, %v1517
      %v1524 = vadd.f32 %v1412, %v1460
      %v1525 = vadd.f32 %v1413, %v1469
      %v1526 = vadd.f32 %v1414, %v1478
      %v1527 = vadd.f32 %v1415, %v1487
      %v1528 = vadd.f32 %v1416, %v1496
      %v1529 = vadd.f32 %v1417, %v1505
      %v1530 = vadd.f32 %v1418, %v1514
      %v1531 = vadd.f32 %v1419, %v1523
      %vm1532 = vcmp.ge.s32.totalorder %v646, 1
      %vm1533 = vcmp.ge.s32.totalorder %v647, 1
      %vm1534 = vcmp.ge.s32.totalorder %v648, 1
      %vm1535 = vcmp.ge.s32.totalorder %v649, 1
      %vm1536 = vcmp.ge.s32.totalorder %v650, 1
      %vm1537 = vcmp.ge.s32.totalorder %v651, 1
      %vm1538 = vcmp.ge.s32.totalorder %v652, 1
      %vm1539 = vcmp.ge.s32.totalorder %v653, 1
      %v1540 = vrot.slane %v1524, 7
      %v1541 = vrot.slane %v1525, 7
      %v1542 = vrot.slane %v1526, 7
      %v1543 = vrot.slane %v1527, 7
      %v1544 = vrot.slane %v1528, 7
      %v1545 = vrot.slane %v1529, 7
      %v1546 = vrot.slane %v1530, 7
      %v1547 = vrot.slane %v1531, 7
      %v1548 = vsel %vm956, %v1546, %v1547
      %v1549 = vsel %vm956, %v1545, %v1546
      %v1550 = vsel %vm956, %v1544, %v1545
      %v1551 = vsel %vm956, %v1543, %v1544
      %v1552 = vsel %vm956, %v1542, %v1543
      %v1553 = vsel %vm956, %v1541, %v1542
      %v1554 = vsel %vm956, %v1540, %v1541
      %v1555 = vsel %vm956, %v1547, %v1540
      %v1556 = vsel %vm1532, 1, 0
      %v1557 = vsel %vm1533, 1, 0
      %v1558 = vsel %vm1534, 1, 0
      %v1559 = vsel %vm1535, 1, 0
      %v1560 = vsel %vm1536, 1, 0
      %v1561 = vsel %vm1537, 1, 0
      %v1562 = vsel %vm1538, 1, 0
      %v1563 = vsel %vm1539, 1, 0
      %vm1564 = vcmp.eq.s32.totalorder %v1556, 1
      %vm1565 = vcmp.eq.s32.totalorder %v1557, 1
      %vm1566 = vcmp.eq.s32.totalorder %v1558, 1
      %vm1567 = vcmp.eq.s32.totalorder %v1559, 1
      %vm1568 = vcmp.eq.s32.totalorder %v1560, 1
      %vm1569 = vcmp.eq.s32.totalorder %v1561, 1
      %vm1570 = vcmp.eq.s32.totalorder %v1562, 1
      %vm1571 = vcmp.eq.s32.totalorder %v1563, 1
      %v1572 = vsel %vm1564, %v1555, 0.0
      %v1573 = vsel %vm1565, %v1554, 0.0
      %v1574 = vsel %vm1566, %v1553, 0.0
      %v1575 = vsel %vm1567, %v1552, 0.0
      %v1576 = vsel %vm1568, %v1551, 0.0
      %v1577 = vsel %vm1569, %v1550, 0.0
      %v1578 = vsel %vm1570, %v1549, 0.0
      %v1579 = vsel %vm1571, %v1548, 0.0
      %v1580 = vadd.f32 %v1524, %v1572
      %v1581 = vadd.f32 %v1525, %v1573
      %v1582 = vadd.f32 %v1526, %v1574
      %v1583 = vadd.f32 %v1527, %v1575
      %v1584 = vadd.f32 %v1528, %v1576
      %v1585 = vadd.f32 %v1529, %v1577
      %v1586 = vadd.f32 %v1530, %v1578
      %v1587 = vadd.f32 %v1531, %v1579
      %vm1588 = vcmp.ge.s32.totalorder %v646, 2
      %vm1589 = vcmp.ge.s32.totalorder %v647, 2
      %vm1590 = vcmp.ge.s32.totalorder %v648, 2
      %vm1591 = vcmp.ge.s32.totalorder %v649, 2
      %vm1592 = vcmp.ge.s32.totalorder %v650, 2
      %vm1593 = vcmp.ge.s32.totalorder %v651, 2
      %vm1594 = vcmp.ge.s32.totalorder %v652, 2
      %vm1595 = vcmp.ge.s32.totalorder %v653, 2
      %v1596 = vrot.slane %v1580, 6
      %v1597 = vrot.slane %v1581, 6
      %v1598 = vrot.slane %v1582, 6
      %v1599 = vrot.slane %v1583, 6
      %v1600 = vrot.slane %v1584, 6
      %v1601 = vrot.slane %v1585, 6
      %v1602 = vrot.slane %v1586, 6
      %v1603 = vrot.slane %v1587, 6
      %v1604 = vsel %vm845, %v1602, %v1603
      %v1605 = vsel %vm845, %v1601, %v1602
      %v1606 = vsel %vm845, %v1600, %v1601
      %v1607 = vsel %vm845, %v1599, %v1600
      %v1608 = vsel %vm845, %v1598, %v1599
      %v1609 = vsel %vm845, %v1597, %v1598
      %v1610 = vsel %vm845, %v1596, %v1597
      %v1611 = vsel %vm845, %v1603, %v1596
      %v1612 = vsel %vm1588, 1, 0
      %v1613 = vsel %vm1589, 1, 0
      %v1614 = vsel %vm1590, 1, 0
      %v1615 = vsel %vm1591, 1, 0
      %v1616 = vsel %vm1592, 1, 0
      %v1617 = vsel %vm1593, 1, 0
      %v1618 = vsel %vm1594, 1, 0
      %v1619 = vsel %vm1595, 1, 0
      %vm1620 = vcmp.eq.s32.totalorder %v1612, 1
      %vm1621 = vcmp.eq.s32.totalorder %v1613, 1
      %vm1622 = vcmp.eq.s32.totalorder %v1614, 1
      %vm1623 = vcmp.eq.s32.totalorder %v1615, 1
      %vm1624 = vcmp.eq.s32.totalorder %v1616, 1
      %vm1625 = vcmp.eq.s32.totalorder %v1617, 1
      %vm1626 = vcmp.eq.s32.totalorder %v1618, 1
      %vm1627 = vcmp.eq.s32.totalorder %v1619, 1
      %v1628 = vsel %vm1620, %v1611, 0.0
      %v1629 = vsel %vm1621, %v1610, 0.0
      %v1630 = vsel %vm1622, %v1609, 0.0
      %v1631 = vsel %vm1623, %v1608, 0.0
      %v1632 = vsel %vm1624, %v1607, 0.0
      %v1633 = vsel %vm1625, %v1606, 0.0
      %v1634 = vsel %vm1626, %v1605, 0.0
      %v1635 = vsel %vm1627, %v1604, 0.0
      %v1636 = vadd.f32 %v1580, %v1628
      %v1637 = vadd.f32 %v1581, %v1629
      %v1638 = vadd.f32 %v1582, %v1630
      %v1639 = vadd.f32 %v1583, %v1631
      %v1640 = vadd.f32 %v1584, %v1632
      %v1641 = vadd.f32 %v1585, %v1633
      %v1642 = vadd.f32 %v1586, %v1634
      %v1643 = vadd.f32 %v1587, %v1635
      %vm1644 = vcmp.ge.s32.totalorder %v646, 4
      %vm1645 = vcmp.ge.s32.totalorder %v647, 4
      %vm1646 = vcmp.ge.s32.totalorder %v648, 4
      %vm1647 = vcmp.ge.s32.totalorder %v649, 4
      %vm1648 = vcmp.ge.s32.totalorder %v650, 4
      %vm1649 = vcmp.ge.s32.totalorder %v651, 4
      %vm1650 = vcmp.ge.s32.totalorder %v652, 4
      %vm1651 = vcmp.ge.s32.totalorder %v653, 4
      %v1652 = vrot.slane %v1636, 4
      %v1653 = vrot.slane %v1637, 4
      %v1654 = vrot.slane %v1638, 4
      %v1655 = vrot.slane %v1639, 4
      %v1656 = vrot.slane %v1640, 4
      %v1657 = vrot.slane %v1641, 4
      %v1658 = vrot.slane %v1642, 4
      %v1659 = vrot.slane %v1643, 4
      %vm1660 = vcmp.lt.s32.totalorder %v646, 4
      %v1661 = vsel %vm1660, %v1658, %v1659
      %v1662 = vsel %vm1660, %v1657, %v1658
      %v1663 = vsel %vm1660, %v1656, %v1657
      %v1664 = vsel %vm1660, %v1655, %v1656
      %v1665 = vsel %vm1660, %v1654, %v1655
      %v1666 = vsel %vm1660, %v1653, %v1654
      %v1667 = vsel %vm1660, %v1652, %v1653
      %v1668 = vsel %vm1660, %v1659, %v1652
      %v1669 = vsel %vm1644, 1, 0
      %v1670 = vsel %vm1645, 1, 0
      %v1671 = vsel %vm1646, 1, 0
      %v1672 = vsel %vm1647, 1, 0
      %v1673 = vsel %vm1648, 1, 0
      %v1674 = vsel %vm1649, 1, 0
      %v1675 = vsel %vm1650, 1, 0
      %v1676 = vsel %vm1651, 1, 0
      %vm1677 = vcmp.eq.s32.totalorder %v1669, 1
      %vm1678 = vcmp.eq.s32.totalorder %v1670, 1
      %vm1679 = vcmp.eq.s32.totalorder %v1671, 1
      %vm1680 = vcmp.eq.s32.totalorder %v1672, 1
      %vm1681 = vcmp.eq.s32.totalorder %v1673, 1
      %vm1682 = vcmp.eq.s32.totalorder %v1674, 1
      %vm1683 = vcmp.eq.s32.totalorder %v1675, 1
      %vm1684 = vcmp.eq.s32.totalorder %v1676, 1
      %v1685 = vsel %vm1677, %v1668, 0.0
      %v1686 = vsel %vm1678, %v1667, 0.0
      %v1687 = vsel %vm1679, %v1666, 0.0
      %v1688 = vsel %vm1680, %v1665, 0.0
      %v1689 = vsel %vm1681, %v1664, 0.0
      %v1690 = vsel %vm1682, %v1663, 0.0
      %v1691 = vsel %vm1683, %v1662, 0.0
      %v1692 = vsel %vm1684, %v1661, 0.0
      %v1693 = vadd.f32 %v1636, %v1685
      %v1694 = vadd.f32 %v1637, %v1686
      %v1695 = vadd.f32 %v1638, %v1687
      %v1696 = vadd.f32 %v1639, %v1688
      %v1697 = vadd.f32 %v1640, %v1689
      %v1698 = vadd.f32 %v1641, %v1690
      %v1699 = vadd.f32 %v1642, %v1691
      %v1700 = vadd.f32 %v1643, %v1692
      %vm1701 = vcmp.ge.s32.totalorder %v646, 8
      %vm1702 = vcmp.ge.s32.totalorder %v647, 8
      %vm1703 = vcmp.ge.s32.totalorder %v648, 8
      %vm1704 = vcmp.ge.s32.totalorder %v649, 8
      %vm1705 = vcmp.ge.s32.totalorder %v650, 8
      %vm1706 = vcmp.ge.s32.totalorder %v651, 8
      %vm1707 = vcmp.ge.s32.totalorder %v652, 8
      %vm1708 = vcmp.ge.s32.totalorder %v653, 8
      %v1709 = vsel %vm1701, 1, 0
      %v1710 = vsel %vm1702, 1, 0
      %v1711 = vsel %vm1703, 1, 0
      %v1712 = vsel %vm1704, 1, 0
      %v1713 = vsel %vm1705, 1, 0
      %v1714 = vsel %vm1706, 1, 0
      %v1715 = vsel %vm1707, 1, 0
      %v1716 = vsel %vm1708, 1, 0
      %vm1717 = vcmp.eq.s32.totalorder %v1709, 1
      %vm1718 = vcmp.eq.s32.totalorder %v1710, 1
      %vm1719 = vcmp.eq.s32.totalorder %v1711, 1
      %vm1720 = vcmp.eq.s32.totalorder %v1712, 1
      %vm1721 = vcmp.eq.s32.totalorder %v1713, 1
      %vm1722 = vcmp.eq.s32.totalorder %v1714, 1
      %vm1723 = vcmp.eq.s32.totalorder %v1715, 1
      %vm1724 = vcmp.eq.s32.totalorder %v1716, 1
      %v1725 = vsel %vm1717, %v1700, 0.0
      %v1726 = vsel %vm1718, %v1693, 0.0
      %v1727 = vsel %vm1719, %v1694, 0.0
      %v1728 = vsel %vm1720, %v1695, 0.0
      %v1729 = vsel %vm1721, %v1696, 0.0
      %v1730 = vsel %vm1722, %v1697, 0.0
      %v1731 = vsel %vm1723, %v1698, 0.0
      %v1732 = vsel %vm1724, %v1699, 0.0
      %v1733 = vadd.f32 %v1693, %v1725
      %v1734 = vadd.f32 %v1694, %v1726
      %v1735 = vadd.f32 %v1695, %v1727
      %v1736 = vadd.f32 %v1696, %v1728
      %v1737 = vadd.f32 %v1697, %v1729
      %v1738 = vadd.f32 %v1698, %v1730
      %v1739 = vadd.f32 %v1699, %v1731
      %v1740 = vadd.f32 %v1700, %v1732
      %vm1741 = vcmp.ge.s32.totalorder %v646, 16
      %vm1742 = vcmp.ge.s32.totalorder %v647, 16
      %vm1743 = vcmp.ge.s32.totalorder %v648, 16
      %vm1744 = vcmp.ge.s32.totalorder %v649, 16
      %vm1745 = vcmp.ge.s32.totalorder %v650, 16
      %vm1746 = vcmp.ge.s32.totalorder %v651, 16
      %vm1747 = vcmp.ge.s32.totalorder %v652, 16
      %vm1748 = vcmp.ge.s32.totalorder %v653, 16
      %v1749 = vsel %vm1741, 1, 0
      %v1750 = vsel %vm1742, 1, 0
      %v1751 = vsel %vm1743, 1, 0
      %v1752 = vsel %vm1744, 1, 0
      %v1753 = vsel %vm1745, 1, 0
      %v1754 = vsel %vm1746, 1, 0
      %v1755 = vsel %vm1747, 1, 0
      %v1756 = vsel %vm1748, 1, 0
      %vm1757 = vcmp.eq.s32.totalorder %v1749, 1
      %vm1758 = vcmp.eq.s32.totalorder %v1750, 1
      %vm1759 = vcmp.eq.s32.totalorder %v1751, 1
      %vm1760 = vcmp.eq.s32.totalorder %v1752, 1
      %vm1761 = vcmp.eq.s32.totalorder %v1753, 1
      %vm1762 = vcmp.eq.s32.totalorder %v1754, 1
      %vm1763 = vcmp.eq.s32.totalorder %v1755, 1
      %vm1764 = vcmp.eq.s32.totalorder %v1756, 1
      %v1765 = vsel %vm1757, %v1739, 0.0
      %v1766 = vsel %vm1758, %v1740, 0.0
      %v1767 = vsel %vm1759, %v1733, 0.0
      %v1768 = vsel %vm1760, %v1734, 0.0
      %v1769 = vsel %vm1761, %v1735, 0.0
      %v1770 = vsel %vm1762, %v1736, 0.0
      %v1771 = vsel %vm1763, %v1737, 0.0
      %v1772 = vsel %vm1764, %v1738, 0.0
      %v1773 = vadd.f32 %v1733, %v1765
      %v1774 = vadd.f32 %v1734, %v1766
      %v1775 = vadd.f32 %v1735, %v1767
      %v1776 = vadd.f32 %v1736, %v1768
      %v1777 = vadd.f32 %v1737, %v1769
      %v1778 = vadd.f32 %v1738, %v1770
      %v1779 = vadd.f32 %v1739, %v1771
      %v1780 = vadd.f32 %v1740, %v1772
      %vm1781 = vcmp.ge.s32.totalorder %v646, 32
      %vm1782 = vcmp.ge.s32.totalorder %v647, 32
      %vm1783 = vcmp.ge.s32.totalorder %v648, 32
      %vm1784 = vcmp.ge.s32.totalorder %v649, 32
      %vm1785 = vcmp.ge.s32.totalorder %v650, 32
      %vm1786 = vcmp.ge.s32.totalorder %v651, 32
      %vm1787 = vcmp.ge.s32.totalorder %v652, 32
      %vm1788 = vcmp.ge.s32.totalorder %v653, 32
      %v1789 = vsel %vm1781, 1, 0
      %v1790 = vsel %vm1782, 1, 0
      %v1791 = vsel %vm1783, 1, 0
      %v1792 = vsel %vm1784, 1, 0
      %v1793 = vsel %vm1785, 1, 0
      %v1794 = vsel %vm1786, 1, 0
      %v1795 = vsel %vm1787, 1, 0
      %v1796 = vsel %vm1788, 1, 0
      %vm1797 = vcmp.eq.s32.totalorder %v1789, 1
      %vm1798 = vcmp.eq.s32.totalorder %v1790, 1
      %vm1799 = vcmp.eq.s32.totalorder %v1791, 1
      %vm1800 = vcmp.eq.s32.totalorder %v1792, 1
      %vm1801 = vcmp.eq.s32.totalorder %v1793, 1
      %vm1802 = vcmp.eq.s32.totalorder %v1794, 1
      %vm1803 = vcmp.eq.s32.totalorder %v1795, 1
      %vm1804 = vcmp.eq.s32.totalorder %v1796, 1
      %v1805 = vsel %vm1797, %v1777, 0.0
      %v1806 = vsel %vm1798, %v1778, 0.0
      %v1807 = vsel %vm1799, %v1779, 0.0
      %v1808 = vsel %vm1800, %v1780, 0.0
      %v1809 = vsel %vm1801, %v1773, 0.0
      %v1810 = vsel %vm1802, %v1774, 0.0
      %v1811 = vsel %vm1803, %v1775, 0.0
      %v1812 = vsel %vm1804, %v1776, 0.0
      %v1813 = vadd.f32 %v1773, %v1805
      %v1814 = vadd.f32 %v1774, %v1806
      %v1815 = vadd.f32 %v1775, %v1807
      %v1816 = vadd.f32 %v1776, %v1808
      %v1817 = vadd.f32 %v1777, %v1809
      %v1818 = vadd.f32 %v1778, %v1810
      %v1819 = vadd.f32 %v1779, %v1811
      %v1820 = vadd.f32 %v1780, %v1812
      %vm1821 = vcmask 15360
      %v1822 = vsel %vm1821, %v1524, 0.0
      %v1823 = vsel %vm1821, %v1525, 0.0
      %v1824 = vadd.f32 %v1822, %v1823
      %v1825 = vsel %vm1821, %v1526, 0.0
      %v1826 = vadd.f32 %v1824, %v1825
      %v1827 = vsel %vm1821, %v1527, 0.0
      %v1828 = vadd.f32 %v1826, %v1827
      %v1829 = vsel %vm1821, %v1528, 0.0
      %v1830 = vadd.f32 %v1828, %v1829
      %v1831 = vsel %vm1821, %v1529, 0.0
      %v1832 = vadd.f32 %v1830, %v1831
      %v1833 = vsel %vm1821, %v1530, 0.0
      %v1834 = vadd.f32 %v1832, %v1833
      %v1835 = vsel %vm1821, %v1531, 0.0
      %v1836 = vadd.f32 %v1834, %v1835
      %v1837 = vrot.slane %v1836, 4
      %v1838 = vadd.f32 %v1836, %v1837
      %v1839 = vrot.slane %v1838, 2
      %v1840 = vadd.f32 %v1838, %v1839
      %v1841 = vrot.slane %v1840, 1
      %v1842 = vadd.f32 %v1840, %v1841
      %v1843 = vlaneseq
      %v1844 = vand.u32 %v1843, 127
      %vm1845 = vcmp.ge.s32.totalorder %v646, %v1844
      %vm1846 = vcmp.ge.s32.totalorder %v647, %v1844
      %vm1847 = vcmp.ge.s32.totalorder %v648, %v1844
      %vm1848 = vcmp.ge.s32.totalorder %v649, %v1844
      %vm1849 = vcmp.ge.s32.totalorder %v650, %v1844
      %vm1850 = vcmp.ge.s32.totalorder %v651, %v1844
      %vm1851 = vcmp.ge.s32.totalorder %v652, %v1844
      %vm1852 = vcmp.ge.s32.totalorder %v653, %v1844
      %v1853 = vpack.c.bf16 %v1356, %v1354
      %v1854 = vpack.c.bf16 %v1360, %v1358
      %v1855 = vpack.c.bf16 %v1364, %v1362
      %v1856 = vpack.c.bf16 %v1368, %v1366
      %1861 = vrot.lane.b32.xlu0 %v1853, 112
      %v1862 = vpop.permute.xlu0 %1861
      %1863 = vrot.lane.b32.xlu0 %v1854, 112
      %v1864 = vpop.permute.xlu0 %1863
      %1865 = vrot.lane.b32.xlu0 %v1855, 112
      %v1866 = vpop.permute.xlu0 %1865
      %1867 = vrot.lane.b32.xlu0 %v1856, 112
      %v1868 = vpop.permute.xlu0 %1867
      %vm1869 = vcmask 130048
      %v1871 = vsel %vm1869, %v1862, 0
      %v1874 = vsel %vm1869, %v1864, 0
      %v1877 = vsel %vm1869, %v1866, 0
      %v1880 = vsel %vm1869, %v1868, 0
      %v1883 = vsel %vm1869, %v1853, 0
      %v1886 = vsel %vm1869, %v1854, 0
      %v1889 = vsel %vm1869, %v1855, 0
      %v1892 = vsel %vm1869, %v1856, 0
      %1894 = vmatpush.bf16.xpose.msra.mxu0 0
      %1895 = vmatpush.bf16.xpose.msra.mxu0 0
      %1896 = vmatpush.bf16.xpose.msra.mxu0 0
      %1897 = vmatpush.bf16.xpose.msra.mxu0 0
      %1898 = vmatpush.bf16.xpose.msra.mxu0 %v1892
      %1899 = vmatpush.bf16.xpose.msra.mxu0 %v1889
      %1900 = vmatpush.bf16.xpose.msra.mxu0 %v1886
      %1901 = vmatpush.bf16.xpose.msra.mxu0 %v1883
      %1902 = vmatmul.bf16.gmra.mxu0 %v1871
      %v1903 = vpop.f32.mrf.mxu0
      %v1904 = vadd.f32 0.0, %v1903
      %v1905 = vpop.f32.mrf.mxu0
      %v1906 = vadd.f32 0.0, %v1905
      %1907 = vmatmul.bf16.gmra.mxu0 %v1874
      %v1908 = vpop.f32.mrf.mxu0
      %v1909 = vadd.f32 0.0, %v1908
      %v1910 = vpop.f32.mrf.mxu0
      %v1911 = vadd.f32 0.0, %v1910
      %1912 = vmatmul.bf16.gmra.mxu0 %v1877
      %v1913 = vpop.f32.mrf.mxu0
      %v1914 = vadd.f32 0.0, %v1913
      %v1915 = vpop.f32.mrf.mxu0
      %v1916 = vadd.f32 0.0, %v1915
      %1917 = vmatmul.bf16.gmra.mxu0 %v1880
      %v1918 = vpop.f32.mrf.mxu0
      %v1919 = vadd.f32 0.0, %v1918
      %v1920 = vpop.f32.mrf.mxu0
      %v1921 = vadd.f32 0.0, %v1920
      %1922 = vdwg.mxu0
      %v1923 = vsel %vm1845, %v1904, 0.0
      %v1924 = vsel %vm1846, %v1906, 0.0
      %v1925 = vsel %vm1847, %v1909, 0.0
      %v1926 = vsel %vm1848, %v1911, 0.0
      %v1927 = vsel %vm1849, %v1914, 0.0
      %v1928 = vsel %vm1850, %v1916, 0.0
      %v1929 = vsel %vm1851, %v1919, 0.0
      %v1930 = vsel %vm1852, %v1921, 0.0
      %v1931 = vpack.c.bf16 %v1924, %v1923
      %v1932 = vpack.c.bf16 %v1926, %v1925
      %v1933 = vpack.c.bf16 %v1928, %v1927
      %v1934 = vpack.c.bf16 %v1930, %v1929
      %v1935 = vperm.slane %v1402, 0
      %v1936 = vmul.f32 %v1935, %v1813
      %v1937 = vmul.f32 %v1935, %v1814
      %v1938 = vmul.f32 %v1935, %v1815
      %v1939 = vmul.f32 %v1935, %v1816
      %v1940 = vmul.f32 %v1935, %v1817
      %v1941 = vmul.f32 %v1935, %v1818
      %v1942 = vmul.f32 %v1935, %v1819
      %v1943 = vmul.f32 %v1935, %v1820
      %v1944 = vmul.f32 %v1936, 1.442695
      %v1945 = vpow.pop %v1944
      %v1946 = vmul.f32 %v1937, 1.442695
      %v1947 = vpow.pop %v1946
      %v1948 = vmul.f32 %v1938, 1.442695
      %v1949 = vpow.pop %v1948
      %v1950 = vmul.f32 %v1939, 1.442695
      %v1951 = vpow.pop %v1950
      %v1952 = vmul.f32 %v1940, 1.442695
      %v1953 = vpow.pop %v1952
      %v1954 = vmul.f32 %v1941, 1.442695
      %v1955 = vpow.pop %v1954
      %v1956 = vmul.f32 %v1942, 1.442695
      %v1957 = vpow.pop %v1956
      %v1958 = vmul.f32 %v1943, 1.442695
      %v1959 = vpow.pop %v1958
      %v1960 = vsub.f32 0.0, %v1402
      %v1961 = vperm.slane %v1960, 0
      %v1962 = vmul.f32 %v1961, %v1813
      %v1963 = vmul.f32 %v1961, %v1814
      %v1964 = vmul.f32 %v1961, %v1815
      %v1965 = vmul.f32 %v1961, %v1816
      %v1966 = vmul.f32 %v1961, %v1817
      %v1967 = vmul.f32 %v1961, %v1818
      %v1968 = vmul.f32 %v1961, %v1819
      %v1969 = vmul.f32 %v1961, %v1820
      %v1970 = vmul.f32 %v1962, 1.442695
      %v1971 = vpow.pop %v1970
      %v1972 = vmul.f32 %v1963, 1.442695
      %v1973 = vpow.pop %v1972
      %v1974 = vmul.f32 %v1964, 1.442695
      %v1975 = vpow.pop %v1974
      %v1976 = vmul.f32 %v1965, 1.442695
      %v1977 = vpow.pop %v1976
      %v1978 = vmul.f32 %v1966, 1.442695
      %v1979 = vpow.pop %v1978
      %v1980 = vmul.f32 %v1967, 1.442695
      %v1981 = vpow.pop %v1980
      %v1982 = vmul.f32 %v1968, 1.442695
      %v1983 = vpow.pop %v1982
      %v1984 = vmul.f32 %v1969, 1.442695
      %v1985 = vpow.pop %v1984
      %v1986 = vmul.f32 %v1402, %v1842
      %v1987 = vmul.f32 %v1986, 1.442695
      %v1988 = vpow.pop %v1987
      %v1989 = vmul.f32 %v1971, %v1524
      %v1990 = vmul.f32 %v1973, %v1525
      %v1991 = vmul.f32 %v1975, %v1526
      %v1992 = vmul.f32 %v1977, %v1527
      %v1993 = vmul.f32 %v1979, %v1528
      %v1994 = vmul.f32 %v1981, %v1529
      %v1995 = vmul.f32 %v1983, %v1530
      %v1996 = vmul.f32 %v1985, %v1531
      %1998 = vset.pattern.permute.xlu0 0
      %1999 = vperm.xlu0 %1998, %v1989
      %v2000 = vpop.permute.xlu0 %1999
      %2003 = vset.pattern.permute.xlu0 0
      %2004 = vperm.xlu0 %2003, %v1990
      %v2005 = vpop.permute.xlu0 %2004
      %2008 = vset.pattern.permute.xlu0 0
      %2009 = vperm.xlu0 %2008, %v1991
      %v2010 = vpop.permute.xlu0 %2009
      %2013 = vset.pattern.permute.xlu0 0
      %2014 = vperm.xlu0 %2013, %v1992
      %v2015 = vpop.permute.xlu0 %2014
      %2018 = vset.pattern.permute.xlu0 0
      %2019 = vperm.xlu0 %2018, %v1993
      %v2020 = vpop.permute.xlu0 %2019
      %2023 = vset.pattern.permute.xlu0 0
      %2024 = vperm.xlu0 %2023, %v1994
      %v2025 = vpop.permute.xlu0 %2024
      %2028 = vset.pattern.permute.xlu0 0
      %2029 = vperm.xlu0 %2028, %v1995
      %v2030 = vpop.permute.xlu0 %2029
      %2033 = vset.pattern.permute.xlu0 0
      %2034 = vperm.xlu0 %2033, %v1996
      %v2035 = vpop.permute.xlu0 %2034
      %v2037 = vmul.f32 %v2000, %v1353
      %v2038 = vmul.f32 %v2005, %v1355
      %v2039 = vmul.f32 %v2010, %v1357
      %v2040 = vmul.f32 %v2015, %v1359
      %v2041 = vmul.f32 %v2020, %v1361
      %v2042 = vmul.f32 %v2025, %v1363
      %v2043 = vmul.f32 %v2030, %v1365
      %v2044 = vmul.f32 %v2035, %v1367
      %v2045 = vld [vmem:[#allocation2] sm:$0xff]
      %v2046 = vld [vmem:[#allocation2 + $0x8] sm:$0xff]
      %v2047 = vpack.c.bf16 %v2038, %v2037
      %v2048 = vpack.c.bf16 %v2040, %v2039
      %v2049 = vpack.c.bf16 %v2042, %v2041
      %v2050 = vpack.c.bf16 %v2044, %v2043
      %v2051 = vpack.c.bf16 %v2046, %v2045
      %2052 = vmatpush.bf16.msra.mxu0 0
      %2053 = vmatpush.bf16.msra.mxu0 0
      %2054 = vmatpush.bf16.msra.mxu0 0
      %2055 = vmatpush.bf16.msra.mxu0 0
      %2056 = vmatpush.bf16.msra.mxu0 0
      %2057 = vmatpush.bf16.msra.mxu0 0
      %2058 = vmatpush.bf16.msra.mxu0 0
      %2059 = vmatpush.bf16.msra.mxu0 %v2051
      %2060 = vmatmul.bf16.gmra.mxu0 %v1871
      %v2061 = vpop.f32.mrf.mxu0
      %v2062 = vadd.f32 0.0, %v2061
      %v2063 = vpop.f32.mrf.mxu0
      %v2064 = vadd.f32 0.0, %v2063
      %2065 = vmatmul.bf16.gmra.mxu0 %v1874
      %v2066 = vpop.f32.mrf.mxu0
      %v2067 = vadd.f32 0.0, %v2066
      %v2068 = vpop.f32.mrf.mxu0
      %v2069 = vadd.f32 0.0, %v2068
      %2070 = vmatmul.bf16.gmra.mxu0 %v1877
      %v2071 = vpop.f32.mrf.mxu0
      %v2072 = vadd.f32 0.0, %v2071
      %v2073 = vpop.f32.mrf.mxu0
      %v2074 = vadd.f32 0.0, %v2073
      %2075 = vmatmul.bf16.gmra.mxu0 %v1880
      %v2076 = vpop.f32.mrf.mxu0
      %v2077 = vadd.f32 0.0, %v2076
      %v2078 = vpop.f32.mrf.mxu0
      %v2079 = vadd.f32 0.0, %v2078
      %2080 = vdwg.mxu0
      %v2082 = vsel %vm516, %v1931, 0
      %v2085 = vsel %vm516, %v1932, 0
      %v2088 = vsel %vm516, %v1933, 0
      %v2091 = vsel %vm516, %v1934, 0
      %2093 = vmatpush.bf16.msra.mxu0 0
      %2094 = vmatpush.bf16.msra.mxu0 0
      %2095 = vmatpush.bf16.msra.mxu0 0
      %2096 = vmatpush.bf16.msra.mxu0 0
      %2097 = vmatpush.bf16.msra.mxu0 %v2050
      %2098 = vmatpush.bf16.msra.mxu0 %v2049
      %2099 = vmatpush.bf16.msra.mxu0 %v2048
      %2100 = vmatpush.bf16.msra.mxu0 %v2047
      %2101 = vmatmul.bf16.gmra.mxu0 %v2082
      %v2102 = vpop.f32.mrf.mxu0
      %v2103 = vadd.f32 %v2062, %v2102
      %v2104 = vpop.f32.mrf.mxu0
      %v2105 = vadd.f32 %v2064, %v2104
      %2106 = vmatmul.bf16.gmra.mxu0 %v2085
      %v2107 = vpop.f32.mrf.mxu0
      %v2108 = vadd.f32 %v2067, %v2107
      %v2109 = vpop.f32.mrf.mxu0
      %v2110 = vadd.f32 %v2069, %v2109
      %2111 = vmatmul.bf16.gmra.mxu0 %v2088
      %v2112 = vpop.f32.mrf.mxu0
      %v2113 = vadd.f32 %v2072, %v2112
      %v2114 = vpop.f32.mrf.mxu0
      %v2115 = vadd.f32 %v2074, %v2114
      %2116 = vmatmul.bf16.gmra.mxu0 %v2091
      %v2117 = vpop.f32.mrf.mxu0
      %v2118 = vadd.f32 %v2077, %v2117
      %v2119 = vpop.f32.mrf.mxu0
      %v2120 = vadd.f32 %v2079, %v2119
      %2121 = vdwg.mxu0
      %2123 = vset.pattern.permute.xlu0 0
      %2124 = vperm.xlu0 %2123, %v1945
      %v2125 = vpop.permute.xlu0 %2124
      %2128 = vset.pattern.permute.xlu0 0
      %2129 = vperm.xlu0 %2128, %v1947
      %v2130 = vpop.permute.xlu0 %2129
      %2133 = vset.pattern.permute.xlu0 0
      %2134 = vperm.xlu0 %2133, %v1949
      %v2135 = vpop.permute.xlu0 %2134
      %2138 = vset.pattern.permute.xlu0 0
      %2139 = vperm.xlu0 %2138, %v1951
      %v2140 = vpop.permute.xlu0 %2139
      %2143 = vset.pattern.permute.xlu0 0
      %2144 = vperm.xlu0 %2143, %v1953
      %v2145 = vpop.permute.xlu0 %2144
      %2148 = vset.pattern.permute.xlu0 0
      %2149 = vperm.xlu0 %2148, %v1955
      %v2150 = vpop.permute.xlu0 %2149
      %2153 = vset.pattern.permute.xlu0 0
      %2154 = vperm.xlu0 %2153, %v1957
      %v2155 = vpop.permute.xlu0 %2154
      %2158 = vset.pattern.permute.xlu0 0
      %2159 = vperm.xlu0 %2158, %v1959
      %v2160 = vpop.permute.xlu0 %2159
      %v2162 = vmul.f32 %v2125, %v2103
      %v2163 = vmul.f32 %v2130, %v2105
      %v2164 = vmul.f32 %v2135, %v2108
      %v2165 = vmul.f32 %v2140, %v2110
      %v2166 = vmul.f32 %v2145, %v2113
      %v2167 = vmul.f32 %v2150, %v2115
      %v2168 = vmul.f32 %v2155, %v2118
      %v2169 = vmul.f32 %v2160, %v2120
      %v2171 = vrot.slane %v1402, 1
      %s2172 = vtos %v2171
      %v2173 = vstv %s2172
      %v2175 = vmul.f32 %v2173, %v1353
      %v2176 = vmul.f32 %v2173, %v1355
      %v2177 = vmul.f32 %v2173, %v1357
      %v2178 = vmul.f32 %v2173, %v1359
      %v2179 = vmul.f32 %v2173, %v1361
      %v2180 = vmul.f32 %v2173, %v1363
      %v2181 = vmul.f32 %v2173, %v1365
      %v2182 = vmul.f32 %v2173, %v1367
      %v2183 = vadd.f32 %v2162, %v2175
      %v2184 = vadd.f32 %v2163, %v2176
      %v2185 = vadd.f32 %v2164, %v2177
      %v2186 = vadd.f32 %v2165, %v2178
      %v2187 = vadd.f32 %v2166, %v2179
      %v2188 = vadd.f32 %v2167, %v2180
      %v2189 = vadd.f32 %v2168, %v2181
      %v2190 = vadd.f32 %v2169, %v2182
      %2191 = vxpose.xlu0.c.b16.start [1/8] %v1853, 128
      %2192 = vxpose.xlu0.c.b16.cont [2/8] %v1854, 128
      %2193 = vxpose.xlu0.c.b16.cont [3/8] %v1855, 128
      %2194 = vxpose.xlu0.c.b16.cont [4/8] %v1856, 128
      %2195 = vxpose.xlu0.c.b16.cont [5/8] 0, 128
      %2196 = vxpose.xlu0.c.b16.cont [6/8] 0, 128
      %2197 = vxpose.xlu0.c.b16.cont [7/8] 0, 128
      %2198 = vxpose.xlu0.c.b16.end [8/8] 0, 128
      %v2199 = vpop.trf.xlu0
      %v2200 = vpop.trf.xlu0
      %v2201 = vpop.trf.xlu0
      %v2202 = vpop.trf.xlu0
      %v2203 = vpop.trf.xlu0
      %v2204 = vpop.trf.xlu0
      %v2205 = vpop.trf.xlu0
      %v2206 = vpop.trf.xlu0
      %v2208 = vsel %vm516, %v2199, 0
      %2210 = vmatpush.bf16.msra.mxu0 0
      %2211 = vmatpush.bf16.msra.mxu0 0
      %2212 = vmatpush.bf16.msra.mxu0 0
      %2213 = vmatpush.bf16.msra.mxu0 0
      %2214 = vmatpush.bf16.msra.mxu0 %v2050
      %2215 = vmatpush.bf16.msra.mxu0 %v2049
      %2216 = vmatpush.bf16.msra.mxu0 %v2048
      %2217 = vmatpush.bf16.msra.mxu0 %v2047
      %2218 = vmatmul.bf16.gmra.mxu0 %v2208
      %v2219 = vpop.f32.mrf.mxu0
      %v2220 = vadd.f32 0.0, %v2219
      %v2221 = vpop.f32.mrf.mxu0
      %v2222 = vadd.f32 0.0, %v2221
      %2223 = vdwg.mxu0
      %v2224 = vadd.f32 %v2045, %v2220
      %v2225 = vadd.f32 %v2046, %v2222
      %s2227 = vtos %v1988
      %v2228 = vstv %s2227
      %v2230 = vmul.f32 %v2228, %v2224
      %v2231 = vmul.f32 %v2228, %v2225
      %2232 = vst.msk [vmem:[#allocation2] sm:$0xff] %vm516, %v2230
      %2233 = vst.msk [vmem:[#allocation2 + $0x8] sm:$0xff] %vm516, %v2231
      %v2234 = vxor.u32 %v539, 2147483648
      %v2235 = vxor.u32 %v541, 2147483648
      %v2236 = vxor.u32 %v544, 2147483648
      %v2237 = vxor.u32 %v546, 2147483648
      %v2238 = vxor.u32 %v549, 2147483648
      %v2239 = vxor.u32 %v551, 2147483648
      %v2240 = vxor.u32 %v554, 2147483648
      %v2241 = vxor.u32 %v556, 2147483648
      %v2242 = vmul.f32 %v2234, 1.442695
      %v2243 = vpow.pop %v2242
      %v2244 = vmul.f32 %v2235, 1.442695
      %v2245 = vpow.pop %v2244
      %v2246 = vmul.f32 %v2236, 1.442695
      %v2247 = vpow.pop %v2246
      %v2248 = vmul.f32 %v2237, 1.442695
      %v2249 = vpow.pop %v2248
      %v2250 = vmul.f32 %v2238, 1.442695
      %v2251 = vpow.pop %v2250
      %v2252 = vmul.f32 %v2239, 1.442695
      %v2253 = vpow.pop %v2252
      %v2254 = vmul.f32 %v2240, 1.442695
      %v2255 = vpow.pop %v2254
      %v2256 = vmul.f32 %v2241, 1.442695
      %v2257 = vpow.pop %v2256
      %v2258 = vadd.f32 %v2243, 1.0
      %v2259 = vadd.f32 %v2245, 1.0
      %v2260 = vadd.f32 %v2247, 1.0
      %v2261 = vadd.f32 %v2249, 1.0
      %v2262 = vadd.f32 %v2251, 1.0
      %v2263 = vadd.f32 %v2253, 1.0
      %v2264 = vadd.f32 %v2255, 1.0
      %v2265 = vadd.f32 %v2257, 1.0
      %v2266 = vrcp.pop %v2258
      %v2267 = vmul.f32 %v2258, %v2266
      %v2268 = vsub.f32 1.0, %v2267
      %v2269 = vmul.f32 %v2266, %v2268
      %v2270 = vadd.f32 %v2266, %v2269
      %vm2271 = vweird.f32 %v2258
      %vm2272 = vweird.f32 %v2266
      %vm2273 = vmor %vm2271, %vm2272
      %v2274 = vsel %vm2273, %v2266, %v2270
      %v2275 = vand.u32 2147483647, %v2258
      %vm2276 = vcmp.eq.f32.partialorder %v2275, 8.507059e+37
      %v2277 = vand.u32 %v2258, 2147483648
      %v2278 = vor.u32 1.1754944e-38, %v2277
      %v2279 = vsel %vm2276, %v2278, %v2274
      %v2280 = vmul.f32 1.0, %v2279
      %v2281 = vrcp.pop %v2259
      %v2282 = vmul.f32 %v2259, %v2281
      %v2283 = vsub.f32 1.0, %v2282
      %v2284 = vmul.f32 %v2281, %v2283
      %v2285 = vadd.f32 %v2281, %v2284
      %vm2286 = vweird.f32 %v2259
      %vm2287 = vweird.f32 %v2281
      %vm2288 = vmor %vm2286, %vm2287
      %v2289 = vsel %vm2288, %v2281, %v2285
      %v2290 = vand.u32 2147483647, %v2259
      %vm2291 = vcmp.eq.f32.partialorder %v2290, 8.507059e+37
      %v2292 = vand.u32 %v2259, 2147483648
      %v2293 = vor.u32 1.1754944e-38, %v2292
      %v2294 = vsel %vm2291, %v2293, %v2289
      %v2295 = vmul.f32 1.0, %v2294
      %v2296 = vrcp.pop %v2260
      %v2297 = vmul.f32 %v2260, %v2296
      %v2298 = vsub.f32 1.0, %v2297
      %v2299 = vmul.f32 %v2296, %v2298
      %v2300 = vadd.f32 %v2296, %v2299
      %vm2301 = vweird.f32 %v2260
      %vm2302 = vweird.f32 %v2296
      %vm2303 = vmor %vm2301, %vm2302
      %v2304 = vsel %vm2303, %v2296, %v2300
      %v2305 = vand.u32 2147483647, %v2260
      %vm2306 = vcmp.eq.f32.partialorder %v2305, 8.507059e+37
      %v2307 = vand.u32 %v2260, 2147483648
      %v2308 = vor.u32 1.1754944e-38, %v2307
      %v2309 = vsel %vm2306, %v2308, %v2304
      %v2310 = vmul.f32 1.0, %v2309
      %v2311 = vrcp.pop %v2261
      %v2312 = vmul.f32 %v2261, %v2311
      %v2313 = vsub.f32 1.0, %v2312
      %v2314 = vmul.f32 %v2311, %v2313
      %v2315 = vadd.f32 %v2311, %v2314
      %vm2316 = vweird.f32 %v2261
      %vm2317 = vweird.f32 %v2311
      %vm2318 = vmor %vm2316, %vm2317
      %v2319 = vsel %vm2318, %v2311, %v2315
      %v2320 = vand.u32 2147483647, %v2261
      %vm2321 = vcmp.eq.f32.partialorder %v2320, 8.507059e+37
      %v2322 = vand.u32 %v2261, 2147483648
      %v2323 = vor.u32 1.1754944e-38, %v2322
      %v2324 = vsel %vm2321, %v2323, %v2319
      %v2325 = vmul.f32 1.0, %v2324
      %v2326 = vrcp.pop %v2262
      %v2327 = vmul.f32 %v2262, %v2326
      %v2328 = vsub.f32 1.0, %v2327
      %v2329 = vmul.f32 %v2326, %v2328
      %v2330 = vadd.f32 %v2326, %v2329
      %vm2331 = vweird.f32 %v2262
      %vm2332 = vweird.f32 %v2326
      %vm2333 = vmor %vm2331, %vm2332
      %v2334 = vsel %vm2333, %v2326, %v2330
      %v2335 = vand.u32 2147483647, %v2262
      %vm2336 = vcmp.eq.f32.partialorder %v2335, 8.507059e+37
      %v2337 = vand.u32 %v2262, 2147483648
      %v2338 = vor.u32 1.1754944e-38, %v2337
      %v2339 = vsel %vm2336, %v2338, %v2334
      %v2340 = vmul.f32 1.0, %v2339
      %v2341 = vrcp.pop %v2263
      %v2342 = vmul.f32 %v2263, %v2341
      %v2343 = vsub.f32 1.0, %v2342
      %v2344 = vmul.f32 %v2341, %v2343
      %v2345 = vadd.f32 %v2341, %v2344
      %vm2346 = vweird.f32 %v2263
      %vm2347 = vweird.f32 %v2341
      %vm2348 = vmor %vm2346, %vm2347
      %v2349 = vsel %vm2348, %v2341, %v2345
      %v2350 = vand.u32 2147483647, %v2263
      %vm2351 = vcmp.eq.f32.partialorder %v2350, 8.507059e+37
      %v2352 = vand.u32 %v2263, 2147483648
      %v2353 = vor.u32 1.1754944e-38, %v2352
      %v2354 = vsel %vm2351, %v2353, %v2349
      %v2355 = vmul.f32 1.0, %v2354
      %v2356 = vrcp.pop %v2264
      %v2357 = vmul.f32 %v2264, %v2356
      %v2358 = vsub.f32 1.0, %v2357
      %v2359 = vmul.f32 %v2356, %v2358
      %v2360 = vadd.f32 %v2356, %v2359
      %vm2361 = vweird.f32 %v2264
      %vm2362 = vweird.f32 %v2356
      %vm2363 = vmor %vm2361, %vm2362
      %v2364 = vsel %vm2363, %v2356, %v2360
      %v2365 = vand.u32 2147483647, %v2264
      %vm2366 = vcmp.eq.f32.partialorder %v2365, 8.507059e+37
      %v2367 = vand.u32 %v2264, 2147483648
      %v2368 = vor.u32 1.1754944e-38, %v2367
      %v2369 = vsel %vm2366, %v2368, %v2364
      %v2370 = vmul.f32 1.0, %v2369
      %v2371 = vrcp.pop %v2265
      %v2372 = vmul.f32 %v2265, %v2371
      %v2373 = vsub.f32 1.0, %v2372
      %v2374 = vmul.f32 %v2371, %v2373
      %v2375 = vadd.f32 %v2371, %v2374
      %vm2376 = vweird.f32 %v2265
      %vm2377 = vweird.f32 %v2371
      %vm2378 = vmor %vm2376, %vm2377
      %v2379 = vsel %vm2378, %v2371, %v2375
      %v2380 = vand.u32 2147483647, %v2265
      %vm2381 = vcmp.eq.f32.partialorder %v2380, 8.507059e+37
      %v2382 = vand.u32 %v2265, 2147483648
      %v2383 = vor.u32 1.1754944e-38, %v2382
      %v2384 = vsel %vm2381, %v2383, %v2379
      %v2385 = vmul.f32 1.0, %v2384
      %v2386 = vmul.f32 %v539, %v2280
      %v2387 = vmul.f32 %v541, %v2295
      %v2388 = vmul.f32 %v544, %v2310
      %v2389 = vmul.f32 %v546, %v2325
      %v2390 = vmul.f32 %v549, %v2340
      %v2391 = vmul.f32 %v551, %v2355
      %v2392 = vmul.f32 %v554, %v2370
      %v2393 = vmul.f32 %v556, %v2385
      %v2394 = vmul.f32 %v2183, %v2386
      %v2395 = vmul.f32 %v2184, %v2387
      %v2396 = vmul.f32 %v2185, %v2388
      %v2397 = vmul.f32 %v2186, %v2389
      %v2398 = vmul.f32 %v2187, %v2390
      %v2399 = vmul.f32 %v2188, %v2391
      %v2400 = vmul.f32 %v2189, %v2392
      %v2401 = vmul.f32 %v2190, %v2393
      %2402 = vset.pattern.permute.xlu0 1
      %2403 = vperm.xlu0 %2402, %v1989
      %v2404 = vpop.permute.xlu0 %2403
      %2406 = vset.pattern.permute.xlu0 1
      %2407 = vperm.xlu0 %2406, %v1990
      %v2408 = vpop.permute.xlu0 %2407
      %2410 = vset.pattern.permute.xlu0 1
      %2411 = vperm.xlu0 %2410, %v1991
      %v2412 = vpop.permute.xlu0 %2411
      %2414 = vset.pattern.permute.xlu0 1
      %2415 = vperm.xlu0 %2414, %v1992
      %v2416 = vpop.permute.xlu0 %2415
      %2418 = vset.pattern.permute.xlu0 1
      %2419 = vperm.xlu0 %2418, %v1993
      %v2420 = vpop.permute.xlu0 %2419
      %2422 = vset.pattern.permute.xlu0 1
      %2423 = vperm.xlu0 %2422, %v1994
      %v2424 = vpop.permute.xlu0 %2423
      %2426 = vset.pattern.permute.xlu0 1
      %2427 = vperm.xlu0 %2426, %v1995
      %v2428 = vpop.permute.xlu0 %2427
      %2430 = vset.pattern.permute.xlu0 1
      %2431 = vperm.xlu0 %2430, %v1996
      %v2432 = vpop.permute.xlu0 %2431
      %v2434 = vmul.f32 %v2404, %v1353
      %v2435 = vmul.f32 %v2408, %v1355
      %v2436 = vmul.f32 %v2412, %v1357
      %v2437 = vmul.f32 %v2416, %v1359
      %v2438 = vmul.f32 %v2420, %v1361
      %v2439 = vmul.f32 %v2424, %v1363
      %v2440 = vmul.f32 %v2428, %v1365
      %v2441 = vmul.f32 %v2432, %v1367
      %v2442 = vld [vmem:[#allocation2 + $0x10] sm:$0xff]
      %v2443 = vld [vmem:[#allocation2 + $0x18] sm:$0xff]
      %v2444 = vpack.c.bf16 %v2435, %v2434
      %v2445 = vpack.c.bf16 %v2437, %v2436
      %v2446 = vpack.c.bf16 %v2439, %v2438
      %v2447 = vpack.c.bf16 %v2441, %v2440
      %v2448 = vpack.c.bf16 %v2443, %v2442
      %2449 = vmatpush.bf16.msra.mxu0 0
      %2450 = vmatpush.bf16.msra.mxu0 0
      %2451 = vmatpush.bf16.msra.mxu0 0
      %2452 = vmatpush.bf16.msra.mxu0 0
      %2453 = vmatpush.bf16.msra.mxu0 0
      %2454 = vmatpush.bf16.msra.mxu0 0
      %2455 = vmatpush.bf16.msra.mxu0 0
      %2456 = vmatpush.bf16.msra.mxu0 %v2448
      %2457 = vmatmul.bf16.gmra.mxu0 %v1871
      %v2458 = vpop.f32.mrf.mxu0
      %v2459 = vadd.f32 0.0, %v2458
      %v2460 = vpop.f32.mrf.mxu0
      %v2461 = vadd.f32 0.0, %v2460
      %2462 = vmatmul.bf16.gmra.mxu0 %v1874
      %v2463 = vpop.f32.mrf.mxu0
      %v2464 = vadd.f32 0.0, %v2463
      %v2465 = vpop.f32.mrf.mxu0
      %v2466 = vadd.f32 0.0, %v2465
      %2467 = vmatmul.bf16.gmra.mxu0 %v1877
      %v2468 = vpop.f32.mrf.mxu0
      %v2469 = vadd.f32 0.0, %v2468
      %v2470 = vpop.f32.mrf.mxu0
      %v2471 = vadd.f32 0.0, %v2470
      %2472 = vmatmul.bf16.gmra.mxu0 %v1880
      %v2473 = vpop.f32.mrf.mxu0
      %v2474 = vadd.f32 0.0, %v2473
      %v2475 = vpop.f32.mrf.mxu0
      %v2476 = vadd.f32 0.0, %v2475
      %2477 = vdwg.mxu0
      %2482 = vrot.lane.b32.xlu0 %v2444, 64
      %v2483 = vpop.permute.xlu0 %2482
      %2484 = vrot.lane.b32.xlu0 %v2445, 64
      %v2485 = vpop.permute.xlu0 %2484
      %2486 = vrot.lane.b32.xlu0 %v2446, 64
      %v2487 = vpop.permute.xlu0 %2486
      %2488 = vrot.lane.b32.xlu0 %v2447, 64
      %v2489 = vpop.permute.xlu0 %2488
      %2494 = vmatpush.bf16.msra.mxu0 0
      %2495 = vmatpush.bf16.msra.mxu0 0
      %2496 = vmatpush.bf16.msra.mxu0 0
      %2497 = vmatpush.bf16.msra.mxu0 0
      %2498 = vmatpush.bf16.msra.mxu0 %v2489
      %2499 = vmatpush.bf16.msra.mxu0 %v2487
      %2500 = vmatpush.bf16.msra.mxu0 %v2485
      %2501 = vmatpush.bf16.msra.mxu0 %v2483
      %2502 = vmatmul.bf16.gmra.mxu0 %v2082
      %v2503 = vpop.f32.mrf.mxu0
      %v2504 = vadd.f32 %v2459, %v2503
      %v2505 = vpop.f32.mrf.mxu0
      %v2506 = vadd.f32 %v2461, %v2505
      %2507 = vmatmul.bf16.gmra.mxu0 %v2085
      %v2508 = vpop.f32.mrf.mxu0
      %v2509 = vadd.f32 %v2464, %v2508
      %v2510 = vpop.f32.mrf.mxu0
      %v2511 = vadd.f32 %v2466, %v2510
      %2512 = vmatmul.bf16.gmra.mxu0 %v2088
      %v2513 = vpop.f32.mrf.mxu0
      %v2514 = vadd.f32 %v2469, %v2513
      %v2515 = vpop.f32.mrf.mxu0
      %v2516 = vadd.f32 %v2471, %v2515
      %2517 = vmatmul.bf16.gmra.mxu0 %v2091
      %v2518 = vpop.f32.mrf.mxu0
      %v2519 = vadd.f32 %v2474, %v2518
      %v2520 = vpop.f32.mrf.mxu0
      %v2521 = vadd.f32 %v2476, %v2520
      %2522 = vdwg.mxu0
      %2523 = vset.pattern.permute.xlu0 1
      %2524 = vperm.xlu0 %2523, %v1945
      %v2525 = vpop.permute.xlu0 %2524
      %2527 = vset.pattern.permute.xlu0 1
      %2528 = vperm.xlu0 %2527, %v1947
      %v2529 = vpop.permute.xlu0 %2528
      %2531 = vset.pattern.permute.xlu0 1
      %2532 = vperm.xlu0 %2531, %v1949
      %v2533 = vpop.permute.xlu0 %2532
      %2535 = vset.pattern.permute.xlu0 1
      %2536 = vperm.xlu0 %2535, %v1951
      %v2537 = vpop.permute.xlu0 %2536
      %2539 = vset.pattern.permute.xlu0 1
      %2540 = vperm.xlu0 %2539, %v1953
      %v2541 = vpop.permute.xlu0 %2540
      %2543 = vset.pattern.permute.xlu0 1
      %2544 = vperm.xlu0 %2543, %v1955
      %v2545 = vpop.permute.xlu0 %2544
      %2547 = vset.pattern.permute.xlu0 1
      %2548 = vperm.xlu0 %2547, %v1957
      %v2549 = vpop.permute.xlu0 %2548
      %2551 = vset.pattern.permute.xlu0 1
      %2552 = vperm.xlu0 %2551, %v1959
      %v2553 = vpop.permute.xlu0 %2552
      %v2555 = vmul.f32 %v2525, %v2504
      %v2556 = vmul.f32 %v2529, %v2506
      %v2557 = vmul.f32 %v2533, %v2509
      %v2558 = vmul.f32 %v2537, %v2511
      %v2559 = vmul.f32 %v2541, %v2514
      %v2560 = vmul.f32 %v2545, %v2516
      %v2561 = vmul.f32 %v2549, %v2519
      %v2562 = vmul.f32 %v2553, %v2521
      %2563 = vrot.lane.b32.xlu0 %v2171, 127
      %v2564 = vpop.permute.xlu0 %2563
      %s2565 = vtos %v2564
      %v2566 = vstv %s2565
      %v2568 = vmul.f32 %v2566, %v1353
      %v2569 = vmul.f32 %v2566, %v1355
      %v2570 = vmul.f32 %v2566, %v1357
      %v2571 = vmul.f32 %v2566, %v1359
      %v2572 = vmul.f32 %v2566, %v1361
      %v2573 = vmul.f32 %v2566, %v1363
      %v2574 = vmul.f32 %v2566, %v1365
      %v2575 = vmul.f32 %v2566, %v1367
      %2584 = vrot.lane.b32.xlu0 %v2568, 64
      %v2585 = vpop.permute.xlu0 %2584
      %2586 = vrot.lane.b32.xlu0 %v2569, 64
      %v2587 = vpop.permute.xlu0 %2586
      %2588 = vrot.lane.b32.xlu0 %v2570, 64
      %v2589 = vpop.permute.xlu0 %2588
      %2590 = vrot.lane.b32.xlu0 %v2571, 64
      %v2591 = vpop.permute.xlu0 %2590
      %2592 = vrot.lane.b32.xlu0 %v2572, 64
      %v2593 = vpop.permute.xlu0 %2592
      %2594 = vrot.lane.b32.xlu0 %v2573, 64
      %v2595 = vpop.permute.xlu0 %2594
      %2596 = vrot.lane.b32.xlu0 %v2574, 64
      %v2597 = vpop.permute.xlu0 %2596
      %2598 = vrot.lane.b32.xlu0 %v2575, 64
      %v2599 = vpop.permute.xlu0 %2598
      %v2608 = vadd.f32 %v2555, %v2585
      %v2609 = vadd.f32 %v2556, %v2587
      %v2610 = vadd.f32 %v2557, %v2589
      %v2611 = vadd.f32 %v2558, %v2591
      %v2612 = vadd.f32 %v2559, %v2593
      %v2613 = vadd.f32 %v2560, %v2595
      %v2614 = vadd.f32 %v2561, %v2597
      %v2615 = vadd.f32 %v2562, %v2599
      %2616 = vmatpush.bf16.msra.mxu0 0
      %2617 = vmatpush.bf16.msra.mxu0 0
      %2618 = vmatpush.bf16.msra.mxu0 0
      %2619 = vmatpush.bf16.msra.mxu0 0
      %2620 = vmatpush.bf16.msra.mxu0 %v2489
      %2621 = vmatpush.bf16.msra.mxu0 %v2487
      %2622 = vmatpush.bf16.msra.mxu0 %v2485
      %2623 = vmatpush.bf16.msra.mxu0 %v2483
      %2624 = vmatmul.bf16.gmra.mxu0 %v2208
      %v2625 = vpop.f32.mrf.mxu0
      %v2626 = vadd.f32 0.0, %v2625
      %v2627 = vpop.f32.mrf.mxu0
      %v2628 = vadd.f32 0.0, %v2627
      %2629 = vdwg.mxu0
      %v2630 = vadd.f32 %v2442, %v2626
      %v2631 = vadd.f32 %v2443, %v2628
      %2632 = vrot.lane.b32.xlu0 %v1988, 127
      %v2633 = vpop.permute.xlu0 %2632
      %s2634 = vtos %v2633
      %v2635 = vstv %s2634
      %v2637 = vmul.f32 %v2635, %v2630
      %v2638 = vmul.f32 %v2635, %v2631
      %2639 = vst.msk [vmem:[#allocation2 + $0x10] sm:$0xff] %vm516, %v2637
      %2640 = vst.msk [vmem:[#allocation2 + $0x18] sm:$0xff] %vm516, %v2638
      %2649 = vrot.lane.b32.xlu0 %v2386, 64
      %v2650 = vpop.permute.xlu0 %2649
      %2651 = vrot.lane.b32.xlu0 %v2387, 64
      %v2652 = vpop.permute.xlu0 %2651
      %2653 = vrot.lane.b32.xlu0 %v2388, 64
      %v2654 = vpop.permute.xlu0 %2653
      %2655 = vrot.lane.b32.xlu0 %v2389, 64
      %v2656 = vpop.permute.xlu0 %2655
      %2657 = vrot.lane.b32.xlu0 %v2390, 64
      %v2658 = vpop.permute.xlu0 %2657
      %2659 = vrot.lane.b32.xlu0 %v2391, 64
      %v2660 = vpop.permute.xlu0 %2659
      %2661 = vrot.lane.b32.xlu0 %v2392, 64
      %v2662 = vpop.permute.xlu0 %2661
      %2663 = vrot.lane.b32.xlu0 %v2393, 64
      %v2664 = vpop.permute.xlu0 %2663
      %v2673 = vmul.f32 %v2608, %v2650
      %v2674 = vmul.f32 %v2609, %v2652
      %v2675 = vmul.f32 %v2610, %v2654
      %v2676 = vmul.f32 %v2611, %v2656
      %v2677 = vmul.f32 %v2612, %v2658
      %v2678 = vmul.f32 %v2613, %v2660
      %v2679 = vmul.f32 %v2614, %v2662
      %v2680 = vmul.f32 %v2615, %v2664
      %2689 = vrot.lane.b32.xlu0 %v2673, 64
      %v2690 = vpop.permute.xlu0 %2689
      %2691 = vrot.lane.b32.xlu0 %v2674, 64
      %v2692 = vpop.permute.xlu0 %2691
      %2693 = vrot.lane.b32.xlu0 %v2675, 64
      %v2694 = vpop.permute.xlu0 %2693
      %2695 = vrot.lane.b32.xlu0 %v2676, 64
      %v2696 = vpop.permute.xlu0 %2695
      %2697 = vrot.lane.b32.xlu0 %v2677, 64
      %v2698 = vpop.permute.xlu0 %2697
      %2699 = vrot.lane.b32.xlu0 %v2678, 64
      %v2700 = vpop.permute.xlu0 %2699
      %2701 = vrot.lane.b32.xlu0 %v2679, 64
      %v2702 = vpop.permute.xlu0 %2701
      %2703 = vrot.lane.b32.xlu0 %v2680, 64
      %v2704 = vpop.permute.xlu0 %2703
      %v2713 = vsel %vm516, %v2394, %v2690
      %v2714 = vsel %vm516, %v2395, %v2692
      %v2715 = vsel %vm516, %v2396, %v2694
      %v2716 = vsel %vm516, %v2397, %v2696
      %v2717 = vsel %vm516, %v2398, %v2698
      %v2718 = vsel %vm516, %v2399, %v2700
      %v2719 = vsel %vm516, %v2400, %v2702
      %v2720 = vsel %vm516, %v2401, %v2704
      %v2721 = vmul.f32 %v2713, %v2713
      %v2722 = vmul.f32 %v2714, %v2714
      %v2723 = vmul.f32 %v2715, %v2715
      %v2724 = vmul.f32 %v2716, %v2716
      %v2725 = vmul.f32 %v2717, %v2717
      %v2726 = vmul.f32 %v2718, %v2718
      %v2727 = vmul.f32 %v2719, %v2719
      %v2728 = vmul.f32 %v2720, %v2720
      %2729 = vadd.xlane.f32.xlu0 %v2721
      %v2730 = vpop.xlane.xlu0 %2729
      %2731 = vadd.xlane.f32.xlu0 %v2722
      %v2732 = vpop.xlane.xlu0 %2731
      %2733 = vadd.xlane.f32.xlu0 %v2723
      %v2734 = vpop.xlane.xlu0 %2733
      %2735 = vadd.xlane.f32.xlu0 %v2724
      %v2736 = vpop.xlane.xlu0 %2735
      %2737 = vadd.xlane.f32.xlu0 %v2725
      %v2738 = vpop.xlane.xlu0 %2737
      %2739 = vadd.xlane.f32.xlu0 %v2726
      %v2740 = vpop.xlane.xlu0 %2739
      %2741 = vadd.xlane.f32.xlu0 %v2727
      %v2742 = vpop.xlane.xlu0 %2741
      %2743 = vadd.xlane.f32.xlu0 %v2728
      %v2744 = vpop.xlane.xlu0 %2743
      %v2745 = vmul.f32 %v2730, 0.0078125
      %v2746 = vmul.f32 %v2732, 0.0078125
      %v2747 = vmul.f32 %v2734, 0.0078125
      %v2748 = vmul.f32 %v2736, 0.0078125
      %v2749 = vmul.f32 %v2738, 0.0078125
      %v2750 = vmul.f32 %v2740, 0.0078125
      %v2751 = vmul.f32 %v2742, 0.0078125
      %v2752 = vmul.f32 %v2744, 0.0078125
      %v2753 = vadd.f32 %v2745, 1e-05
      %v2754 = vadd.f32 %v2746, 1e-05
      %v2755 = vadd.f32 %v2747, 1e-05
      %v2756 = vadd.f32 %v2748, 1e-05
      %v2757 = vadd.f32 %v2749, 1e-05
      %v2758 = vadd.f32 %v2750, 1e-05
      %v2759 = vadd.f32 %v2751, 1e-05
      %v2760 = vadd.f32 %v2752, 1e-05
      %v2761 = vrsqrt.pop %v2753
      %v2762 = vmul.f32 %v2761, %v2753
      %v2763 = vmul.f32 %v2762, %v2761
      %v2764 = vmul.f32 0.5, %v2763
      %v2765 = vsub.f32 1.5, %v2764
      %v2766 = vmul.f32 %v2761, %v2765
      %vm2767 = vweird.f32 %v2753
      %vm2768 = vweird.f32 %v2761
      %vm2769 = vmor %vm2767, %vm2768
      %v2770 = vsel %vm2769, %v2761, %v2766
      %v2771 = vrsqrt.pop %v2754
      %v2772 = vmul.f32 %v2771, %v2754
      %v2773 = vmul.f32 %v2772, %v2771
      %v2774 = vmul.f32 0.5, %v2773
      %v2775 = vsub.f32 1.5, %v2774
      %v2776 = vmul.f32 %v2771, %v2775
      %vm2777 = vweird.f32 %v2754
      %vm2778 = vweird.f32 %v2771
      %vm2779 = vmor %vm2777, %vm2778
      %v2780 = vsel %vm2779, %v2771, %v2776
      %v2781 = vrsqrt.pop %v2755
      %v2782 = vmul.f32 %v2781, %v2755
      %v2783 = vmul.f32 %v2782, %v2781
      %v2784 = vmul.f32 0.5, %v2783
      %v2785 = vsub.f32 1.5, %v2784
      %v2786 = vmul.f32 %v2781, %v2785
      %vm2787 = vweird.f32 %v2755
      %vm2788 = vweird.f32 %v2781
      %vm2789 = vmor %vm2787, %vm2788
      %v2790 = vsel %vm2789, %v2781, %v2786
      %v2791 = vrsqrt.pop %v2756
      %v2792 = vmul.f32 %v2791, %v2756
      %v2793 = vmul.f32 %v2792, %v2791
      %v2794 = vmul.f32 0.5, %v2793
      %v2795 = vsub.f32 1.5, %v2794
      %v2796 = vmul.f32 %v2791, %v2795
      %vm2797 = vweird.f32 %v2756
      %vm2798 = vweird.f32 %v2791
      %vm2799 = vmor %vm2797, %vm2798
      %v2800 = vsel %vm2799, %v2791, %v2796
      %v2801 = vrsqrt.pop %v2757
      %v2802 = vmul.f32 %v2801, %v2757
      %v2803 = vmul.f32 %v2802, %v2801
      %v2804 = vmul.f32 0.5, %v2803
      %v2805 = vsub.f32 1.5, %v2804
      %v2806 = vmul.f32 %v2801, %v2805
      %vm2807 = vweird.f32 %v2757
      %vm2808 = vweird.f32 %v2801
      %vm2809 = vmor %vm2807, %vm2808
      %v2810 = vsel %vm2809, %v2801, %v2806
      %v2811 = vrsqrt.pop %v2758
      %v2812 = vmul.f32 %v2811, %v2758
      %v2813 = vmul.f32 %v2812, %v2811
      %v2814 = vmul.f32 0.5, %v2813
      %v2815 = vsub.f32 1.5, %v2814
      %v2816 = vmul.f32 %v2811, %v2815
      %vm2817 = vweird.f32 %v2758
      %vm2818 = vweird.f32 %v2811
      %vm2819 = vmor %vm2817, %vm2818
      %v2820 = vsel %vm2819, %v2811, %v2816
      %v2821 = vrsqrt.pop %v2759
      %v2822 = vmul.f32 %v2821, %v2759
      %v2823 = vmul.f32 %v2822, %v2821
      %v2824 = vmul.f32 0.5, %v2823
      %v2825 = vsub.f32 1.5, %v2824
      %v2826 = vmul.f32 %v2821, %v2825
      %vm2827 = vweird.f32 %v2759
      %vm2828 = vweird.f32 %v2821
      %vm2829 = vmor %vm2827, %vm2828
      %v2830 = vsel %vm2829, %v2821, %v2826
      %v2831 = vrsqrt.pop %v2760
      %v2832 = vmul.f32 %v2831, %v2760
      %v2833 = vmul.f32 %v2832, %v2831
      %v2834 = vmul.f32 0.5, %v2833
      %v2835 = vsub.f32 1.5, %v2834
      %v2836 = vmul.f32 %v2831, %v2835
      %vm2837 = vweird.f32 %v2760
      %vm2838 = vweird.f32 %v2831
      %vm2839 = vmor %vm2837, %vm2838
      %v2840 = vsel %vm2839, %v2831, %v2836
      %v2841 = vmul.f32 %v2713, %v2770
      %v2842 = vmul.f32 %v2714, %v2780
      %v2843 = vmul.f32 %v2715, %v2790
      %v2844 = vmul.f32 %v2716, %v2800
      %v2845 = vmul.f32 %v2717, %v2810
      %v2846 = vmul.f32 %v2718, %v2820
      %v2847 = vmul.f32 %v2719, %v2830
      %v2848 = vmul.f32 %v2720, %v2840
      %v2849 = vld [vmem:[%s7] sm:$0x1]
      %v2851 = vperm.slane %v2849, 0
      %v2853 = vmul.f32 %v2841, %v2851
      %v2854 = vmul.f32 %v2842, %v2851
      %v2855 = vmul.f32 %v2843, %v2851
      %v2856 = vmul.f32 %v2844, %v2851
      %v2857 = vmul.f32 %v2845, %v2851
      %v2858 = vmul.f32 %v2846, %v2851
      %v2859 = vmul.f32 %v2847, %v2851
      %v2860 = vmul.f32 %v2848, %v2851
      %v2861 = vpack.c.bf16 %v2854, %v2853
      %v2862 = vpack.c.bf16 %v2856, %v2855
      %v2863 = vpack.c.bf16 %v2858, %v2857
      %v2864 = vpack.c.bf16 %v2860, %v2859
      %v2865 = vld [vmem:[%s4] sm:$0xf]
      %v2866 = vld [vmem:[%s4 + $0x4] sm:$0xf]
      %v2867 = vld [vmem:[%s4 + $0x8] sm:$0xf]
      %v2868 = vld [vmem:[%s4 + $0xc] sm:$0xf]
      %v2869 = vld [vmem:[%s4 + $0x10] sm:$0xf]
      %v2870 = vld [vmem:[%s4 + $0x14] sm:$0xf]
      %v2871 = vld [vmem:[%s4 + $0x18] sm:$0xf]
      %v2872 = vld [vmem:[%s4 + $0x1c] sm:$0xf]
      %v2873 = vld [vmem:[%s4 + $0x20] sm:$0xf]
      %v2874 = vld [vmem:[%s4 + $0x24] sm:$0xf]
      %v2875 = vld [vmem:[%s4 + $0x28] sm:$0xf]
      %v2876 = vld [vmem:[%s4 + $0x2c] sm:$0xf]
      %v2877 = vld [vmem:[%s4 + $0x30] sm:$0xf]
      %v2878 = vld [vmem:[%s4 + $0x34] sm:$0xf]
      %v2879 = vld [vmem:[%s4 + $0x38] sm:$0xf]
      %v2880 = vld [vmem:[%s4 + $0x3c] sm:$0xf]
      %v2897 = vunpack.c.l.b16 %v2865
      %v2898 = vunpack.c.l.b16 %v2866
      %v2899 = vunpack.c.l.b16 %v2867
      %v2900 = vunpack.c.l.b16 %v2868
      %v2901 = vunpack.c.l.b16 %v2869
      %v2902 = vunpack.c.l.b16 %v2870
      %v2903 = vunpack.c.l.b16 %v2871
      %v2904 = vunpack.c.l.b16 %v2872
      %v2905 = vunpack.c.l.b16 %v2873
      %v2906 = vunpack.c.l.b16 %v2874
      %v2907 = vunpack.c.l.b16 %v2875
      %v2908 = vunpack.c.l.b16 %v2876
      %v2909 = vunpack.c.l.b16 %v2877
      %v2910 = vunpack.c.l.b16 %v2878
      %v2911 = vunpack.c.l.b16 %v2879
      %v2912 = vunpack.c.l.b16 %v2880
      %v2913 = vpack.c.b16 %v2898, %v2897
      %v2914 = vpack.c.b16 %v2900, %v2899
      %v2915 = vpack.c.b16 %v2902, %v2901
      %v2916 = vpack.c.b16 %v2904, %v2903
      %v2917 = vpack.c.b16 %v2906, %v2905
      %v2918 = vpack.c.b16 %v2908, %v2907
      %v2919 = vpack.c.b16 %v2910, %v2909
      %v2920 = vpack.c.b16 %v2912, %v2911
      %2929 = vmatpush.bf16.msra.mxu0 %v2920
      %2930 = vmatpush.bf16.msra.mxu0 %v2919
      %2931 = vmatpush.bf16.msra.mxu0 %v2918
      %2932 = vmatpush.bf16.msra.mxu0 %v2917
      %2933 = vmatpush.bf16.msra.mxu0 %v2916
      %2934 = vmatpush.bf16.msra.mxu0 %v2915
      %2935 = vmatpush.bf16.msra.mxu0 %v2914
      %2936 = vmatpush.bf16.msra.mxu0 %v2913
      %2937 = vmatmul.bf16.gmra.mxu0 %v2861
      %v2938 = vpop.f32.mrf.mxu0
      %v2939 = vadd.f32 0.0, %v2938
      %v2940 = vpop.f32.mrf.mxu0
      %v2941 = vadd.f32 0.0, %v2940
      %2942 = vmatmul.bf16.gmra.mxu0 %v2862
      %v2943 = vpop.f32.mrf.mxu0
      %v2944 = vadd.f32 0.0, %v2943
      %v2945 = vpop.f32.mrf.mxu0
      %v2946 = vadd.f32 0.0, %v2945
      %2947 = vmatmul.bf16.gmra.mxu0 %v2863
      %v2948 = vpop.f32.mrf.mxu0
      %v2949 = vadd.f32 0.0, %v2948
      %v2950 = vpop.f32.mrf.mxu0
      %v2951 = vadd.f32 0.0, %v2950
      %2952 = vmatmul.bf16.gmra.mxu0 %v2864
      %v2953 = vpop.f32.mrf.mxu0
      %v2954 = vadd.f32 0.0, %v2953
      %v2955 = vpop.f32.mrf.mxu0
      %v2956 = vadd.f32 0.0, %v2955
      %2957 = vdwg.mxu0
      %v2958 = vld [vmem:[%s369] sm:$0xff]
      %v2959 = vld [vmem:[%s369 + $0x8] sm:$0xff]
      %v2960 = vld [vmem:[%s369 + $0x10] sm:$0xff]
      %v2961 = vld [vmem:[%s369 + $0x18] sm:$0xff]
      %v2962 = vld [vmem:[%s369 + $0x20] sm:$0xff]
      %v2963 = vld [vmem:[%s369 + $0x28] sm:$0xff]
      %v2964 = vld [vmem:[%s369 + $0x30] sm:$0xff]
      %v2965 = vld [vmem:[%s369 + $0x38] sm:$0xff]
      %v2966 = vadd.f32 %v2958, %v2939
      %v2967 = vadd.f32 %v2959, %v2941
      %v2968 = vadd.f32 %v2960, %v2944
      %v2969 = vadd.f32 %v2961, %v2946
      %v2970 = vadd.f32 %v2962, %v2949
      %v2971 = vadd.f32 %v2963, %v2951
      %v2972 = vadd.f32 %v2964, %v2954
      %v2973 = vadd.f32 %v2965, %v2956
      %2974 = vst.msk [vmem:[%s379] sm:$0xff] %vm516, %v2966
      %2975 = vst.msk [vmem:[%s379 + $0x8] sm:$0xff] %vm516, %v2967
      %2976 = vst.msk [vmem:[%s379 + $0x10] sm:$0xff] %vm516, %v2968
      %2977 = vst.msk [vmem:[%s379 + $0x18] sm:$0xff] %vm516, %v2969
      %2978 = vst.msk [vmem:[%s379 + $0x20] sm:$0xff] %vm516, %v2970
      %2979 = vst.msk [vmem:[%s379 + $0x28] sm:$0xff] %vm516, %v2971
      %2980 = vst.msk [vmem:[%s379 + $0x30] sm:$0xff] %vm516, %v2972
      %2981 = vst.msk [vmem:[%s379 + $0x38] sm:$0xff] %vm516, %v2973
      %s2982 = smul.u32 8, %s24
      %p2983 = scmp.lt.s32.totalorder %s23, 1
      %s2984 = scalar_select %p2983, %s23, 1
      %p2985 = scmp.lt.s32.totalorder %s2982, 15
      %s2986 = scalar_select %p2985, %s2982, 15
      %s2987 = smul.addr %s2984, 16
      %s2988 = sadd.s32 %s2986, %s2987
      %s2989 = smul.addr %s2988, 8
      %s2990 = scalar_lea.vmem %s8, %s2989
      // Predicated region
      $region57: #{_lambda_.5} parent=51 // pred_check
        %p2991 = pneg %p233
      $region58: #{_lambda_.5} parent=51 // pred_check_branch
        %2993 = sbr.rel (%p2991) target = $region60
      $region59: #{_lambda_.5} parent=51 // pred_region
        %s2994 = smul.u32 8, %s24
      $region60: #{_lambda_.5} parent=51 // pred_fallthru
        _
    $region52: #{_lambda_.5} parent=5 // pred_fallthru
      _
    %p2995 = scmp.le.s32.totalorder 2, %s14
    // Predicated region
    $region61: #{_lambda_.5} parent=5 // pred_check
      %p2996 = pneg %p2995
    $region62: #{_lambda_.5} parent=5 // pred_check_branch
      %2998 = sbr.rel (%p2996) target = $region64
    $region63: #{_lambda_.5} parent=5 // pred_region
      %s2999 = ssub.s32 %s14, 2
      // Predicated region
      $region65: #{_lambda_.5} parent=63 // pred_check
        %p3000 = pneg %p239
      $region66: #{_lambda_.5} parent=63 // pred_check_branch
        %3002 = sbr.rel (%p3000) target = $region68
      $region67: #{_lambda_.5} parent=63 // pred_region
        %s3003 = smul.u32 8, %s26
        %p3004 = scmp.lt.s32.totalorder %s25, 1
        %s3005 = scalar_select %p3004, %s25, 1
        %p3006 = scmp.lt.s32.totalorder %s3003, 15
        %s3007 = scalar_select %p3006, %s3003, 15
        %s3008 = smul.addr %s3005, 16
        %s3009 = sadd.s32 %s3007, %s3008
        %s3010 = smul.addr %s3009, 8
        %s3011 = scalar_lea.vmem %s8, %s3010
      $region68: #{_lambda_.5} parent=63 // pred_fallthru
        _
    $region64: #{_lambda_.5} parent=5 // pred_fallthru
      _
  $region6: #{_lambda_.5} parent=0 // loop_footer
    %s18 = sadd.s32 1, %s14
  $region7: #{_lambda_.5} parent=0 // loop_footer_branch
    %13 = sbr.rel target = $region3
  $region8: #{_lambda_.5} parent=0 // loop_exit
    _

// kernel: _lambda_.6
$region0: #{_lambda_.6}
  #allocation0 [shape = 'u32[]', space=smem, size = 0x4, offset = 0x4, fixed_abs, tag = 'smem constant byte address 0x4 - core index']
  #allocation1 [shape = 'u32[72,128]{1,0:T(1,128)}', space=vmem, size = 0x9000, scoped, tag = 'internal scratch']
  #allocation2 [shape = 'f32[32,64]{1,0:T(8,128)}', space=vmem, size = 0x4000, scoped, tag = 'scratch operand']
  #allocation3 [shape = 'f32[64,160]{1,0:T(8,128)}', space=vmem, size = 0x10000, scoped, tag = 'scratch operand']
  %s0 = inlined_call_operand.vmem [shape: f32[2,128,64], index: 0, kind: input, shape index: {}]
  %s1 = inlined_call_operand.vmem [shape: f32[2,128,64], index: 1, kind: input, shape index: {}]
  %s2 = inlined_call_operand.vmem [shape: bf16[64,512], index: 2, kind: input, shape index: {}]
  %s3 = inlined_call_operand.vmem [shape: f32[4,160], index: 3, kind: input, shape index: {}]
  %s4 = inlined_call_operand.vmem [shape: bf16[128,64], index: 4, kind: input, shape index: {}]
  %s5 = inlined_call_operand.vmem [shape: f32[3,2], index: 5, kind: input, shape index: {}]
  %s6 = inlined_call_operand.vmem [shape: f32[1,160], index: 6, kind: input, shape index: {}]
  %s7 = inlined_call_operand.vmem [shape: f32[1,128], index: 7, kind: input, shape index: {}]
  %s8 = inlined_call_operand.vmem [shape: f32[2,128,64], index: 8, kind: output, shape index: {}]
  %s9 = sld [smem:[#allocation0]]
  $region69: #{_lambda_.6} parent=0
    _
  %s11 = ssub.s32 1, %s9
  %s12 = scalar_select 0, %s11, %s9
  loop: start=0, step=1, limit=6
  $region2: #{_lambda_.6} parent=0 // loop_pre_header
    _
  $region3: #{_lambda_.6} parent=0 // loop_header
    %s14 = sphi 0, %s18
    %p15 = scmp.ge.s32.totalorder %s14, 6
    %s21 = sphi 0, %s33
    %s22 = sphi 0, %s29
    %s23 = sphi 0, %s21
    %s24 = sphi 0, %s22
    %s25 = sphi 0, %s23
    %s26 = sphi 0, %s24
    %s40 = sphi 0, %s42
    %s43 = sphi 0, %s40
    %s44 = sphi 0, %s43
    %s60 = sphi 0, %s44
    %s70 = sphi 0, %s72
    %s73 = sphi 0, %s70
    %s74 = sphi 0, %s73
    %s90 = sphi 0, %s74
    %s94 = sphi 0, %s94
    %s96 = sphi 0, %s94
    %s97 = sphi 0, %s96
    %s111 = sphi 0, %s97
    %s115 = sphi 0, %s115
    %s117 = sphi 0, %s115
    %s118 = sphi 0, %s117
    %s132 = sphi 0, %s118
    %s136 = sphi 0, %s136
    %s138 = sphi 0, %s136
    %s139 = sphi 0, %s138
    %s153 = sphi 0, %s139
    %s157 = sphi 0, %s157
    %s159 = sphi 0, %s157
    %s160 = sphi 0, %s159
    %s174 = sphi 0, %s160
    %s178 = sphi 0, %s178
    %s180 = sphi 0, %s178
    %s181 = sphi 0, %s180
    %s195 = sphi 0, %s181
    %s199 = sphi 0, %s199
    %s201 = sphi 0, %s199
    %s202 = sphi 0, %s201
    %s216 = sphi 0, %s202
    %s226 = sphi 0, %s228
    %s229 = sphi 0, %s226
    %s230 = sphi 0, %s229
    %s246 = sphi 0, %s230
  $region4: #{_lambda_.6} parent=0 // loop_header_branch
    %17 = sbr.rel (%p15) target = $region8
  $region5: #{_lambda_.6} parent=0 // loop_body
    %s19 = ssub.s32 %s14, 1
    %s20 = ssub.s32 %s14, 2
    %s27 = sadd.s32 1, %s22
    %p28 = scmp.ge.s32.totalorder %s27, 2
    %s29 = scalar_select %p28, 0, %s27
    %s30 = sadd.s32 1, %s21
    %s31 = scalar_select %p28, %s30, %s21
    %p32 = scmp.ge.s32.totalorder %s31, 2
    %s33 = scalar_select %p32, 0, %s31
    %s34 = ssub.s32 1, %s22
    %s35 = ssub.s32 1, %s29
    %s36 = ssub.s32 %s21, %s33
    %s37 = ssub.s32 %s34, %s35
    %s38 = sor.u32 %s36, %s37
    %p39 = scmp.eq.s32.totalorder %s38, 0
    %s41 = sadd.s32 %s40, 1
    %s42 = scalar_select %p39, %s40, %s41
    %p45 = pneg %p39
    %p46 = scmp.eq.s32.totalorder %s14, 3
    %p47 = por %p45, %p46
    %p48 = scmp.ne.s32.totalorder %s40, %s43
    %p49 = scmp.eq.s32.totalorder %s14, 0
    %p50 = por %p48, %p49
    %p51 = scmp.ne.s32.totalorder %s40, %s43
    %p52 = scmp.eq.s32.totalorder %s19, 3
    %p53 = por %p51, %p52
    %p54 = scmp.ne.s32.totalorder %s43, %s44
    %p55 = scmp.eq.s32.totalorder %s19, 0
    %p56 = por %p54, %p55
    %p57 = scmp.ne.s32.totalorder %s43, %s44
    %p58 = scmp.eq.s32.totalorder %s20, 3
    %p59 = por %p57, %p58
    %p61 = scmp.ne.s32.totalorder %s44, %s60
    %p62 = scmp.eq.s32.totalorder %s20, 0
    %p63 = por %p61, %p62
    %s64 = ssub.s32 1, %s22
    %s65 = ssub.s32 1, %s29
    %s66 = ssub.s32 %s21, %s33
    %s67 = ssub.s32 %s64, %s65
    %s68 = sor.u32 %s66, %s67
    %p69 = scmp.eq.s32.totalorder %s68, 0
    %s71 = sadd.s32 %s70, 1
    %s72 = scalar_select %p69, %s70, %s71
    %p75 = pneg %p69
    %p76 = scmp.eq.s32.totalorder %s14, 3
    %p77 = por %p75, %p76
    %p78 = scmp.ne.s32.totalorder %s70, %s73
    %p79 = scmp.eq.s32.totalorder %s14, 0
    %p80 = por %p78, %p79
    %p81 = scmp.ne.s32.totalorder %s70, %s73
    %p82 = scmp.eq.s32.totalorder %s19, 3
    %p83 = por %p81, %p82
    %p84 = scmp.ne.s32.totalorder %s73, %s74
    %p85 = scmp.eq.s32.totalorder %s19, 0
    %p86 = por %p84, %p85
    %p87 = scmp.ne.s32.totalorder %s73, %s74
    %p88 = scmp.eq.s32.totalorder %s20, 3
    %p89 = por %p87, %p88
    %p91 = scmp.ne.s32.totalorder %s74, %s90
    %p92 = scmp.eq.s32.totalorder %s20, 0
    %p93 = por %p91, %p92
    %s95 = sadd.s32 %s94, 1
    %p98 = scmp.eq.s32.totalorder %s14, 3
    %p99 = scmp.ne.s32.totalorder %s94, %s96
    %p100 = scmp.eq.s32.totalorder %s14, 0
    %p101 = por %p99, %p100
    %p102 = scmp.ne.s32.totalorder %s94, %s96
    %p103 = scmp.eq.s32.totalorder %s19, 3
    %p104 = por %p102, %p103
    %p105 = scmp.ne.s32.totalorder %s96, %s97
    %p106 = scmp.eq.s32.totalorder %s19, 0
    %p107 = por %p105, %p106
    %p108 = scmp.ne.s32.totalorder %s96, %s97
    %p109 = scmp.eq.s32.totalorder %s20, 3
    %p110 = por %p108, %p109
    %p112 = scmp.ne.s32.totalorder %s97, %s111
    %p113 = scmp.eq.s32.totalorder %s20, 0
    %p114 = por %p112, %p113
    %s116 = sadd.s32 %s115, 1
    %p119 = scmp.eq.s32.totalorder %s14, 3
    %p120 = scmp.ne.s32.totalorder %s115, %s117
    %p121 = scmp.eq.s32.totalorder %s14, 0
    %p122 = por %p120, %p121
    %p123 = scmp.ne.s32.totalorder %s115, %s117
    %p124 = scmp.eq.s32.totalorder %s19, 3
    %p125 = por %p123, %p124
    %p126 = scmp.ne.s32.totalorder %s117, %s118
    %p127 = scmp.eq.s32.totalorder %s19, 0
    %p128 = por %p126, %p127
    %p129 = scmp.ne.s32.totalorder %s117, %s118
    %p130 = scmp.eq.s32.totalorder %s20, 3
    %p131 = por %p129, %p130
    %p133 = scmp.ne.s32.totalorder %s118, %s132
    %p134 = scmp.eq.s32.totalorder %s20, 0
    %p135 = por %p133, %p134
    %s137 = sadd.s32 %s136, 1
    %p140 = scmp.eq.s32.totalorder %s14, 3
    %p141 = scmp.ne.s32.totalorder %s136, %s138
    %p142 = scmp.eq.s32.totalorder %s14, 0
    %p143 = por %p141, %p142
    %p144 = scmp.ne.s32.totalorder %s136, %s138
    %p145 = scmp.eq.s32.totalorder %s19, 3
    %p146 = por %p144, %p145
    %p147 = scmp.ne.s32.totalorder %s138, %s139
    %p148 = scmp.eq.s32.totalorder %s19, 0
    %p149 = por %p147, %p148
    %p150 = scmp.ne.s32.totalorder %s138, %s139
    %p151 = scmp.eq.s32.totalorder %s20, 3
    %p152 = por %p150, %p151
    %p154 = scmp.ne.s32.totalorder %s139, %s153
    %p155 = scmp.eq.s32.totalorder %s20, 0
    %p156 = por %p154, %p155
    %s158 = sadd.s32 %s157, 1
    %p161 = scmp.eq.s32.totalorder %s14, 3
    %p162 = scmp.ne.s32.totalorder %s157, %s159
    %p163 = scmp.eq.s32.totalorder %s14, 0
    %p164 = por %p162, %p163
    %p165 = scmp.ne.s32.totalorder %s157, %s159
    %p166 = scmp.eq.s32.totalorder %s19, 3
    %p167 = por %p165, %p166
    %p168 = scmp.ne.s32.totalorder %s159, %s160
    %p169 = scmp.eq.s32.totalorder %s19, 0
    %p170 = por %p168, %p169
    %p171 = scmp.ne.s32.totalorder %s159, %s160
    %p172 = scmp.eq.s32.totalorder %s20, 3
    %p173 = por %p171, %p172
    %p175 = scmp.ne.s32.totalorder %s160, %s174
    %p176 = scmp.eq.s32.totalorder %s20, 0
    %p177 = por %p175, %p176
    %s179 = sadd.s32 %s178, 1
    %p182 = scmp.eq.s32.totalorder %s14, 3
    %p183 = scmp.ne.s32.totalorder %s178, %s180
    %p184 = scmp.eq.s32.totalorder %s14, 0
    %p185 = por %p183, %p184
    %p186 = scmp.ne.s32.totalorder %s178, %s180
    %p187 = scmp.eq.s32.totalorder %s19, 3
    %p188 = por %p186, %p187
    %p189 = scmp.ne.s32.totalorder %s180, %s181
    %p190 = scmp.eq.s32.totalorder %s19, 0
    %p191 = por %p189, %p190
    %p192 = scmp.ne.s32.totalorder %s180, %s181
    %p193 = scmp.eq.s32.totalorder %s20, 3
    %p194 = por %p192, %p193
    %p196 = scmp.ne.s32.totalorder %s181, %s195
    %p197 = scmp.eq.s32.totalorder %s20, 0
    %p198 = por %p196, %p197
    %s200 = sadd.s32 %s199, 1
    %p203 = scmp.eq.s32.totalorder %s14, 3
    %p204 = scmp.ne.s32.totalorder %s199, %s201
    %p205 = scmp.eq.s32.totalorder %s14, 0
    %p206 = por %p204, %p205
    %p207 = scmp.ne.s32.totalorder %s199, %s201
    %p208 = scmp.eq.s32.totalorder %s19, 3
    %p209 = por %p207, %p208
    %p210 = scmp.ne.s32.totalorder %s201, %s202
    %p211 = scmp.eq.s32.totalorder %s19, 0
    %p212 = por %p210, %p211
    %p213 = scmp.ne.s32.totalorder %s201, %s202
    %p214 = scmp.eq.s32.totalorder %s20, 3
    %p215 = por %p213, %p214
    %p217 = scmp.ne.s32.totalorder %s202, %s216
    %p218 = scmp.eq.s32.totalorder %s20, 0
    %p219 = por %p217, %p218
    %s220 = ssub.s32 1, %s22
    %s221 = ssub.s32 1, %s29
    %s222 = ssub.s32 %s21, %s33
    %s223 = ssub.s32 %s220, %s221
    %s224 = sor.u32 %s222, %s223
    %p225 = scmp.eq.s32.totalorder %s224, 0
    %s227 = sadd.s32 %s226, 1
    %s228 = scalar_select %p225, %s226, %s227
    %p231 = pneg %p225
    %p232 = scmp.eq.s32.totalorder %s14, 3
    %p233 = por %p231, %p232
    %p234 = scmp.ne.s32.totalorder %s226, %s229
    %p235 = scmp.eq.s32.totalorder %s14, 0
    %p236 = por %p234, %p235
    %p237 = scmp.ne.s32.totalorder %s226, %s229
    %p238 = scmp.eq.s32.totalorder %s19, 3
    %p239 = por %p237, %p238
    %p240 = scmp.ne.s32.totalorder %s229, %s230
    %p241 = scmp.eq.s32.totalorder %s19, 0
    %p242 = por %p240, %p241
    %p243 = scmp.ne.s32.totalorder %s229, %s230
    %p244 = scmp.eq.s32.totalorder %s20, 3
    %p245 = por %p243, %p244
    %p247 = scmp.ne.s32.totalorder %s230, %s246
    %p248 = scmp.eq.s32.totalorder %s20, 0
    %p249 = por %p247, %p248
    %p250 = scmp.le.s32.totalorder 1, %s14
    %p251 = scmp.lt.s32.totalorder %s14, 5
    %p252 = pnand %p250, %p251
    %p253 = pneg %p252
    // Predicated region
    $region9: #{_lambda_.6} parent=5 // pred_check
      _
    $region10: #{_lambda_.6} parent=5 // pred_check_branch
      %255 = sbr.rel (%p252) target = $region12
    $region11: #{_lambda_.6} parent=5 // pred_region
      %s256 = ssub.s32 %s14, 1
      // Predicated region
      $region13: #{_lambda_.6} parent=11 // pred_check
        %p257 = pneg %p107
      $region14: #{_lambda_.6} parent=11 // pred_check_branch
        %259 = sbr.rel (%p257) target = $region16
      $region15: #{_lambda_.6} parent=11 // pred_region
        _
      $region16: #{_lambda_.6} parent=11 // pred_fallthru
        _
      // Predicated region
      $region17: #{_lambda_.6} parent=11 // pred_check
        %p260 = pneg %p128
      $region18: #{_lambda_.6} parent=11 // pred_check_branch
        %262 = sbr.rel (%p260) target = $region20
      $region19: #{_lambda_.6} parent=11 // pred_region
        _
      $region20: #{_lambda_.6} parent=11 // pred_fallthru
        _
      // Predicated region
      $region21: #{_lambda_.6} parent=11 // pred_check
        %p263 = pneg %p149
      $region22: #{_lambda_.6} parent=11 // pred_check_branch
        %265 = sbr.rel (%p263) target = $region24
      $region23: #{_lambda_.6} parent=11 // pred_region
        _
      $region24: #{_lambda_.6} parent=11 // pred_fallthru
        _
      // Predicated region
      $region25: #{_lambda_.6} parent=11 // pred_check
        %p266 = pneg %p170
      $region26: #{_lambda_.6} parent=11 // pred_check_branch
        %268 = sbr.rel (%p266) target = $region28
      $region27: #{_lambda_.6} parent=11 // pred_region
        _
      $region28: #{_lambda_.6} parent=11 // pred_fallthru
        _
      // Predicated region
      $region29: #{_lambda_.6} parent=11 // pred_check
        %p269 = pneg %p191
      $region30: #{_lambda_.6} parent=11 // pred_check_branch
        %271 = sbr.rel (%p269) target = $region32
      $region31: #{_lambda_.6} parent=11 // pred_region
        _
      $region32: #{_lambda_.6} parent=11 // pred_fallthru
        _
      // Predicated region
      $region33: #{_lambda_.6} parent=11 // pred_check
        %p272 = pneg %p212
      $region34: #{_lambda_.6} parent=11 // pred_check_branch
        %274 = sbr.rel (%p272) target = $region36
      $region35: #{_lambda_.6} parent=11 // pred_region
        _
      $region36: #{_lambda_.6} parent=11 // pred_fallthru
        _
    $region12: #{_lambda_.6} parent=5 // pred_fallthru
      _
    %p275 = scmp.lt.s32.totalorder %s14, 4
    // Predicated region
    $region37: #{_lambda_.6} parent=5 // pred_check
      %p276 = pneg %p275
    $region38: #{_lambda_.6} parent=5 // pred_check_branch
      %278 = sbr.rel (%p276) target = $region40
    $region39: #{_lambda_.6} parent=5 // pred_region
      // Predicated region
      $region41: #{_lambda_.6} parent=39 // pred_check
        %p279 = pneg %p50
      $region42: #{_lambda_.6} parent=39 // pred_check_branch
        %281 = sbr.rel (%p279) target = $region44
      $region43: #{_lambda_.6} parent=39 // pred_region
        %s282 = ssub.s32 1, %s22
        %s283 = smul.u32 8, %s282
        %p284 = scmp.lt.s32.totalorder %s21, 1
        %s285 = scalar_select %p284, %s21, 1
        %p286 = scmp.lt.s32.totalorder %s283, 15
        %s287 = scalar_select %p286, %s283, 15
        %s288 = smul.addr %s285, 16
        %s289 = sadd.s32 %s287, %s288
        %s290 = smul.addr %s289, 8
        %s291 = scalar_lea.vmem %s0, %s290
        %s292 = ssub.s32 1, %s22
        %s293 = smul.u32 8, %s292
      $region44: #{_lambda_.6} parent=39 // pred_fallthru
        _
      // Predicated region
      $region45: #{_lambda_.6} parent=39 // pred_check
        %p294 = pneg %p80
      $region46: #{_lambda_.6} parent=39 // pred_check_branch
        %296 = sbr.rel (%p294) target = $region48
      $region47: #{_lambda_.6} parent=39 // pred_region
        %s297 = ssub.s32 1, %s22
        %s298 = smul.u32 8, %s297
        %p299 = scmp.lt.s32.totalorder %s21, 1
        %s300 = scalar_select %p299, %s21, 1
        %p301 = scmp.lt.s32.totalorder %s298, 15
        %s302 = scalar_select %p301, %s298, 15
        %s303 = smul.addr %s300, 16
        %s304 = sadd.s32 %s302, %s303
        %s305 = smul.addr %s304, 8
        %s306 = scalar_lea.vmem %s1, %s305
        %s307 = ssub.s32 1, %s22
        %s308 = smul.u32 8, %s307
      $region48: #{_lambda_.6} parent=39 // pred_fallthru
        _
    $region40: #{_lambda_.6} parent=5 // pred_fallthru
      _
    %p309 = scmp.le.s32.totalorder 1, %s14
    %p310 = scmp.lt.s32.totalorder %s14, 5
    %p311 = pnand %p309, %p310
    %p312 = pneg %p311
    // Predicated region
    $region49: #{_lambda_.6} parent=5 // pred_check
      _
    $region50: #{_lambda_.6} parent=5 // pred_check_branch
      %314 = sbr.rel (%p311) target = $region52
    $region51: #{_lambda_.6} parent=5 // pred_region
      %s315 = ssub.s32 %s14, 1
      %s316 = ssub.s32 1, %s24
      %s317 = smul.u32 8, %s316
      %p318 = scmp.lt.s32.totalorder %s23, 1
      %s319 = scalar_select %p318, %s23, 1
      %p320 = scmp.lt.s32.totalorder %s317, 15
      %s321 = scalar_select %p320, %s317, 15
      %s322 = smul.addr %s319, 16
      %s323 = sadd.s32 %s321, %s322
      %s324 = smul.addr %s323, 8
      %s325 = scalar_lea.vmem %s0, %s324
      %p326 = pneg %p56
      %p327 = pneg %p53
      %s328 = ssub.s32 1, %s24
      %s329 = smul.u32 8, %s328
      %p330 = scmp.lt.s32.totalorder %s23, 1
      %s331 = scalar_select %p330, %s23, 1
      %p332 = scmp.lt.s32.totalorder %s329, 15
      %s333 = scalar_select %p332, %s329, 15
      %s334 = smul.addr %s331, 16
      %s335 = sadd.s32 %s333, %s334
      %s336 = smul.addr %s335, 8
      %s337 = scalar_lea.vmem %s1, %s336
      %p338 = pneg %p86
      %p339 = pneg %p83
      %p340 = pneg %p107
      %p341 = pneg %p104
      %p342 = pneg %p128
      %p343 = pneg %p125
      %p344 = pneg %p149
      %p345 = pneg %p146
      %p346 = pneg %p170
      %p347 = pneg %p167
      %p348 = pneg %p191
      %p349 = pneg %p188
      %p350 = pneg %p212
      %p351 = pneg %p209
      %p352 = pneg %p242
      %p353 = pneg %p239
      %s354 = ssub.s32 1, %s24
      %s355 = smul.u32 8, %s354
      %p356 = scmp.lt.s32.totalorder %s23, 1
      %s357 = scalar_select %p356, %s23, 1
      %p358 = scmp.lt.s32.totalorder %s355, 15
      %s359 = scalar_select %p358, %s355, 15
      %s360 = smul.addr %s357, 16
      %s361 = sadd.s32 %s359, %s360
      %s362 = smul.addr %s361, 8
      %s363 = scalar_lea.vmem %s8, %s362
      %s364 = ssub.s32 1, %s24
      %s365 = smul.u32 8, %s364
      %p366 = scmp.lt.s32.totalorder %s23, 1
      %s367 = scalar_select %p366, %s23, 1
      %p368 = scmp.lt.s32.totalorder %s365, 15
      %s369 = scalar_select %p368, %s365, 15
      %s370 = smul.addr %s367, 16
      %s371 = sadd.s32 %s369, %s370
      %s372 = smul.addr %s371, 8
      %s373 = scalar_lea.vmem %s0, %s372
      %s374 = ssub.s32 1, %s24
      %s375 = smul.u32 8, %s374
      %s376 = ssub.s32 1, %s24
      %s377 = smul.u32 8, %s376
      %p378 = scmp.lt.s32.totalorder %s23, 1
      %s379 = scalar_select %p378, %s23, 1
      %p380 = scmp.lt.s32.totalorder %s377, 15
      %s381 = scalar_select %p380, %s377, 15
      %s382 = smul.addr %s379, 16
      %s383 = sadd.s32 %s381, %s382
      %s384 = smul.addr %s383, 8
      %s385 = scalar_lea.vmem %s1, %s384
      %s386 = ssub.s32 1, %s24
      %s387 = smul.u32 8, %s386
      %s388 = ssub.s32 1, %s24
      %s389 = smul.u32 8, %s388
      %p390 = scmp.lt.s32.totalorder %s23, 1
      %s391 = scalar_select %p390, %s23, 1
      %p392 = scmp.lt.s32.totalorder %s389, 15
      %s393 = scalar_select %p392, %s389, 15
      %s394 = smul.addr %s391, 16
      %s395 = sadd.s32 %s393, %s394
      %s396 = smul.addr %s395, 8
      %s397 = scalar_lea.vmem %s8, %s396
      %s398 = ssub.s32 1, %s24
      %s399 = smul.u32 8, %s398
      %p401 = scmp.eq.s32.totalorder %s24, 0
      // Predicated region
      $region53: #{_lambda_.6} parent=51 // pred_check
        %p402 = pneg %p401
      $region54: #{_lambda_.6} parent=51 // pred_check_branch
        %404 = sbr.rel (%p402) target = $region56
      $region55: #{_lambda_.6} parent=51 // pred_region
        %vm405 = vcmask 523264
        %406 = vst.msk [vmem:[#allocation2] sm:$0xff] %vm405, 0.0
        %407 = vst.msk [vmem:[#allocation2 + $0x8] sm:$0xff] %vm405, 0.0
        %408 = vst.msk [vmem:[#allocation2 + $0x10] sm:$0xff] %vm405, 0.0
        %409 = vst.msk [vmem:[#allocation2 + $0x18] sm:$0xff] %vm405, 0.0
        %410 = vst [vmem:[#allocation3] sm:$0xff] 0.0
        %vm411 = vcmask 261120
        %412 = vst.msk [vmem:[#allocation3 + $0x8] sm:$0xff] %vm411, 0.0
        %413 = vst [vmem:[#allocation3 + $0x10] sm:$0xff] 0.0
        %414 = vst.msk [vmem:[#allocation3 + $0x18] sm:$0xff] %vm411, 0.0
        %415 = vst [vmem:[#allocation3 + $0x20] sm:$0xff] 0.0
        %416 = vst.msk [vmem:[#allocation3 + $0x28] sm:$0xff] %vm411, 0.0
        %417 = vst [vmem:[#allocation3 + $0x30] sm:$0xff] 0.0
        %418 = vst.msk [vmem:[#allocation3 + $0x38] sm:$0xff] %vm411, 0.0
        %419 = vst [vmem:[#allocation3 + $0x40] sm:$0xff] 0.0
        %420 = vst.msk [vmem:[#allocation3 + $0x48] sm:$0xff] %vm411, 0.0
        %421 = vst [vmem:[#allocation3 + $0x50] sm:$0xff] 0.0
        %422 = vst.msk [vmem:[#allocation3 + $0x58] sm:$0xff] %vm411, 0.0
        %423 = vst [vmem:[#allocation3 + $0x60] sm:$0xff] 0.0
        %424 = vst.msk [vmem:[#allocation3 + $0x68] sm:$0xff] %vm411, 0.0
        %425 = vst [vmem:[#allocation3 + $0x70] sm:$0xff] 0.0
        %426 = vst.msk [vmem:[#allocation3 + $0x78] sm:$0xff] %vm411, 0.0
      $region56: #{_lambda_.6} parent=51 // pred_fallthru
        _
      %v427 = vld [vmem:[%s373] sm:$0xff]
      %v428 = vld [vmem:[%s373 + $0x8] sm:$0xff]
      %v429 = vld [vmem:[%s373 + $0x10] sm:$0xff]
      %v430 = vld [vmem:[%s373 + $0x18] sm:$0xff]
      %v431 = vld [vmem:[%s373 + $0x20] sm:$0xff]
      %v432 = vld [vmem:[%s373 + $0x28] sm:$0xff]
      %v433 = vld [vmem:[%s373 + $0x30] sm:$0xff]
      %v434 = vld [vmem:[%s373 + $0x38] sm:$0xff]
      %v435 = vpack.c.bf16 %v428, %v427
      %v436 = vpack.c.bf16 %v430, %v429
      %v437 = vpack.c.bf16 %v432, %v431
      %v438 = vpack.c.bf16 %v434, %v433
      %v439 = vld [vmem:[%s2] sm:$0xff]
      %v440 = vld [vmem:[%s2 + $0x8] sm:$0xff]
      %v441 = vld [vmem:[%s2 + $0x10] sm:$0xff]
      %v442 = vld [vmem:[%s2 + $0x18] sm:$0xff]
      %v443 = vld [vmem:[%s2 + $0x20] sm:$0xff]
      %v444 = vld [vmem:[%s2 + $0x28] sm:$0xff]
      %v445 = vld [vmem:[%s2 + $0x30] sm:$0xff]
      %v446 = vld [vmem:[%s2 + $0x38] sm:$0xff]
      %v447 = vld [vmem:[%s2 + $0x40] sm:$0xff]
      %v448 = vld [vmem:[%s2 + $0x48] sm:$0xff]
      %v449 = vld [vmem:[%s2 + $0x50] sm:$0xff]
      %v450 = vld [vmem:[%s2 + $0x58] sm:$0xff]
      %v451 = vld [vmem:[%s2 + $0x60] sm:$0xff]
      %v452 = vld [vmem:[%s2 + $0x68] sm:$0xff]
      %v453 = vld [vmem:[%s2 + $0x70] sm:$0xff]
      %v454 = vld [vmem:[%s2 + $0x78] sm:$0xff]
      %v471 = vunpack.c.l.b16 %v439
      %v472 = vunpack.c.h.b16 %v439
      %v473 = vunpack.c.l.b16 %v440
      %v474 = vunpack.c.h.b16 %v440
      %v475 = vunpack.c.l.b16 %v441
      %v476 = vunpack.c.h.b16 %v441
      %v477 = vunpack.c.l.b16 %v442
      %v478 = vunpack.c.h.b16 %v442
      %v479 = vunpack.c.l.b16 %v443
      %v480 = vunpack.c.h.b16 %v443
      %v481 = vunpack.c.l.b16 %v444
      %v482 = vunpack.c.h.b16 %v444
      %v483 = vunpack.c.l.b16 %v445
      %v484 = vunpack.c.h.b16 %v445
      %v485 = vunpack.c.l.b16 %v446
      %v486 = vunpack.c.h.b16 %v446
      %v487 = vunpack.c.l.b16 %v447
      %v488 = vunpack.c.h.b16 %v447
      %v489 = vunpack.c.l.b16 %v448
      %v490 = vunpack.c.h.b16 %v448
      %v491 = vunpack.c.l.b16 %v449
      %v492 = vunpack.c.h.b16 %v449
      %v493 = vunpack.c.l.b16 %v450
      %v494 = vunpack.c.h.b16 %v450
      %v495 = vunpack.c.l.b16 %v451
      %v496 = vunpack.c.h.b16 %v451
      %v497 = vunpack.c.l.b16 %v452
      %v498 = vunpack.c.h.b16 %v452
      %v499 = vunpack.c.l.b16 %v453
      %v500 = vunpack.c.h.b16 %v453
      %v501 = vunpack.c.l.b16 %v454
      %v502 = vunpack.c.h.b16 %v454
      %v503 = vpack.c.b16 %v475, %v471
      %v504 = vpack.c.b16 %v476, %v472
      %v505 = vpack.c.b16 %v477, %v473
      %v506 = vpack.c.b16 %v478, %v474
      %v507 = vpack.c.b16 %v483, %v479
      %v508 = vpack.c.b16 %v484, %v480
      %v509 = vpack.c.b16 %v485, %v481
      %v510 = vpack.c.b16 %v486, %v482
      %v511 = vpack.c.b16 %v491, %v487
      %v512 = vpack.c.b16 %v492, %v488
      %v513 = vpack.c.b16 %v493, %v489
      %v514 = vpack.c.b16 %v494, %v490
      %v515 = vpack.c.b16 %v499, %v495
      %v516 = vpack.c.b16 %v500, %v496
      %v517 = vpack.c.b16 %v501, %v497
      %v518 = vpack.c.b16 %v502, %v498
      %vm535 = vcmask 523264
      %v537 = vsel %vm535, %v435, 0
      %v540 = vsel %vm535, %v436, 0
      %v543 = vsel %vm535, %v437, 0
      %v546 = vsel %vm535, %v438, 0
      %548 = vmatpush.bf16.msra.mxu0 0
      %549 = vmatpush.bf16.msra.mxu0 0
      %550 = vmatpush.bf16.msra.mxu0 0
      %551 = vmatpush.bf16.msra.mxu0 0
      %552 = vmatpush.bf16.msra.mxu0 %v515
      %553 = vmatpush.bf16.msra.mxu0 %v511
      %554 = vmatpush.bf16.msra.mxu0 %v507
      %555 = vmatpush.bf16.msra.mxu0 %v503
      %556 = vmatmul.bf16.gmra.mxu0 %v537
      %v557 = vpop.f32.mrf.mxu0
      %v558 = vadd.f32 0.0, %v557
      %v559 = vpop.f32.mrf.mxu0
      %v560 = vadd.f32 0.0, %v559
      %561 = vmatmul.bf16.gmra.mxu0 %v540
      %v562 = vpop.f32.mrf.mxu0
      %v563 = vadd.f32 0.0, %v562
      %v564 = vpop.f32.mrf.mxu0
      %v565 = vadd.f32 0.0, %v564
      %566 = vmatmul.bf16.gmra.mxu0 %v543
      %v567 = vpop.f32.mrf.mxu0
      %v568 = vadd.f32 0.0, %v567
      %v569 = vpop.f32.mrf.mxu0
      %v570 = vadd.f32 0.0, %v569
      %571 = vmatmul.bf16.gmra.mxu0 %v546
      %v572 = vpop.f32.mrf.mxu0
      %v573 = vadd.f32 0.0, %v572
      %v574 = vpop.f32.mrf.mxu0
      %v575 = vadd.f32 0.0, %v574
      %576 = vdwg.mxu0
      %577 = vmatpush.bf16.msra.mxu0 0
      %578 = vmatpush.bf16.msra.mxu0 0
      %579 = vmatpush.bf16.msra.mxu0 0
      %580 = vmatpush.bf16.msra.mxu0 0
      %581 = vmatpush.bf16.msra.mxu0 %v516
      %582 = vmatpush.bf16.msra.mxu0 %v512
      %583 = vmatpush.bf16.msra.mxu0 %v508
      %584 = vmatpush.bf16.msra.mxu0 %v504
      %585 = vmatmul.bf16.gmra.mxu0 %v537
      %v586 = vpop.f32.mrf.mxu0
      %v587 = vadd.f32 0.0, %v586
      %v588 = vpop.f32.mrf.mxu0
      %v589 = vadd.f32 0.0, %v588
      %590 = vmatmul.bf16.gmra.mxu0 %v540
      %v591 = vpop.f32.mrf.mxu0
      %v592 = vadd.f32 0.0, %v591
      %v593 = vpop.f32.mrf.mxu0
      %v594 = vadd.f32 0.0, %v593
      %595 = vmatmul.bf16.gmra.mxu0 %v543
      %v596 = vpop.f32.mrf.mxu0
      %v597 = vadd.f32 0.0, %v596
      %v598 = vpop.f32.mrf.mxu0
      %v599 = vadd.f32 0.0, %v598
      %600 = vmatmul.bf16.gmra.mxu0 %v546
      %v601 = vpop.f32.mrf.mxu0
      %v602 = vadd.f32 0.0, %v601
      %v603 = vpop.f32.mrf.mxu0
      %v604 = vadd.f32 0.0, %v603
      %605 = vdwg.mxu0
      %606 = vmatpush.bf16.msra.mxu0 0
      %607 = vmatpush.bf16.msra.mxu0 0
      %608 = vmatpush.bf16.msra.mxu0 0
      %609 = vmatpush.bf16.msra.mxu0 0
      %610 = vmatpush.bf16.msra.mxu0 %v517
      %611 = vmatpush.bf16.msra.mxu0 %v513
      %612 = vmatpush.bf16.msra.mxu0 %v509
      %613 = vmatpush.bf16.msra.mxu0 %v505
      %614 = vmatmul.bf16.gmra.mxu0 %v537
      %v615 = vpop.f32.mrf.mxu0
      %v616 = vadd.f32 0.0, %v615
      %v617 = vpop.f32.mrf.mxu0
      %v618 = vadd.f32 0.0, %v617
      %619 = vmatmul.bf16.gmra.mxu0 %v540
      %v620 = vpop.f32.mrf.mxu0
      %v621 = vadd.f32 0.0, %v620
      %v622 = vpop.f32.mrf.mxu0
      %v623 = vadd.f32 0.0, %v622
      %624 = vmatmul.bf16.gmra.mxu0 %v543
      %v625 = vpop.f32.mrf.mxu0
      %v626 = vadd.f32 0.0, %v625
      %v627 = vpop.f32.mrf.mxu0
      %v628 = vadd.f32 0.0, %v627
      %629 = vmatmul.bf16.gmra.mxu0 %v546
      %v630 = vpop.f32.mrf.mxu0
      %v631 = vadd.f32 0.0, %v630
      %v632 = vpop.f32.mrf.mxu0
      %v633 = vadd.f32 0.0, %v632
      %634 = vdwg.mxu0
      %635 = vmatpush.bf16.msra.mxu0 0
      %636 = vmatpush.bf16.msra.mxu0 0
      %637 = vmatpush.bf16.msra.mxu0 0
      %638 = vmatpush.bf16.msra.mxu0 0
      %639 = vmatpush.bf16.msra.mxu0 %v518
      %640 = vmatpush.bf16.msra.mxu0 %v514
      %641 = vmatpush.bf16.msra.mxu0 %v510
      %642 = vmatpush.bf16.msra.mxu0 %v506
      %643 = vmatmul.bf16.gmra.mxu0 %v537
      %v644 = vpop.f32.mrf.mxu0
      %v645 = vadd.f32 0.0, %v644
      %v646 = vpop.f32.mrf.mxu0
      %v647 = vadd.f32 0.0, %v646
      %648 = vmatmul.bf16.gmra.mxu0 %v540
      %v649 = vpop.f32.mrf.mxu0
      %v650 = vadd.f32 0.0, %v649
      %v651 = vpop.f32.mrf.mxu0
      %v652 = vadd.f32 0.0, %v651
      %653 = vmatmul.bf16.gmra.mxu0 %v543
      %v654 = vpop.f32.mrf.mxu0
      %v655 = vadd.f32 0.0, %v654
      %v656 = vpop.f32.mrf.mxu0
      %v657 = vadd.f32 0.0, %v656
      %658 = vmatmul.bf16.gmra.mxu0 %v546
      %v659 = vpop.f32.mrf.mxu0
      %v660 = vadd.f32 0.0, %v659
      %v661 = vpop.f32.mrf.mxu0
      %v662 = vadd.f32 0.0, %v661
      %663 = vdwg.mxu0
      %v664 = vlaneseq
      %v665 = vshrl.u32 %v664, 7
      %v666 = vadd.s32 %v665, 8
      %v667 = vadd.s32 %v665, 16
      %v668 = vadd.s32 %v665, 24
      %v669 = vadd.s32 %v665, 32
      %v670 = vadd.s32 %v665, 40
      %v671 = vadd.s32 %v665, 48
      %v672 = vadd.s32 %v665, 56
      %v673 = vld [vmem:[#allocation3] sm:$0xff]
      %v674 = vld [vmem:[#allocation3 + $0x8] sm:$0xff]
      %v675 = vld [vmem:[#allocation3 + $0x10] sm:$0xff]
      %v676 = vld [vmem:[#allocation3 + $0x18] sm:$0xff]
      %v677 = vld [vmem:[#allocation3 + $0x20] sm:$0xff]
      %v678 = vld [vmem:[#allocation3 + $0x28] sm:$0xff]
      %v679 = vld [vmem:[#allocation3 + $0x30] sm:$0xff]
      %v680 = vld [vmem:[#allocation3 + $0x38] sm:$0xff]
      %v681 = vld [vmem:[#allocation3 + $0x40] sm:$0xff]
      %v682 = vld [vmem:[#allocation3 + $0x48] sm:$0xff]
      %v683 = vld [vmem:[#allocation3 + $0x50] sm:$0xff]
      %v684 = vld [vmem:[#allocation3 + $0x58] sm:$0xff]
      %v685 = vld [vmem:[#allocation3 + $0x60] sm:$0xff]
      %v686 = vld [vmem:[#allocation3 + $0x68] sm:$0xff]
      %v687 = vld [vmem:[#allocation3 + $0x70] sm:$0xff]
      %v688 = vld [vmem:[#allocation3 + $0x78] sm:$0xff]
      %v689 = vld [vmem:[%s3] sm:$0xff]
      %v690 = vld [vmem:[%s6] sm:$0x3]
      %vm691 = vcmp.lt.s32.totalorder %v665, 3
      %vm692 = vcmp.lt.s32.totalorder %v666, 3
      %vm693 = vcmp.lt.s32.totalorder %v667, 3
      %vm694 = vcmp.lt.s32.totalorder %v668, 3
      %vm695 = vcmp.lt.s32.totalorder %v669, 3
      %vm696 = vcmp.lt.s32.totalorder %v670, 3
      %vm697 = vcmp.lt.s32.totalorder %v671, 3
      %vm698 = vcmp.lt.s32.totalorder %v672, 3
      %v699 = vsel %vm691, 1, 0
      %v700 = vsel %vm692, 1, 0
      %v701 = vsel %vm693, 1, 0
      %v702 = vsel %vm694, 1, 0
      %v703 = vsel %vm695, 1, 0
      %v704 = vsel %vm696, 1, 0
      %v705 = vsel %vm697, 1, 0
      %v706 = vsel %vm698, 1, 0
      %vm707 = vcmp.eq.s32.totalorder %v699, 1
      %vm708 = vcmp.eq.s32.totalorder %v700, 1
      %vm709 = vcmp.eq.s32.totalorder %v701, 1
      %vm710 = vcmp.eq.s32.totalorder %v702, 1
      %vm711 = vcmp.eq.s32.totalorder %v703, 1
      %vm712 = vcmp.eq.s32.totalorder %v704, 1
      %vm713 = vcmp.eq.s32.totalorder %v705, 1
      %vm714 = vcmp.eq.s32.totalorder %v706, 1
      %v715 = vsel %vm707, %v673, %v587
      %v716 = vsel %vm707, %v674, %v616
      %v717 = vsel %vm708, %v675, %v589
      %v718 = vsel %vm708, %v676, %v618
      %v719 = vsel %vm709, %v677, %v592
      %v720 = vsel %vm709, %v678, %v621
      %v721 = vsel %vm710, %v679, %v594
      %v722 = vsel %vm710, %v680, %v623
      %v723 = vsel %vm711, %v681, %v597
      %v724 = vsel %vm711, %v682, %v626
      %v725 = vsel %vm712, %v683, %v599
      %v726 = vsel %vm712, %v684, %v628
      %v727 = vsel %vm713, %v685, %v602
      %v728 = vsel %vm713, %v686, %v631
      %v729 = vsel %vm714, %v687, %v604
      %v730 = vsel %vm714, %v688, %v633
      %v731 = vrot.slane %v715, 3
      %v732 = vrot.slane %v716, 3
      %v733 = vrot.slane %v717, 3
      %v734 = vrot.slane %v718, 3
      %v735 = vrot.slane %v719, 3
      %v736 = vrot.slane %v720, 3
      %v737 = vrot.slane %v721, 3
      %v738 = vrot.slane %v722, 3
      %v739 = vrot.slane %v723, 3
      %v740 = vrot.slane %v724, 3
      %v741 = vrot.slane %v725, 3
      %v742 = vrot.slane %v726, 3
      %v743 = vrot.slane %v727, 3
      %v744 = vrot.slane %v728, 3
      %v745 = vrot.slane %v729, 3
      %v746 = vrot.slane %v730, 3
      %vm747 = vcmp.lt.s32.totalorder %v665, 5
      %v748 = vsel %vm747, %v743, %v745
      %v749 = vsel %vm747, %v744, %v746
      %v750 = vsel %vm747, %v741, %v743
      %v751 = vsel %vm747, %v742, %v744
      %v752 = vsel %vm747, %v739, %v741
      %v753 = vsel %vm747, %v740, %v742
      %v754 = vsel %vm747, %v737, %v739
      %v755 = vsel %vm747, %v738, %v740
      %v756 = vsel %vm747, %v735, %v737
      %v757 = vsel %vm747, %v736, %v738
      %v758 = vsel %vm747, %v733, %v735
      %v759 = vsel %vm747, %v734, %v736
      %v760 = vsel %vm747, %v731, %v733
      %v761 = vsel %vm747, %v732, %v734
      %v762 = vsel %vm747, %v745, %v731
      %v763 = vsel %vm747, %v746, %v732
      %v765 = vperm.slane %v689, 0
      %v766 = vperm.slane %v689, 4
      %v769 = vperm.slane %v765, 0
      %v770 = vperm.slane %v766, 0
      %v771 = vmul.f32 %v760, %v769
      %v772 = vmul.f32 %v761, %v770
      %v773 = vmul.f32 %v758, %v769
      %v774 = vmul.f32 %v759, %v770
      %v775 = vmul.f32 %v756, %v769
      %v776 = vmul.f32 %v757, %v770
      %v777 = vmul.f32 %v754, %v769
      %v778 = vmul.f32 %v755, %v770
      %v779 = vmul.f32 %v752, %v769
      %v780 = vmul.f32 %v753, %v770
      %v781 = vmul.f32 %v750, %v769
      %v782 = vmul.f32 %v751, %v770
      %v783 = vmul.f32 %v748, %v769
      %v784 = vmul.f32 %v749, %v770
      %v785 = vmul.f32 %v762, %v769
      %v786 = vmul.f32 %v763, %v770
      %v788 = vperm.slane %v690, 0
      %v789 = vperm.slane %v690, 1
      %v792 = vadd.f32 %v788, %v771
      %v793 = vadd.f32 %v789, %v772
      %v794 = vadd.f32 %v788, %v773
      %v795 = vadd.f32 %v789, %v774
      %v796 = vadd.f32 %v788, %v775
      %v797 = vadd.f32 %v789, %v776
      %v798 = vadd.f32 %v788, %v777
      %v799 = vadd.f32 %v789, %v778
      %v800 = vadd.f32 %v788, %v779
      %v801 = vadd.f32 %v789, %v780
      %v802 = vadd.f32 %v788, %v781
      %v803 = vadd.f32 %v789, %v782
      %v804 = vadd.f32 %v788, %v783
      %v805 = vadd.f32 %v789, %v784
      %v806 = vadd.f32 %v788, %v785
      %v807 = vadd.f32 %v789, %v786
      %vm808 = vcmp.lt.s32.totalorder %v665, 2
      %vm809 = vcmp.lt.s32.totalorder %v666, 2
      %vm810 = vcmp.lt.s32.totalorder %v667, 2
      %vm811 = vcmp.lt.s32.totalorder %v668, 2
      %vm812 = vcmp.lt.s32.totalorder %v669, 2
      %vm813 = vcmp.lt.s32.totalorder %v670, 2
      %vm814 = vcmp.lt.s32.totalorder %v671, 2
      %vm815 = vcmp.lt.s32.totalorder %v672, 2
      %v816 = vsel %vm808, 1, 0
      %v817 = vsel %vm809, 1, 0
      %v818 = vsel %vm810, 1, 0
      %v819 = vsel %vm811, 1, 0
      %v820 = vsel %vm812, 1, 0
      %v821 = vsel %vm813, 1, 0
      %v822 = vsel %vm814, 1, 0
      %v823 = vsel %vm815, 1, 0
      %vm824 = vcmp.eq.s32.totalorder %v816, 1
      %vm825 = vcmp.eq.s32.totalorder %v817, 1
      %vm826 = vcmp.eq.s32.totalorder %v818, 1
      %vm827 = vcmp.eq.s32.totalorder %v819, 1
      %vm828 = vcmp.eq.s32.totalorder %v820, 1
      %vm829 = vcmp.eq.s32.totalorder %v821, 1
      %vm830 = vcmp.eq.s32.totalorder %v822, 1
      %vm831 = vcmp.eq.s32.totalorder %v823, 1
      %v832 = vsel %vm824, %v673, %v587
      %v833 = vsel %vm824, %v674, %v616
      %v834 = vsel %vm825, %v675, %v589
      %v835 = vsel %vm825, %v676, %v618
      %v836 = vsel %vm826, %v677, %v592
      %v837 = vsel %vm826, %v678, %v621
      %v838 = vsel %vm827, %v679, %v594
      %v839 = vsel %vm827, %v680, %v623
      %v840 = vsel %vm828, %v681, %v597
      %v841 = vsel %vm828, %v682, %v626
      %v842 = vsel %vm829, %v683, %v599
      %v843 = vsel %vm829, %v684, %v628
      %v844 = vsel %vm830, %v685, %v602
      %v845 = vsel %vm830, %v686, %v631
      %v846 = vsel %vm831, %v687, %v604
      %v847 = vsel %vm831, %v688, %v633
      %v848 = vrot.slane %v832, 2
      %v849 = vrot.slane %v833, 2
      %v850 = vrot.slane %v834, 2
      %v851 = vrot.slane %v835, 2
      %v852 = vrot.slane %v836, 2
      %v853 = vrot.slane %v837, 2
      %v854 = vrot.slane %v838, 2
      %v855 = vrot.slane %v839, 2
      %v856 = vrot.slane %v840, 2
      %v857 = vrot.slane %v841, 2
      %v858 = vrot.slane %v842, 2
      %v859 = vrot.slane %v843, 2
      %v860 = vrot.slane %v844, 2
      %v861 = vrot.slane %v845, 2
      %v862 = vrot.slane %v846, 2
      %v863 = vrot.slane %v847, 2
      %vm864 = vcmp.lt.s32.totalorder %v665, 6
      %v865 = vsel %vm864, %v860, %v862
      %v866 = vsel %vm864, %v861, %v863
      %v867 = vsel %vm864, %v858, %v860
      %v868 = vsel %vm864, %v859, %v861
      %v869 = vsel %vm864, %v856, %v858
      %v870 = vsel %vm864, %v857, %v859
      %v871 = vsel %vm864, %v854, %v856
      %v872 = vsel %vm864, %v855, %v857
      %v873 = vsel %vm864, %v852, %v854
      %v874 = vsel %vm864, %v853, %v855
      %v875 = vsel %vm864, %v850, %v852
      %v876 = vsel %vm864, %v851, %v853
      %v877 = vsel %vm864, %v848, %v850
      %v878 = vsel %vm864, %v849, %v851
      %v879 = vsel %vm864, %v862, %v848
      %v880 = vsel %vm864, %v863, %v849
      %v881 = vperm.slane %v689, 1
      %v882 = vperm.slane %v689, 5
      %v885 = vperm.slane %v881, 1
      %v886 = vperm.slane %v882, 1
      %v887 = vmul.f32 %v877, %v885
      %v888 = vmul.f32 %v878, %v886
      %v889 = vmul.f32 %v875, %v885
      %v890 = vmul.f32 %v876, %v886
      %v891 = vmul.f32 %v873, %v885
      %v892 = vmul.f32 %v874, %v886
      %v893 = vmul.f32 %v871, %v885
      %v894 = vmul.f32 %v872, %v886
      %v895 = vmul.f32 %v869, %v885
      %v896 = vmul.f32 %v870, %v886
      %v897 = vmul.f32 %v867, %v885
      %v898 = vmul.f32 %v868, %v886
      %v899 = vmul.f32 %v865, %v885
      %v900 = vmul.f32 %v866, %v886
      %v901 = vmul.f32 %v879, %v885
      %v902 = vmul.f32 %v880, %v886
      %v903 = vadd.f32 %v792, %v887
      %v904 = vadd.f32 %v793, %v888
      %v905 = vadd.f32 %v794, %v889
      %v906 = vadd.f32 %v795, %v890
      %v907 = vadd.f32 %v796, %v891
      %v908 = vadd.f32 %v797, %v892
      %v909 = vadd.f32 %v798, %v893
      %v910 = vadd.f32 %v799, %v894
      %v911 = vadd.f32 %v800, %v895
      %v912 = vadd.f32 %v801, %v896
      %v913 = vadd.f32 %v802, %v897
      %v914 = vadd.f32 %v803, %v898
      %v915 = vadd.f32 %v804, %v899
      %v916 = vadd.f32 %v805, %v900
      %v917 = vadd.f32 %v806, %v901
      %v918 = vadd.f32 %v807, %v902
      %vm919 = vcmp.lt.s32.totalorder %v665, 1
      %vm920 = vcmp.lt.s32.totalorder %v666, 1
      %vm921 = vcmp.lt.s32.totalorder %v667, 1
      %vm922 = vcmp.lt.s32.totalorder %v668, 1
      %vm923 = vcmp.lt.s32.totalorder %v669, 1
      %vm924 = vcmp.lt.s32.totalorder %v670, 1
      %vm925 = vcmp.lt.s32.totalorder %v671, 1
      %vm926 = vcmp.lt.s32.totalorder %v672, 1
      %v927 = vsel %vm919, 1, 0
      %v928 = vsel %vm920, 1, 0
      %v929 = vsel %vm921, 1, 0
      %v930 = vsel %vm922, 1, 0
      %v931 = vsel %vm923, 1, 0
      %v932 = vsel %vm924, 1, 0
      %v933 = vsel %vm925, 1, 0
      %v934 = vsel %vm926, 1, 0
      %vm935 = vcmp.eq.s32.totalorder %v927, 1
      %vm936 = vcmp.eq.s32.totalorder %v928, 1
      %vm937 = vcmp.eq.s32.totalorder %v929, 1
      %vm938 = vcmp.eq.s32.totalorder %v930, 1
      %vm939 = vcmp.eq.s32.totalorder %v931, 1
      %vm940 = vcmp.eq.s32.totalorder %v932, 1
      %vm941 = vcmp.eq.s32.totalorder %v933, 1
      %vm942 = vcmp.eq.s32.totalorder %v934, 1
      %v943 = vsel %vm935, %v673, %v587
      %v944 = vsel %vm935, %v674, %v616
      %v945 = vsel %vm936, %v675, %v589
      %v946 = vsel %vm936, %v676, %v618
      %v947 = vsel %vm937, %v677, %v592
      %v948 = vsel %vm937, %v678, %v621
      %v949 = vsel %vm938, %v679, %v594
      %v950 = vsel %vm938, %v680, %v623
      %v951 = vsel %vm939, %v681, %v597
      %v952 = vsel %vm939, %v682, %v626
      %v953 = vsel %vm940, %v683, %v599
      %v954 = vsel %vm940, %v684, %v628
      %v955 = vsel %vm941, %v685, %v602
      %v956 = vsel %vm941, %v686, %v631
      %v957 = vsel %vm942, %v687, %v604
      %v958 = vsel %vm942, %v688, %v633
      %v959 = vrot.slane %v943, 1
      %v960 = vrot.slane %v944, 1
      %v961 = vrot.slane %v945, 1
      %v962 = vrot.slane %v946, 1
      %v963 = vrot.slane %v947, 1
      %v964 = vrot.slane %v948, 1
      %v965 = vrot.slane %v949, 1
      %v966 = vrot.slane %v950, 1
      %v967 = vrot.slane %v951, 1
      %v968 = vrot.slane %v952, 1
      %v969 = vrot.slane %v953, 1
      %v970 = vrot.slane %v954, 1
      %v971 = vrot.slane %v955, 1
      %v972 = vrot.slane %v956, 1
      %v973 = vrot.slane %v957, 1
      %v974 = vrot.slane %v958, 1
      %vm975 = vcmp.lt.s32.totalorder %v665, 7
      %v976 = vsel %vm975, %v971, %v973
      %v977 = vsel %vm975, %v972, %v974
      %v978 = vsel %vm975, %v969, %v971
      %v979 = vsel %vm975, %v970, %v972
      %v980 = vsel %vm975, %v967, %v969
      %v981 = vsel %vm975, %v968, %v970
      %v982 = vsel %vm975, %v965, %v967
      %v983 = vsel %vm975, %v966, %v968
      %v984 = vsel %vm975, %v963, %v965
      %v985 = vsel %vm975, %v964, %v966
      %v986 = vsel %vm975, %v961, %v963
      %v987 = vsel %vm975, %v962, %v964
      %v988 = vsel %vm975, %v959, %v961
      %v989 = vsel %vm975, %v960, %v962
      %v990 = vsel %vm975, %v973, %v959
      %v991 = vsel %vm975, %v974, %v960
      %v992 = vperm.slane %v689, 2
      %v993 = vperm.slane %v689, 6
      %v996 = vperm.slane %v992, 2
      %v997 = vperm.slane %v993, 2
      %v998 = vmul.f32 %v988, %v996
      %v999 = vmul.f32 %v989, %v997
      %v1000 = vmul.f32 %v986, %v996
      %v1001 = vmul.f32 %v987, %v997
      %v1002 = vmul.f32 %v984, %v996
      %v1003 = vmul.f32 %v985, %v997
      %v1004 = vmul.f32 %v982, %v996
      %v1005 = vmul.f32 %v983, %v997
      %v1006 = vmul.f32 %v980, %v996
      %v1007 = vmul.f32 %v981, %v997
      %v1008 = vmul.f32 %v978, %v996
      %v1009 = vmul.f32 %v979, %v997
      %v1010 = vmul.f32 %v976, %v996
      %v1011 = vmul.f32 %v977, %v997
      %v1012 = vmul.f32 %v990, %v996
      %v1013 = vmul.f32 %v991, %v997
      %v1014 = vadd.f32 %v903, %v998
      %v1015 = vadd.f32 %v904, %v999
      %v1016 = vadd.f32 %v905, %v1000
      %v1017 = vadd.f32 %v906, %v1001
      %v1018 = vadd.f32 %v907, %v1002
      %v1019 = vadd.f32 %v908, %v1003
      %v1020 = vadd.f32 %v909, %v1004
      %v1021 = vadd.f32 %v910, %v1005
      %v1022 = vadd.f32 %v911, %v1006
      %v1023 = vadd.f32 %v912, %v1007
      %v1024 = vadd.f32 %v913, %v1008
      %v1025 = vadd.f32 %v914, %v1009
      %v1026 = vadd.f32 %v915, %v1010
      %v1027 = vadd.f32 %v916, %v1011
      %v1028 = vadd.f32 %v917, %v1012
      %v1029 = vadd.f32 %v918, %v1013
      %v1030 = vperm.slane %v689, 3
      %v1031 = vperm.slane %v689, 7
      %v1034 = vperm.slane %v1030, 3
      %v1035 = vperm.slane %v1031, 3
      %v1036 = vmul.f32 %v587, %v1034
      %v1037 = vmul.f32 %v616, %v1035
      %v1038 = vmul.f32 %v589, %v1034
      %v1039 = vmul.f32 %v618, %v1035
      %v1040 = vmul.f32 %v592, %v1034
      %v1041 = vmul.f32 %v621, %v1035
      %v1042 = vmul.f32 %v594, %v1034
      %v1043 = vmul.f32 %v623, %v1035
      %v1044 = vmul.f32 %v597, %v1034
      %v1045 = vmul.f32 %v626, %v1035
      %v1046 = vmul.f32 %v599, %v1034
      %v1047 = vmul.f32 %v628, %v1035
      %v1048 = vmul.f32 %v602, %v1034
      %v1049 = vmul.f32 %v631, %v1035
      %v1050 = vmul.f32 %v604, %v1034
      %v1051 = vmul.f32 %v633, %v1035
      %v1052 = vadd.f32 %v1014, %v1036
      %v1053 = vadd.f32 %v1015, %v1037
      %v1054 = vadd.f32 %v1016, %v1038
      %v1055 = vadd.f32 %v1017, %v1039
      %v1056 = vadd.f32 %v1018, %v1040
      %v1057 = vadd.f32 %v1019, %v1041
      %v1058 = vadd.f32 %v1020, %v1042
      %v1059 = vadd.f32 %v1021, %v1043
      %v1060 = vadd.f32 %v1022, %v1044
      %v1061 = vadd.f32 %v1023, %v1045
      %v1062 = vadd.f32 %v1024, %v1046
      %v1063 = vadd.f32 %v1025, %v1047
      %v1064 = vadd.f32 %v1026, %v1048
      %v1065 = vadd.f32 %v1027, %v1049
      %v1066 = vadd.f32 %v1028, %v1050
      %v1067 = vadd.f32 %v1029, %v1051
      %v1068 = vxor.u32 %v1052, 2147483648
      %v1069 = vxor.u32 %v1053, 2147483648
      %v1070 = vxor.u32 %v1054, 2147483648
      %v1071 = vxor.u32 %v1055, 2147483648
      %v1072 = vxor.u32 %v1056, 2147483648
      %v1073 = vxor.u32 %v1057, 2147483648
      %v1074 = vxor.u32 %v1058, 2147483648
      %v1075 = vxor.u32 %v1059, 2147483648
      %v1076 = vxor.u32 %v1060, 2147483648
      %v1077 = vxor.u32 %v1061, 2147483648
      %v1078 = vxor.u32 %v1062, 2147483648
      %v1079 = vxor.u32 %v1063, 2147483648
      %v1080 = vxor.u32 %v1064, 2147483648
      %v1081 = vxor.u32 %v1065, 2147483648
      %v1082 = vxor.u32 %v1066, 2147483648
      %v1083 = vxor.u32 %v1067, 2147483648
      %v1084 = vmul.f32 %v1068, 1.442695
      %v1085 = vpow.pop %v1084
      %v1086 = vmul.f32 %v1069, 1.442695
      %v1087 = vpow.pop %v1086
      %v1088 = vmul.f32 %v1070, 1.442695
      %v1089 = vpow.pop %v1088
      %v1090 = vmul.f32 %v1071, 1.442695
      %v1091 = vpow.pop %v1090
      %v1092 = vmul.f32 %v1072, 1.442695
      %v1093 = vpow.pop %v1092
      %v1094 = vmul.f32 %v1073, 1.442695
      %v1095 = vpow.pop %v1094
      %v1096 = vmul.f32 %v1074, 1.442695
      %v1097 = vpow.pop %v1096
      %v1098 = vmul.f32 %v1075, 1.442695
      %v1099 = vpow.pop %v1098
      %v1100 = vmul.f32 %v1076, 1.442695
      %v1101 = vpow.pop %v1100
      %v1102 = vmul.f32 %v1077, 1.442695
      %v1103 = vpow.pop %v1102
      %v1104 = vmul.f32 %v1078, 1.442695
      %v1105 = vpow.pop %v1104
      %v1106 = vmul.f32 %v1079, 1.442695
      %v1107 = vpow.pop %v1106
      %v1108 = vmul.f32 %v1080, 1.442695
      %v1109 = vpow.pop %v1108
      %v1110 = vmul.f32 %v1081, 1.442695
      %v1111 = vpow.pop %v1110
      %v1112 = vmul.f32 %v1082, 1.442695
      %v1113 = vpow.pop %v1112
      %v1114 = vmul.f32 %v1083, 1.442695
      %v1115 = vpow.pop %v1114
      %v1116 = vadd.f32 %v1085, 1.0
      %v1117 = vadd.f32 %v1087, 1.0
      %v1118 = vadd.f32 %v1089, 1.0
      %v1119 = vadd.f32 %v1091, 1.0
      %v1120 = vadd.f32 %v1093, 1.0
      %v1121 = vadd.f32 %v1095, 1.0
      %v1122 = vadd.f32 %v1097, 1.0
      %v1123 = vadd.f32 %v1099, 1.0
      %v1124 = vadd.f32 %v1101, 1.0
      %v1125 = vadd.f32 %v1103, 1.0
      %v1126 = vadd.f32 %v1105, 1.0
      %v1127 = vadd.f32 %v1107, 1.0
      %v1128 = vadd.f32 %v1109, 1.0
      %v1129 = vadd.f32 %v1111, 1.0
      %v1130 = vadd.f32 %v1113, 1.0
      %v1131 = vadd.f32 %v1115, 1.0
      %v1132 = vrcp.pop %v1116
      %v1133 = vmul.f32 %v1116, %v1132
      %v1134 = vsub.f32 1.0, %v1133
      %v1135 = vmul.f32 %v1132, %v1134
      %v1136 = vadd.f32 %v1132, %v1135
      %vm1137 = vweird.f32 %v1116
      %vm1138 = vweird.f32 %v1132
      %vm1139 = vmor %vm1137, %vm1138
      %v1140 = vsel %vm1139, %v1132, %v1136
      %v1141 = vand.u32 2147483647, %v1116
      %vm1142 = vcmp.eq.f32.partialorder %v1141, 8.507059e+37
      %v1143 = vand.u32 %v1116, 2147483648
      %v1144 = vor.u32 1.1754944e-38, %v1143
      %v1145 = vsel %vm1142, %v1144, %v1140
      %v1146 = vmul.f32 1.0, %v1145
      %v1147 = vrcp.pop %v1117
      %v1148 = vmul.f32 %v1117, %v1147
      %v1149 = vsub.f32 1.0, %v1148
      %v1150 = vmul.f32 %v1147, %v1149
      %v1151 = vadd.f32 %v1147, %v1150
      %vm1152 = vweird.f32 %v1117
      %vm1153 = vweird.f32 %v1147
      %vm1154 = vmor %vm1152, %vm1153
      %v1155 = vsel %vm1154, %v1147, %v1151
      %v1156 = vand.u32 2147483647, %v1117
      %vm1157 = vcmp.eq.f32.partialorder %v1156, 8.507059e+37
      %v1158 = vand.u32 %v1117, 2147483648
      %v1159 = vor.u32 1.1754944e-38, %v1158
      %v1160 = vsel %vm1157, %v1159, %v1155
      %v1161 = vmul.f32 1.0, %v1160
      %v1162 = vrcp.pop %v1118
      %v1163 = vmul.f32 %v1118, %v1162
      %v1164 = vsub.f32 1.0, %v1163
      %v1165 = vmul.f32 %v1162, %v1164
      %v1166 = vadd.f32 %v1162, %v1165
      %vm1167 = vweird.f32 %v1118
      %vm1168 = vweird.f32 %v1162
      %vm1169 = vmor %vm1167, %vm1168
      %v1170 = vsel %vm1169, %v1162, %v1166
      %v1171 = vand.u32 2147483647, %v1118
      %vm1172 = vcmp.eq.f32.partialorder %v1171, 8.507059e+37
      %v1173 = vand.u32 %v1118, 2147483648
      %v1174 = vor.u32 1.1754944e-38, %v1173
      %v1175 = vsel %vm1172, %v1174, %v1170
      %v1176 = vmul.f32 1.0, %v1175
      %v1177 = vrcp.pop %v1119
      %v1178 = vmul.f32 %v1119, %v1177
      %v1179 = vsub.f32 1.0, %v1178
      %v1180 = vmul.f32 %v1177, %v1179
      %v1181 = vadd.f32 %v1177, %v1180
      %vm1182 = vweird.f32 %v1119
      %vm1183 = vweird.f32 %v1177
      %vm1184 = vmor %vm1182, %vm1183
      %v1185 = vsel %vm1184, %v1177, %v1181
      %v1186 = vand.u32 2147483647, %v1119
      %vm1187 = vcmp.eq.f32.partialorder %v1186, 8.507059e+37
      %v1188 = vand.u32 %v1119, 2147483648
      %v1189 = vor.u32 1.1754944e-38, %v1188
      %v1190 = vsel %vm1187, %v1189, %v1185
      %v1191 = vmul.f32 1.0, %v1190
      %v1192 = vrcp.pop %v1120
      %v1193 = vmul.f32 %v1120, %v1192
      %v1194 = vsub.f32 1.0, %v1193
      %v1195 = vmul.f32 %v1192, %v1194
      %v1196 = vadd.f32 %v1192, %v1195
      %vm1197 = vweird.f32 %v1120
      %vm1198 = vweird.f32 %v1192
      %vm1199 = vmor %vm1197, %vm1198
      %v1200 = vsel %vm1199, %v1192, %v1196
      %v1201 = vand.u32 2147483647, %v1120
      %vm1202 = vcmp.eq.f32.partialorder %v1201, 8.507059e+37
      %v1203 = vand.u32 %v1120, 2147483648
      %v1204 = vor.u32 1.1754944e-38, %v1203
      %v1205 = vsel %vm1202, %v1204, %v1200
      %v1206 = vmul.f32 1.0, %v1205
      %v1207 = vrcp.pop %v1121
      %v1208 = vmul.f32 %v1121, %v1207
      %v1209 = vsub.f32 1.0, %v1208
      %v1210 = vmul.f32 %v1207, %v1209
      %v1211 = vadd.f32 %v1207, %v1210
      %vm1212 = vweird.f32 %v1121
      %vm1213 = vweird.f32 %v1207
      %vm1214 = vmor %vm1212, %vm1213
      %v1215 = vsel %vm1214, %v1207, %v1211
      %v1216 = vand.u32 2147483647, %v1121
      %vm1217 = vcmp.eq.f32.partialorder %v1216, 8.507059e+37
      %v1218 = vand.u32 %v1121, 2147483648
      %v1219 = vor.u32 1.1754944e-38, %v1218
      %v1220 = vsel %vm1217, %v1219, %v1215
      %v1221 = vmul.f32 1.0, %v1220
      %v1222 = vrcp.pop %v1122
      %v1223 = vmul.f32 %v1122, %v1222
      %v1224 = vsub.f32 1.0, %v1223
      %v1225 = vmul.f32 %v1222, %v1224
      %v1226 = vadd.f32 %v1222, %v1225
      %vm1227 = vweird.f32 %v1122
      %vm1228 = vweird.f32 %v1222
      %vm1229 = vmor %vm1227, %vm1228
      %v1230 = vsel %vm1229, %v1222, %v1226
      %v1231 = vand.u32 2147483647, %v1122
      %vm1232 = vcmp.eq.f32.partialorder %v1231, 8.507059e+37
      %v1233 = vand.u32 %v1122, 2147483648
      %v1234 = vor.u32 1.1754944e-38, %v1233
      %v1235 = vsel %vm1232, %v1234, %v1230
      %v1236 = vmul.f32 1.0, %v1235
      %v1237 = vrcp.pop %v1123
      %v1238 = vmul.f32 %v1123, %v1237
      %v1239 = vsub.f32 1.0, %v1238
      %v1240 = vmul.f32 %v1237, %v1239
      %v1241 = vadd.f32 %v1237, %v1240
      %vm1242 = vweird.f32 %v1123
      %vm1243 = vweird.f32 %v1237
      %vm1244 = vmor %vm1242, %vm1243
      %v1245 = vsel %vm1244, %v1237, %v1241
      %v1246 = vand.u32 2147483647, %v1123
      %vm1247 = vcmp.eq.f32.partialorder %v1246, 8.507059e+37
      %v1248 = vand.u32 %v1123, 2147483648
      %v1249 = vor.u32 1.1754944e-38, %v1248
      %v1250 = vsel %vm1247, %v1249, %v1245
      %v1251 = vmul.f32 1.0, %v1250
      %v1252 = vrcp.pop %v1124
      %v1253 = vmul.f32 %v1124, %v1252
      %v1254 = vsub.f32 1.0, %v1253
      %v1255 = vmul.f32 %v1252, %v1254
      %v1256 = vadd.f32 %v1252, %v1255
      %vm1257 = vweird.f32 %v1124
      %vm1258 = vweird.f32 %v1252
      %vm1259 = vmor %vm1257, %vm1258
      %v1260 = vsel %vm1259, %v1252, %v1256
      %v1261 = vand.u32 2147483647, %v1124
      %vm1262 = vcmp.eq.f32.partialorder %v1261, 8.507059e+37
      %v1263 = vand.u32 %v1124, 2147483648
      %v1264 = vor.u32 1.1754944e-38, %v1263
      %v1265 = vsel %vm1262, %v1264, %v1260
      %v1266 = vmul.f32 1.0, %v1265
      %v1267 = vrcp.pop %v1125
      %v1268 = vmul.f32 %v1125, %v1267
      %v1269 = vsub.f32 1.0, %v1268
      %v1270 = vmul.f32 %v1267, %v1269
      %v1271 = vadd.f32 %v1267, %v1270
      %vm1272 = vweird.f32 %v1125
      %vm1273 = vweird.f32 %v1267
      %vm1274 = vmor %vm1272, %vm1273
      %v1275 = vsel %vm1274, %v1267, %v1271
      %v1276 = vand.u32 2147483647, %v1125
      %vm1277 = vcmp.eq.f32.partialorder %v1276, 8.507059e+37
      %v1278 = vand.u32 %v1125, 2147483648
      %v1279 = vor.u32 1.1754944e-38, %v1278
      %v1280 = vsel %vm1277, %v1279, %v1275
      %v1281 = vmul.f32 1.0, %v1280
      %v1282 = vrcp.pop %v1126
      %v1283 = vmul.f32 %v1126, %v1282
      %v1284 = vsub.f32 1.0, %v1283
      %v1285 = vmul.f32 %v1282, %v1284
      %v1286 = vadd.f32 %v1282, %v1285
      %vm1287 = vweird.f32 %v1126
      %vm1288 = vweird.f32 %v1282
      %vm1289 = vmor %vm1287, %vm1288
      %v1290 = vsel %vm1289, %v1282, %v1286
      %v1291 = vand.u32 2147483647, %v1126
      %vm1292 = vcmp.eq.f32.partialorder %v1291, 8.507059e+37
      %v1293 = vand.u32 %v1126, 2147483648
      %v1294 = vor.u32 1.1754944e-38, %v1293
      %v1295 = vsel %vm1292, %v1294, %v1290
      %v1296 = vmul.f32 1.0, %v1295
      %v1297 = vrcp.pop %v1127
      %v1298 = vmul.f32 %v1127, %v1297
      %v1299 = vsub.f32 1.0, %v1298
      %v1300 = vmul.f32 %v1297, %v1299
      %v1301 = vadd.f32 %v1297, %v1300
      %vm1302 = vweird.f32 %v1127
      %vm1303 = vweird.f32 %v1297
      %vm1304 = vmor %vm1302, %vm1303
      %v1305 = vsel %vm1304, %v1297, %v1301
      %v1306 = vand.u32 2147483647, %v1127
      %vm1307 = vcmp.eq.f32.partialorder %v1306, 8.507059e+37
      %v1308 = vand.u32 %v1127, 2147483648
      %v1309 = vor.u32 1.1754944e-38, %v1308
      %v1310 = vsel %vm1307, %v1309, %v1305
      %v1311 = vmul.f32 1.0, %v1310
      %v1312 = vrcp.pop %v1128
      %v1313 = vmul.f32 %v1128, %v1312
      %v1314 = vsub.f32 1.0, %v1313
      %v1315 = vmul.f32 %v1312, %v1314
      %v1316 = vadd.f32 %v1312, %v1315
      %vm1317 = vweird.f32 %v1128
      %vm1318 = vweird.f32 %v1312
      %vm1319 = vmor %vm1317, %vm1318
      %v1320 = vsel %vm1319, %v1312, %v1316
      %v1321 = vand.u32 2147483647, %v1128
      %vm1322 = vcmp.eq.f32.partialorder %v1321, 8.507059e+37
      %v1323 = vand.u32 %v1128, 2147483648
      %v1324 = vor.u32 1.1754944e-38, %v1323
      %v1325 = vsel %vm1322, %v1324, %v1320
      %v1326 = vmul.f32 1.0, %v1325
      %v1327 = vrcp.pop %v1129
      %v1328 = vmul.f32 %v1129, %v1327
      %v1329 = vsub.f32 1.0, %v1328
      %v1330 = vmul.f32 %v1327, %v1329
      %v1331 = vadd.f32 %v1327, %v1330
      %vm1332 = vweird.f32 %v1129
      %vm1333 = vweird.f32 %v1327
      %vm1334 = vmor %vm1332, %vm1333
      %v1335 = vsel %vm1334, %v1327, %v1331
      %v1336 = vand.u32 2147483647, %v1129
      %vm1337 = vcmp.eq.f32.partialorder %v1336, 8.507059e+37
      %v1338 = vand.u32 %v1129, 2147483648
      %v1339 = vor.u32 1.1754944e-38, %v1338
      %v1340 = vsel %vm1337, %v1339, %v1335
      %v1341 = vmul.f32 1.0, %v1340
      %v1342 = vrcp.pop %v1130
      %v1343 = vmul.f32 %v1130, %v1342
      %v1344 = vsub.f32 1.0, %v1343
      %v1345 = vmul.f32 %v1342, %v1344
      %v1346 = vadd.f32 %v1342, %v1345
      %vm1347 = vweird.f32 %v1130
      %vm1348 = vweird.f32 %v1342
      %vm1349 = vmor %vm1347, %vm1348
      %v1350 = vsel %vm1349, %v1342, %v1346
      %v1351 = vand.u32 2147483647, %v1130
      %vm1352 = vcmp.eq.f32.partialorder %v1351, 8.507059e+37
      %v1353 = vand.u32 %v1130, 2147483648
      %v1354 = vor.u32 1.1754944e-38, %v1353
      %v1355 = vsel %vm1352, %v1354, %v1350
      %v1356 = vmul.f32 1.0, %v1355
      %v1357 = vrcp.pop %v1131
      %v1358 = vmul.f32 %v1131, %v1357
      %v1359 = vsub.f32 1.0, %v1358
      %v1360 = vmul.f32 %v1357, %v1359
      %v1361 = vadd.f32 %v1357, %v1360
      %vm1362 = vweird.f32 %v1131
      %vm1363 = vweird.f32 %v1357
      %vm1364 = vmor %vm1362, %vm1363
      %v1365 = vsel %vm1364, %v1357, %v1361
      %v1366 = vand.u32 2147483647, %v1131
      %vm1367 = vcmp.eq.f32.partialorder %v1366, 8.507059e+37
      %v1368 = vand.u32 %v1131, 2147483648
      %v1369 = vor.u32 1.1754944e-38, %v1368
      %v1370 = vsel %vm1367, %v1369, %v1365
      %v1371 = vmul.f32 1.0, %v1370
      %v1372 = vmul.f32 %v1052, %v1146
      %v1373 = vmul.f32 %v1053, %v1161
      %v1374 = vmul.f32 %v1054, %v1176
      %v1375 = vmul.f32 %v1055, %v1191
      %v1376 = vmul.f32 %v1056, %v1206
      %v1377 = vmul.f32 %v1057, %v1221
      %v1378 = vmul.f32 %v1058, %v1236
      %v1379 = vmul.f32 %v1059, %v1251
      %v1380 = vmul.f32 %v1060, %v1266
      %v1381 = vmul.f32 %v1061, %v1281
      %v1382 = vmul.f32 %v1062, %v1296
      %v1383 = vmul.f32 %v1063, %v1311
      %v1384 = vmul.f32 %v1064, %v1326
      %v1385 = vmul.f32 %v1065, %v1341
      %v1386 = vmul.f32 %v1066, %v1356
      %v1387 = vmul.f32 %v1067, %v1371
      %v1388 = vsel %vm707, %v587, 0.0
      %v1389 = vsel %vm707, %v616, 0.0
      %v1390 = vsel %vm708, %v589, 0.0
      %v1391 = vsel %vm708, %v618, 0.0
      %v1392 = vsel %vm709, %v592, 0.0
      %v1393 = vsel %vm709, %v621, 0.0
      %v1394 = vsel %vm710, %v594, 0.0
      %v1395 = vsel %vm710, %v623, 0.0
      %v1396 = vsel %vm711, %v597, 0.0
      %v1397 = vsel %vm711, %v626, 0.0
      %v1398 = vsel %vm712, %v599, 0.0
      %v1399 = vsel %vm712, %v628, 0.0
      %v1400 = vsel %vm713, %v602, 0.0
      %v1401 = vsel %vm713, %v631, 0.0
      %v1402 = vsel %vm714, %v604, 0.0
      %v1403 = vsel %vm714, %v633, 0.0
      %1404 = vst [vmem:[#allocation3] sm:$0xff] %v1388
      %vm1405 = vcmask 261120
      %1406 = vst.msk [vmem:[#allocation3 + $0x8] sm:$0xff] %vm1405, %v1389
      %1407 = vst [vmem:[#allocation3 + $0x10] sm:$0xff] %v1390
      %1408 = vst.msk [vmem:[#allocation3 + $0x18] sm:$0xff] %vm1405, %v1391
      %1409 = vst [vmem:[#allocation3 + $0x20] sm:$0xff] %v1392
      %1410 = vst.msk [vmem:[#allocation3 + $0x28] sm:$0xff] %vm1405, %v1393
      %1411 = vst [vmem:[#allocation3 + $0x30] sm:$0xff] %v1394
      %1412 = vst.msk [vmem:[#allocation3 + $0x38] sm:$0xff] %vm1405, %v1395
      %1413 = vst [vmem:[#allocation3 + $0x40] sm:$0xff] %v1396
      %1414 = vst.msk [vmem:[#allocation3 + $0x48] sm:$0xff] %vm1405, %v1397
      %1415 = vst [vmem:[#allocation3 + $0x50] sm:$0xff] %v1398
      %1416 = vst.msk [vmem:[#allocation3 + $0x58] sm:$0xff] %vm1405, %v1399
      %1417 = vst [vmem:[#allocation3 + $0x60] sm:$0xff] %v1400
      %1418 = vst.msk [vmem:[#allocation3 + $0x68] sm:$0xff] %vm1405, %v1401
      %1419 = vst [vmem:[#allocation3 + $0x70] sm:$0xff] %v1402
      %1420 = vst.msk [vmem:[#allocation3 + $0x78] sm:$0xff] %vm1405, %v1403
      %v1421 = vld [vmem:[%s5] sm:$0x7]
      %v1422 = vperm.slane %v1421, 2
      %v1423 = vadd.f32 %v645, %v1422
      %v1424 = vadd.f32 %v647, %v1422
      %v1425 = vadd.f32 %v650, %v1422
      %v1426 = vadd.f32 %v652, %v1422
      %v1427 = vadd.f32 %v655, %v1422
      %v1428 = vadd.f32 %v657, %v1422
      %v1429 = vadd.f32 %v660, %v1422
      %v1430 = vadd.f32 %v662, %v1422
      %v1431 = vmax.f32 %v1423, 0.0
      %v1432 = vmax.f32 %v1424, 0.0
      %v1433 = vmax.f32 %v1425, 0.0
      %v1434 = vmax.f32 %v1426, 0.0
      %v1435 = vmax.f32 %v1427, 0.0
      %v1436 = vmax.f32 %v1428, 0.0
      %v1437 = vmax.f32 %v1429, 0.0
      %v1438 = vmax.f32 %v1430, 0.0
      %v1439 = vand.u32 2147483647, %v1423
      %v1440 = vand.u32 2147483647, %v1424
      %v1441 = vand.u32 2147483647, %v1425
      %v1442 = vand.u32 2147483647, %v1426
      %v1443 = vand.u32 2147483647, %v1427
      %v1444 = vand.u32 2147483647, %v1428
      %v1445 = vand.u32 2147483647, %v1429
      %v1446 = vand.u32 2147483647, %v1430
      %v1447 = vsub.f32 0.0, %v1439
      %v1448 = vsub.f32 0.0, %v1440
      %v1449 = vsub.f32 0.0, %v1441
      %v1450 = vsub.f32 0.0, %v1442
      %v1451 = vsub.f32 0.0, %v1443
      %v1452 = vsub.f32 0.0, %v1444
      %v1453 = vsub.f32 0.0, %v1445
      %v1454 = vsub.f32 0.0, %v1446
      %v1455 = vmul.f32 %v1447, 1.442695
      %v1456 = vpow.pop %v1455
      %v1457 = vmul.f32 %v1448, 1.442695
      %v1458 = vpow.pop %v1457
      %v1459 = vmul.f32 %v1449, 1.442695
      %v1460 = vpow.pop %v1459
      %v1461 = vmul.f32 %v1450, 1.442695
      %v1462 = vpow.pop %v1461
      %v1463 = vmul.f32 %v1451, 1.442695
      %v1464 = vpow.pop %v1463
      %v1465 = vmul.f32 %v1452, 1.442695
      %v1466 = vpow.pop %v1465
      %v1467 = vmul.f32 %v1453, 1.442695
      %v1468 = vpow.pop %v1467
      %v1469 = vmul.f32 %v1454, 1.442695
      %v1470 = vpow.pop %v1469
      %v1471 = vadd.f32 %v1456, 1.0
      %v1472 = vlog2.pop %v1471
      %v1473 = vmul.f32 %v1472, 0.6931472
      %v1474 = vmul.f32 -0.5, %v1456
      %v1475 = vadd.f32 %v1474, 1.0
      %v1476 = vmul.f32 %v1475, %v1456
      %v1477 = vand.u32 2147483647, %v1456
      %vm1478 = vcmp.lt.f32.partialorder %v1477, 0.0004427343
      %v1479 = vsel %vm1478, %v1476, %v1473
      %v1480 = vadd.f32 %v1458, 1.0
      %v1481 = vlog2.pop %v1480
      %v1482 = vmul.f32 %v1481, 0.6931472
      %v1483 = vmul.f32 -0.5, %v1458
      %v1484 = vadd.f32 %v1483, 1.0
      %v1485 = vmul.f32 %v1484, %v1458
      %v1486 = vand.u32 2147483647, %v1458
      %vm1487 = vcmp.lt.f32.partialorder %v1486, 0.0004427343
      %v1488 = vsel %vm1487, %v1485, %v1482
      %v1489 = vadd.f32 %v1460, 1.0
      %v1490 = vlog2.pop %v1489
      %v1491 = vmul.f32 %v1490, 0.6931472
      %v1492 = vmul.f32 -0.5, %v1460
      %v1493 = vadd.f32 %v1492, 1.0
      %v1494 = vmul.f32 %v1493, %v1460
      %v1495 = vand.u32 2147483647, %v1460
      %vm1496 = vcmp.lt.f32.partialorder %v1495, 0.0004427343
      %v1497 = vsel %vm1496, %v1494, %v1491
      %v1498 = vadd.f32 %v1462, 1.0
      %v1499 = vlog2.pop %v1498
      %v1500 = vmul.f32 %v1499, 0.6931472
      %v1501 = vmul.f32 -0.5, %v1462
      %v1502 = vadd.f32 %v1501, 1.0
      %v1503 = vmul.f32 %v1502, %v1462
      %v1504 = vand.u32 2147483647, %v1462
      %vm1505 = vcmp.lt.f32.partialorder %v1504, 0.0004427343
      %v1506 = vsel %vm1505, %v1503, %v1500
      %v1507 = vadd.f32 %v1464, 1.0
      %v1508 = vlog2.pop %v1507
      %v1509 = vmul.f32 %v1508, 0.6931472
      %v1510 = vmul.f32 -0.5, %v1464
      %v1511 = vadd.f32 %v1510, 1.0
      %v1512 = vmul.f32 %v1511, %v1464
      %v1513 = vand.u32 2147483647, %v1464
      %vm1514 = vcmp.lt.f32.partialorder %v1513, 0.0004427343
      %v1515 = vsel %vm1514, %v1512, %v1509
      %v1516 = vadd.f32 %v1466, 1.0
      %v1517 = vlog2.pop %v1516
      %v1518 = vmul.f32 %v1517, 0.6931472
      %v1519 = vmul.f32 -0.5, %v1466
      %v1520 = vadd.f32 %v1519, 1.0
      %v1521 = vmul.f32 %v1520, %v1466
      %v1522 = vand.u32 2147483647, %v1466
      %vm1523 = vcmp.lt.f32.partialorder %v1522, 0.0004427343
      %v1524 = vsel %vm1523, %v1521, %v1518
      %v1525 = vadd.f32 %v1468, 1.0
      %v1526 = vlog2.pop %v1525
      %v1527 = vmul.f32 %v1526, 0.6931472
      %v1528 = vmul.f32 -0.5, %v1468
      %v1529 = vadd.f32 %v1528, 1.0
      %v1530 = vmul.f32 %v1529, %v1468
      %v1531 = vand.u32 2147483647, %v1468
      %vm1532 = vcmp.lt.f32.partialorder %v1531, 0.0004427343
      %v1533 = vsel %vm1532, %v1530, %v1527
      %v1534 = vadd.f32 %v1470, 1.0
      %v1535 = vlog2.pop %v1534
      %v1536 = vmul.f32 %v1535, 0.6931472
      %v1537 = vmul.f32 -0.5, %v1470
      %v1538 = vadd.f32 %v1537, 1.0
      %v1539 = vmul.f32 %v1538, %v1470
      %v1540 = vand.u32 2147483647, %v1470
      %vm1541 = vcmp.lt.f32.partialorder %v1540, 0.0004427343
      %v1542 = vsel %vm1541, %v1539, %v1536
      %v1543 = vadd.f32 %v1431, %v1479
      %v1544 = vadd.f32 %v1432, %v1488
      %v1545 = vadd.f32 %v1433, %v1497
      %v1546 = vadd.f32 %v1434, %v1506
      %v1547 = vadd.f32 %v1435, %v1515
      %v1548 = vadd.f32 %v1436, %v1524
      %v1549 = vadd.f32 %v1437, %v1533
      %v1550 = vadd.f32 %v1438, %v1542
      %vm1551 = vcmp.ge.s32.totalorder %v665, 1
      %vm1552 = vcmp.ge.s32.totalorder %v666, 1
      %vm1553 = vcmp.ge.s32.totalorder %v667, 1
      %vm1554 = vcmp.ge.s32.totalorder %v668, 1
      %vm1555 = vcmp.ge.s32.totalorder %v669, 1
      %vm1556 = vcmp.ge.s32.totalorder %v670, 1
      %vm1557 = vcmp.ge.s32.totalorder %v671, 1
      %vm1558 = vcmp.ge.s32.totalorder %v672, 1
      %v1559 = vrot.slane %v1543, 7
      %v1560 = vrot.slane %v1544, 7
      %v1561 = vrot.slane %v1545, 7
      %v1562 = vrot.slane %v1546, 7
      %v1563 = vrot.slane %v1547, 7
      %v1564 = vrot.slane %v1548, 7
      %v1565 = vrot.slane %v1549, 7
      %v1566 = vrot.slane %v1550, 7
      %v1567 = vsel %vm919, %v1565, %v1566
      %v1568 = vsel %vm919, %v1564, %v1565
      %v1569 = vsel %vm919, %v1563, %v1564
      %v1570 = vsel %vm919, %v1562, %v1563
      %v1571 = vsel %vm919, %v1561, %v1562
      %v1572 = vsel %vm919, %v1560, %v1561
      %v1573 = vsel %vm919, %v1559, %v1560
      %v1574 = vsel %vm919, %v1566, %v1559
      %v1575 = vsel %vm1551, 1, 0
      %v1576 = vsel %vm1552, 1, 0
      %v1577 = vsel %vm1553, 1, 0
      %v1578 = vsel %vm1554, 1, 0
      %v1579 = vsel %vm1555, 1, 0
      %v1580 = vsel %vm1556, 1, 0
      %v1581 = vsel %vm1557, 1, 0
      %v1582 = vsel %vm1558, 1, 0
      %vm1583 = vcmp.eq.s32.totalorder %v1575, 1
      %vm1584 = vcmp.eq.s32.totalorder %v1576, 1
      %vm1585 = vcmp.eq.s32.totalorder %v1577, 1
      %vm1586 = vcmp.eq.s32.totalorder %v1578, 1
      %vm1587 = vcmp.eq.s32.totalorder %v1579, 1
      %vm1588 = vcmp.eq.s32.totalorder %v1580, 1
      %vm1589 = vcmp.eq.s32.totalorder %v1581, 1
      %vm1590 = vcmp.eq.s32.totalorder %v1582, 1
      %v1591 = vsel %vm1583, %v1574, 0.0
      %v1592 = vsel %vm1584, %v1573, 0.0
      %v1593 = vsel %vm1585, %v1572, 0.0
      %v1594 = vsel %vm1586, %v1571, 0.0
      %v1595 = vsel %vm1587, %v1570, 0.0
      %v1596 = vsel %vm1588, %v1569, 0.0
      %v1597 = vsel %vm1589, %v1568, 0.0
      %v1598 = vsel %vm1590, %v1567, 0.0
      %v1599 = vadd.f32 %v1543, %v1591
      %v1600 = vadd.f32 %v1544, %v1592
      %v1601 = vadd.f32 %v1545, %v1593
      %v1602 = vadd.f32 %v1546, %v1594
      %v1603 = vadd.f32 %v1547, %v1595
      %v1604 = vadd.f32 %v1548, %v1596
      %v1605 = vadd.f32 %v1549, %v1597
      %v1606 = vadd.f32 %v1550, %v1598
      %vm1607 = vcmp.ge.s32.totalorder %v665, 2
      %vm1608 = vcmp.ge.s32.totalorder %v666, 2
      %vm1609 = vcmp.ge.s32.totalorder %v667, 2
      %vm1610 = vcmp.ge.s32.totalorder %v668, 2
      %vm1611 = vcmp.ge.s32.totalorder %v669, 2
      %vm1612 = vcmp.ge.s32.totalorder %v670, 2
      %vm1613 = vcmp.ge.s32.totalorder %v671, 2
      %vm1614 = vcmp.ge.s32.totalorder %v672, 2
      %v1615 = vrot.slane %v1599, 6
      %v1616 = vrot.slane %v1600, 6
      %v1617 = vrot.slane %v1601, 6
      %v1618 = vrot.slane %v1602, 6
      %v1619 = vrot.slane %v1603, 6
      %v1620 = vrot.slane %v1604, 6
      %v1621 = vrot.slane %v1605, 6
      %v1622 = vrot.slane %v1606, 6
      %v1623 = vsel %vm808, %v1621, %v1622
      %v1624 = vsel %vm808, %v1620, %v1621
      %v1625 = vsel %vm808, %v1619, %v1620
      %v1626 = vsel %vm808, %v1618, %v1619
      %v1627 = vsel %vm808, %v1617, %v1618
      %v1628 = vsel %vm808, %v1616, %v1617
      %v1629 = vsel %vm808, %v1615, %v1616
      %v1630 = vsel %vm808, %v1622, %v1615
      %v1631 = vsel %vm1607, 1, 0
      %v1632 = vsel %vm1608, 1, 0
      %v1633 = vsel %vm1609, 1, 0
      %v1634 = vsel %vm1610, 1, 0
      %v1635 = vsel %vm1611, 1, 0
      %v1636 = vsel %vm1612, 1, 0
      %v1637 = vsel %vm1613, 1, 0
      %v1638 = vsel %vm1614, 1, 0
      %vm1639 = vcmp.eq.s32.totalorder %v1631, 1
      %vm1640 = vcmp.eq.s32.totalorder %v1632, 1
      %vm1641 = vcmp.eq.s32.totalorder %v1633, 1
      %vm1642 = vcmp.eq.s32.totalorder %v1634, 1
      %vm1643 = vcmp.eq.s32.totalorder %v1635, 1
      %vm1644 = vcmp.eq.s32.totalorder %v1636, 1
      %vm1645 = vcmp.eq.s32.totalorder %v1637, 1
      %vm1646 = vcmp.eq.s32.totalorder %v1638, 1
      %v1647 = vsel %vm1639, %v1630, 0.0
      %v1648 = vsel %vm1640, %v1629, 0.0
      %v1649 = vsel %vm1641, %v1628, 0.0
      %v1650 = vsel %vm1642, %v1627, 0.0
      %v1651 = vsel %vm1643, %v1626, 0.0
      %v1652 = vsel %vm1644, %v1625, 0.0
      %v1653 = vsel %vm1645, %v1624, 0.0
      %v1654 = vsel %vm1646, %v1623, 0.0
      %v1655 = vadd.f32 %v1599, %v1647
      %v1656 = vadd.f32 %v1600, %v1648
      %v1657 = vadd.f32 %v1601, %v1649
      %v1658 = vadd.f32 %v1602, %v1650
      %v1659 = vadd.f32 %v1603, %v1651
      %v1660 = vadd.f32 %v1604, %v1652
      %v1661 = vadd.f32 %v1605, %v1653
      %v1662 = vadd.f32 %v1606, %v1654
      %vm1663 = vcmp.ge.s32.totalorder %v665, 4
      %vm1664 = vcmp.ge.s32.totalorder %v666, 4
      %vm1665 = vcmp.ge.s32.totalorder %v667, 4
      %vm1666 = vcmp.ge.s32.totalorder %v668, 4
      %vm1667 = vcmp.ge.s32.totalorder %v669, 4
      %vm1668 = vcmp.ge.s32.totalorder %v670, 4
      %vm1669 = vcmp.ge.s32.totalorder %v671, 4
      %vm1670 = vcmp.ge.s32.totalorder %v672, 4
      %v1671 = vrot.slane %v1655, 4
      %v1672 = vrot.slane %v1656, 4
      %v1673 = vrot.slane %v1657, 4
      %v1674 = vrot.slane %v1658, 4
      %v1675 = vrot.slane %v1659, 4
      %v1676 = vrot.slane %v1660, 4
      %v1677 = vrot.slane %v1661, 4
      %v1678 = vrot.slane %v1662, 4
      %vm1679 = vcmp.lt.s32.totalorder %v665, 4
      %v1680 = vsel %vm1679, %v1677, %v1678
      %v1681 = vsel %vm1679, %v1676, %v1677
      %v1682 = vsel %vm1679, %v1675, %v1676
      %v1683 = vsel %vm1679, %v1674, %v1675
      %v1684 = vsel %vm1679, %v1673, %v1674
      %v1685 = vsel %vm1679, %v1672, %v1673
      %v1686 = vsel %vm1679, %v1671, %v1672
      %v1687 = vsel %vm1679, %v1678, %v1671
      %v1688 = vsel %vm1663, 1, 0
      %v1689 = vsel %vm1664, 1, 0
      %v1690 = vsel %vm1665, 1, 0
      %v1691 = vsel %vm1666, 1, 0
      %v1692 = vsel %vm1667, 1, 0
      %v1693 = vsel %vm1668, 1, 0
      %v1694 = vsel %vm1669, 1, 0
      %v1695 = vsel %vm1670, 1, 0
      %vm1696 = vcmp.eq.s32.totalorder %v1688, 1
      %vm1697 = vcmp.eq.s32.totalorder %v1689, 1
      %vm1698 = vcmp.eq.s32.totalorder %v1690, 1
      %vm1699 = vcmp.eq.s32.totalorder %v1691, 1
      %vm1700 = vcmp.eq.s32.totalorder %v1692, 1
      %vm1701 = vcmp.eq.s32.totalorder %v1693, 1
      %vm1702 = vcmp.eq.s32.totalorder %v1694, 1
      %vm1703 = vcmp.eq.s32.totalorder %v1695, 1
      %v1704 = vsel %vm1696, %v1687, 0.0
      %v1705 = vsel %vm1697, %v1686, 0.0
      %v1706 = vsel %vm1698, %v1685, 0.0
      %v1707 = vsel %vm1699, %v1684, 0.0
      %v1708 = vsel %vm1700, %v1683, 0.0
      %v1709 = vsel %vm1701, %v1682, 0.0
      %v1710 = vsel %vm1702, %v1681, 0.0
      %v1711 = vsel %vm1703, %v1680, 0.0
      %v1712 = vadd.f32 %v1655, %v1704
      %v1713 = vadd.f32 %v1656, %v1705
      %v1714 = vadd.f32 %v1657, %v1706
      %v1715 = vadd.f32 %v1658, %v1707
      %v1716 = vadd.f32 %v1659, %v1708
      %v1717 = vadd.f32 %v1660, %v1709
      %v1718 = vadd.f32 %v1661, %v1710
      %v1719 = vadd.f32 %v1662, %v1711
      %vm1720 = vcmp.ge.s32.totalorder %v665, 8
      %vm1721 = vcmp.ge.s32.totalorder %v666, 8
      %vm1722 = vcmp.ge.s32.totalorder %v667, 8
      %vm1723 = vcmp.ge.s32.totalorder %v668, 8
      %vm1724 = vcmp.ge.s32.totalorder %v669, 8
      %vm1725 = vcmp.ge.s32.totalorder %v670, 8
      %vm1726 = vcmp.ge.s32.totalorder %v671, 8
      %vm1727 = vcmp.ge.s32.totalorder %v672, 8
      %v1728 = vsel %vm1720, 1, 0
      %v1729 = vsel %vm1721, 1, 0
      %v1730 = vsel %vm1722, 1, 0
      %v1731 = vsel %vm1723, 1, 0
      %v1732 = vsel %vm1724, 1, 0
      %v1733 = vsel %vm1725, 1, 0
      %v1734 = vsel %vm1726, 1, 0
      %v1735 = vsel %vm1727, 1, 0
      %vm1736 = vcmp.eq.s32.totalorder %v1728, 1
      %vm1737 = vcmp.eq.s32.totalorder %v1729, 1
      %vm1738 = vcmp.eq.s32.totalorder %v1730, 1
      %vm1739 = vcmp.eq.s32.totalorder %v1731, 1
      %vm1740 = vcmp.eq.s32.totalorder %v1732, 1
      %vm1741 = vcmp.eq.s32.totalorder %v1733, 1
      %vm1742 = vcmp.eq.s32.totalorder %v1734, 1
      %vm1743 = vcmp.eq.s32.totalorder %v1735, 1
      %v1744 = vsel %vm1736, %v1719, 0.0
      %v1745 = vsel %vm1737, %v1712, 0.0
      %v1746 = vsel %vm1738, %v1713, 0.0
      %v1747 = vsel %vm1739, %v1714, 0.0
      %v1748 = vsel %vm1740, %v1715, 0.0
      %v1749 = vsel %vm1741, %v1716, 0.0
      %v1750 = vsel %vm1742, %v1717, 0.0
      %v1751 = vsel %vm1743, %v1718, 0.0
      %v1752 = vadd.f32 %v1712, %v1744
      %v1753 = vadd.f32 %v1713, %v1745
      %v1754 = vadd.f32 %v1714, %v1746
      %v1755 = vadd.f32 %v1715, %v1747
      %v1756 = vadd.f32 %v1716, %v1748
      %v1757 = vadd.f32 %v1717, %v1749
      %v1758 = vadd.f32 %v1718, %v1750
      %v1759 = vadd.f32 %v1719, %v1751
      %vm1760 = vcmp.ge.s32.totalorder %v665, 16
      %vm1761 = vcmp.ge.s32.totalorder %v666, 16
      %vm1762 = vcmp.ge.s32.totalorder %v667, 16
      %vm1763 = vcmp.ge.s32.totalorder %v668, 16
      %vm1764 = vcmp.ge.s32.totalorder %v669, 16
      %vm1765 = vcmp.ge.s32.totalorder %v670, 16
      %vm1766 = vcmp.ge.s32.totalorder %v671, 16
      %vm1767 = vcmp.ge.s32.totalorder %v672, 16
      %v1768 = vsel %vm1760, 1, 0
      %v1769 = vsel %vm1761, 1, 0
      %v1770 = vsel %vm1762, 1, 0
      %v1771 = vsel %vm1763, 1, 0
      %v1772 = vsel %vm1764, 1, 0
      %v1773 = vsel %vm1765, 1, 0
      %v1774 = vsel %vm1766, 1, 0
      %v1775 = vsel %vm1767, 1, 0
      %vm1776 = vcmp.eq.s32.totalorder %v1768, 1
      %vm1777 = vcmp.eq.s32.totalorder %v1769, 1
      %vm1778 = vcmp.eq.s32.totalorder %v1770, 1
      %vm1779 = vcmp.eq.s32.totalorder %v1771, 1
      %vm1780 = vcmp.eq.s32.totalorder %v1772, 1
      %vm1781 = vcmp.eq.s32.totalorder %v1773, 1
      %vm1782 = vcmp.eq.s32.totalorder %v1774, 1
      %vm1783 = vcmp.eq.s32.totalorder %v1775, 1
      %v1784 = vsel %vm1776, %v1758, 0.0
      %v1785 = vsel %vm1777, %v1759, 0.0
      %v1786 = vsel %vm1778, %v1752, 0.0
      %v1787 = vsel %vm1779, %v1753, 0.0
      %v1788 = vsel %vm1780, %v1754, 0.0
      %v1789 = vsel %vm1781, %v1755, 0.0
      %v1790 = vsel %vm1782, %v1756, 0.0
      %v1791 = vsel %vm1783, %v1757, 0.0
      %v1792 = vadd.f32 %v1752, %v1784
      %v1793 = vadd.f32 %v1753, %v1785
      %v1794 = vadd.f32 %v1754, %v1786
      %v1795 = vadd.f32 %v1755, %v1787
      %v1796 = vadd.f32 %v1756, %v1788
      %v1797 = vadd.f32 %v1757, %v1789
      %v1798 = vadd.f32 %v1758, %v1790
      %v1799 = vadd.f32 %v1759, %v1791
      %vm1800 = vcmp.ge.s32.totalorder %v665, 32
      %vm1801 = vcmp.ge.s32.totalorder %v666, 32
      %vm1802 = vcmp.ge.s32.totalorder %v667, 32
      %vm1803 = vcmp.ge.s32.totalorder %v668, 32
      %vm1804 = vcmp.ge.s32.totalorder %v669, 32
      %vm1805 = vcmp.ge.s32.totalorder %v670, 32
      %vm1806 = vcmp.ge.s32.totalorder %v671, 32
      %vm1807 = vcmp.ge.s32.totalorder %v672, 32
      %v1808 = vsel %vm1800, 1, 0
      %v1809 = vsel %vm1801, 1, 0
      %v1810 = vsel %vm1802, 1, 0
      %v1811 = vsel %vm1803, 1, 0
      %v1812 = vsel %vm1804, 1, 0
      %v1813 = vsel %vm1805, 1, 0
      %v1814 = vsel %vm1806, 1, 0
      %v1815 = vsel %vm1807, 1, 0
      %vm1816 = vcmp.eq.s32.totalorder %v1808, 1
      %vm1817 = vcmp.eq.s32.totalorder %v1809, 1
      %vm1818 = vcmp.eq.s32.totalorder %v1810, 1
      %vm1819 = vcmp.eq.s32.totalorder %v1811, 1
      %vm1820 = vcmp.eq.s32.totalorder %v1812, 1
      %vm1821 = vcmp.eq.s32.totalorder %v1813, 1
      %vm1822 = vcmp.eq.s32.totalorder %v1814, 1
      %vm1823 = vcmp.eq.s32.totalorder %v1815, 1
      %v1824 = vsel %vm1816, %v1796, 0.0
      %v1825 = vsel %vm1817, %v1797, 0.0
      %v1826 = vsel %vm1818, %v1798, 0.0
      %v1827 = vsel %vm1819, %v1799, 0.0
      %v1828 = vsel %vm1820, %v1792, 0.0
      %v1829 = vsel %vm1821, %v1793, 0.0
      %v1830 = vsel %vm1822, %v1794, 0.0
      %v1831 = vsel %vm1823, %v1795, 0.0
      %v1832 = vadd.f32 %v1792, %v1824
      %v1833 = vadd.f32 %v1793, %v1825
      %v1834 = vadd.f32 %v1794, %v1826
      %v1835 = vadd.f32 %v1795, %v1827
      %v1836 = vadd.f32 %v1796, %v1828
      %v1837 = vadd.f32 %v1797, %v1829
      %v1838 = vadd.f32 %v1798, %v1830
      %v1839 = vadd.f32 %v1799, %v1831
      %vm1840 = vcmask 15360
      %v1841 = vsel %vm1840, %v1543, 0.0
      %v1842 = vsel %vm1840, %v1544, 0.0
      %v1843 = vadd.f32 %v1841, %v1842
      %v1844 = vsel %vm1840, %v1545, 0.0
      %v1845 = vadd.f32 %v1843, %v1844
      %v1846 = vsel %vm1840, %v1546, 0.0
      %v1847 = vadd.f32 %v1845, %v1846
      %v1848 = vsel %vm1840, %v1547, 0.0
      %v1849 = vadd.f32 %v1847, %v1848
      %v1850 = vsel %vm1840, %v1548, 0.0
      %v1851 = vadd.f32 %v1849, %v1850
      %v1852 = vsel %vm1840, %v1549, 0.0
      %v1853 = vadd.f32 %v1851, %v1852
      %v1854 = vsel %vm1840, %v1550, 0.0
      %v1855 = vadd.f32 %v1853, %v1854
      %v1856 = vrot.slane %v1855, 4
      %v1857 = vadd.f32 %v1855, %v1856
      %v1858 = vrot.slane %v1857, 2
      %v1859 = vadd.f32 %v1857, %v1858
      %v1860 = vrot.slane %v1859, 1
      %v1861 = vadd.f32 %v1859, %v1860
      %v1862 = vsub.f32 %v1861, %v1832
      %v1863 = vsub.f32 %v1861, %v1833
      %v1864 = vsub.f32 %v1861, %v1834
      %v1865 = vsub.f32 %v1861, %v1835
      %v1866 = vsub.f32 %v1861, %v1836
      %v1867 = vsub.f32 %v1861, %v1837
      %v1868 = vsub.f32 %v1861, %v1838
      %v1869 = vsub.f32 %v1861, %v1839
      %v1870 = vadd.f32 %v1862, %v1543
      %v1871 = vadd.f32 %v1863, %v1544
      %v1872 = vadd.f32 %v1864, %v1545
      %v1873 = vadd.f32 %v1865, %v1546
      %v1874 = vadd.f32 %v1866, %v1547
      %v1875 = vadd.f32 %v1867, %v1548
      %v1876 = vadd.f32 %v1868, %v1549
      %v1877 = vadd.f32 %v1869, %v1550
      %v1878 = vlaneseq
      %v1879 = vand.u32 %v1878, 127
      %vm1880 = vcmp.le.s32.totalorder %v665, %v1879
      %vm1881 = vcmp.le.s32.totalorder %v666, %v1879
      %vm1882 = vcmp.le.s32.totalorder %v667, %v1879
      %vm1883 = vcmp.le.s32.totalorder %v668, %v1879
      %vm1884 = vcmp.le.s32.totalorder %v669, %v1879
      %vm1885 = vcmp.le.s32.totalorder %v670, %v1879
      %vm1886 = vcmp.le.s32.totalorder %v671, %v1879
      %vm1887 = vcmp.le.s32.totalorder %v672, %v1879
      %v1888 = vpack.c.bf16 %v1375, %v1373
      %v1889 = vpack.c.bf16 %v1379, %v1377
      %v1890 = vpack.c.bf16 %v1383, %v1381
      %v1891 = vpack.c.bf16 %v1387, %v1385
      %1896 = vrot.lane.b32.xlu0 %v1888, 112
      %v1897 = vpop.permute.xlu0 %1896
      %1898 = vrot.lane.b32.xlu0 %v1889, 112
      %v1899 = vpop.permute.xlu0 %1898
      %1900 = vrot.lane.b32.xlu0 %v1890, 112
      %v1901 = vpop.permute.xlu0 %1900
      %1902 = vrot.lane.b32.xlu0 %v1891, 112
      %v1903 = vpop.permute.xlu0 %1902
      %vm1904 = vcmask 130048
      %v1906 = vsel %vm1904, %v1897, 0
      %v1909 = vsel %vm1904, %v1899, 0
      %v1912 = vsel %vm1904, %v1901, 0
      %v1915 = vsel %vm1904, %v1903, 0
      %v1918 = vsel %vm1904, %v1888, 0
      %v1921 = vsel %vm1904, %v1889, 0
      %v1924 = vsel %vm1904, %v1890, 0
      %v1927 = vsel %vm1904, %v1891, 0
      %1929 = vmatpush.bf16.xpose.msra.mxu0 0
      %1930 = vmatpush.bf16.xpose.msra.mxu0 0
      %1931 = vmatpush.bf16.xpose.msra.mxu0 0
      %1932 = vmatpush.bf16.xpose.msra.mxu0 0
      %1933 = vmatpush.bf16.xpose.msra.mxu0 %v1927
      %1934 = vmatpush.bf16.xpose.msra.mxu0 %v1924
      %1935 = vmatpush.bf16.xpose.msra.mxu0 %v1921
      %1936 = vmatpush.bf16.xpose.msra.mxu0 %v1918
      %1937 = vmatmul.bf16.gmra.mxu0 %v1906
      %v1938 = vpop.f32.mrf.mxu0
      %v1939 = vadd.f32 0.0, %v1938
      %v1940 = vpop.f32.mrf.mxu0
      %v1941 = vadd.f32 0.0, %v1940
      %1942 = vmatmul.bf16.gmra.mxu0 %v1909
      %v1943 = vpop.f32.mrf.mxu0
      %v1944 = vadd.f32 0.0, %v1943
      %v1945 = vpop.f32.mrf.mxu0
      %v1946 = vadd.f32 0.0, %v1945
      %1947 = vmatmul.bf16.gmra.mxu0 %v1912
      %v1948 = vpop.f32.mrf.mxu0
      %v1949 = vadd.f32 0.0, %v1948
      %v1950 = vpop.f32.mrf.mxu0
      %v1951 = vadd.f32 0.0, %v1950
      %1952 = vmatmul.bf16.gmra.mxu0 %v1915
      %v1953 = vpop.f32.mrf.mxu0
      %v1954 = vadd.f32 0.0, %v1953
      %v1955 = vpop.f32.mrf.mxu0
      %v1956 = vadd.f32 0.0, %v1955
      %1957 = vdwg.mxu0
      %v1958 = vsel %vm1880, %v1939, 0.0
      %v1959 = vsel %vm1881, %v1941, 0.0
      %v1960 = vsel %vm1882, %v1944, 0.0
      %v1961 = vsel %vm1883, %v1946, 0.0
      %v1962 = vsel %vm1884, %v1949, 0.0
      %v1963 = vsel %vm1885, %v1951, 0.0
      %v1964 = vsel %vm1886, %v1954, 0.0
      %v1965 = vsel %vm1887, %v1956, 0.0
      %v1966 = vpack.c.bf16 %v1959, %v1958
      %v1967 = vpack.c.bf16 %v1961, %v1960
      %v1968 = vpack.c.bf16 %v1963, %v1962
      %v1969 = vpack.c.bf16 %v1965, %v1964
      %v1970 = vperm.slane %v1421, 0
      %v1971 = vmul.f32 %v1970, %v1870
      %v1972 = vmul.f32 %v1970, %v1871
      %v1973 = vmul.f32 %v1970, %v1872
      %v1974 = vmul.f32 %v1970, %v1873
      %v1975 = vmul.f32 %v1970, %v1874
      %v1976 = vmul.f32 %v1970, %v1875
      %v1977 = vmul.f32 %v1970, %v1876
      %v1978 = vmul.f32 %v1970, %v1877
      %v1979 = vmul.f32 %v1971, 1.442695
      %v1980 = vpow.pop %v1979
      %v1981 = vmul.f32 %v1972, 1.442695
      %v1982 = vpow.pop %v1981
      %v1983 = vmul.f32 %v1973, 1.442695
      %v1984 = vpow.pop %v1983
      %v1985 = vmul.f32 %v1974, 1.442695
      %v1986 = vpow.pop %v1985
      %v1987 = vmul.f32 %v1975, 1.442695
      %v1988 = vpow.pop %v1987
      %v1989 = vmul.f32 %v1976, 1.442695
      %v1990 = vpow.pop %v1989
      %v1991 = vmul.f32 %v1977, 1.442695
      %v1992 = vpow.pop %v1991
      %v1993 = vmul.f32 %v1978, 1.442695
      %v1994 = vpow.pop %v1993
      %v1995 = vsub.f32 0.0, %v1421
      %v1996 = vperm.slane %v1995, 0
      %v1997 = vmul.f32 %v1996, %v1870
      %v1998 = vmul.f32 %v1996, %v1871
      %v1999 = vmul.f32 %v1996, %v1872
      %v2000 = vmul.f32 %v1996, %v1873
      %v2001 = vmul.f32 %v1996, %v1874
      %v2002 = vmul.f32 %v1996, %v1875
      %v2003 = vmul.f32 %v1996, %v1876
      %v2004 = vmul.f32 %v1996, %v1877
      %v2005 = vmul.f32 %v1997, 1.442695
      %v2006 = vpow.pop %v2005
      %v2007 = vmul.f32 %v1998, 1.442695
      %v2008 = vpow.pop %v2007
      %v2009 = vmul.f32 %v1999, 1.442695
      %v2010 = vpow.pop %v2009
      %v2011 = vmul.f32 %v2000, 1.442695
      %v2012 = vpow.pop %v2011
      %v2013 = vmul.f32 %v2001, 1.442695
      %v2014 = vpow.pop %v2013
      %v2015 = vmul.f32 %v2002, 1.442695
      %v2016 = vpow.pop %v2015
      %v2017 = vmul.f32 %v2003, 1.442695
      %v2018 = vpow.pop %v2017
      %v2019 = vmul.f32 %v2004, 1.442695
      %v2020 = vpow.pop %v2019
      %v2021 = vmul.f32 %v1421, %v1861
      %v2022 = vmul.f32 %v2021, 1.442695
      %v2023 = vpow.pop %v2022
      %v2024 = vmul.f32 %v2006, %v1543
      %v2025 = vmul.f32 %v2008, %v1544
      %v2026 = vmul.f32 %v2010, %v1545
      %v2027 = vmul.f32 %v2012, %v1546
      %v2028 = vmul.f32 %v2014, %v1547
      %v2029 = vmul.f32 %v2016, %v1548
      %v2030 = vmul.f32 %v2018, %v1549
      %v2031 = vmul.f32 %v2020, %v1550
      %2033 = vset.pattern.permute.xlu0 0
      %2034 = vperm.xlu0 %2033, %v2024
      %v2035 = vpop.permute.xlu0 %2034
      %2038 = vset.pattern.permute.xlu0 0
      %2039 = vperm.xlu0 %2038, %v2025
      %v2040 = vpop.permute.xlu0 %2039
      %2043 = vset.pattern.permute.xlu0 0
      %2044 = vperm.xlu0 %2043, %v2026
      %v2045 = vpop.permute.xlu0 %2044
      %2048 = vset.pattern.permute.xlu0 0
      %2049 = vperm.xlu0 %2048, %v2027
      %v2050 = vpop.permute.xlu0 %2049
      %2053 = vset.pattern.permute.xlu0 0
      %2054 = vperm.xlu0 %2053, %v2028
      %v2055 = vpop.permute.xlu0 %2054
      %2058 = vset.pattern.permute.xlu0 0
      %2059 = vperm.xlu0 %2058, %v2029
      %v2060 = vpop.permute.xlu0 %2059
      %2063 = vset.pattern.permute.xlu0 0
      %2064 = vperm.xlu0 %2063, %v2030
      %v2065 = vpop.permute.xlu0 %2064
      %2068 = vset.pattern.permute.xlu0 0
      %2069 = vperm.xlu0 %2068, %v2031
      %v2070 = vpop.permute.xlu0 %2069
      %v2072 = vmul.f32 %v2035, %v1372
      %v2073 = vmul.f32 %v2040, %v1374
      %v2074 = vmul.f32 %v2045, %v1376
      %v2075 = vmul.f32 %v2050, %v1378
      %v2076 = vmul.f32 %v2055, %v1380
      %v2077 = vmul.f32 %v2060, %v1382
      %v2078 = vmul.f32 %v2065, %v1384
      %v2079 = vmul.f32 %v2070, %v1386
      %v2080 = vld [vmem:[#allocation2] sm:$0xff]
      %v2081 = vld [vmem:[#allocation2 + $0x8] sm:$0xff]
      %v2082 = vpack.c.bf16 %v2073, %v2072
      %v2083 = vpack.c.bf16 %v2075, %v2074
      %v2084 = vpack.c.bf16 %v2077, %v2076
      %v2085 = vpack.c.bf16 %v2079, %v2078
      %v2086 = vpack.c.bf16 %v2081, %v2080
      %2087 = vmatpush.bf16.msra.mxu0 0
      %2088 = vmatpush.bf16.msra.mxu0 0
      %2089 = vmatpush.bf16.msra.mxu0 0
      %2090 = vmatpush.bf16.msra.mxu0 0
      %2091 = vmatpush.bf16.msra.mxu0 0
      %2092 = vmatpush.bf16.msra.mxu0 0
      %2093 = vmatpush.bf16.msra.mxu0 0
      %2094 = vmatpush.bf16.msra.mxu0 %v2086
      %2095 = vmatmul.bf16.gmra.mxu0 %v1906
      %v2096 = vpop.f32.mrf.mxu0
      %v2097 = vadd.f32 0.0, %v2096
      %v2098 = vpop.f32.mrf.mxu0
      %v2099 = vadd.f32 0.0, %v2098
      %2100 = vmatmul.bf16.gmra.mxu0 %v1909
      %v2101 = vpop.f32.mrf.mxu0
      %v2102 = vadd.f32 0.0, %v2101
      %v2103 = vpop.f32.mrf.mxu0
      %v2104 = vadd.f32 0.0, %v2103
      %2105 = vmatmul.bf16.gmra.mxu0 %v1912
      %v2106 = vpop.f32.mrf.mxu0
      %v2107 = vadd.f32 0.0, %v2106
      %v2108 = vpop.f32.mrf.mxu0
      %v2109 = vadd.f32 0.0, %v2108
      %2110 = vmatmul.bf16.gmra.mxu0 %v1915
      %v2111 = vpop.f32.mrf.mxu0
      %v2112 = vadd.f32 0.0, %v2111
      %v2113 = vpop.f32.mrf.mxu0
      %v2114 = vadd.f32 0.0, %v2113
      %2115 = vdwg.mxu0
      %v2117 = vsel %vm535, %v1966, 0
      %v2120 = vsel %vm535, %v1967, 0
      %v2123 = vsel %vm535, %v1968, 0
      %v2126 = vsel %vm535, %v1969, 0
      %2128 = vmatpush.bf16.msra.mxu0 0
      %2129 = vmatpush.bf16.msra.mxu0 0
      %2130 = vmatpush.bf16.msra.mxu0 0
      %2131 = vmatpush.bf16.msra.mxu0 0
      %2132 = vmatpush.bf16.msra.mxu0 %v2085
      %2133 = vmatpush.bf16.msra.mxu0 %v2084
      %2134 = vmatpush.bf16.msra.mxu0 %v2083
      %2135 = vmatpush.bf16.msra.mxu0 %v2082
      %2136 = vmatmul.bf16.gmra.mxu0 %v2117
      %v2137 = vpop.f32.mrf.mxu0
      %v2138 = vadd.f32 %v2097, %v2137
      %v2139 = vpop.f32.mrf.mxu0
      %v2140 = vadd.f32 %v2099, %v2139
      %2141 = vmatmul.bf16.gmra.mxu0 %v2120
      %v2142 = vpop.f32.mrf.mxu0
      %v2143 = vadd.f32 %v2102, %v2142
      %v2144 = vpop.f32.mrf.mxu0
      %v2145 = vadd.f32 %v2104, %v2144
      %2146 = vmatmul.bf16.gmra.mxu0 %v2123
      %v2147 = vpop.f32.mrf.mxu0
      %v2148 = vadd.f32 %v2107, %v2147
      %v2149 = vpop.f32.mrf.mxu0
      %v2150 = vadd.f32 %v2109, %v2149
      %2151 = vmatmul.bf16.gmra.mxu0 %v2126
      %v2152 = vpop.f32.mrf.mxu0
      %v2153 = vadd.f32 %v2112, %v2152
      %v2154 = vpop.f32.mrf.mxu0
      %v2155 = vadd.f32 %v2114, %v2154
      %2156 = vdwg.mxu0
      %2158 = vset.pattern.permute.xlu0 0
      %2159 = vperm.xlu0 %2158, %v1980
      %v2160 = vpop.permute.xlu0 %2159
      %2163 = vset.pattern.permute.xlu0 0
      %2164 = vperm.xlu0 %2163, %v1982
      %v2165 = vpop.permute.xlu0 %2164
      %2168 = vset.pattern.permute.xlu0 0
      %2169 = vperm.xlu0 %2168, %v1984
      %v2170 = vpop.permute.xlu0 %2169
      %2173 = vset.pattern.permute.xlu0 0
      %2174 = vperm.xlu0 %2173, %v1986
      %v2175 = vpop.permute.xlu0 %2174
      %2178 = vset.pattern.permute.xlu0 0
      %2179 = vperm.xlu0 %2178, %v1988
      %v2180 = vpop.permute.xlu0 %2179
      %2183 = vset.pattern.permute.xlu0 0
      %2184 = vperm.xlu0 %2183, %v1990
      %v2185 = vpop.permute.xlu0 %2184
      %2188 = vset.pattern.permute.xlu0 0
      %2189 = vperm.xlu0 %2188, %v1992
      %v2190 = vpop.permute.xlu0 %2189
      %2193 = vset.pattern.permute.xlu0 0
      %2194 = vperm.xlu0 %2193, %v1994
      %v2195 = vpop.permute.xlu0 %2194
      %v2197 = vmul.f32 %v2160, %v2138
      %v2198 = vmul.f32 %v2165, %v2140
      %v2199 = vmul.f32 %v2170, %v2143
      %v2200 = vmul.f32 %v2175, %v2145
      %v2201 = vmul.f32 %v2180, %v2148
      %v2202 = vmul.f32 %v2185, %v2150
      %v2203 = vmul.f32 %v2190, %v2153
      %v2204 = vmul.f32 %v2195, %v2155
      %v2206 = vrot.slane %v1421, 1
      %s2207 = vtos %v2206
      %v2208 = vstv %s2207
      %v2210 = vmul.f32 %v2208, %v1372
      %v2211 = vmul.f32 %v2208, %v1374
      %v2212 = vmul.f32 %v2208, %v1376
      %v2213 = vmul.f32 %v2208, %v1378
      %v2214 = vmul.f32 %v2208, %v1380
      %v2215 = vmul.f32 %v2208, %v1382
      %v2216 = vmul.f32 %v2208, %v1384
      %v2217 = vmul.f32 %v2208, %v1386
      %v2218 = vadd.f32 %v2197, %v2210
      %v2219 = vadd.f32 %v2198, %v2211
      %v2220 = vadd.f32 %v2199, %v2212
      %v2221 = vadd.f32 %v2200, %v2213
      %v2222 = vadd.f32 %v2201, %v2214
      %v2223 = vadd.f32 %v2202, %v2215
      %v2224 = vadd.f32 %v2203, %v2216
      %v2225 = vadd.f32 %v2204, %v2217
      %2226 = vxpose.xlu0.c.b16.start [1/8] %v1888, 128
      %2227 = vxpose.xlu0.c.b16.cont [2/8] %v1889, 128
      %2228 = vxpose.xlu0.c.b16.cont [3/8] %v1890, 128
      %2229 = vxpose.xlu0.c.b16.cont [4/8] %v1891, 128
      %2230 = vxpose.xlu0.c.b16.cont [5/8] 0, 128
      %2231 = vxpose.xlu0.c.b16.cont [6/8] 0, 128
      %2232 = vxpose.xlu0.c.b16.cont [7/8] 0, 128
      %2233 = vxpose.xlu0.c.b16.end [8/8] 0, 128
      %v2234 = vpop.trf.xlu0
      %v2235 = vpop.trf.xlu0
      %v2236 = vpop.trf.xlu0
      %v2237 = vpop.trf.xlu0
      %v2238 = vpop.trf.xlu0
      %v2239 = vpop.trf.xlu0
      %v2240 = vpop.trf.xlu0
      %v2241 = vpop.trf.xlu0
      %v2243 = vsel %vm535, %v2234, 0
      %2245 = vmatpush.bf16.msra.mxu0 0
      %2246 = vmatpush.bf16.msra.mxu0 0
      %2247 = vmatpush.bf16.msra.mxu0 0
      %2248 = vmatpush.bf16.msra.mxu0 0
      %2249 = vmatpush.bf16.msra.mxu0 %v2085
      %2250 = vmatpush.bf16.msra.mxu0 %v2084
      %2251 = vmatpush.bf16.msra.mxu0 %v2083
      %2252 = vmatpush.bf16.msra.mxu0 %v2082
      %2253 = vmatmul.bf16.gmra.mxu0 %v2243
      %v2254 = vpop.f32.mrf.mxu0
      %v2255 = vadd.f32 0.0, %v2254
      %v2256 = vpop.f32.mrf.mxu0
      %v2257 = vadd.f32 0.0, %v2256
      %2258 = vdwg.mxu0
      %v2259 = vadd.f32 %v2080, %v2255
      %v2260 = vadd.f32 %v2081, %v2257
      %s2262 = vtos %v2023
      %v2263 = vstv %s2262
      %v2265 = vmul.f32 %v2263, %v2259
      %v2266 = vmul.f32 %v2263, %v2260
      %2267 = vst.msk [vmem:[#allocation2] sm:$0xff] %vm535, %v2265
      %2268 = vst.msk [vmem:[#allocation2 + $0x8] sm:$0xff] %vm535, %v2266
      %v2269 = vxor.u32 %v558, 2147483648
      %v2270 = vxor.u32 %v560, 2147483648
      %v2271 = vxor.u32 %v563, 2147483648
      %v2272 = vxor.u32 %v565, 2147483648
      %v2273 = vxor.u32 %v568, 2147483648
      %v2274 = vxor.u32 %v570, 2147483648
      %v2275 = vxor.u32 %v573, 2147483648
      %v2276 = vxor.u32 %v575, 2147483648
      %v2277 = vmul.f32 %v2269, 1.442695
      %v2278 = vpow.pop %v2277
      %v2279 = vmul.f32 %v2270, 1.442695
      %v2280 = vpow.pop %v2279
      %v2281 = vmul.f32 %v2271, 1.442695
      %v2282 = vpow.pop %v2281
      %v2283 = vmul.f32 %v2272, 1.442695
      %v2284 = vpow.pop %v2283
      %v2285 = vmul.f32 %v2273, 1.442695
      %v2286 = vpow.pop %v2285
      %v2287 = vmul.f32 %v2274, 1.442695
      %v2288 = vpow.pop %v2287
      %v2289 = vmul.f32 %v2275, 1.442695
      %v2290 = vpow.pop %v2289
      %v2291 = vmul.f32 %v2276, 1.442695
      %v2292 = vpow.pop %v2291
      %v2293 = vadd.f32 %v2278, 1.0
      %v2294 = vadd.f32 %v2280, 1.0
      %v2295 = vadd.f32 %v2282, 1.0
      %v2296 = vadd.f32 %v2284, 1.0
      %v2297 = vadd.f32 %v2286, 1.0
      %v2298 = vadd.f32 %v2288, 1.0
      %v2299 = vadd.f32 %v2290, 1.0
      %v2300 = vadd.f32 %v2292, 1.0
      %v2301 = vrcp.pop %v2293
      %v2302 = vmul.f32 %v2293, %v2301
      %v2303 = vsub.f32 1.0, %v2302
      %v2304 = vmul.f32 %v2301, %v2303
      %v2305 = vadd.f32 %v2301, %v2304
      %vm2306 = vweird.f32 %v2293
      %vm2307 = vweird.f32 %v2301
      %vm2308 = vmor %vm2306, %vm2307
      %v2309 = vsel %vm2308, %v2301, %v2305
      %v2310 = vand.u32 2147483647, %v2293
      %vm2311 = vcmp.eq.f32.partialorder %v2310, 8.507059e+37
      %v2312 = vand.u32 %v2293, 2147483648
      %v2313 = vor.u32 1.1754944e-38, %v2312
      %v2314 = vsel %vm2311, %v2313, %v2309
      %v2315 = vmul.f32 1.0, %v2314
      %v2316 = vrcp.pop %v2294
      %v2317 = vmul.f32 %v2294, %v2316
      %v2318 = vsub.f32 1.0, %v2317
      %v2319 = vmul.f32 %v2316, %v2318
      %v2320 = vadd.f32 %v2316, %v2319
      %vm2321 = vweird.f32 %v2294
      %vm2322 = vweird.f32 %v2316
      %vm2323 = vmor %vm2321, %vm2322
      %v2324 = vsel %vm2323, %v2316, %v2320
      %v2325 = vand.u32 2147483647, %v2294
      %vm2326 = vcmp.eq.f32.partialorder %v2325, 8.507059e+37
      %v2327 = vand.u32 %v2294, 2147483648
      %v2328 = vor.u32 1.1754944e-38, %v2327
      %v2329 = vsel %vm2326, %v2328, %v2324
      %v2330 = vmul.f32 1.0, %v2329
      %v2331 = vrcp.pop %v2295
      %v2332 = vmul.f32 %v2295, %v2331
      %v2333 = vsub.f32 1.0, %v2332
      %v2334 = vmul.f32 %v2331, %v2333
      %v2335 = vadd.f32 %v2331, %v2334
      %vm2336 = vweird.f32 %v2295
      %vm2337 = vweird.f32 %v2331
      %vm2338 = vmor %vm2336, %vm2337
      %v2339 = vsel %vm2338, %v2331, %v2335
      %v2340 = vand.u32 2147483647, %v2295
      %vm2341 = vcmp.eq.f32.partialorder %v2340, 8.507059e+37
      %v2342 = vand.u32 %v2295, 2147483648
      %v2343 = vor.u32 1.1754944e-38, %v2342
      %v2344 = vsel %vm2341, %v2343, %v2339
      %v2345 = vmul.f32 1.0, %v2344
      %v2346 = vrcp.pop %v2296
      %v2347 = vmul.f32 %v2296, %v2346
      %v2348 = vsub.f32 1.0, %v2347
      %v2349 = vmul.f32 %v2346, %v2348
      %v2350 = vadd.f32 %v2346, %v2349
      %vm2351 = vweird.f32 %v2296
      %vm2352 = vweird.f32 %v2346
      %vm2353 = vmor %vm2351, %vm2352
      %v2354 = vsel %vm2353, %v2346, %v2350
      %v2355 = vand.u32 2147483647, %v2296
      %vm2356 = vcmp.eq.f32.partialorder %v2355, 8.507059e+37
      %v2357 = vand.u32 %v2296, 2147483648
      %v2358 = vor.u32 1.1754944e-38, %v2357
      %v2359 = vsel %vm2356, %v2358, %v2354
      %v2360 = vmul.f32 1.0, %v2359
      %v2361 = vrcp.pop %v2297
      %v2362 = vmul.f32 %v2297, %v2361
      %v2363 = vsub.f32 1.0, %v2362
      %v2364 = vmul.f32 %v2361, %v2363
      %v2365 = vadd.f32 %v2361, %v2364
      %vm2366 = vweird.f32 %v2297
      %vm2367 = vweird.f32 %v2361
      %vm2368 = vmor %vm2366, %vm2367
      %v2369 = vsel %vm2368, %v2361, %v2365
      %v2370 = vand.u32 2147483647, %v2297
      %vm2371 = vcmp.eq.f32.partialorder %v2370, 8.507059e+37
      %v2372 = vand.u32 %v2297, 2147483648
      %v2373 = vor.u32 1.1754944e-38, %v2372
      %v2374 = vsel %vm2371, %v2373, %v2369
      %v2375 = vmul.f32 1.0, %v2374
      %v2376 = vrcp.pop %v2298
      %v2377 = vmul.f32 %v2298, %v2376
      %v2378 = vsub.f32 1.0, %v2377
      %v2379 = vmul.f32 %v2376, %v2378
      %v2380 = vadd.f32 %v2376, %v2379
      %vm2381 = vweird.f32 %v2298
      %vm2382 = vweird.f32 %v2376
      %vm2383 = vmor %vm2381, %vm2382
      %v2384 = vsel %vm2383, %v2376, %v2380
      %v2385 = vand.u32 2147483647, %v2298
      %vm2386 = vcmp.eq.f32.partialorder %v2385, 8.507059e+37
      %v2387 = vand.u32 %v2298, 2147483648
      %v2388 = vor.u32 1.1754944e-38, %v2387
      %v2389 = vsel %vm2386, %v2388, %v2384
      %v2390 = vmul.f32 1.0, %v2389
      %v2391 = vrcp.pop %v2299
      %v2392 = vmul.f32 %v2299, %v2391
      %v2393 = vsub.f32 1.0, %v2392
      %v2394 = vmul.f32 %v2391, %v2393
      %v2395 = vadd.f32 %v2391, %v2394
      %vm2396 = vweird.f32 %v2299
      %vm2397 = vweird.f32 %v2391
      %vm2398 = vmor %vm2396, %vm2397
      %v2399 = vsel %vm2398, %v2391, %v2395
      %v2400 = vand.u32 2147483647, %v2299
      %vm2401 = vcmp.eq.f32.partialorder %v2400, 8.507059e+37
      %v2402 = vand.u32 %v2299, 2147483648
      %v2403 = vor.u32 1.1754944e-38, %v2402
      %v2404 = vsel %vm2401, %v2403, %v2399
      %v2405 = vmul.f32 1.0, %v2404
      %v2406 = vrcp.pop %v2300
      %v2407 = vmul.f32 %v2300, %v2406
      %v2408 = vsub.f32 1.0, %v2407
      %v2409 = vmul.f32 %v2406, %v2408
      %v2410 = vadd.f32 %v2406, %v2409
      %vm2411 = vweird.f32 %v2300
      %vm2412 = vweird.f32 %v2406
      %vm2413 = vmor %vm2411, %vm2412
      %v2414 = vsel %vm2413, %v2406, %v2410
      %v2415 = vand.u32 2147483647, %v2300
      %vm2416 = vcmp.eq.f32.partialorder %v2415, 8.507059e+37
      %v2417 = vand.u32 %v2300, 2147483648
      %v2418 = vor.u32 1.1754944e-38, %v2417
      %v2419 = vsel %vm2416, %v2418, %v2414
      %v2420 = vmul.f32 1.0, %v2419
      %v2421 = vmul.f32 %v558, %v2315
      %v2422 = vmul.f32 %v560, %v2330
      %v2423 = vmul.f32 %v563, %v2345
      %v2424 = vmul.f32 %v565, %v2360
      %v2425 = vmul.f32 %v568, %v2375
      %v2426 = vmul.f32 %v570, %v2390
      %v2427 = vmul.f32 %v573, %v2405
      %v2428 = vmul.f32 %v575, %v2420
      %v2429 = vmul.f32 %v2218, %v2421
      %v2430 = vmul.f32 %v2219, %v2422
      %v2431 = vmul.f32 %v2220, %v2423
      %v2432 = vmul.f32 %v2221, %v2424
      %v2433 = vmul.f32 %v2222, %v2425
      %v2434 = vmul.f32 %v2223, %v2426
      %v2435 = vmul.f32 %v2224, %v2427
      %v2436 = vmul.f32 %v2225, %v2428
      %2437 = vset.pattern.permute.xlu0 1
      %2438 = vperm.xlu0 %2437, %v2024
      %v2439 = vpop.permute.xlu0 %2438
      %2441 = vset.pattern.permute.xlu0 1
      %2442 = vperm.xlu0 %2441, %v2025
      %v2443 = vpop.permute.xlu0 %2442
      %2445 = vset.pattern.permute.xlu0 1
      %2446 = vperm.xlu0 %2445, %v2026
      %v2447 = vpop.permute.xlu0 %2446
      %2449 = vset.pattern.permute.xlu0 1
      %2450 = vperm.xlu0 %2449, %v2027
      %v2451 = vpop.permute.xlu0 %2450
      %2453 = vset.pattern.permute.xlu0 1
      %2454 = vperm.xlu0 %2453, %v2028
      %v2455 = vpop.permute.xlu0 %2454
      %2457 = vset.pattern.permute.xlu0 1
      %2458 = vperm.xlu0 %2457, %v2029
      %v2459 = vpop.permute.xlu0 %2458
      %2461 = vset.pattern.permute.xlu0 1
      %2462 = vperm.xlu0 %2461, %v2030
      %v2463 = vpop.permute.xlu0 %2462
      %2465 = vset.pattern.permute.xlu0 1
      %2466 = vperm.xlu0 %2465, %v2031
      %v2467 = vpop.permute.xlu0 %2466
      %v2469 = vmul.f32 %v2439, %v1372
      %v2470 = vmul.f32 %v2443, %v1374
      %v2471 = vmul.f32 %v2447, %v1376
      %v2472 = vmul.f32 %v2451, %v1378
      %v2473 = vmul.f32 %v2455, %v1380
      %v2474 = vmul.f32 %v2459, %v1382
      %v2475 = vmul.f32 %v2463, %v1384
      %v2476 = vmul.f32 %v2467, %v1386
      %v2477 = vld [vmem:[#allocation2 + $0x10] sm:$0xff]
      %v2478 = vld [vmem:[#allocation2 + $0x18] sm:$0xff]
      %v2479 = vpack.c.bf16 %v2470, %v2469
      %v2480 = vpack.c.bf16 %v2472, %v2471
      %v2481 = vpack.c.bf16 %v2474, %v2473
      %v2482 = vpack.c.bf16 %v2476, %v2475
      %v2483 = vpack.c.bf16 %v2478, %v2477
      %2484 = vmatpush.bf16.msra.mxu0 0
      %2485 = vmatpush.bf16.msra.mxu0 0
      %2486 = vmatpush.bf16.msra.mxu0 0
      %2487 = vmatpush.bf16.msra.mxu0 0
      %2488 = vmatpush.bf16.msra.mxu0 0
      %2489 = vmatpush.bf16.msra.mxu0 0
      %2490 = vmatpush.bf16.msra.mxu0 0
      %2491 = vmatpush.bf16.msra.mxu0 %v2483
      %2492 = vmatmul.bf16.gmra.mxu0 %v1906
      %v2493 = vpop.f32.mrf.mxu0
      %v2494 = vadd.f32 0.0, %v2493
      %v2495 = vpop.f32.mrf.mxu0
      %v2496 = vadd.f32 0.0, %v2495
      %2497 = vmatmul.bf16.gmra.mxu0 %v1909
      %v2498 = vpop.f32.mrf.mxu0
      %v2499 = vadd.f32 0.0, %v2498
      %v2500 = vpop.f32.mrf.mxu0
      %v2501 = vadd.f32 0.0, %v2500
      %2502 = vmatmul.bf16.gmra.mxu0 %v1912
      %v2503 = vpop.f32.mrf.mxu0
      %v2504 = vadd.f32 0.0, %v2503
      %v2505 = vpop.f32.mrf.mxu0
      %v2506 = vadd.f32 0.0, %v2505
      %2507 = vmatmul.bf16.gmra.mxu0 %v1915
      %v2508 = vpop.f32.mrf.mxu0
      %v2509 = vadd.f32 0.0, %v2508
      %v2510 = vpop.f32.mrf.mxu0
      %v2511 = vadd.f32 0.0, %v2510
      %2512 = vdwg.mxu0
      %2517 = vrot.lane.b32.xlu0 %v2479, 64
      %v2518 = vpop.permute.xlu0 %2517
      %2519 = vrot.lane.b32.xlu0 %v2480, 64
      %v2520 = vpop.permute.xlu0 %2519
      %2521 = vrot.lane.b32.xlu0 %v2481, 64
      %v2522 = vpop.permute.xlu0 %2521
      %2523 = vrot.lane.b32.xlu0 %v2482, 64
      %v2524 = vpop.permute.xlu0 %2523
      %2529 = vmatpush.bf16.msra.mxu0 0
      %2530 = vmatpush.bf16.msra.mxu0 0
      %2531 = vmatpush.bf16.msra.mxu0 0
      %2532 = vmatpush.bf16.msra.mxu0 0
      %2533 = vmatpush.bf16.msra.mxu0 %v2524
      %2534 = vmatpush.bf16.msra.mxu0 %v2522
      %2535 = vmatpush.bf16.msra.mxu0 %v2520
      %2536 = vmatpush.bf16.msra.mxu0 %v2518
      %2537 = vmatmul.bf16.gmra.mxu0 %v2117
      %v2538 = vpop.f32.mrf.mxu0
      %v2539 = vadd.f32 %v2494, %v2538
      %v2540 = vpop.f32.mrf.mxu0
      %v2541 = vadd.f32 %v2496, %v2540
      %2542 = vmatmul.bf16.gmra.mxu0 %v2120
      %v2543 = vpop.f32.mrf.mxu0
      %v2544 = vadd.f32 %v2499, %v2543
      %v2545 = vpop.f32.mrf.mxu0
      %v2546 = vadd.f32 %v2501, %v2545
      %2547 = vmatmul.bf16.gmra.mxu0 %v2123
      %v2548 = vpop.f32.mrf.mxu0
      %v2549 = vadd.f32 %v2504, %v2548
      %v2550 = vpop.f32.mrf.mxu0
      %v2551 = vadd.f32 %v2506, %v2550
      %2552 = vmatmul.bf16.gmra.mxu0 %v2126
      %v2553 = vpop.f32.mrf.mxu0
      %v2554 = vadd.f32 %v2509, %v2553
      %v2555 = vpop.f32.mrf.mxu0
      %v2556 = vadd.f32 %v2511, %v2555
      %2557 = vdwg.mxu0
      %2558 = vset.pattern.permute.xlu0 1
      %2559 = vperm.xlu0 %2558, %v1980
      %v2560 = vpop.permute.xlu0 %2559
      %2562 = vset.pattern.permute.xlu0 1
      %2563 = vperm.xlu0 %2562, %v1982
      %v2564 = vpop.permute.xlu0 %2563
      %2566 = vset.pattern.permute.xlu0 1
      %2567 = vperm.xlu0 %2566, %v1984
      %v2568 = vpop.permute.xlu0 %2567
      %2570 = vset.pattern.permute.xlu0 1
      %2571 = vperm.xlu0 %2570, %v1986
      %v2572 = vpop.permute.xlu0 %2571
      %2574 = vset.pattern.permute.xlu0 1
      %2575 = vperm.xlu0 %2574, %v1988
      %v2576 = vpop.permute.xlu0 %2575
      %2578 = vset.pattern.permute.xlu0 1
      %2579 = vperm.xlu0 %2578, %v1990
      %v2580 = vpop.permute.xlu0 %2579
      %2582 = vset.pattern.permute.xlu0 1
      %2583 = vperm.xlu0 %2582, %v1992
      %v2584 = vpop.permute.xlu0 %2583
      %2586 = vset.pattern.permute.xlu0 1
      %2587 = vperm.xlu0 %2586, %v1994
      %v2588 = vpop.permute.xlu0 %2587
      %v2590 = vmul.f32 %v2560, %v2539
      %v2591 = vmul.f32 %v2564, %v2541
      %v2592 = vmul.f32 %v2568, %v2544
      %v2593 = vmul.f32 %v2572, %v2546
      %v2594 = vmul.f32 %v2576, %v2549
      %v2595 = vmul.f32 %v2580, %v2551
      %v2596 = vmul.f32 %v2584, %v2554
      %v2597 = vmul.f32 %v2588, %v2556
      %2598 = vrot.lane.b32.xlu0 %v2206, 127
      %v2599 = vpop.permute.xlu0 %2598
      %s2600 = vtos %v2599
      %v2601 = vstv %s2600
      %v2603 = vmul.f32 %v2601, %v1372
      %v2604 = vmul.f32 %v2601, %v1374
      %v2605 = vmul.f32 %v2601, %v1376
      %v2606 = vmul.f32 %v2601, %v1378
      %v2607 = vmul.f32 %v2601, %v1380
      %v2608 = vmul.f32 %v2601, %v1382
      %v2609 = vmul.f32 %v2601, %v1384
      %v2610 = vmul.f32 %v2601, %v1386
      %2619 = vrot.lane.b32.xlu0 %v2603, 64
      %v2620 = vpop.permute.xlu0 %2619
      %2621 = vrot.lane.b32.xlu0 %v2604, 64
      %v2622 = vpop.permute.xlu0 %2621
      %2623 = vrot.lane.b32.xlu0 %v2605, 64
      %v2624 = vpop.permute.xlu0 %2623
      %2625 = vrot.lane.b32.xlu0 %v2606, 64
      %v2626 = vpop.permute.xlu0 %2625
      %2627 = vrot.lane.b32.xlu0 %v2607, 64
      %v2628 = vpop.permute.xlu0 %2627
      %2629 = vrot.lane.b32.xlu0 %v2608, 64
      %v2630 = vpop.permute.xlu0 %2629
      %2631 = vrot.lane.b32.xlu0 %v2609, 64
      %v2632 = vpop.permute.xlu0 %2631
      %2633 = vrot.lane.b32.xlu0 %v2610, 64
      %v2634 = vpop.permute.xlu0 %2633
      %v2643 = vadd.f32 %v2590, %v2620
      %v2644 = vadd.f32 %v2591, %v2622
      %v2645 = vadd.f32 %v2592, %v2624
      %v2646 = vadd.f32 %v2593, %v2626
      %v2647 = vadd.f32 %v2594, %v2628
      %v2648 = vadd.f32 %v2595, %v2630
      %v2649 = vadd.f32 %v2596, %v2632
      %v2650 = vadd.f32 %v2597, %v2634
      %2651 = vmatpush.bf16.msra.mxu0 0
      %2652 = vmatpush.bf16.msra.mxu0 0
      %2653 = vmatpush.bf16.msra.mxu0 0
      %2654 = vmatpush.bf16.msra.mxu0 0
      %2655 = vmatpush.bf16.msra.mxu0 %v2524
      %2656 = vmatpush.bf16.msra.mxu0 %v2522
      %2657 = vmatpush.bf16.msra.mxu0 %v2520
      %2658 = vmatpush.bf16.msra.mxu0 %v2518
      %2659 = vmatmul.bf16.gmra.mxu0 %v2243
      %v2660 = vpop.f32.mrf.mxu0
      %v2661 = vadd.f32 0.0, %v2660
      %v2662 = vpop.f32.mrf.mxu0
      %v2663 = vadd.f32 0.0, %v2662
      %2664 = vdwg.mxu0
      %v2665 = vadd.f32 %v2477, %v2661
      %v2666 = vadd.f32 %v2478, %v2663
      %2667 = vrot.lane.b32.xlu0 %v2023, 127
      %v2668 = vpop.permute.xlu0 %2667
      %s2669 = vtos %v2668
      %v2670 = vstv %s2669
      %v2672 = vmul.f32 %v2670, %v2665
      %v2673 = vmul.f32 %v2670, %v2666
      %2674 = vst.msk [vmem:[#allocation2 + $0x10] sm:$0xff] %vm535, %v2672
      %2675 = vst.msk [vmem:[#allocation2 + $0x18] sm:$0xff] %vm535, %v2673
      %2684 = vrot.lane.b32.xlu0 %v2421, 64
      %v2685 = vpop.permute.xlu0 %2684
      %2686 = vrot.lane.b32.xlu0 %v2422, 64
      %v2687 = vpop.permute.xlu0 %2686
      %2688 = vrot.lane.b32.xlu0 %v2423, 64
      %v2689 = vpop.permute.xlu0 %2688
      %2690 = vrot.lane.b32.xlu0 %v2424, 64
      %v2691 = vpop.permute.xlu0 %2690
      %2692 = vrot.lane.b32.xlu0 %v2425, 64
      %v2693 = vpop.permute.xlu0 %2692
      %2694 = vrot.lane.b32.xlu0 %v2426, 64
      %v2695 = vpop.permute.xlu0 %2694
      %2696 = vrot.lane.b32.xlu0 %v2427, 64
      %v2697 = vpop.permute.xlu0 %2696
      %2698 = vrot.lane.b32.xlu0 %v2428, 64
      %v2699 = vpop.permute.xlu0 %2698
      %v2708 = vmul.f32 %v2643, %v2685
      %v2709 = vmul.f32 %v2644, %v2687
      %v2710 = vmul.f32 %v2645, %v2689
      %v2711 = vmul.f32 %v2646, %v2691
      %v2712 = vmul.f32 %v2647, %v2693
      %v2713 = vmul.f32 %v2648, %v2695
      %v2714 = vmul.f32 %v2649, %v2697
      %v2715 = vmul.f32 %v2650, %v2699
      %2724 = vrot.lane.b32.xlu0 %v2708, 64
      %v2725 = vpop.permute.xlu0 %2724
      %2726 = vrot.lane.b32.xlu0 %v2709, 64
      %v2727 = vpop.permute.xlu0 %2726
      %2728 = vrot.lane.b32.xlu0 %v2710, 64
      %v2729 = vpop.permute.xlu0 %2728
      %2730 = vrot.lane.b32.xlu0 %v2711, 64
      %v2731 = vpop.permute.xlu0 %2730
      %2732 = vrot.lane.b32.xlu0 %v2712, 64
      %v2733 = vpop.permute.xlu0 %2732
      %2734 = vrot.lane.b32.xlu0 %v2713, 64
      %v2735 = vpop.permute.xlu0 %2734
      %2736 = vrot.lane.b32.xlu0 %v2714, 64
      %v2737 = vpop.permute.xlu0 %2736
      %2738 = vrot.lane.b32.xlu0 %v2715, 64
      %v2739 = vpop.permute.xlu0 %2738
      %v2748 = vsel %vm535, %v2429, %v2725
      %v2749 = vsel %vm535, %v2430, %v2727
      %v2750 = vsel %vm535, %v2431, %v2729
      %v2751 = vsel %vm535, %v2432, %v2731
      %v2752 = vsel %vm535, %v2433, %v2733
      %v2753 = vsel %vm535, %v2434, %v2735
      %v2754 = vsel %vm535, %v2435, %v2737
      %v2755 = vsel %vm535, %v2436, %v2739
      %v2756 = vmul.f32 %v2748, %v2748
      %v2757 = vmul.f32 %v2749, %v2749
      %v2758 = vmul.f32 %v2750, %v2750
      %v2759 = vmul.f32 %v2751, %v2751
      %v2760 = vmul.f32 %v2752, %v2752
      %v2761 = vmul.f32 %v2753, %v2753
      %v2762 = vmul.f32 %v2754, %v2754
      %v2763 = vmul.f32 %v2755, %v2755
      %2764 = vadd.xlane.f32.xlu0 %v2756
      %v2765 = vpop.xlane.xlu0 %2764
      %2766 = vadd.xlane.f32.xlu0 %v2757
      %v2767 = vpop.xlane.xlu0 %2766
      %2768 = vadd.xlane.f32.xlu0 %v2758
      %v2769 = vpop.xlane.xlu0 %2768
      %2770 = vadd.xlane.f32.xlu0 %v2759
      %v2771 = vpop.xlane.xlu0 %2770
      %2772 = vadd.xlane.f32.xlu0 %v2760
      %v2773 = vpop.xlane.xlu0 %2772
      %2774 = vadd.xlane.f32.xlu0 %v2761
      %v2775 = vpop.xlane.xlu0 %2774
      %2776 = vadd.xlane.f32.xlu0 %v2762
      %v2777 = vpop.xlane.xlu0 %2776
      %2778 = vadd.xlane.f32.xlu0 %v2763
      %v2779 = vpop.xlane.xlu0 %2778
      %v2780 = vmul.f32 %v2765, 0.0078125
      %v2781 = vmul.f32 %v2767, 0.0078125
      %v2782 = vmul.f32 %v2769, 0.0078125
      %v2783 = vmul.f32 %v2771, 0.0078125
      %v2784 = vmul.f32 %v2773, 0.0078125
      %v2785 = vmul.f32 %v2775, 0.0078125
      %v2786 = vmul.f32 %v2777, 0.0078125
      %v2787 = vmul.f32 %v2779, 0.0078125
      %v2788 = vadd.f32 %v2780, 1e-05
      %v2789 = vadd.f32 %v2781, 1e-05
      %v2790 = vadd.f32 %v2782, 1e-05
      %v2791 = vadd.f32 %v2783, 1e-05
      %v2792 = vadd.f32 %v2784, 1e-05
      %v2793 = vadd.f32 %v2785, 1e-05
      %v2794 = vadd.f32 %v2786, 1e-05
      %v2795 = vadd.f32 %v2787, 1e-05
      %v2796 = vrsqrt.pop %v2788
      %v2797 = vmul.f32 %v2796, %v2788
      %v2798 = vmul.f32 %v2797, %v2796
      %v2799 = vmul.f32 0.5, %v2798
      %v2800 = vsub.f32 1.5, %v2799
      %v2801 = vmul.f32 %v2796, %v2800
      %vm2802 = vweird.f32 %v2788
      %vm2803 = vweird.f32 %v2796
      %vm2804 = vmor %vm2802, %vm2803
      %v2805 = vsel %vm2804, %v2796, %v2801
      %v2806 = vrsqrt.pop %v2789
      %v2807 = vmul.f32 %v2806, %v2789
      %v2808 = vmul.f32 %v2807, %v2806
      %v2809 = vmul.f32 0.5, %v2808
      %v2810 = vsub.f32 1.5, %v2809
      %v2811 = vmul.f32 %v2806, %v2810
      %vm2812 = vweird.f32 %v2789
      %vm2813 = vweird.f32 %v2806
      %vm2814 = vmor %vm2812, %vm2813
      %v2815 = vsel %vm2814, %v2806, %v2811
      %v2816 = vrsqrt.pop %v2790
      %v2817 = vmul.f32 %v2816, %v2790
      %v2818 = vmul.f32 %v2817, %v2816
      %v2819 = vmul.f32 0.5, %v2818
      %v2820 = vsub.f32 1.5, %v2819
      %v2821 = vmul.f32 %v2816, %v2820
      %vm2822 = vweird.f32 %v2790
      %vm2823 = vweird.f32 %v2816
      %vm2824 = vmor %vm2822, %vm2823
      %v2825 = vsel %vm2824, %v2816, %v2821
      %v2826 = vrsqrt.pop %v2791
      %v2827 = vmul.f32 %v2826, %v2791
      %v2828 = vmul.f32 %v2827, %v2826
      %v2829 = vmul.f32 0.5, %v2828
      %v2830 = vsub.f32 1.5, %v2829
      %v2831 = vmul.f32 %v2826, %v2830
      %vm2832 = vweird.f32 %v2791
      %vm2833 = vweird.f32 %v2826
      %vm2834 = vmor %vm2832, %vm2833
      %v2835 = vsel %vm2834, %v2826, %v2831
      %v2836 = vrsqrt.pop %v2792
      %v2837 = vmul.f32 %v2836, %v2792
      %v2838 = vmul.f32 %v2837, %v2836
      %v2839 = vmul.f32 0.5, %v2838
      %v2840 = vsub.f32 1.5, %v2839
      %v2841 = vmul.f32 %v2836, %v2840
      %vm2842 = vweird.f32 %v2792
      %vm2843 = vweird.f32 %v2836
      %vm2844 = vmor %vm2842, %vm2843
      %v2845 = vsel %vm2844, %v2836, %v2841
      %v2846 = vrsqrt.pop %v2793
      %v2847 = vmul.f32 %v2846, %v2793
      %v2848 = vmul.f32 %v2847, %v2846
      %v2849 = vmul.f32 0.5, %v2848
      %v2850 = vsub.f32 1.5, %v2849
      %v2851 = vmul.f32 %v2846, %v2850
      %vm2852 = vweird.f32 %v2793
      %vm2853 = vweird.f32 %v2846
      %vm2854 = vmor %vm2852, %vm2853
      %v2855 = vsel %vm2854, %v2846, %v2851
      %v2856 = vrsqrt.pop %v2794
      %v2857 = vmul.f32 %v2856, %v2794
      %v2858 = vmul.f32 %v2857, %v2856
      %v2859 = vmul.f32 0.5, %v2858
      %v2860 = vsub.f32 1.5, %v2859
      %v2861 = vmul.f32 %v2856, %v2860
      %vm2862 = vweird.f32 %v2794
      %vm2863 = vweird.f32 %v2856
      %vm2864 = vmor %vm2862, %vm2863
      %v2865 = vsel %vm2864, %v2856, %v2861
      %v2866 = vrsqrt.pop %v2795
      %v2867 = vmul.f32 %v2866, %v2795
      %v2868 = vmul.f32 %v2867, %v2866
      %v2869 = vmul.f32 0.5, %v2868
      %v2870 = vsub.f32 1.5, %v2869
      %v2871 = vmul.f32 %v2866, %v2870
      %vm2872 = vweird.f32 %v2795
      %vm2873 = vweird.f32 %v2866
      %vm2874 = vmor %vm2872, %vm2873
      %v2875 = vsel %vm2874, %v2866, %v2871
      %v2876 = vmul.f32 %v2748, %v2805
      %v2877 = vmul.f32 %v2749, %v2815
      %v2878 = vmul.f32 %v2750, %v2825
      %v2879 = vmul.f32 %v2751, %v2835
      %v2880 = vmul.f32 %v2752, %v2845
      %v2881 = vmul.f32 %v2753, %v2855
      %v2882 = vmul.f32 %v2754, %v2865
      %v2883 = vmul.f32 %v2755, %v2875
      %v2884 = vld [vmem:[%s7] sm:$0x1]
      %v2886 = vperm.slane %v2884, 0
      %v2888 = vmul.f32 %v2876, %v2886
      %v2889 = vmul.f32 %v2877, %v2886
      %v2890 = vmul.f32 %v2878, %v2886
      %v2891 = vmul.f32 %v2879, %v2886
      %v2892 = vmul.f32 %v2880, %v2886
      %v2893 = vmul.f32 %v2881, %v2886
      %v2894 = vmul.f32 %v2882, %v2886
      %v2895 = vmul.f32 %v2883, %v2886
      %v2896 = vpack.c.bf16 %v2889, %v2888
      %v2897 = vpack.c.bf16 %v2891, %v2890
      %v2898 = vpack.c.bf16 %v2893, %v2892
      %v2899 = vpack.c.bf16 %v2895, %v2894
      %v2900 = vld [vmem:[%s4] sm:$0xf]
      %v2901 = vld [vmem:[%s4 + $0x4] sm:$0xf]
      %v2902 = vld [vmem:[%s4 + $0x8] sm:$0xf]
      %v2903 = vld [vmem:[%s4 + $0xc] sm:$0xf]
      %v2904 = vld [vmem:[%s4 + $0x10] sm:$0xf]
      %v2905 = vld [vmem:[%s4 + $0x14] sm:$0xf]
      %v2906 = vld [vmem:[%s4 + $0x18] sm:$0xf]
      %v2907 = vld [vmem:[%s4 + $0x1c] sm:$0xf]
      %v2908 = vld [vmem:[%s4 + $0x20] sm:$0xf]
      %v2909 = vld [vmem:[%s4 + $0x24] sm:$0xf]
      %v2910 = vld [vmem:[%s4 + $0x28] sm:$0xf]
      %v2911 = vld [vmem:[%s4 + $0x2c] sm:$0xf]
      %v2912 = vld [vmem:[%s4 + $0x30] sm:$0xf]
      %v2913 = vld [vmem:[%s4 + $0x34] sm:$0xf]
      %v2914 = vld [vmem:[%s4 + $0x38] sm:$0xf]
      %v2915 = vld [vmem:[%s4 + $0x3c] sm:$0xf]
      %v2932 = vunpack.c.l.b16 %v2900
      %v2933 = vunpack.c.l.b16 %v2901
      %v2934 = vunpack.c.l.b16 %v2902
      %v2935 = vunpack.c.l.b16 %v2903
      %v2936 = vunpack.c.l.b16 %v2904
      %v2937 = vunpack.c.l.b16 %v2905
      %v2938 = vunpack.c.l.b16 %v2906
      %v2939 = vunpack.c.l.b16 %v2907
      %v2940 = vunpack.c.l.b16 %v2908
      %v2941 = vunpack.c.l.b16 %v2909
      %v2942 = vunpack.c.l.b16 %v2910
      %v2943 = vunpack.c.l.b16 %v2911
      %v2944 = vunpack.c.l.b16 %v2912
      %v2945 = vunpack.c.l.b16 %v2913
      %v2946 = vunpack.c.l.b16 %v2914
      %v2947 = vunpack.c.l.b16 %v2915
      %v2948 = vpack.c.b16 %v2933, %v2932
      %v2949 = vpack.c.b16 %v2935, %v2934
      %v2950 = vpack.c.b16 %v2937, %v2936
      %v2951 = vpack.c.b16 %v2939, %v2938
      %v2952 = vpack.c.b16 %v2941, %v2940
      %v2953 = vpack.c.b16 %v2943, %v2942
      %v2954 = vpack.c.b16 %v2945, %v2944
      %v2955 = vpack.c.b16 %v2947, %v2946
      %2964 = vmatpush.bf16.msra.mxu0 %v2955
      %2965 = vmatpush.bf16.msra.mxu0 %v2954
      %2966 = vmatpush.bf16.msra.mxu0 %v2953
      %2967 = vmatpush.bf16.msra.mxu0 %v2952
      %2968 = vmatpush.bf16.msra.mxu0 %v2951
      %2969 = vmatpush.bf16.msra.mxu0 %v2950
      %2970 = vmatpush.bf16.msra.mxu0 %v2949
      %2971 = vmatpush.bf16.msra.mxu0 %v2948
      %2972 = vmatmul.bf16.gmra.mxu0 %v2896
      %v2973 = vpop.f32.mrf.mxu0
      %v2974 = vadd.f32 0.0, %v2973
      %v2975 = vpop.f32.mrf.mxu0
      %v2976 = vadd.f32 0.0, %v2975
      %2977 = vmatmul.bf16.gmra.mxu0 %v2897
      %v2978 = vpop.f32.mrf.mxu0
      %v2979 = vadd.f32 0.0, %v2978
      %v2980 = vpop.f32.mrf.mxu0
      %v2981 = vadd.f32 0.0, %v2980
      %2982 = vmatmul.bf16.gmra.mxu0 %v2898
      %v2983 = vpop.f32.mrf.mxu0
      %v2984 = vadd.f32 0.0, %v2983
      %v2985 = vpop.f32.mrf.mxu0
      %v2986 = vadd.f32 0.0, %v2985
      %2987 = vmatmul.bf16.gmra.mxu0 %v2899
      %v2988 = vpop.f32.mrf.mxu0
      %v2989 = vadd.f32 0.0, %v2988
      %v2990 = vpop.f32.mrf.mxu0
      %v2991 = vadd.f32 0.0, %v2990
      %2992 = vdwg.mxu0
      %v2993 = vld [vmem:[%s385] sm:$0xff]
      %v2994 = vld [vmem:[%s385 + $0x8] sm:$0xff]
      %v2995 = vld [vmem:[%s385 + $0x10] sm:$0xff]
      %v2996 = vld [vmem:[%s385 + $0x18] sm:$0xff]
      %v2997 = vld [vmem:[%s385 + $0x20] sm:$0xff]
      %v2998 = vld [vmem:[%s385 + $0x28] sm:$0xff]
      %v2999 = vld [vmem:[%s385 + $0x30] sm:$0xff]
      %v3000 = vld [vmem:[%s385 + $0x38] sm:$0xff]
      %v3001 = vadd.f32 %v2993, %v2974
      %v3002 = vadd.f32 %v2994, %v2976
      %v3003 = vadd.f32 %v2995, %v2979
      %v3004 = vadd.f32 %v2996, %v2981
      %v3005 = vadd.f32 %v2997, %v2984
      %v3006 = vadd.f32 %v2998, %v2986
      %v3007 = vadd.f32 %v2999, %v2989
      %v3008 = vadd.f32 %v3000, %v2991
      %3009 = vst.msk [vmem:[%s397] sm:$0xff] %vm535, %v3001
      %3010 = vst.msk [vmem:[%s397 + $0x8] sm:$0xff] %vm535, %v3002
      %3011 = vst.msk [vmem:[%s397 + $0x10] sm:$0xff] %vm535, %v3003
      %3012 = vst.msk [vmem:[%s397 + $0x18] sm:$0xff] %vm535, %v3004
      %3013 = vst.msk [vmem:[%s397 + $0x20] sm:$0xff] %vm535, %v3005
      %3014 = vst.msk [vmem:[%s397 + $0x28] sm:$0xff] %vm535, %v3006
      %3015 = vst.msk [vmem:[%s397 + $0x30] sm:$0xff] %vm535, %v3007
      %3016 = vst.msk [vmem:[%s397 + $0x38] sm:$0xff] %vm535, %v3008
      %s3017 = ssub.s32 1, %s24
      %s3018 = smul.u32 8, %s3017
      %p3019 = scmp.lt.s32.totalorder %s23, 1
      %s3020 = scalar_select %p3019, %s23, 1
      %p3021 = scmp.lt.s32.totalorder %s3018, 15
      %s3022 = scalar_select %p3021, %s3018, 15
      %s3023 = smul.addr %s3020, 16
      %s3024 = sadd.s32 %s3022, %s3023
      %s3025 = smul.addr %s3024, 8
      %s3026 = scalar_lea.vmem %s8, %s3025
      // Predicated region
      $region57: #{_lambda_.6} parent=51 // pred_check
        %p3027 = pneg %p239
      $region58: #{_lambda_.6} parent=51 // pred_check_branch
        %3029 = sbr.rel (%p3027) target = $region60
      $region59: #{_lambda_.6} parent=51 // pred_region
        %s3030 = ssub.s32 1, %s24
        %s3031 = smul.u32 8, %s3030
      $region60: #{_lambda_.6} parent=51 // pred_fallthru
        _
    $region52: #{_lambda_.6} parent=5 // pred_fallthru
      _
    %p3032 = scmp.le.s32.totalorder 2, %s14
    // Predicated region
    $region61: #{_lambda_.6} parent=5 // pred_check
      %p3033 = pneg %p3032
    $region62: #{_lambda_.6} parent=5 // pred_check_branch
      %3035 = sbr.rel (%p3033) target = $region64
    $region63: #{_lambda_.6} parent=5 // pred_region
      %s3036 = ssub.s32 %s14, 2
      // Predicated region
      $region65: #{_lambda_.6} parent=63 // pred_check
        %p3037 = pneg %p245
      $region66: #{_lambda_.6} parent=63 // pred_check_branch
        %3039 = sbr.rel (%p3037) target = $region68
      $region67: #{_lambda_.6} parent=63 // pred_region
        %s3040 = ssub.s32 1, %s26
        %s3041 = smul.u32 8, %s3040
        %p3042 = scmp.lt.s32.totalorder %s25, 1
        %s3043 = scalar_select %p3042, %s25, 1
        %p3044 = scmp.lt.s32.totalorder %s3041, 15
        %s3045 = scalar_select %p3044, %s3041, 15
        %s3046 = smul.addr %s3043, 16
        %s3047 = sadd.s32 %s3045, %s3046
        %s3048 = smul.addr %s3047, 8
        %s3049 = scalar_lea.vmem %s8, %s3048
      $region68: #{_lambda_.6} parent=63 // pred_fallthru
        _
    $region64: #{_lambda_.6} parent=5 // pred_fallthru
      _
  $region6: #{_lambda_.6} parent=0 // loop_footer
    %s18 = sadd.s32 1, %s14
  $region7: #{_lambda_.6} parent=0 // loop_footer_branch
    %13 = sbr.rel target = $region3
  $region8: #{_lambda_.6} parent=0 // loop_exit
    _

</llo_original>
